<compile_context>
chip_gen: v7x
topology: tpu7x:2x2x1
jax: 0.10.0
libtpu: 0.0.40
codegen_flags: <defaults>
</compile_context>

<pallas_src>
import functools

import jax
import jax.numpy as jnp
from jax.experimental import pallas as pl
from jax.experimental.pallas import tpu as pltpu


def _round_up(v, m):
    return ((v + m - 1) // m) * m


# ----------------------------------------------------------------------------
# Fused decoder kernel (all layers in one pallas_call)
# ----------------------------------------------------------------------------
def _make_decoder_kernel(*, layer_cfg, N, H, W, K, q, WS, MARG, eps):
    """layer_cfg: tuple of (cin, cin_pad, cout) per layer (static Python ints)."""
    Hp = H + 2 * q
    BLK = Hp * WS                 # flat positions per image (multiple of 128)
    LC = N * BLK                  # core flat width (all images)
    LB = LC + 2 * MARG            # + margins so every tap slice is in-bounds
    KK = K * K
    inv_count = 1.0 / float(N * H * W)
    n_layers = len(layer_cfg)

    def kernel(*refs):
        x_ref = refs[0]                               # (N, Cin0, H*W)
        mask_ref = refs[1]                            # (1, LC) f32 {0,1}
        w_refs = refs[2:2 + 2 * n_layers:2]           # (cout, KK*cin_pad)
        p_refs = refs[3:2 + 2 * n_layers:2]           # (cout, 3): bias|gamma|beta
        out_ref = refs[2 + 2 * n_layers]              # (N, Cout_last, H*W)
        stage = refs[3 + 2 * n_layers]                # VMEM (cin_pad0, LB) scratch

        mask = mask_ref[...]                          # (1, LC)

        # ---- stage the input into the flat zero-padded grid (channels x positions) ----
        cin0 = layer_cfg[0][0]
        stage[...] = jnp.zeros_like(stage)            # zeros: pads, margins, padded channels
        xv = x_ref[...]                               # (N, Cin0, H*W)
        for n in range(N):
            for h in range(H):
                dst = MARG + n * BLK + (q + h) * WS + q
                stage[0:cin0, dst:dst + W] = xv[n, :, h * W:(h + 1) * W]
        xbig = stage[...]                             # (cin_pad0, LB)

        # ---- layers: im2col -> single MXU matmul -> bias + BN(batch stats) + ReLU ----
        for li, (_cin, cpad, cout) in enumerate(layer_cfg):
            # K*K shifted copies stacked along the 8-aligned sublane axis (static offsets).
            taps = []
            for t in range(KK):
                kh, kw = t // K, t % K
                s = MARG + (kh - q) * WS + (kw - q)
                taps.append(xbig[:, s:s + LC])                       # (cpad, LC)
            xstack = jnp.concatenate(taps, axis=0)                   # (KK*cpad, LC)

            z = jnp.dot(w_refs[li][...], xstack,
                        preferred_element_type=jnp.float32)          # (cout, LC)

            p = p_refs[li]
            bias, gamma, beta = p[:, 0:1], p[:, 1:2], p[:, 2:3]      # (cout, 1)
            z = z + bias
            # masked BatchNorm2d: training-mode batch statistics, biased variance
            mean = jnp.sum(z * mask, axis=-1, keepdims=True) * inv_count
            d = (z - mean) * mask
            var = jnp.sum(d * d, axis=-1, keepdims=True) * inv_count
            inv_std = jax.lax.rsqrt(var + eps)
            y = jnp.maximum(d * inv_std * gamma + beta, 0.0) * mask  # (cout, LC)

            if li + 1 < n_layers:
                zpad = jnp.zeros((cout, MARG), jnp.float32)
                xbig = jnp.concatenate([zpad, y, zpad], axis=-1)     # (cout, LB)
            else:
                # lane-dense final store: (N, Cout, H*W) with H*W on the lane axis
                for n in range(N):
                    for h in range(H):
                        src = n * BLK + (q + h) * WS + q
                        out_ref[n, :, h * W:(h + 1) * W] = y[:, src:src + W]

    return kernel


# ----------------------------------------------------------------------------
# Wrapper: one pallas_call for the whole decoder
# ----------------------------------------------------------------------------
def b_decoder_conv_forward(x_nchw, params, *, K=5):
    """b_decoder_conv forward (batch_norm=True, pooling=False, dropout=None, stride=1)."""
    N, C0, H, W = x_nchw.shape
    q = (K - 1) - (K - 1) // 2                     # equivalent regular-conv padding
    Hp = H + 2 * q
    WS = _round_up(W + 2 * q, 8)                   # padded row stride (lanes)
    while (Hp * WS) % 128 != 0:                    # keep per-image flat block 128-aligned
        WS += 8
    BLK = Hp * WS
    LC = N * BLK
    MARG = _round_up(q * WS + q, 128)
    LB = LC + 2 * MARG

    layer_cfg = []
    cin = C0
    for p in params:
        cout = p["bnp"].shape[0]
        cpad = p["w2"].shape[1] // (K * K)
        assert p["w2"].shape[0] == cout
        layer_cfg.append((cin, cpad, cout))
        cin = cout
    for (ci, cp, _co) in layer_cfg[1:]:
        # sublane-aligned im2col needs intermediate channel counts to be multiples of 8
        assert ci == cp, "intermediate channel counts must be multiples of 8"

    # {0,1} validity mask over the flat padded grid (core region only)
    rows = jnp.arange(Hp)
    cols = jnp.arange(WS)
    m2 = ((rows[:, None] >= q) & (rows[:, None] < q + H) &
          (cols[None, :] >= q) & (cols[None, :] < q + W)).astype(jnp.float32)
    mask = jnp.broadcast_to(m2.reshape(1, BLK), (N, BLK)).reshape(1, LC)

    kernel = _make_decoder_kernel(layer_cfg=tuple(layer_cfg), N=N, H=H, W=W,
                                  K=K, q=q, WS=WS, MARG=MARG, eps=1e-5)

    inputs = [x_nchw.astype(jnp.float32).reshape(N, C0, H * W), mask]
    in_specs = [
        pl.BlockSpec((N, C0, H * W), lambda i: (0, 0, 0)),
        pl.BlockSpec((1, LC), lambda i: (0, 0)),
    ]
    for (_ci, cp, co), p in zip(layer_cfg, params):
        inputs += [p["w2"], p["bnp"]]
        in_specs += [pl.BlockSpec((co, K * K * cp), lambda i: (0, 0)),
                     pl.BlockSpec((co, 3), lambda i: (0, 0))]

    cout_last = layer_cfg[-1][2]
    out = pl.pallas_call(
        kernel,
        out_shape=jax.ShapeDtypeStruct((N, cout_last, H * W), jnp.float32),
        grid_spec=pltpu.PrefetchScalarGridSpec(
            num_scalar_prefetch=0,
            grid=(1,),
            in_specs=in_specs,
            out_specs=pl.BlockSpec((N, cout_last, H * W), lambda i: (0, 0, 0)),
            scratch_shapes=[pltpu.VMEM((layer_cfg[0][1], LB), jnp.float32)],
        ),
        compiler_params=pltpu.CompilerParams(
            dimension_semantics=("arbitrary",),
            vmem_limit_bytes=32 * 1024 * 1024,
        ),
    )(*inputs)
    return out.reshape(N, cout_last, H, W)


# ----------------------------------------------------------------------------
# Deterministic parameter construction
# ----------------------------------------------------------------------------
def init_params(key, repr_sizes, K):
    params = []
    for cin, cout in zip(repr_sizes[:-1], repr_sizes[1:]):
        key, k1, k2, k3, k4 = jax.random.split(key, 5)
        # PyTorch ConvTranspose2d weight layout: (Cin, Cout, K, K)
        w_t = 0.1 * jax.random.normal(k1, (cin, cout, K, K), jnp.float32)
        bias = 0.1 * jax.random.normal(k2, (cout,), jnp.float32)
        gamma = 1.0 + 0.1 * jax.random.normal(k3, (cout,), jnp.float32)
        beta = 0.1 * jax.random.normal(k4, (cout,), jnp.float32)

        # Equivalent regular-conv weight (spatial flip + in/out swap): HWIO
        w_hwio = jnp.transpose(w_t[:, :, ::-1, ::-1], (2, 3, 0, 1))   # (K, K, cin, cout)

        cin_pad = _round_up(cin, 8)
        w_eq = w_hwio.reshape(K * K, cin, cout)
        if cin_pad > cin:
            w_eq = jnp.concatenate(
                [w_eq, jnp.zeros((K * K, cin_pad - cin, cout), jnp.float32)], axis=1)
        # packed matmul weight: w2[co, t*cin_pad + ci] = w_eq[t, ci, co]
        w2 = jnp.transpose(w_eq, (2, 0, 1)).reshape(cout, K * K * cin_pad)
        bnp = jnp.stack([bias, gamma, beta], axis=1)                  # (cout, 3)

        params.append(dict(w2=w2, bnp=bnp, w_hwio=w_hwio,
                           bias=bias, gamma=gamma, beta=beta))
    return params


# Pure-JAX reference (no Pallas), used only as a correctness check.
def _ref_forward(x_nchw, params, *, K=5, eps=1e-5):
    x = jnp.transpose(x_nchw, (0, 2, 3, 1)).astype(jnp.float32)
    q = (K - 1) - (K - 1) // 2
    for p in params:
        y = jax.lax.conv_general_dilated(
            x, p["w_hwio"], window_strides=(1, 1), padding=[(q, q), (q, q)],
            dimension_numbers=("NHWC", "HWIO", "NHWC")) + p["bias"]
        mean = jnp.mean(y, axis=(0, 1, 2), keepdims=True)
        var = jnp.mean((y - mean) ** 2, axis=(0, 1, 2), keepdims=True)
        y = (y - mean) * jax.lax.rsqrt(var + eps) * p["gamma"] + p["beta"]
        x = jnp.maximum(y, 0.0)
    return jnp.transpose(x, (0, 3, 1, 2))


if __name__ == "__main__":
    key = jax.random.PRNGKey(0)
    K = 5
    repr_sizes = [4, 8, 16, 32]            # small synthetic channel sizes
    N, H, W = 2, 16, 16

    kx, kp = jax.random.split(key)
    x = jax.random.normal(kx, (N, repr_sizes[0], H, W), jnp.float32)   # NCHW input
    params = init_params(kp, repr_sizes, K)

    fwd = jax.jit(functools.partial(b_decoder_conv_forward, K=K))
    out = jax.block_until_ready(fwd(x, params))

    ref = jax.block_until_ready(_ref_forward(x, params, K=K))
    assert out.shape == (N, repr_sizes[-1], H, W)
    err = float(jnp.max(jnp.abs(out - ref)))
    assert jnp.allclose(out, ref, atol=5e-4, rtol=5e-4), err

    print("KERNEL_OK")
</pallas_src>

<mosaic_0001>
module attributes {stable_mosaic.version = 11 : i64} {
  func.func @kernel(%arg0: i32, %arg1: memref<2x4x256xf32, #tpu.memory_space<vmem>>, %arg2: memref<1x1280xf32, #tpu.memory_space<vmem>>, %arg3: memref<8x200xf32, #tpu.memory_space<vmem>>, %arg4: memref<8x3xf32, #tpu.memory_space<vmem>>, %arg5: memref<16x200xf32, #tpu.memory_space<vmem>>, %arg6: memref<16x3xf32, #tpu.memory_space<vmem>>, %arg7: memref<32x400xf32, #tpu.memory_space<vmem>>, %arg8: memref<32x3xf32, #tpu.memory_space<vmem>>, %arg9: memref<2x32x256xf32, #tpu.memory_space<vmem>>, %arg10: memref<8x1536xf32, #tpu.memory_space<vmem>>) attributes {dimension_semantics = [#tpu.dimension_semantics<arbitrary>], iteration_bounds = array<i64: 1>, scalar_prefetch = 0 : i64, scratch_operands = 1 : i64, tpu.core_type = #tpu.core_type<tc>, window_params = [{pipeline_mode = #tpu.pipeline_mode<synchronous>, transform_indices = @transform_0, window_bounds = array<i64: 2, 4, 256>}, {pipeline_mode = #tpu.pipeline_mode<synchronous>, transform_indices = @transform_1, window_bounds = array<i64: 1, 1280>}, {pipeline_mode = #tpu.pipeline_mode<synchronous>, transform_indices = @transform_2, window_bounds = array<i64: 8, 200>}, {pipeline_mode = #tpu.pipeline_mode<synchronous>, transform_indices = @transform_3, window_bounds = array<i64: 8, 3>}, {pipeline_mode = #tpu.pipeline_mode<synchronous>, transform_indices = @transform_4, window_bounds = array<i64: 16, 200>}, {pipeline_mode = #tpu.pipeline_mode<synchronous>, transform_indices = @transform_5, window_bounds = array<i64: 16, 3>}, {pipeline_mode = #tpu.pipeline_mode<synchronous>, transform_indices = @transform_6, window_bounds = array<i64: 32, 400>}, {pipeline_mode = #tpu.pipeline_mode<synchronous>, transform_indices = @transform_7, window_bounds = array<i64: 32, 3>}, {pipeline_mode = #tpu.pipeline_mode<synchronous>, transform_indices = @transform_8, window_bounds = array<i64: 2, 32, 256>}]} {
    %c0 = arith.constant 0 : index
    %c0_0 = arith.constant 0 : index
    %0 = vector.load %arg2[%c0, %c0_0] : memref<1x1280xf32, #tpu.memory_space<vmem>>, vector<1x1280xf32>
    %cst = arith.constant 0.000000e+00 : f32
    %1 = vector.broadcast %cst : f32 to vector<8x1536xf32>
    %c0_1 = arith.constant 0 : index
    %c0_2 = arith.constant 0 : index
    %2 = vector.load %arg10[%c0_1, %c0_2] : memref<8x1536xf32, #tpu.memory_space<vmem>>, vector<8x1536xf32>
    tpu.vector_store %arg10[%c0_1, %c0_2], %1 {strides = array<i32>} : memref<8x1536xf32, #tpu.memory_space<vmem>>, vector<8x1536xf32>,
    %c0_3 = arith.constant 0 : index
    %c0_4 = arith.constant 0 : index
    %c0_5 = arith.constant 0 : index
    %3 = vector.load %arg1[%c0_3, %c0_4, %c0_5] : memref<2x4x256xf32, #tpu.memory_space<vmem>>, vector<2x4x256xf32>
    %4 = vector.extract_strided_slice %3 {offsets = [0, 0, 0], sizes = [1, 4, 16], strides = [1, 1, 1]} : vector<2x4x256xf32> to vector<1x4x16xf32>
    %5 = vector.shape_cast %4 : vector<1x4x16xf32> to vector<4x16xf32>
    %c0_6 = arith.constant 0 : index
    %c194 = arith.constant 194 : index
    %6 = vector.load %arg10[%c0_6, %c194] : memref<8x1536xf32, #tpu.memory_space<vmem>>, vector<4x16xf32>
    tpu.vector_store %arg10[%c0_6, %c194], %5 {strides = array<i32>} : memref<8x1536xf32, #tpu.memory_space<vmem>>, vector<4x16xf32>,
    %7 = vector.extract_strided_slice %3 {offsets = [0, 0, 16], sizes = [1, 4, 16], strides = [1, 1, 1]} : vector<2x4x256xf32> to vector<1x4x16xf32>
    %8 = vector.shape_cast %7 : vector<1x4x16xf32> to vector<4x16xf32>
    %c0_7 = arith.constant 0 : index
    %c226 = arith.constant 226 : index
    %9 = vector.load %arg10[%c0_7, %c226] : memref<8x1536xf32, #tpu.memory_space<vmem>>, vector<4x16xf32>
    tpu.vector_store %arg10[%c0_7, %c226], %8 {strides = array<i32>} : memref<8x1536xf32, #tpu.memory_space<vmem>>, vector<4x16xf32>,
    %10 = vector.extract_strided_slice %3 {offsets = [0, 0, 32], sizes = [1, 4, 16], strides = [1, 1, 1]} : vector<2x4x256xf32> to vector<1x4x16xf32>
    %11 = vector.shape_cast %10 : vector<1x4x16xf32> to vector<4x16xf32>
    %c0_8 = arith.constant 0 : index
    %c258 = arith.constant 258 : index
    %12 = vector.load %arg10[%c0_8, %c258] : memref<8x1536xf32, #tpu.memory_space<vmem>>, vector<4x16xf32>
    tpu.vector_store %arg10[%c0_8, %c258], %11 {strides = array<i32>} : memref<8x1536xf32, #tpu.memory_space<vmem>>, vector<4x16xf32>,
    %13 = vector.extract_strided_slice %3 {offsets = [0, 0, 48], sizes = [1, 4, 16], strides = [1, 1, 1]} : vector<2x4x256xf32> to vector<1x4x16xf32>
    %14 = vector.shape_cast %13 : vector<1x4x16xf32> to vector<4x16xf32>
    %c0_9 = arith.constant 0 : index
    %c290 = arith.constant 290 : index
    %15 = vector.load %arg10[%c0_9, %c290] : memref<8x1536xf32, #tpu.memory_space<vmem>>, vector<4x16xf32>
    tpu.vector_store %arg10[%c0_9, %c290], %14 {strides = array<i32>} : memref<8x1536xf32, #tpu.memory_space<vmem>>, vector<4x16xf32>,
    %16 = vector.extract_strided_slice %3 {offsets = [0, 0, 64], sizes = [1, 4, 16], strides = [1, 1, 1]} : vector<2x4x256xf32> to vector<1x4x16xf32>
    %17 = vector.shape_cast %16 : vector<1x4x16xf32> to vector<4x16xf32>
    %c0_10 = arith.constant 0 : index
    %c322 = arith.constant 322 : index
    %18 = vector.load %arg10[%c0_10, %c322] : memref<8x1536xf32, #tpu.memory_space<vmem>>, vector<4x16xf32>
    tpu.vector_store %arg10[%c0_10, %c322], %17 {strides = array<i32>} : memref<8x1536xf32, #tpu.memory_space<vmem>>, vector<4x16xf32>,
    %19 = vector.extract_strided_slice %3 {offsets = [0, 0, 80], sizes = [1, 4, 16], strides = [1, 1, 1]} : vector<2x4x256xf32> to vector<1x4x16xf32>
    %20 = vector.shape_cast %19 : vector<1x4x16xf32> to vector<4x16xf32>
    %c0_11 = arith.constant 0 : index
    %c354 = arith.constant 354 : index
    %21 = vector.load %arg10[%c0_11, %c354] : memref<8x1536xf32, #tpu.memory_space<vmem>>, vector<4x16xf32>
    tpu.vector_store %arg10[%c0_11, %c354], %20 {strides = array<i32>} : memref<8x1536xf32, #tpu.memory_space<vmem>>, vector<4x16xf32>,
    %22 = vector.extract_strided_slice %3 {offsets = [0, 0, 96], sizes = [1, 4, 16], strides = [1, 1, 1]} : vector<2x4x256xf32> to vector<1x4x16xf32>
    %23 = vector.shape_cast %22 : vector<1x4x16xf32> to vector<4x16xf32>
    %c0_12 = arith.constant 0 : index
    %c386 = arith.constant 386 : index
    %24 = vector.load %arg10[%c0_12, %c386] : memref<8x1536xf32, #tpu.memory_space<vmem>>, vector<4x16xf32>
    tpu.vector_store %arg10[%c0_12, %c386], %23 {strides = array<i32>} : memref<8x1536xf32, #tpu.memory_space<vmem>>, vector<4x16xf32>,
    %25 = vector.extract_strided_slice %3 {offsets = [0, 0, 112], sizes = [1, 4, 16], strides = [1, 1, 1]} : vector<2x4x256xf32> to vector<1x4x16xf32>
    %26 = vector.shape_cast %25 : vector<1x4x16xf32> to vector<4x16xf32>
    %c0_13 = arith.constant 0 : index
    %c418 = arith.constant 418 : index
    %27 = vector.load %arg10[%c0_13, %c418] : memref<8x1536xf32, #tpu.memory_space<vmem>>, vector<4x16xf32>
    tpu.vector_store %arg10[%c0_13, %c418], %26 {strides = array<i32>} : memref<8x1536xf32, #tpu.memory_space<vmem>>, vector<4x16xf32>,
    %28 = vector.extract_strided_slice %3 {offsets = [0, 0, 128], sizes = [1, 4, 16], strides = [1, 1, 1]} : vector<2x4x256xf32> to vector<1x4x16xf32>
    %29 = vector.shape_cast %28 : vector<1x4x16xf32> to vector<4x16xf32>
    %c0_14 = arith.constant 0 : index
    %c450 = arith.constant 450 : index
    %30 = vector.load %arg10[%c0_14, %c450] : memref<8x1536xf32, #tpu.memory_space<vmem>>, vector<4x16xf32>
    tpu.vector_store %arg10[%c0_14, %c450], %29 {strides = array<i32>} : memref<8x1536xf32, #tpu.memory_space<vmem>>, vector<4x16xf32>,
    %31 = vector.extract_strided_slice %3 {offsets = [0, 0, 144], sizes = [1, 4, 16], strides = [1, 1, 1]} : vector<2x4x256xf32> to vector<1x4x16xf32>
    %32 = vector.shape_cast %31 : vector<1x4x16xf32> to vector<4x16xf32>
    %c0_15 = arith.constant 0 : index
    %c482 = arith.constant 482 : index
    %33 = vector.load %arg10[%c0_15, %c482] : memref<8x1536xf32, #tpu.memory_space<vmem>>, vector<4x16xf32>
    tpu.vector_store %arg10[%c0_15, %c482], %32 {strides = array<i32>} : memref<8x1536xf32, #tpu.memory_space<vmem>>, vector<4x16xf32>,
    %34 = vector.extract_strided_slice %3 {offsets = [0, 0, 160], sizes = [1, 4, 16], strides = [1, 1, 1]} : vector<2x4x256xf32> to vector<1x4x16xf32>
    %35 = vector.shape_cast %34 : vector<1x4x16xf32> to vector<4x16xf32>
    %c0_16 = arith.constant 0 : index
    %c514 = arith.constant 514 : index
    %36 = vector.load %arg10[%c0_16, %c514] : memref<8x1536xf32, #tpu.memory_space<vmem>>, vector<4x16xf32>
    tpu.vector_store %arg10[%c0_16, %c514], %35 {strides = array<i32>} : memref<8x1536xf32, #tpu.memory_space<vmem>>, vector<4x16xf32>,
    %37 = vector.extract_strided_slice %3 {offsets = [0, 0, 176], sizes = [1, 4, 16], strides = [1, 1, 1]} : vector<2x4x256xf32> to vector<1x4x16xf32>
    %38 = vector.shape_cast %37 : vector<1x4x16xf32> to vector<4x16xf32>
    %c0_17 = arith.constant 0 : index
    %c546 = arith.constant 546 : index
    %39 = vector.load %arg10[%c0_17, %c546] : memref<8x1536xf32, #tpu.memory_space<vmem>>, vector<4x16xf32>
    tpu.vector_store %arg10[%c0_17, %c546], %38 {strides = array<i32>} : memref<8x1536xf32, #tpu.memory_space<vmem>>, vector<4x16xf32>,
    %40 = vector.extract_strided_slice %3 {offsets = [0, 0, 192], sizes = [1, 4, 16], strides = [1, 1, 1]} : vector<2x4x256xf32> to vector<1x4x16xf32>
    %41 = vector.shape_cast %40 : vector<1x4x16xf32> to vector<4x16xf32>
    %c0_18 = arith.constant 0 : index
    %c578 = arith.constant 578 : index
    %42 = vector.load %arg10[%c0_18, %c578] : memref<8x1536xf32, #tpu.memory_space<vmem>>, vector<4x16xf32>
    tpu.vector_store %arg10[%c0_18, %c578], %41 {strides = array<i32>} : memref<8x1536xf32, #tpu.memory_space<vmem>>, vector<4x16xf32>,
    %43 = vector.extract_strided_slice %3 {offsets = [0, 0, 208], sizes = [1, 4, 16], strides = [1, 1, 1]} : vector<2x4x256xf32> to vector<1x4x16xf32>
    %44 = vector.shape_cast %43 : vector<1x4x16xf32> to vector<4x16xf32>
    %c0_19 = arith.constant 0 : index
    %c610 = arith.constant 610 : index
    %45 = vector.load %arg10[%c0_19, %c610] : memref<8x1536xf32, #tpu.memory_space<vmem>>, vector<4x16xf32>
    tpu.vector_store %arg10[%c0_19, %c610], %44 {strides = array<i32>} : memref<8x1536xf32, #tpu.memory_space<vmem>>, vector<4x16xf32>,
    %46 = vector.extract_strided_slice %3 {offsets = [0, 0, 224], sizes = [1, 4, 16], strides = [1, 1, 1]} : vector<2x4x256xf32> to vector<1x4x16xf32>
    %47 = vector.shape_cast %46 : vector<1x4x16xf32> to vector<4x16xf32>
    %c0_20 = arith.constant 0 : index
    %c642 = arith.constant 642 : index
    %48 = vector.load %arg10[%c0_20, %c642] : memref<8x1536xf32, #tpu.memory_space<vmem>>, vector<4x16xf32>
    tpu.vector_store %arg10[%c0_20, %c642], %47 {strides = array<i32>} : memref<8x1536xf32, #tpu.memory_space<vmem>>, vector<4x16xf32>,
    %49 = vector.extract_strided_slice %3 {offsets = [0, 0, 240], sizes = [1, 4, 16], strides = [1, 1, 1]} : vector<2x4x256xf32> to vector<1x4x16xf32>
    %50 = vector.shape_cast %49 : vector<1x4x16xf32> to vector<4x16xf32>
    %c0_21 = arith.constant 0 : index
    %c674 = arith.constant 674 : index
    %51 = vector.load %arg10[%c0_21, %c674] : memref<8x1536xf32, #tpu.memory_space<vmem>>, vector<4x16xf32>
    tpu.vector_store %arg10[%c0_21, %c674], %50 {strides = array<i32>} : memref<8x1536xf32, #tpu.memory_space<vmem>>, vector<4x16xf32>,
    %52 = vector.extract_strided_slice %3 {offsets = [1, 0, 0], sizes = [1, 4, 16], strides = [1, 1, 1]} : vector<2x4x256xf32> to vector<1x4x16xf32>
    %53 = vector.shape_cast %52 : vector<1x4x16xf32> to vector<4x16xf32>
    %c0_22 = arith.constant 0 : index
    %c834 = arith.constant 834 : index
    %54 = vector.load %arg10[%c0_22, %c834] : memref<8x1536xf32, #tpu.memory_space<vmem>>, vector<4x16xf32>
    tpu.vector_store %arg10[%c0_22, %c834], %53 {strides = array<i32>} : memref<8x1536xf32, #tpu.memory_space<vmem>>, vector<4x16xf32>,
    %55 = vector.extract_strided_slice %3 {offsets = [1, 0, 16], sizes = [1, 4, 16], strides = [1, 1, 1]} : vector<2x4x256xf32> to vector<1x4x16xf32>
    %56 = vector.shape_cast %55 : vector<1x4x16xf32> to vector<4x16xf32>
    %c0_23 = arith.constant 0 : index
    %c866 = arith.constant 866 : index
    %57 = vector.load %arg10[%c0_23, %c866] : memref<8x1536xf32, #tpu.memory_space<vmem>>, vector<4x16xf32>
    tpu.vector_store %arg10[%c0_23, %c866], %56 {strides = array<i32>} : memref<8x1536xf32, #tpu.memory_space<vmem>>, vector<4x16xf32>,
    %58 = vector.extract_strided_slice %3 {offsets = [1, 0, 32], sizes = [1, 4, 16], strides = [1, 1, 1]} : vector<2x4x256xf32> to vector<1x4x16xf32>
    %59 = vector.shape_cast %58 : vector<1x4x16xf32> to vector<4x16xf32>
    %c0_24 = arith.constant 0 : index
    %c898 = arith.constant 898 : index
    %60 = vector.load %arg10[%c0_24, %c898] : memref<8x1536xf32, #tpu.memory_space<vmem>>, vector<4x16xf32>
    tpu.vector_store %arg10[%c0_24, %c898], %59 {strides = array<i32>} : memref<8x1536xf32, #tpu.memory_space<vmem>>, vector<4x16xf32>,
    %61 = vector.extract_strided_slice %3 {offsets = [1, 0, 48], sizes = [1, 4, 16], strides = [1, 1, 1]} : vector<2x4x256xf32> to vector<1x4x16xf32>
    %62 = vector.shape_cast %61 : vector<1x4x16xf32> to vector<4x16xf32>
    %c0_25 = arith.constant 0 : index
    %c930 = arith.constant 930 : index
    %63 = vector.load %arg10[%c0_25, %c930] : memref<8x1536xf32, #tpu.memory_space<vmem>>, vector<4x16xf32>
    tpu.vector_store %arg10[%c0_25, %c930], %62 {strides = array<i32>} : memref<8x1536xf32, #tpu.memory_space<vmem>>, vector<4x16xf32>,
    %64 = vector.extract_strided_slice %3 {offsets = [1, 0, 64], sizes = [1, 4, 16], strides = [1, 1, 1]} : vector<2x4x256xf32> to vector<1x4x16xf32>
    %65 = vector.shape_cast %64 : vector<1x4x16xf32> to vector<4x16xf32>
    %c0_26 = arith.constant 0 : index
    %c962 = arith.constant 962 : index
    %66 = vector.load %arg10[%c0_26, %c962] : memref<8x1536xf32, #tpu.memory_space<vmem>>, vector<4x16xf32>
    tpu.vector_store %arg10[%c0_26, %c962], %65 {strides = array<i32>} : memref<8x1536xf32, #tpu.memory_space<vmem>>, vector<4x16xf32>,
    %67 = vector.extract_strided_slice %3 {offsets = [1, 0, 80], sizes = [1, 4, 16], strides = [1, 1, 1]} : vector<2x4x256xf32> to vector<1x4x16xf32>
    %68 = vector.shape_cast %67 : vector<1x4x16xf32> to vector<4x16xf32>
    %c0_27 = arith.constant 0 : index
    %c994 = arith.constant 994 : index
    %69 = vector.load %arg10[%c0_27, %c994] : memref<8x1536xf32, #tpu.memory_space<vmem>>, vector<4x16xf32>
    tpu.vector_store %arg10[%c0_27, %c994], %68 {strides = array<i32>} : memref<8x1536xf32, #tpu.memory_space<vmem>>, vector<4x16xf32>,
    %70 = vector.extract_strided_slice %3 {offsets = [1, 0, 96], sizes = [1, 4, 16], strides = [1, 1, 1]} : vector<2x4x256xf32> to vector<1x4x16xf32>
    %71 = vector.shape_cast %70 : vector<1x4x16xf32> to vector<4x16xf32>
    %c0_28 = arith.constant 0 : index
    %c1026 = arith.constant 1026 : index
    %72 = vector.load %arg10[%c0_28, %c1026] : memref<8x1536xf32, #tpu.memory_space<vmem>>, vector<4x16xf32>
    tpu.vector_store %arg10[%c0_28, %c1026], %71 {strides = array<i32>} : memref<8x1536xf32, #tpu.memory_space<vmem>>, vector<4x16xf32>,
    %73 = vector.extract_strided_slice %3 {offsets = [1, 0, 112], sizes = [1, 4, 16], strides = [1, 1, 1]} : vector<2x4x256xf32> to vector<1x4x16xf32>
    %74 = vector.shape_cast %73 : vector<1x4x16xf32> to vector<4x16xf32>
    %c0_29 = arith.constant 0 : index
    %c1058 = arith.constant 1058 : index
    %75 = vector.load %arg10[%c0_29, %c1058] : memref<8x1536xf32, #tpu.memory_space<vmem>>, vector<4x16xf32>
    tpu.vector_store %arg10[%c0_29, %c1058], %74 {strides = array<i32>} : memref<8x1536xf32, #tpu.memory_space<vmem>>, vector<4x16xf32>,
    %76 = vector.extract_strided_slice %3 {offsets = [1, 0, 128], sizes = [1, 4, 16], strides = [1, 1, 1]} : vector<2x4x256xf32> to vector<1x4x16xf32>
    %77 = vector.shape_cast %76 : vector<1x4x16xf32> to vector<4x16xf32>
    %c0_30 = arith.constant 0 : index
    %c1090 = arith.constant 1090 : index
    %78 = vector.load %arg10[%c0_30, %c1090] : memref<8x1536xf32, #tpu.memory_space<vmem>>, vector<4x16xf32>
    tpu.vector_store %arg10[%c0_30, %c1090], %77 {strides = array<i32>} : memref<8x1536xf32, #tpu.memory_space<vmem>>, vector<4x16xf32>,
    %79 = vector.extract_strided_slice %3 {offsets = [1, 0, 144], sizes = [1, 4, 16], strides = [1, 1, 1]} : vector<2x4x256xf32> to vector<1x4x16xf32>
    %80 = vector.shape_cast %79 : vector<1x4x16xf32> to vector<4x16xf32>
    %c0_31 = arith.constant 0 : index
    %c1122 = arith.constant 1122 : index
    %81 = vector.load %arg10[%c0_31, %c1122] : memref<8x1536xf32, #tpu.memory_space<vmem>>, vector<4x16xf32>
    tpu.vector_store %arg10[%c0_31, %c1122], %80 {strides = array<i32>} : memref<8x1536xf32, #tpu.memory_space<vmem>>, vector<4x16xf32>,
    %82 = vector.extract_strided_slice %3 {offsets = [1, 0, 160], sizes = [1, 4, 16], strides = [1, 1, 1]} : vector<2x4x256xf32> to vector<1x4x16xf32>
    %83 = vector.shape_cast %82 : vector<1x4x16xf32> to vector<4x16xf32>
    %c0_32 = arith.constant 0 : index
    %c1154 = arith.constant 1154 : index
    %84 = vector.load %arg10[%c0_32, %c1154] : memref<8x1536xf32, #tpu.memory_space<vmem>>, vector<4x16xf32>
    tpu.vector_store %arg10[%c0_32, %c1154], %83 {strides = array<i32>} : memref<8x1536xf32, #tpu.memory_space<vmem>>, vector<4x16xf32>,
    %85 = vector.extract_strided_slice %3 {offsets = [1, 0, 176], sizes = [1, 4, 16], strides = [1, 1, 1]} : vector<2x4x256xf32> to vector<1x4x16xf32>
    %86 = vector.shape_cast %85 : vector<1x4x16xf32> to vector<4x16xf32>
    %c0_33 = arith.constant 0 : index
    %c1186 = arith.constant 1186 : index
    %87 = vector.load %arg10[%c0_33, %c1186] : memref<8x1536xf32, #tpu.memory_space<vmem>>, vector<4x16xf32>
    tpu.vector_store %arg10[%c0_33, %c1186], %86 {strides = array<i32>} : memref<8x1536xf32, #tpu.memory_space<vmem>>, vector<4x16xf32>,
    %88 = vector.extract_strided_slice %3 {offsets = [1, 0, 192], sizes = [1, 4, 16], strides = [1, 1, 1]} : vector<2x4x256xf32> to vector<1x4x16xf32>
    %89 = vector.shape_cast %88 : vector<1x4x16xf32> to vector<4x16xf32>
    %c0_34 = arith.constant 0 : index
    %c1218 = arith.constant 1218 : index
    %90 = vector.load %arg10[%c0_34, %c1218] : memref<8x1536xf32, #tpu.memory_space<vmem>>, vector<4x16xf32>
    tpu.vector_store %arg10[%c0_34, %c1218], %89 {strides = array<i32>} : memref<8x1536xf32, #tpu.memory_space<vmem>>, vector<4x16xf32>,
    %91 = vector.extract_strided_slice %3 {offsets = [1, 0, 208], sizes = [1, 4, 16], strides = [1, 1, 1]} : vector<2x4x256xf32> to vector<1x4x16xf32>
    %92 = vector.shape_cast %91 : vector<1x4x16xf32> to vector<4x16xf32>
    %c0_35 = arith.constant 0 : index
    %c1250 = arith.constant 1250 : index
    %93 = vector.load %arg10[%c0_35, %c1250] : memref<8x1536xf32, #tpu.memory_space<vmem>>, vector<4x16xf32>
    tpu.vector_store %arg10[%c0_35, %c1250], %92 {strides = array<i32>} : memref<8x1536xf32, #tpu.memory_space<vmem>>, vector<4x16xf32>,
    %94 = vector.extract_strided_slice %3 {offsets = [1, 0, 224], sizes = [1, 4, 16], strides = [1, 1, 1]} : vector<2x4x256xf32> to vector<1x4x16xf32>
    %95 = vector.shape_cast %94 : vector<1x4x16xf32> to vector<4x16xf32>
    %c0_36 = arith.constant 0 : index
    %c1282 = arith.constant 1282 : index
    %96 = vector.load %arg10[%c0_36, %c1282] : memref<8x1536xf32, #tpu.memory_space<vmem>>, vector<4x16xf32>
    tpu.vector_store %arg10[%c0_36, %c1282], %95 {strides = array<i32>} : memref<8x1536xf32, #tpu.memory_space<vmem>>, vector<4x16xf32>,
    %97 = vector.extract_strided_slice %3 {offsets = [1, 0, 240], sizes = [1, 4, 16], strides = [1, 1, 1]} : vector<2x4x256xf32> to vector<1x4x16xf32>
    %98 = vector.shape_cast %97 : vector<1x4x16xf32> to vector<4x16xf32>
    %c0_37 = arith.constant 0 : index
    %c1314 = arith.constant 1314 : index
    %99 = vector.load %arg10[%c0_37, %c1314] : memref<8x1536xf32, #tpu.memory_space<vmem>>, vector<4x16xf32>
    tpu.vector_store %arg10[%c0_37, %c1314], %98 {strides = array<i32>} : memref<8x1536xf32, #tpu.memory_space<vmem>>, vector<4x16xf32>,
    %c0_38 = arith.constant 0 : index
    %c0_39 = arith.constant 0 : index
    %100 = vector.load %arg10[%c0_38, %c0_39] : memref<8x1536xf32, #tpu.memory_space<vmem>>, vector<8x1536xf32>
    %101 = vector.extract_strided_slice %100 {offsets = [0, 62], sizes = [8, 1280], strides = [1, 1]} : vector<8x1536xf32> to vector<8x1280xf32>
    %102 = vector.extract_strided_slice %100 {offsets = [0, 63], sizes = [8, 1280], strides = [1, 1]} : vector<8x1536xf32> to vector<8x1280xf32>
    %103 = vector.extract_strided_slice %100 {offsets = [0, 64], sizes = [8, 1280], strides = [1, 1]} : vector<8x1536xf32> to vector<8x1280xf32>
    %104 = vector.extract_strided_slice %100 {offsets = [0, 65], sizes = [8, 1280], strides = [1, 1]} : vector<8x1536xf32> to vector<8x1280xf32>
    %105 = vector.extract_strided_slice %100 {offsets = [0, 66], sizes = [8, 1280], strides = [1, 1]} : vector<8x1536xf32> to vector<8x1280xf32>
    %106 = vector.extract_strided_slice %100 {offsets = [0, 94], sizes = [8, 1280], strides = [1, 1]} : vector<8x1536xf32> to vector<8x1280xf32>
    %107 = vector.extract_strided_slice %100 {offsets = [0, 95], sizes = [8, 1280], strides = [1, 1]} : vector<8x1536xf32> to vector<8x1280xf32>
    %108 = vector.extract_strided_slice %100 {offsets = [0, 96], sizes = [8, 1280], strides = [1, 1]} : vector<8x1536xf32> to vector<8x1280xf32>
    %109 = vector.extract_strided_slice %100 {offsets = [0, 97], sizes = [8, 1280], strides = [1, 1]} : vector<8x1536xf32> to vector<8x1280xf32>
    %110 = vector.extract_strided_slice %100 {offsets = [0, 98], sizes = [8, 1280], strides = [1, 1]} : vector<8x1536xf32> to vector<8x1280xf32>
    %111 = vector.extract_strided_slice %100 {offsets = [0, 126], sizes = [8, 1280], strides = [1, 1]} : vector<8x1536xf32> to vector<8x1280xf32>
    %112 = vector.extract_strided_slice %100 {offsets = [0, 127], sizes = [8, 1280], strides = [1, 1]} : vector<8x1536xf32> to vector<8x1280xf32>
    %113 = vector.extract_strided_slice %100 {offsets = [0, 128], sizes = [8, 1280], strides = [1, 1]} : vector<8x1536xf32> to vector<8x1280xf32>
    %114 = vector.extract_strided_slice %100 {offsets = [0, 129], sizes = [8, 1280], strides = [1, 1]} : vector<8x1536xf32> to vector<8x1280xf32>
    %115 = vector.extract_strided_slice %100 {offsets = [0, 130], sizes = [8, 1280], strides = [1, 1]} : vector<8x1536xf32> to vector<8x1280xf32>
    %116 = vector.extract_strided_slice %100 {offsets = [0, 158], sizes = [8, 1280], strides = [1, 1]} : vector<8x1536xf32> to vector<8x1280xf32>
    %117 = vector.extract_strided_slice %100 {offsets = [0, 159], sizes = [8, 1280], strides = [1, 1]} : vector<8x1536xf32> to vector<8x1280xf32>
    %118 = vector.extract_strided_slice %100 {offsets = [0, 160], sizes = [8, 1280], strides = [1, 1]} : vector<8x1536xf32> to vector<8x1280xf32>
    %119 = vector.extract_strided_slice %100 {offsets = [0, 161], sizes = [8, 1280], strides = [1, 1]} : vector<8x1536xf32> to vector<8x1280xf32>
    %120 = vector.extract_strided_slice %100 {offsets = [0, 162], sizes = [8, 1280], strides = [1, 1]} : vector<8x1536xf32> to vector<8x1280xf32>
    %121 = vector.extract_strided_slice %100 {offsets = [0, 190], sizes = [8, 1280], strides = [1, 1]} : vector<8x1536xf32> to vector<8x1280xf32>
    %122 = vector.extract_strided_slice %100 {offsets = [0, 191], sizes = [8, 1280], strides = [1, 1]} : vector<8x1536xf32> to vector<8x1280xf32>
    %123 = vector.extract_strided_slice %100 {offsets = [0, 192], sizes = [8, 1280], strides = [1, 1]} : vector<8x1536xf32> to vector<8x1280xf32>
    %124 = vector.extract_strided_slice %100 {offsets = [0, 193], sizes = [8, 1280], strides = [1, 1]} : vector<8x1536xf32> to vector<8x1280xf32>
    %125 = vector.extract_strided_slice %100 {offsets = [0, 194], sizes = [8, 1280], strides = [1, 1]} : vector<8x1536xf32> to vector<8x1280xf32>
    %126 = tpu.concatenate %101, %102, %103, %104, %105, %106, %107, %108, %109, %110, %111, %112, %113, %114, %115, %116 in 0 : vector<8x1280xf32>, vector<8x1280xf32>, vector<8x1280xf32>, vector<8x1280xf32>, vector<8x1280xf32>, vector<8x1280xf32>, vector<8x1280xf32>, vector<8x1280xf32>, vector<8x1280xf32>, vector<8x1280xf32>, vector<8x1280xf32>, vector<8x1280xf32>, vector<8x1280xf32>, vector<8x1280xf32>, vector<8x1280xf32>, vector<8x1280xf32> -> vector<128x1280xf32>
    %127 = tpu.concatenate %117, %118, %119, %120, %121, %122, %123, %124, %125 in 0 : vector<8x1280xf32>, vector<8x1280xf32>, vector<8x1280xf32>, vector<8x1280xf32>, vector<8x1280xf32>, vector<8x1280xf32>, vector<8x1280xf32>, vector<8x1280xf32>, vector<8x1280xf32> -> vector<72x1280xf32>
    %128 = tpu.concatenate %126, %127 in 0 : vector<128x1280xf32>, vector<72x1280xf32> -> vector<200x1280xf32>
    %c0_40 = arith.constant 0 : index
    %c0_41 = arith.constant 0 : index
    %129 = vector.load %arg3[%c0_40, %c0_41] : memref<8x200xf32, #tpu.memory_space<vmem>>, vector<8x200xf32>
    %cst_42 = arith.constant dense<0.000000e+00> : vector<8x1280xf32>
    %130 = tpu.matmul %129, %128, %cst_42 {dimension_numbers = #tpu.dot_dimension_numbers<[1], [0], [0], [1], [0, 0, 1, 1], [], []>} : vector<8x200xf32>, vector<200x1280xf32>, vector<8x1280xf32> -> vector<8x1280xf32>
    %c0_43 = arith.constant 0 : index
    %c0_44 = arith.constant 0 : index
    %131 = vector.load %arg4[%c0_43, %c0_44] : memref<8x3xf32, #tpu.memory_space<vmem>>, vector<8x1xf32>
    %c0_45 = arith.constant 0 : index
    %c1 = arith.constant 1 : index
    %132 = vector.load %arg4[%c0_45, %c1] : memref<8x3xf32, #tpu.memory_space<vmem>>, vector<8x1xf32>
    %c0_46 = arith.constant 0 : index
    %c2 = arith.constant 2 : index
    %133 = vector.load %arg4[%c0_46, %c2] : memref<8x3xf32, #tpu.memory_space<vmem>>, vector<8x1xf32>
    %134 = vector.broadcast %131 : vector<8x1xf32> to vector<8x1280xf32>
    %135 = arith.addf %130, %134 : vector<8x1280xf32>
    %136 = vector.broadcast %0 : vector<1x1280xf32> to vector<8x1280xf32>
    %137 = arith.mulf %135, %136 : vector<8x1280xf32>
    %cst_47 = arith.constant dense<0.000000e+00> : vector<8xf32>
    %138 = vector.multi_reduction <add>, %137, %cst_47 [1] : vector<8x1280xf32> to vector<8xf32>
    %139 = vector.shape_cast %138 : vector<8xf32> to vector<8x1xf32>
    %cst_48 = arith.constant 0.001953125 : f32
    %140 = vector.broadcast %cst_48 : f32 to vector<8x1xf32>
    %141 = arith.mulf %139, %140 : vector<8x1xf32>
    %142 = vector.broadcast %141 : vector<8x1xf32> to vector<8x1280xf32>
    %143 = arith.subf %135, %142 : vector<8x1280xf32>
    %144 = vector.broadcast %0 : vector<1x1280xf32> to vector<8x1280xf32>
    %145 = arith.mulf %143, %144 : vector<8x1280xf32>
    %146 = arith.mulf %145, %145 : vector<8x1280xf32>
    %cst_49 = arith.constant dense<0.000000e+00> : vector<8xf32>
    %147 = vector.multi_reduction <add>, %146, %cst_49 [1] : vector<8x1280xf32> to vector<8xf32>
    %148 = vector.shape_cast %147 : vector<8xf32> to vector<8x1xf32>
    %cst_50 = arith.constant 0.001953125 : f32
    %149 = vector.broadcast %cst_50 : f32 to vector<8x1xf32>
    %150 = arith.mulf %148, %149 : vector<8x1xf32>
    %cst_51 = arith.constant 9.99999974E-6 : f32
    %151 = vector.broadcast %cst_51 : f32 to vector<8x1xf32>
    %152 = arith.addf %150, %151 : vector<8x1xf32>
    %153 = math.rsqrt %152 : vector<8x1xf32>
    %154 = vector.broadcast %153 : vector<8x1xf32> to vector<8x1280xf32>
    %155 = arith.mulf %145, %154 : vector<8x1280xf32>
    %156 = vector.broadcast %132 : vector<8x1xf32> to vector<8x1280xf32>
    %157 = arith.mulf %155, %156 : vector<8x1280xf32>
    %158 = vector.broadcast %133 : vector<8x1xf32> to vector<8x1280xf32>
    %159 = arith.addf %157, %158 : vector<8x1280xf32>
    %cst_52 = arith.constant 0.000000e+00 : f32
    %160 = vector.broadcast %cst_52 : f32 to vector<8x1280xf32>
    %161 = arith.maximumf %159, %160 : vector<8x1280xf32>
    %162 = vector.broadcast %0 : vector<1x1280xf32> to vector<8x1280xf32>
    %163 = arith.mulf %161, %162 : vector<8x1280xf32>
    %cst_53 = arith.constant 0.000000e+00 : f32
    %164 = vector.broadcast %cst_53 : f32 to vector<8x128xf32>
    %165 = tpu.concatenate %164, %163, %164 in 1 : vector<8x128xf32>, vector<8x1280xf32>, vector<8x128xf32> -> vector<8x1536xf32>
    %166 = vector.extract_strided_slice %165 {offsets = [0, 62], sizes = [8, 1280], strides = [1, 1]} : vector<8x1536xf32> to vector<8x1280xf32>
    %167 = vector.extract_strided_slice %165 {offsets = [0, 63], sizes = [8, 1280], strides = [1, 1]} : vector<8x1536xf32> to vector<8x1280xf32>
    %168 = vector.extract_strided_slice %165 {offsets = [0, 64], sizes = [8, 1280], strides = [1, 1]} : vector<8x1536xf32> to vector<8x1280xf32>
    %169 = vector.extract_strided_slice %165 {offsets = [0, 65], sizes = [8, 1280], strides = [1, 1]} : vector<8x1536xf32> to vector<8x1280xf32>
    %170 = vector.extract_strided_slice %165 {offsets = [0, 66], sizes = [8, 1280], strides = [1, 1]} : vector<8x1536xf32> to vector<8x1280xf32>
    %171 = vector.extract_strided_slice %165 {offsets = [0, 94], sizes = [8, 1280], strides = [1, 1]} : vector<8x1536xf32> to vector<8x1280xf32>
    %172 = vector.extract_strided_slice %165 {offsets = [0, 95], sizes = [8, 1280], strides = [1, 1]} : vector<8x1536xf32> to vector<8x1280xf32>
    %173 = vector.extract_strided_slice %165 {offsets = [0, 96], sizes = [8, 1280], strides = [1, 1]} : vector<8x1536xf32> to vector<8x1280xf32>
    %174 = vector.extract_strided_slice %165 {offsets = [0, 97], sizes = [8, 1280], strides = [1, 1]} : vector<8x1536xf32> to vector<8x1280xf32>
    %175 = vector.extract_strided_slice %165 {offsets = [0, 98], sizes = [8, 1280], strides = [1, 1]} : vector<8x1536xf32> to vector<8x1280xf32>
    %176 = vector.extract_strided_slice %165 {offsets = [0, 126], sizes = [8, 1280], strides = [1, 1]} : vector<8x1536xf32> to vector<8x1280xf32>
    %177 = vector.extract_strided_slice %165 {offsets = [0, 127], sizes = [8, 1280], strides = [1, 1]} : vector<8x1536xf32> to vector<8x1280xf32>
    %178 = vector.extract_strided_slice %165 {offsets = [0, 128], sizes = [8, 1280], strides = [1, 1]} : vector<8x1536xf32> to vector<8x1280xf32>
    %179 = vector.extract_strided_slice %165 {offsets = [0, 129], sizes = [8, 1280], strides = [1, 1]} : vector<8x1536xf32> to vector<8x1280xf32>
    %180 = vector.extract_strided_slice %165 {offsets = [0, 130], sizes = [8, 1280], strides = [1, 1]} : vector<8x1536xf32> to vector<8x1280xf32>
    %181 = vector.extract_strided_slice %165 {offsets = [0, 158], sizes = [8, 1280], strides = [1, 1]} : vector<8x1536xf32> to vector<8x1280xf32>
    %182 = vector.extract_strided_slice %165 {offsets = [0, 159], sizes = [8, 1280], strides = [1, 1]} : vector<8x1536xf32> to vector<8x1280xf32>
    %183 = vector.extract_strided_slice %165 {offsets = [0, 160], sizes = [8, 1280], strides = [1, 1]} : vector<8x1536xf32> to vector<8x1280xf32>
    %184 = vector.extract_strided_slice %165 {offsets = [0, 161], sizes = [8, 1280], strides = [1, 1]} : vector<8x1536xf32> to vector<8x1280xf32>
    %185 = vector.extract_strided_slice %165 {offsets = [0, 162], sizes = [8, 1280], strides = [1, 1]} : vector<8x1536xf32> to vector<8x1280xf32>
    %186 = vector.extract_strided_slice %165 {offsets = [0, 190], sizes = [8, 1280], strides = [1, 1]} : vector<8x1536xf32> to vector<8x1280xf32>
    %187 = vector.extract_strided_slice %165 {offsets = [0, 191], sizes = [8, 1280], strides = [1, 1]} : vector<8x1536xf32> to vector<8x1280xf32>
    %188 = vector.extract_strided_slice %165 {offsets = [0, 192], sizes = [8, 1280], strides = [1, 1]} : vector<8x1536xf32> to vector<8x1280xf32>
    %189 = vector.extract_strided_slice %165 {offsets = [0, 193], sizes = [8, 1280], strides = [1, 1]} : vector<8x1536xf32> to vector<8x1280xf32>
    %190 = vector.extract_strided_slice %165 {offsets = [0, 194], sizes = [8, 1280], strides = [1, 1]} : vector<8x1536xf32> to vector<8x1280xf32>
    %191 = tpu.concatenate %166, %167, %168, %169, %170, %171, %172, %173, %174, %175, %176, %177, %178, %179, %180, %181 in 0 : vector<8x1280xf32>, vector<8x1280xf32>, vector<8x1280xf32>, vector<8x1280xf32>, vector<8x1280xf32>, vector<8x1280xf32>, vector<8x1280xf32>, vector<8x1280xf32>, vector<8x1280xf32>, vector<8x1280xf32>, vector<8x1280xf32>, vector<8x1280xf32>, vector<8x1280xf32>, vector<8x1280xf32>, vector<8x1280xf32>, vector<8x1280xf32> -> vector<128x1280xf32>
    %192 = tpu.concatenate %182, %183, %184, %185, %186, %187, %188, %189, %190 in 0 : vector<8x1280xf32>, vector<8x1280xf32>, vector<8x1280xf32>, vector<8x1280xf32>, vector<8x1280xf32>, vector<8x1280xf32>, vector<8x1280xf32>, vector<8x1280xf32>, vector<8x1280xf32> -> vector<72x1280xf32>
    %193 = tpu.concatenate %191, %192 in 0 : vector<128x1280xf32>, vector<72x1280xf32> -> vector<200x1280xf32>
    %c0_54 = arith.constant 0 : index
    %c0_55 = arith.constant 0 : index
    %194 = vector.load %arg5[%c0_54, %c0_55] : memref<16x200xf32, #tpu.memory_space<vmem>>, vector<16x200xf32>
    %cst_56 = arith.constant dense<0.000000e+00> : vector<16x1280xf32>
    %195 = tpu.matmul %194, %193, %cst_56 {dimension_numbers = #tpu.dot_dimension_numbers<[1], [0], [0], [1], [0, 0, 1, 1], [], []>} : vector<16x200xf32>, vector<200x1280xf32>, vector<16x1280xf32> -> vector<16x1280xf32>
    %c0_57 = arith.constant 0 : index
    %c0_58 = arith.constant 0 : index
    %196 = vector.load %arg6[%c0_57, %c0_58] : memref<16x3xf32, #tpu.memory_space<vmem>>, vector<16x1xf32>
    %c0_59 = arith.constant 0 : index
    %c1_60 = arith.constant 1 : index
    %197 = vector.load %arg6[%c0_59, %c1_60] : memref<16x3xf32, #tpu.memory_space<vmem>>, vector<16x1xf32>
    %c0_61 = arith.constant 0 : index
    %c2_62 = arith.constant 2 : index
    %198 = vector.load %arg6[%c0_61, %c2_62] : memref<16x3xf32, #tpu.memory_space<vmem>>, vector<16x1xf32>
    %199 = vector.broadcast %196 : vector<16x1xf32> to vector<16x1280xf32>
    %200 = arith.addf %195, %199 : vector<16x1280xf32>
    %201 = vector.broadcast %0 : vector<1x1280xf32> to vector<16x1280xf32>
    %202 = arith.mulf %200, %201 : vector<16x1280xf32>
    %cst_63 = arith.constant dense<0.000000e+00> : vector<16xf32>
    %203 = vector.multi_reduction <add>, %202, %cst_63 [1] : vector<16x1280xf32> to vector<16xf32>
    %204 = vector.shape_cast %203 : vector<16xf32> to vector<16x1xf32>
    %cst_64 = arith.constant 0.001953125 : f32
    %205 = vector.broadcast %cst_64 : f32 to vector<16x1xf32>
    %206 = arith.mulf %204, %205 : vector<16x1xf32>
    %207 = vector.broadcast %206 : vector<16x1xf32> to vector<16x1280xf32>
    %208 = arith.subf %200, %207 : vector<16x1280xf32>
    %209 = vector.broadcast %0 : vector<1x1280xf32> to vector<16x1280xf32>
    %210 = arith.mulf %208, %209 : vector<16x1280xf32>
    %211 = arith.mulf %210, %210 : vector<16x1280xf32>
    %cst_65 = arith.constant dense<0.000000e+00> : vector<16xf32>
    %212 = vector.multi_reduction <add>, %211, %cst_65 [1] : vector<16x1280xf32> to vector<16xf32>
    %213 = vector.shape_cast %212 : vector<16xf32> to vector<16x1xf32>
    %cst_66 = arith.constant 0.001953125 : f32
    %214 = vector.broadcast %cst_66 : f32 to vector<16x1xf32>
    %215 = arith.mulf %213, %214 : vector<16x1xf32>
    %cst_67 = arith.constant 9.99999974E-6 : f32
    %216 = vector.broadcast %cst_67 : f32 to vector<16x1xf32>
    %217 = arith.addf %215, %216 : vector<16x1xf32>
    %218 = math.rsqrt %217 : vector<16x1xf32>
    %219 = vector.broadcast %218 : vector<16x1xf32> to vector<16x1280xf32>
    %220 = arith.mulf %210, %219 : vector<16x1280xf32>
    %221 = vector.broadcast %197 : vector<16x1xf32> to vector<16x1280xf32>
    %222 = arith.mulf %220, %221 : vector<16x1280xf32>
    %223 = vector.broadcast %198 : vector<16x1xf32> to vector<16x1280xf32>
    %224 = arith.addf %222, %223 : vector<16x1280xf32>
    %cst_68 = arith.constant 0.000000e+00 : f32
    %225 = vector.broadcast %cst_68 : f32 to vector<16x1280xf32>
    %226 = arith.maximumf %224, %225 : vector<16x1280xf32>
    %227 = vector.broadcast %0 : vector<1x1280xf32> to vector<16x1280xf32>
    %228 = arith.mulf %226, %227 : vector<16x1280xf32>
    %cst_69 = arith.constant 0.000000e+00 : f32
    %229 = vector.broadcast %cst_69 : f32 to vector<16x128xf32>
    %230 = tpu.concatenate %229, %228, %229 in 1 : vector<16x128xf32>, vector<16x1280xf32>, vector<16x128xf32> -> vector<16x1536xf32>
    %231 = vector.extract_strided_slice %230 {offsets = [0, 62], sizes = [16, 1280], strides = [1, 1]} : vector<16x1536xf32> to vector<16x1280xf32>
    %232 = vector.extract_strided_slice %230 {offsets = [0, 63], sizes = [16, 1280], strides = [1, 1]} : vector<16x1536xf32> to vector<16x1280xf32>
    %233 = vector.extract_strided_slice %230 {offsets = [0, 64], sizes = [16, 1280], strides = [1, 1]} : vector<16x1536xf32> to vector<16x1280xf32>
    %234 = vector.extract_strided_slice %230 {offsets = [0, 65], sizes = [16, 1280], strides = [1, 1]} : vector<16x1536xf32> to vector<16x1280xf32>
    %235 = vector.extract_strided_slice %230 {offsets = [0, 66], sizes = [16, 1280], strides = [1, 1]} : vector<16x1536xf32> to vector<16x1280xf32>
    %236 = vector.extract_strided_slice %230 {offsets = [0, 94], sizes = [16, 1280], strides = [1, 1]} : vector<16x1536xf32> to vector<16x1280xf32>
    %237 = vector.extract_strided_slice %230 {offsets = [0, 95], sizes = [16, 1280], strides = [1, 1]} : vector<16x1536xf32> to vector<16x1280xf32>
    %238 = vector.extract_strided_slice %230 {offsets = [0, 96], sizes = [16, 1280], strides = [1, 1]} : vector<16x1536xf32> to vector<16x1280xf32>
    %239 = vector.extract_strided_slice %230 {offsets = [0, 97], sizes = [16, 1280], strides = [1, 1]} : vector<16x1536xf32> to vector<16x1280xf32>
    %240 = vector.extract_strided_slice %230 {offsets = [0, 98], sizes = [16, 1280], strides = [1, 1]} : vector<16x1536xf32> to vector<16x1280xf32>
    %241 = vector.extract_strided_slice %230 {offsets = [0, 126], sizes = [16, 1280], strides = [1, 1]} : vector<16x1536xf32> to vector<16x1280xf32>
    %242 = vector.extract_strided_slice %230 {offsets = [0, 127], sizes = [16, 1280], strides = [1, 1]} : vector<16x1536xf32> to vector<16x1280xf32>
    %243 = vector.extract_strided_slice %230 {offsets = [0, 128], sizes = [16, 1280], strides = [1, 1]} : vector<16x1536xf32> to vector<16x1280xf32>
    %244 = vector.extract_strided_slice %230 {offsets = [0, 129], sizes = [16, 1280], strides = [1, 1]} : vector<16x1536xf32> to vector<16x1280xf32>
    %245 = vector.extract_strided_slice %230 {offsets = [0, 130], sizes = [16, 1280], strides = [1, 1]} : vector<16x1536xf32> to vector<16x1280xf32>
    %246 = vector.extract_strided_slice %230 {offsets = [0, 158], sizes = [16, 1280], strides = [1, 1]} : vector<16x1536xf32> to vector<16x1280xf32>
    %247 = vector.extract_strided_slice %230 {offsets = [0, 159], sizes = [16, 1280], strides = [1, 1]} : vector<16x1536xf32> to vector<16x1280xf32>
    %248 = vector.extract_strided_slice %230 {offsets = [0, 160], sizes = [16, 1280], strides = [1, 1]} : vector<16x1536xf32> to vector<16x1280xf32>
    %249 = vector.extract_strided_slice %230 {offsets = [0, 161], sizes = [16, 1280], strides = [1, 1]} : vector<16x1536xf32> to vector<16x1280xf32>
    %250 = vector.extract_strided_slice %230 {offsets = [0, 162], sizes = [16, 1280], strides = [1, 1]} : vector<16x1536xf32> to vector<16x1280xf32>
    %251 = vector.extract_strided_slice %230 {offsets = [0, 190], sizes = [16, 1280], strides = [1, 1]} : vector<16x1536xf32> to vector<16x1280xf32>
    %252 = vector.extract_strided_slice %230 {offsets = [0, 191], sizes = [16, 1280], strides = [1, 1]} : vector<16x1536xf32> to vector<16x1280xf32>
    %253 = vector.extract_strided_slice %230 {offsets = [0, 192], sizes = [16, 1280], strides = [1, 1]} : vector<16x1536xf32> to vector<16x1280xf32>
    %254 = vector.extract_strided_slice %230 {offsets = [0, 193], sizes = [16, 1280], strides = [1, 1]} : vector<16x1536xf32> to vector<16x1280xf32>
    %255 = vector.extract_strided_slice %230 {offsets = [0, 194], sizes = [16, 1280], strides = [1, 1]} : vector<16x1536xf32> to vector<16x1280xf32>
    %256 = tpu.concatenate %231, %232, %233, %234, %235, %236, %237, %238, %239, %240, %241, %242, %243, %244, %245, %246 in 0 : vector<16x1280xf32>, vector<16x1280xf32>, vector<16x1280xf32>, vector<16x1280xf32>, vector<16x1280xf32>, vector<16x1280xf32>, vector<16x1280xf32>, vector<16x1280xf32>, vector<16x1280xf32>, vector<16x1280xf32>, vector<16x1280xf32>, vector<16x1280xf32>, vector<16x1280xf32>, vector<16x1280xf32>, vector<16x1280xf32>, vector<16x1280xf32> -> vector<256x1280xf32>
    %257 = tpu.concatenate %247, %248, %249, %250, %251, %252, %253, %254, %255 in 0 : vector<16x1280xf32>, vector<16x1280xf32>, vector<16x1280xf32>, vector<16x1280xf32>, vector<16x1280xf32>, vector<16x1280xf32>, vector<16x1280xf32>, vector<16x1280xf32>, vector<16x1280xf32> -> vector<144x1280xf32>
    %258 = tpu.concatenate %256, %257 in 0 : vector<256x1280xf32>, vector<144x1280xf32> -> vector<400x1280xf32>
    %c0_70 = arith.constant 0 : index
    %c0_71 = arith.constant 0 : index
    %259 = vector.load %arg7[%c0_70, %c0_71] : memref<32x400xf32, #tpu.memory_space<vmem>>, vector<32x400xf32>
    %cst_72 = arith.constant dense<0.000000e+00> : vector<32x1280xf32>
    %260 = tpu.matmul %259, %258, %cst_72 {dimension_numbers = #tpu.dot_dimension_numbers<[1], [0], [0], [1], [0, 0, 1, 1], [], []>} : vector<32x400xf32>, vector<400x1280xf32>, vector<32x1280xf32> -> vector<32x1280xf32>
    %c0_73 = arith.constant 0 : index
    %c0_74 = arith.constant 0 : index
    %261 = vector.load %arg8[%c0_73, %c0_74] : memref<32x3xf32, #tpu.memory_space<vmem>>, vector<32x1xf32>
    %c0_75 = arith.constant 0 : index
    %c1_76 = arith.constant 1 : index
    %262 = vector.load %arg8[%c0_75, %c1_76] : memref<32x3xf32, #tpu.memory_space<vmem>>, vector<32x1xf32>
    %c0_77 = arith.constant 0 : index
    %c2_78 = arith.constant 2 : index
    %263 = vector.load %arg8[%c0_77, %c2_78] : memref<32x3xf32, #tpu.memory_space<vmem>>, vector<32x1xf32>
    %264 = vector.broadcast %261 : vector<32x1xf32> to vector<32x1280xf32>
    %265 = arith.addf %260, %264 : vector<32x1280xf32>
    %266 = vector.broadcast %0 : vector<1x1280xf32> to vector<32x1280xf32>
    %267 = arith.mulf %265, %266 : vector<32x1280xf32>
    %cst_79 = arith.constant dense<0.000000e+00> : vector<32xf32>
    %268 = vector.multi_reduction <add>, %267, %cst_79 [1] : vector<32x1280xf32> to vector<32xf32>
    %269 = vector.shape_cast %268 : vector<32xf32> to vector<32x1xf32>
    %cst_80 = arith.constant 0.001953125 : f32
    %270 = vector.broadcast %cst_80 : f32 to vector<32x1xf32>
    %271 = arith.mulf %269, %270 : vector<32x1xf32>
    %272 = vector.broadcast %271 : vector<32x1xf32> to vector<32x1280xf32>
    %273 = arith.subf %265, %272 : vector<32x1280xf32>
    %274 = vector.broadcast %0 : vector<1x1280xf32> to vector<32x1280xf32>
    %275 = arith.mulf %273, %274 : vector<32x1280xf32>
    %276 = arith.mulf %275, %275 : vector<32x1280xf32>
    %cst_81 = arith.constant dense<0.000000e+00> : vector<32xf32>
    %277 = vector.multi_reduction <add>, %276, %cst_81 [1] : vector<32x1280xf32> to vector<32xf32>
    %278 = vector.shape_cast %277 : vector<32xf32> to vector<32x1xf32>
    %cst_82 = arith.constant 0.001953125 : f32
    %279 = vector.broadcast %cst_82 : f32 to vector<32x1xf32>
    %280 = arith.mulf %278, %279 : vector<32x1xf32>
    %cst_83 = arith.constant 9.99999974E-6 : f32
    %281 = vector.broadcast %cst_83 : f32 to vector<32x1xf32>
    %282 = arith.addf %280, %281 : vector<32x1xf32>
    %283 = math.rsqrt %282 : vector<32x1xf32>
    %284 = vector.broadcast %283 : vector<32x1xf32> to vector<32x1280xf32>
    %285 = arith.mulf %275, %284 : vector<32x1280xf32>
    %286 = vector.broadcast %262 : vector<32x1xf32> to vector<32x1280xf32>
    %287 = arith.mulf %285, %286 : vector<32x1280xf32>
    %288 = vector.broadcast %263 : vector<32x1xf32> to vector<32x1280xf32>
    %289 = arith.addf %287, %288 : vector<32x1280xf32>
    %cst_84 = arith.constant 0.000000e+00 : f32
    %290 = vector.broadcast %cst_84 : f32 to vector<32x1280xf32>
    %291 = arith.maximumf %289, %290 : vector<32x1280xf32>
    %292 = vector.broadcast %0 : vector<1x1280xf32> to vector<32x1280xf32>
    %293 = arith.mulf %291, %292 : vector<32x1280xf32>
    %294 = vector.extract_strided_slice %293 {offsets = [0, 66], sizes = [32, 16], strides = [1, 1]} : vector<32x1280xf32> to vector<32x16xf32>
    %c0_85 = arith.constant 0 : index
    %c0_86 = arith.constant 0 : index
    %c0_87 = arith.constant 0 : index
    %295 = vector.load %arg9[%c0_85, %c0_86, %c0_87] : memref<2x32x256xf32, #tpu.memory_space<vmem>>, vector<1x32x16xf32>
    %296 = vector.shape_cast %295 : vector<1x32x16xf32> to vector<32x16xf32>
    %297 = vector.shape_cast %294 : vector<32x16xf32> to vector<1x32x16xf32>
    tpu.vector_store %arg9[%c0_85, %c0_86, %c0_87], %297 {strides = array<i32>} : memref<2x32x256xf32, #tpu.memory_space<vmem>>, vector<1x32x16xf32>,
    %298 = vector.extract_strided_slice %293 {offsets = [0, 98], sizes = [32, 16], strides = [1, 1]} : vector<32x1280xf32> to vector<32x16xf32>
    %c0_88 = arith.constant 0 : index
    %c0_89 = arith.constant 0 : index
    %c16 = arith.constant 16 : index
    %299 = vector.load %arg9[%c0_88, %c0_89, %c16] : memref<2x32x256xf32, #tpu.memory_space<vmem>>, vector<1x32x16xf32>
    %300 = vector.shape_cast %299 : vector<1x32x16xf32> to vector<32x16xf32>
    %301 = vector.shape_cast %298 : vector<32x16xf32> to vector<1x32x16xf32>
    tpu.vector_store %arg9[%c0_88, %c0_89, %c16], %301 {strides = array<i32>} : memref<2x32x256xf32, #tpu.memory_space<vmem>>, vector<1x32x16xf32>,
    %302 = vector.extract_strided_slice %293 {offsets = [0, 130], sizes = [32, 16], strides = [1, 1]} : vector<32x1280xf32> to vector<32x16xf32>
    %c0_90 = arith.constant 0 : index
    %c0_91 = arith.constant 0 : index
    %c32 = arith.constant 32 : index
    %303 = vector.load %arg9[%c0_90, %c0_91, %c32] : memref<2x32x256xf32, #tpu.memory_space<vmem>>, vector<1x32x16xf32>
    %304 = vector.shape_cast %303 : vector<1x32x16xf32> to vector<32x16xf32>
    %305 = vector.shape_cast %302 : vector<32x16xf32> to vector<1x32x16xf32>
    tpu.vector_store %arg9[%c0_90, %c0_91, %c32], %305 {strides = array<i32>} : memref<2x32x256xf32, #tpu.memory_space<vmem>>, vector<1x32x16xf32>,
    %306 = vector.extract_strided_slice %293 {offsets = [0, 162], sizes = [32, 16], strides = [1, 1]} : vector<32x1280xf32> to vector<32x16xf32>
    %c0_92 = arith.constant 0 : index
    %c0_93 = arith.constant 0 : index
    %c48 = arith.constant 48 : index
    %307 = vector.load %arg9[%c0_92, %c0_93, %c48] : memref<2x32x256xf32, #tpu.memory_space<vmem>>, vector<1x32x16xf32>
    %308 = vector.shape_cast %307 : vector<1x32x16xf32> to vector<32x16xf32>
    %309 = vector.shape_cast %306 : vector<32x16xf32> to vector<1x32x16xf32>
    tpu.vector_store %arg9[%c0_92, %c0_93, %c48], %309 {strides = array<i32>} : memref<2x32x256xf32, #tpu.memory_space<vmem>>, vector<1x32x16xf32>,
    %310 = vector.extract_strided_slice %293 {offsets = [0, 194], sizes = [32, 16], strides = [1, 1]} : vector<32x1280xf32> to vector<32x16xf32>
    %c0_94 = arith.constant 0 : index
    %c0_95 = arith.constant 0 : index
    %c64 = arith.constant 64 : index
    %311 = vector.load %arg9[%c0_94, %c0_95, %c64] : memref<2x32x256xf32, #tpu.memory_space<vmem>>, vector<1x32x16xf32>
    %312 = vector.shape_cast %311 : vector<1x32x16xf32> to vector<32x16xf32>
    %313 = vector.shape_cast %310 : vector<32x16xf32> to vector<1x32x16xf32>
    tpu.vector_store %arg9[%c0_94, %c0_95, %c64], %313 {strides = array<i32>} : memref<2x32x256xf32, #tpu.memory_space<vmem>>, vector<1x32x16xf32>,
    %314 = vector.extract_strided_slice %293 {offsets = [0, 226], sizes = [32, 16], strides = [1, 1]} : vector<32x1280xf32> to vector<32x16xf32>
    %c0_96 = arith.constant 0 : index
    %c0_97 = arith.constant 0 : index
    %c80 = arith.constant 80 : index
    %315 = vector.load %arg9[%c0_96, %c0_97, %c80] : memref<2x32x256xf32, #tpu.memory_space<vmem>>, vector<1x32x16xf32>
    %316 = vector.shape_cast %315 : vector<1x32x16xf32> to vector<32x16xf32>
    %317 = vector.shape_cast %314 : vector<32x16xf32> to vector<1x32x16xf32>
    tpu.vector_store %arg9[%c0_96, %c0_97, %c80], %317 {strides = array<i32>} : memref<2x32x256xf32, #tpu.memory_space<vmem>>, vector<1x32x16xf32>,
    %318 = vector.extract_strided_slice %293 {offsets = [0, 258], sizes = [32, 16], strides = [1, 1]} : vector<32x1280xf32> to vector<32x16xf32>
    %c0_98 = arith.constant 0 : index
    %c0_99 = arith.constant 0 : index
    %c96 = arith.constant 96 : index
    %319 = vector.load %arg9[%c0_98, %c0_99, %c96] : memref<2x32x256xf32, #tpu.memory_space<vmem>>, vector<1x32x16xf32>
    %320 = vector.shape_cast %319 : vector<1x32x16xf32> to vector<32x16xf32>
    %321 = vector.shape_cast %318 : vector<32x16xf32> to vector<1x32x16xf32>
    tpu.vector_store %arg9[%c0_98, %c0_99, %c96], %321 {strides = array<i32>} : memref<2x32x256xf32, #tpu.memory_space<vmem>>, vector<1x32x16xf32>,
    %322 = vector.extract_strided_slice %293 {offsets = [0, 290], sizes = [32, 16], strides = [1, 1]} : vector<32x1280xf32> to vector<32x16xf32>
    %c0_100 = arith.constant 0 : index
    %c0_101 = arith.constant 0 : index
    %c112 = arith.constant 112 : index
    %323 = vector.load %arg9[%c0_100, %c0_101, %c112] : memref<2x32x256xf32, #tpu.memory_space<vmem>>, vector<1x32x16xf32>
    %324 = vector.shape_cast %323 : vector<1x32x16xf32> to vector<32x16xf32>
    %325 = vector.shape_cast %322 : vector<32x16xf32> to vector<1x32x16xf32>
    tpu.vector_store %arg9[%c0_100, %c0_101, %c112], %325 {strides = array<i32>} : memref<2x32x256xf32, #tpu.memory_space<vmem>>, vector<1x32x16xf32>,
    %326 = vector.extract_strided_slice %293 {offsets = [0, 322], sizes = [32, 16], strides = [1, 1]} : vector<32x1280xf32> to vector<32x16xf32>
    %c0_102 = arith.constant 0 : index
    %c0_103 = arith.constant 0 : index
    %c128 = arith.constant 128 : index
    %327 = vector.load %arg9[%c0_102, %c0_103, %c128] : memref<2x32x256xf32, #tpu.memory_space<vmem>>, vector<1x32x16xf32>
    %328 = vector.shape_cast %327 : vector<1x32x16xf32> to vector<32x16xf32>
    %329 = vector.shape_cast %326 : vector<32x16xf32> to vector<1x32x16xf32>
    tpu.vector_store %arg9[%c0_102, %c0_103, %c128], %329 {strides = array<i32>} : memref<2x32x256xf32, #tpu.memory_space<vmem>>, vector<1x32x16xf32>,
    %330 = vector.extract_strided_slice %293 {offsets = [0, 354], sizes = [32, 16], strides = [1, 1]} : vector<32x1280xf32> to vector<32x16xf32>
    %c0_104 = arith.constant 0 : index
    %c0_105 = arith.constant 0 : index
    %c144 = arith.constant 144 : index
    %331 = vector.load %arg9[%c0_104, %c0_105, %c144] : memref<2x32x256xf32, #tpu.memory_space<vmem>>, vector<1x32x16xf32>
    %332 = vector.shape_cast %331 : vector<1x32x16xf32> to vector<32x16xf32>
    %333 = vector.shape_cast %330 : vector<32x16xf32> to vector<1x32x16xf32>
    tpu.vector_store %arg9[%c0_104, %c0_105, %c144], %333 {strides = array<i32>} : memref<2x32x256xf32, #tpu.memory_space<vmem>>, vector<1x32x16xf32>,
    %334 = vector.extract_strided_slice %293 {offsets = [0, 386], sizes = [32, 16], strides = [1, 1]} : vector<32x1280xf32> to vector<32x16xf32>
    %c0_106 = arith.constant 0 : index
    %c0_107 = arith.constant 0 : index
    %c160 = arith.constant 160 : index
    %335 = vector.load %arg9[%c0_106, %c0_107, %c160] : memref<2x32x256xf32, #tpu.memory_space<vmem>>, vector<1x32x16xf32>
    %336 = vector.shape_cast %335 : vector<1x32x16xf32> to vector<32x16xf32>
    %337 = vector.shape_cast %334 : vector<32x16xf32> to vector<1x32x16xf32>
    tpu.vector_store %arg9[%c0_106, %c0_107, %c160], %337 {strides = array<i32>} : memref<2x32x256xf32, #tpu.memory_space<vmem>>, vector<1x32x16xf32>,
    %338 = vector.extract_strided_slice %293 {offsets = [0, 418], sizes = [32, 16], strides = [1, 1]} : vector<32x1280xf32> to vector<32x16xf32>
    %c0_108 = arith.constant 0 : index
    %c0_109 = arith.constant 0 : index
    %c176 = arith.constant 176 : index
    %339 = vector.load %arg9[%c0_108, %c0_109, %c176] : memref<2x32x256xf32, #tpu.memory_space<vmem>>, vector<1x32x16xf32>
    %340 = vector.shape_cast %339 : vector<1x32x16xf32> to vector<32x16xf32>
    %341 = vector.shape_cast %338 : vector<32x16xf32> to vector<1x32x16xf32>
    tpu.vector_store %arg9[%c0_108, %c0_109, %c176], %341 {strides = array<i32>} : memref<2x32x256xf32, #tpu.memory_space<vmem>>, vector<1x32x16xf32>,
    %342 = vector.extract_strided_slice %293 {offsets = [0, 450], sizes = [32, 16], strides = [1, 1]} : vector<32x1280xf32> to vector<32x16xf32>
    %c0_110 = arith.constant 0 : index
    %c0_111 = arith.constant 0 : index
    %c192 = arith.constant 192 : index
    %343 = vector.load %arg9[%c0_110, %c0_111, %c192] : memref<2x32x256xf32, #tpu.memory_space<vmem>>, vector<1x32x16xf32>
    %344 = vector.shape_cast %343 : vector<1x32x16xf32> to vector<32x16xf32>
    %345 = vector.shape_cast %342 : vector<32x16xf32> to vector<1x32x16xf32>
    tpu.vector_store %arg9[%c0_110, %c0_111, %c192], %345 {strides = array<i32>} : memref<2x32x256xf32, #tpu.memory_space<vmem>>, vector<1x32x16xf32>,
    %346 = vector.extract_strided_slice %293 {offsets = [0, 482], sizes = [32, 16], strides = [1, 1]} : vector<32x1280xf32> to vector<32x16xf32>
    %c0_112 = arith.constant 0 : index
    %c0_113 = arith.constant 0 : index
    %c208 = arith.constant 208 : index
    %347 = vector.load %arg9[%c0_112, %c0_113, %c208] : memref<2x32x256xf32, #tpu.memory_space<vmem>>, vector<1x32x16xf32>
    %348 = vector.shape_cast %347 : vector<1x32x16xf32> to vector<32x16xf32>
    %349 = vector.shape_cast %346 : vector<32x16xf32> to vector<1x32x16xf32>
    tpu.vector_store %arg9[%c0_112, %c0_113, %c208], %349 {strides = array<i32>} : memref<2x32x256xf32, #tpu.memory_space<vmem>>, vector<1x32x16xf32>,
    %350 = vector.extract_strided_slice %293 {offsets = [0, 514], sizes = [32, 16], strides = [1, 1]} : vector<32x1280xf32> to vector<32x16xf32>
    %c0_114 = arith.constant 0 : index
    %c0_115 = arith.constant 0 : index
    %c224 = arith.constant 224 : index
    %351 = vector.load %arg9[%c0_114, %c0_115, %c224] : memref<2x32x256xf32, #tpu.memory_space<vmem>>, vector<1x32x16xf32>
    %352 = vector.shape_cast %351 : vector<1x32x16xf32> to vector<32x16xf32>
    %353 = vector.shape_cast %350 : vector<32x16xf32> to vector<1x32x16xf32>
    tpu.vector_store %arg9[%c0_114, %c0_115, %c224], %353 {strides = array<i32>} : memref<2x32x256xf32, #tpu.memory_space<vmem>>, vector<1x32x16xf32>,
    %354 = vector.extract_strided_slice %293 {offsets = [0, 546], sizes = [32, 16], strides = [1, 1]} : vector<32x1280xf32> to vector<32x16xf32>
    %c0_116 = arith.constant 0 : index
    %c0_117 = arith.constant 0 : index
    %c240 = arith.constant 240 : index
    %355 = vector.load %arg9[%c0_116, %c0_117, %c240] : memref<2x32x256xf32, #tpu.memory_space<vmem>>, vector<1x32x16xf32>
    %356 = vector.shape_cast %355 : vector<1x32x16xf32> to vector<32x16xf32>
    %357 = vector.shape_cast %354 : vector<32x16xf32> to vector<1x32x16xf32>
    tpu.vector_store %arg9[%c0_116, %c0_117, %c240], %357 {strides = array<i32>} : memref<2x32x256xf32, #tpu.memory_space<vmem>>, vector<1x32x16xf32>,
    %358 = vector.extract_strided_slice %293 {offsets = [0, 706], sizes = [32, 16], strides = [1, 1]} : vector<32x1280xf32> to vector<32x16xf32>
    %c1_118 = arith.constant 1 : index
    %c0_119 = arith.constant 0 : index
    %c0_120 = arith.constant 0 : index
    %359 = vector.load %arg9[%c1_118, %c0_119, %c0_120] : memref<2x32x256xf32, #tpu.memory_space<vmem>>, vector<1x32x16xf32>
    %360 = vector.shape_cast %359 : vector<1x32x16xf32> to vector<32x16xf32>
    %361 = vector.shape_cast %358 : vector<32x16xf32> to vector<1x32x16xf32>
    tpu.vector_store %arg9[%c1_118, %c0_119, %c0_120], %361 {strides = array<i32>} : memref<2x32x256xf32, #tpu.memory_space<vmem>>, vector<1x32x16xf32>,
    %362 = vector.extract_strided_slice %293 {offsets = [0, 738], sizes = [32, 16], strides = [1, 1]} : vector<32x1280xf32> to vector<32x16xf32>
    %c1_121 = arith.constant 1 : index
    %c0_122 = arith.constant 0 : index
    %c16_123 = arith.constant 16 : index
    %363 = vector.load %arg9[%c1_121, %c0_122, %c16_123] : memref<2x32x256xf32, #tpu.memory_space<vmem>>, vector<1x32x16xf32>
    %364 = vector.shape_cast %363 : vector<1x32x16xf32> to vector<32x16xf32>
    %365 = vector.shape_cast %362 : vector<32x16xf32> to vector<1x32x16xf32>
    tpu.vector_store %arg9[%c1_121, %c0_122, %c16_123], %365 {strides = array<i32>} : memref<2x32x256xf32, #tpu.memory_space<vmem>>, vector<1x32x16xf32>,
    %366 = vector.extract_strided_slice %293 {offsets = [0, 770], sizes = [32, 16], strides = [1, 1]} : vector<32x1280xf32> to vector<32x16xf32>
    %c1_124 = arith.constant 1 : index
    %c0_125 = arith.constant 0 : index
    %c32_126 = arith.constant 32 : index
    %367 = vector.load %arg9[%c1_124, %c0_125, %c32_126] : memref<2x32x256xf32, #tpu.memory_space<vmem>>, vector<1x32x16xf32>
    %368 = vector.shape_cast %367 : vector<1x32x16xf32> to vector<32x16xf32>
    %369 = vector.shape_cast %366 : vector<32x16xf32> to vector<1x32x16xf32>
    tpu.vector_store %arg9[%c1_124, %c0_125, %c32_126], %369 {strides = array<i32>} : memref<2x32x256xf32, #tpu.memory_space<vmem>>, vector<1x32x16xf32>,
    %370 = vector.extract_strided_slice %293 {offsets = [0, 802], sizes = [32, 16], strides = [1, 1]} : vector<32x1280xf32> to vector<32x16xf32>
    %c1_127 = arith.constant 1 : index
    %c0_128 = arith.constant 0 : index
    %c48_129 = arith.constant 48 : index
    %371 = vector.load %arg9[%c1_127, %c0_128, %c48_129] : memref<2x32x256xf32, #tpu.memory_space<vmem>>, vector<1x32x16xf32>
    %372 = vector.shape_cast %371 : vector<1x32x16xf32> to vector<32x16xf32>
    %373 = vector.shape_cast %370 : vector<32x16xf32> to vector<1x32x16xf32>
    tpu.vector_store %arg9[%c1_127, %c0_128, %c48_129], %373 {strides = array<i32>} : memref<2x32x256xf32, #tpu.memory_space<vmem>>, vector<1x32x16xf32>,
    %374 = vector.extract_strided_slice %293 {offsets = [0, 834], sizes = [32, 16], strides = [1, 1]} : vector<32x1280xf32> to vector<32x16xf32>
    %c1_130 = arith.constant 1 : index
    %c0_131 = arith.constant 0 : index
    %c64_132 = arith.constant 64 : index
    %375 = vector.load %arg9[%c1_130, %c0_131, %c64_132] : memref<2x32x256xf32, #tpu.memory_space<vmem>>, vector<1x32x16xf32>
    %376 = vector.shape_cast %375 : vector<1x32x16xf32> to vector<32x16xf32>
    %377 = vector.shape_cast %374 : vector<32x16xf32> to vector<1x32x16xf32>
    tpu.vector_store %arg9[%c1_130, %c0_131, %c64_132], %377 {strides = array<i32>} : memref<2x32x256xf32, #tpu.memory_space<vmem>>, vector<1x32x16xf32>,
    %378 = vector.extract_strided_slice %293 {offsets = [0, 866], sizes = [32, 16], strides = [1, 1]} : vector<32x1280xf32> to vector<32x16xf32>
    %c1_133 = arith.constant 1 : index
    %c0_134 = arith.constant 0 : index
    %c80_135 = arith.constant 80 : index
    %379 = vector.load %arg9[%c1_133, %c0_134, %c80_135] : memref<2x32x256xf32, #tpu.memory_space<vmem>>, vector<1x32x16xf32>
    %380 = vector.shape_cast %379 : vector<1x32x16xf32> to vector<32x16xf32>
    %381 = vector.shape_cast %378 : vector<32x16xf32> to vector<1x32x16xf32>
    tpu.vector_store %arg9[%c1_133, %c0_134, %c80_135], %381 {strides = array<i32>} : memref<2x32x256xf32, #tpu.memory_space<vmem>>, vector<1x32x16xf32>,
    %382 = vector.extract_strided_slice %293 {offsets = [0, 898], sizes = [32, 16], strides = [1, 1]} : vector<32x1280xf32> to vector<32x16xf32>
    %c1_136 = arith.constant 1 : index
    %c0_137 = arith.constant 0 : index
    %c96_138 = arith.constant 96 : index
    %383 = vector.load %arg9[%c1_136, %c0_137, %c96_138] : memref<2x32x256xf32, #tpu.memory_space<vmem>>, vector<1x32x16xf32>
    %384 = vector.shape_cast %383 : vector<1x32x16xf32> to vector<32x16xf32>
    %385 = vector.shape_cast %382 : vector<32x16xf32> to vector<1x32x16xf32>
    tpu.vector_store %arg9[%c1_136, %c0_137, %c96_138], %385 {strides = array<i32>} : memref<2x32x256xf32, #tpu.memory_space<vmem>>, vector<1x32x16xf32>,
    %386 = vector.extract_strided_slice %293 {offsets = [0, 930], sizes = [32, 16], strides = [1, 1]} : vector<32x1280xf32> to vector<32x16xf32>
    %c1_139 = arith.constant 1 : index
    %c0_140 = arith.constant 0 : index
    %c112_141 = arith.constant 112 : index
    %387 = vector.load %arg9[%c1_139, %c0_140, %c112_141] : memref<2x32x256xf32, #tpu.memory_space<vmem>>, vector<1x32x16xf32>
    %388 = vector.shape_cast %387 : vector<1x32x16xf32> to vector<32x16xf32>
    %389 = vector.shape_cast %386 : vector<32x16xf32> to vector<1x32x16xf32>
    tpu.vector_store %arg9[%c1_139, %c0_140, %c112_141], %389 {strides = array<i32>} : memref<2x32x256xf32, #tpu.memory_space<vmem>>, vector<1x32x16xf32>,
    %390 = vector.extract_strided_slice %293 {offsets = [0, 962], sizes = [32, 16], strides = [1, 1]} : vector<32x1280xf32> to vector<32x16xf32>
    %c1_142 = arith.constant 1 : index
    %c0_143 = arith.constant 0 : index
    %c128_144 = arith.constant 128 : index
    %391 = vector.load %arg9[%c1_142, %c0_143, %c128_144] : memref<2x32x256xf32, #tpu.memory_space<vmem>>, vector<1x32x16xf32>
    %392 = vector.shape_cast %391 : vector<1x32x16xf32> to vector<32x16xf32>
    %393 = vector.shape_cast %390 : vector<32x16xf32> to vector<1x32x16xf32>
    tpu.vector_store %arg9[%c1_142, %c0_143, %c128_144], %393 {strides = array<i32>} : memref<2x32x256xf32, #tpu.memory_space<vmem>>, vector<1x32x16xf32>,
    %394 = vector.extract_strided_slice %293 {offsets = [0, 994], sizes = [32, 16], strides = [1, 1]} : vector<32x1280xf32> to vector<32x16xf32>
    %c1_145 = arith.constant 1 : index
    %c0_146 = arith.constant 0 : index
    %c144_147 = arith.constant 144 : index
    %395 = vector.load %arg9[%c1_145, %c0_146, %c144_147] : memref<2x32x256xf32, #tpu.memory_space<vmem>>, vector<1x32x16xf32>
    %396 = vector.shape_cast %395 : vector<1x32x16xf32> to vector<32x16xf32>
    %397 = vector.shape_cast %394 : vector<32x16xf32> to vector<1x32x16xf32>
    tpu.vector_store %arg9[%c1_145, %c0_146, %c144_147], %397 {strides = array<i32>} : memref<2x32x256xf32, #tpu.memory_space<vmem>>, vector<1x32x16xf32>,
    %398 = vector.extract_strided_slice %293 {offsets = [0, 1026], sizes = [32, 16], strides = [1, 1]} : vector<32x1280xf32> to vector<32x16xf32>
    %c1_148 = arith.constant 1 : index
    %c0_149 = arith.constant 0 : index
    %c160_150 = arith.constant 160 : index
    %399 = vector.load %arg9[%c1_148, %c0_149, %c160_150] : memref<2x32x256xf32, #tpu.memory_space<vmem>>, vector<1x32x16xf32>
    %400 = vector.shape_cast %399 : vector<1x32x16xf32> to vector<32x16xf32>
    %401 = vector.shape_cast %398 : vector<32x16xf32> to vector<1x32x16xf32>
    tpu.vector_store %arg9[%c1_148, %c0_149, %c160_150], %401 {strides = array<i32>} : memref<2x32x256xf32, #tpu.memory_space<vmem>>, vector<1x32x16xf32>,
    %402 = vector.extract_strided_slice %293 {offsets = [0, 1058], sizes = [32, 16], strides = [1, 1]} : vector<32x1280xf32> to vector<32x16xf32>
    %c1_151 = arith.constant 1 : index
    %c0_152 = arith.constant 0 : index
    %c176_153 = arith.constant 176 : index
    %403 = vector.load %arg9[%c1_151, %c0_152, %c176_153] : memref<2x32x256xf32, #tpu.memory_space<vmem>>, vector<1x32x16xf32>
    %404 = vector.shape_cast %403 : vector<1x32x16xf32> to vector<32x16xf32>
    %405 = vector.shape_cast %402 : vector<32x16xf32> to vector<1x32x16xf32>
    tpu.vector_store %arg9[%c1_151, %c0_152, %c176_153], %405 {strides = array<i32>} : memref<2x32x256xf32, #tpu.memory_space<vmem>>, vector<1x32x16xf32>,
    %406 = vector.extract_strided_slice %293 {offsets = [0, 1090], sizes = [32, 16], strides = [1, 1]} : vector<32x1280xf32> to vector<32x16xf32>
    %c1_154 = arith.constant 1 : index
    %c0_155 = arith.constant 0 : index
    %c192_156 = arith.constant 192 : index
    %407 = vector.load %arg9[%c1_154, %c0_155, %c192_156] : memref<2x32x256xf32, #tpu.memory_space<vmem>>, vector<1x32x16xf32>
    %408 = vector.shape_cast %407 : vector<1x32x16xf32> to vector<32x16xf32>
    %409 = vector.shape_cast %406 : vector<32x16xf32> to vector<1x32x16xf32>
    tpu.vector_store %arg9[%c1_154, %c0_155, %c192_156], %409 {strides = array<i32>} : memref<2x32x256xf32, #tpu.memory_space<vmem>>, vector<1x32x16xf32>,
    %410 = vector.extract_strided_slice %293 {offsets = [0, 1122], sizes = [32, 16], strides = [1, 1]} : vector<32x1280xf32> to vector<32x16xf32>
    %c1_157 = arith.constant 1 : index
    %c0_158 = arith.constant 0 : index
    %c208_159 = arith.constant 208 : index
    %411 = vector.load %arg9[%c1_157, %c0_158, %c208_159] : memref<2x32x256xf32, #tpu.memory_space<vmem>>, vector<1x32x16xf32>
    %412 = vector.shape_cast %411 : vector<1x32x16xf32> to vector<32x16xf32>
    %413 = vector.shape_cast %410 : vector<32x16xf32> to vector<1x32x16xf32>
    tpu.vector_store %arg9[%c1_157, %c0_158, %c208_159], %413 {strides = array<i32>} : memref<2x32x256xf32, #tpu.memory_space<vmem>>, vector<1x32x16xf32>,
    %414 = vector.extract_strided_slice %293 {offsets = [0, 1154], sizes = [32, 16], strides = [1, 1]} : vector<32x1280xf32> to vector<32x16xf32>
    %c1_160 = arith.constant 1 : index
    %c0_161 = arith.constant 0 : index
    %c224_162 = arith.constant 224 : index
    %415 = vector.load %arg9[%c1_160, %c0_161, %c224_162] : memref<2x32x256xf32, #tpu.memory_space<vmem>>, vector<1x32x16xf32>
    %416 = vector.shape_cast %415 : vector<1x32x16xf32> to vector<32x16xf32>
    %417 = vector.shape_cast %414 : vector<32x16xf32> to vector<1x32x16xf32>
    tpu.vector_store %arg9[%c1_160, %c0_161, %c224_162], %417 {strides = array<i32>} : memref<2x32x256xf32, #tpu.memory_space<vmem>>, vector<1x32x16xf32>,
    %418 = vector.extract_strided_slice %293 {offsets = [0, 1186], sizes = [32, 16], strides = [1, 1]} : vector<32x1280xf32> to vector<32x16xf32>
    %c1_163 = arith.constant 1 : index
    %c0_164 = arith.constant 0 : index
    %c240_165 = arith.constant 240 : index
    %419 = vector.load %arg9[%c1_163, %c0_164, %c240_165] : memref<2x32x256xf32, #tpu.memory_space<vmem>>, vector<1x32x16xf32>
    %420 = vector.shape_cast %419 : vector<1x32x16xf32> to vector<32x16xf32>
    %421 = vector.shape_cast %418 : vector<32x16xf32> to vector<1x32x16xf32>
    tpu.vector_store %arg9[%c1_163, %c0_164, %c240_165], %421 {strides = array<i32>} : memref<2x32x256xf32, #tpu.memory_space<vmem>>, vector<1x32x16xf32>,
    return
  }
  func.func @transform_0(%arg0: i32) -> (i32, i32, i32) {
    %c0_i32 = arith.constant 0 : i32
    %c0_i32_0 = arith.constant 0 : i32
    %c0_i32_1 = arith.constant 0 : i32
    %c0_i32_2 = arith.constant 0 : i32
    return %c0_i32, %c0_i32_0, %c0_i32_1 : i32, i32, i32
  }
  func.func @transform_1(%arg0: i32) -> (i32, i32) {
    %c0_i32 = arith.constant 0 : i32
    %c0_i32_0 = arith.constant 0 : i32
    %c0_i32_1 = arith.constant 0 : i32
    return %c0_i32, %c0_i32_0 : i32, i32
  }
  func.func @transform_2(%arg0: i32) -> (i32, i32) {
    %c0_i32 = arith.constant 0 : i32
    %c0_i32_0 = arith.constant 0 : i32
    %c0_i32_1 = arith.constant 0 : i32
    return %c0_i32, %c0_i32_0 : i32, i32
  }
  func.func @transform_3(%arg0: i32) -> (i32, i32) {
    %c0_i32 = arith.constant 0 : i32
    %c0_i32_0 = arith.constant 0 : i32
    %c0_i32_1 = arith.constant 0 : i32
    return %c0_i32, %c0_i32_0 : i32, i32
  }
  func.func @transform_4(%arg0: i32) -> (i32, i32) {
    %c0_i32 = arith.constant 0 : i32
    %c0_i32_0 = arith.constant 0 : i32
    %c0_i32_1 = arith.constant 0 : i32
    return %c0_i32, %c0_i32_0 : i32, i32
  }
  func.func @transform_5(%arg0: i32) -> (i32, i32) {
    %c0_i32 = arith.constant 0 : i32
    %c0_i32_0 = arith.constant 0 : i32
    %c0_i32_1 = arith.constant 0 : i32
    return %c0_i32, %c0_i32_0 : i32, i32
  }
  func.func @transform_6(%arg0: i32) -> (i32, i32) {
    %c0_i32 = arith.constant 0 : i32
    %c0_i32_0 = arith.constant 0 : i32
    %c0_i32_1 = arith.constant 0 : i32
    return %c0_i32, %c0_i32_0 : i32, i32
  }
  func.func @transform_7(%arg0: i32) -> (i32, i32) {
    %c0_i32 = arith.constant 0 : i32
    %c0_i32_0 = arith.constant 0 : i32
    %c0_i32_1 = arith.constant 0 : i32
    return %c0_i32, %c0_i32_0 : i32, i32
  }
  func.func @transform_8(%arg0: i32) -> (i32, i32, i32) {
    %c0_i32 = arith.constant 0 : i32
    %c0_i32_0 = arith.constant 0 : i32
    %c0_i32_1 = arith.constant 0 : i32
    %c0_i32_2 = arith.constant 0 : i32
    return %c0_i32, %c0_i32_0, %c0_i32_1 : i32, i32, i32
  }
}

</mosaic_0001>

<llo_original>
// kernel: b_decoder_conv_forward.1
$region0: #{b_decoder_conv_forward.1}
  #allocation0 [shape = 'u32[]', space=smem, size = 0x4, offset = 0x4, fixed_abs, tag = 'smem constant byte address 0x4 - core index']
  #allocation1 [shape = 'u32[144,128]{1,0:T(1,128)}', space=vmem, size = 0x12000, scoped, tag = 'internal scratch']
  #allocation2 [shape = 'f32[8,1536]{1,0:T(8,128)}', space=vmem, size = 0xc000, scoped, tag = 'scratch operand']
  %s0 = inlined_call_operand.vmem [shape: f32[2,4,256], index: 0, kind: input, shape index: {}]
  %s1 = inlined_call_operand.vmem [shape: f32[1,1280], index: 1, kind: input, shape index: {}]
  %s2 = inlined_call_operand.vmem [shape: f32[8,200], index: 2, kind: input, shape index: {}]
  %s3 = inlined_call_operand.vmem [shape: f32[8,3], index: 3, kind: input, shape index: {}]
  %s4 = inlined_call_operand.vmem [shape: f32[16,200], index: 4, kind: input, shape index: {}]
  %s5 = inlined_call_operand.vmem [shape: f32[16,3], index: 5, kind: input, shape index: {}]
  %s6 = inlined_call_operand.vmem [shape: f32[32,400], index: 6, kind: input, shape index: {}]
  %s7 = inlined_call_operand.vmem [shape: f32[32,3], index: 7, kind: input, shape index: {}]
  %s8 = inlined_call_operand.vmem [shape: f32[2,32,256], index: 8, kind: output, shape index: {}]
  %s9 = sld [smem:[#allocation0]]
  $region42: #{b_decoder_conv_forward.1} parent=0
    _
  %s11 = ssub.s32 1, %s9
  %s12 = scalar_select 0, %s11, %s9
  // Predicated region
  $region2: #{b_decoder_conv_forward.1} parent=0 // pred_check
    _
  $region3: #{b_decoder_conv_forward.1} parent=0 // pred_check_branch
    %14 = sbr.rel (0) target = $region5
  $region4: #{b_decoder_conv_forward.1} parent=0 // pred_region
    _
  $region5: #{b_decoder_conv_forward.1} parent=0 // pred_fallthru
    _
  // Predicated region
  $region6: #{b_decoder_conv_forward.1} parent=0 // pred_check
    _
  $region7: #{b_decoder_conv_forward.1} parent=0 // pred_check_branch
    %16 = sbr.rel (0) target = $region9
  $region8: #{b_decoder_conv_forward.1} parent=0 // pred_region
    _
  $region9: #{b_decoder_conv_forward.1} parent=0 // pred_fallthru
    _
  // Predicated region
  $region10: #{b_decoder_conv_forward.1} parent=0 // pred_check
    _
  $region11: #{b_decoder_conv_forward.1} parent=0 // pred_check_branch
    %18 = sbr.rel (0) target = $region13
  $region12: #{b_decoder_conv_forward.1} parent=0 // pred_region
    _
  $region13: #{b_decoder_conv_forward.1} parent=0 // pred_fallthru
    _
  // Predicated region
  $region14: #{b_decoder_conv_forward.1} parent=0 // pred_check
    _
  $region15: #{b_decoder_conv_forward.1} parent=0 // pred_check_branch
    %20 = sbr.rel (0) target = $region17
  $region16: #{b_decoder_conv_forward.1} parent=0 // pred_region
    _
  $region17: #{b_decoder_conv_forward.1} parent=0 // pred_fallthru
    _
  // Predicated region
  $region18: #{b_decoder_conv_forward.1} parent=0 // pred_check
    _
  $region19: #{b_decoder_conv_forward.1} parent=0 // pred_check_branch
    %22 = sbr.rel (0) target = $region21
  $region20: #{b_decoder_conv_forward.1} parent=0 // pred_region
    _
  $region21: #{b_decoder_conv_forward.1} parent=0 // pred_fallthru
    _
  // Predicated region
  $region22: #{b_decoder_conv_forward.1} parent=0 // pred_check
    _
  $region23: #{b_decoder_conv_forward.1} parent=0 // pred_check_branch
    %24 = sbr.rel (0) target = $region25
  $region24: #{b_decoder_conv_forward.1} parent=0 // pred_region
    _
  $region25: #{b_decoder_conv_forward.1} parent=0 // pred_fallthru
    _
  // Predicated region
  $region26: #{b_decoder_conv_forward.1} parent=0 // pred_check
    _
  $region27: #{b_decoder_conv_forward.1} parent=0 // pred_check_branch
    %26 = sbr.rel (0) target = $region29
  $region28: #{b_decoder_conv_forward.1} parent=0 // pred_region
    _
  $region29: #{b_decoder_conv_forward.1} parent=0 // pred_fallthru
    _
  // Predicated region
  $region30: #{b_decoder_conv_forward.1} parent=0 // pred_check
    _
  $region31: #{b_decoder_conv_forward.1} parent=0 // pred_check_branch
    %28 = sbr.rel (0) target = $region33
  $region32: #{b_decoder_conv_forward.1} parent=0 // pred_region
    _
  $region33: #{b_decoder_conv_forward.1} parent=0 // pred_fallthru
    _
  %v29 = vld [vmem:[%s1] sm:$0xff]
  %v30 = vld [vmem:[%s1 + $0x8] sm:$0x3]
  %31 = vst [vmem:[#allocation2] sm:$0xff] 0.0
  %32 = vst [vmem:[#allocation2 + $0x8] sm:$0xff] 0.0
  %33 = vst [vmem:[#allocation2 + $0x10] sm:$0xff] 0.0
  %34 = vst [vmem:[#allocation2 + $0x18] sm:$0xff] 0.0
  %35 = vst [vmem:[#allocation2 + $0x20] sm:$0xff] 0.0
  %36 = vst [vmem:[#allocation2 + $0x28] sm:$0xff] 0.0
  %37 = vst [vmem:[#allocation2 + $0x30] sm:$0xff] 0.0
  %38 = vst [vmem:[#allocation2 + $0x38] sm:$0xff] 0.0
  %39 = vst [vmem:[#allocation2 + $0x40] sm:$0xff] 0.0
  %40 = vst [vmem:[#allocation2 + $0x48] sm:$0xff] 0.0
  %41 = vst [vmem:[#allocation2 + $0x50] sm:$0xff] 0.0
  %42 = vst [vmem:[#allocation2 + $0x58] sm:$0xff] 0.0
  %v43 = vld [vmem:[%s0] sm:$0xff]
  %v44 = vld [vmem:[%s0 + $0x8] sm:$0xff]
  %46 = vrot.lane.b32.xlu0 %v43, 66
  %v47 = vpop.permute.xlu0 %46
  %vm49 = vcmask 667152
  %50 = vst.msk [vmem:[#allocation2 + $0x8] sm:$0xf] %vm49, %v47
  %51 = vrot.lane.b32.xlu0 %v43, 82
  %v52 = vpop.permute.xlu0 %51
  %vm54 = vcmask 929552
  %55 = vst.msk [vmem:[#allocation2 + $0x8] sm:$0xf] %vm54, %v52
  %56 = vrot.lane.b32.xlu0 %v43, 98
  %v57 = vpop.permute.xlu0 %56
  %vm59 = vcmask 142352
  %60 = vst.msk [vmem:[#allocation2 + $0x10] sm:$0xf] %vm59, %v57
  %61 = vrot.lane.b32.xlu0 %v43, 114
  %v62 = vpop.permute.xlu0 %61
  %vm64 = vcmask 404752
  %65 = vst.msk [vmem:[#allocation2 + $0x10] sm:$0xf] %vm64, %v62
  %66 = vrot.lane.b32.xlu0 %v43, 2
  %v67 = vpop.permute.xlu0 %66
  %69 = vst.msk [vmem:[#allocation2 + $0x10] sm:$0xf] %vm49, %v67
  %70 = vrot.lane.b32.xlu0 %v43, 18
  %v71 = vpop.permute.xlu0 %70
  %73 = vst.msk [vmem:[#allocation2 + $0x10] sm:$0xf] %vm54, %v71
  %74 = vrot.lane.b32.xlu0 %v43, 34
  %v75 = vpop.permute.xlu0 %74
  %77 = vst.msk [vmem:[#allocation2 + $0x18] sm:$0xf] %vm59, %v75
  %78 = vrot.lane.b32.xlu0 %v43, 50
  %v79 = vpop.permute.xlu0 %78
  %81 = vst.msk [vmem:[#allocation2 + $0x18] sm:$0xf] %vm64, %v79
  %v82 = vrot.slane %v43, 4
  %83 = vrot.lane.b32.xlu0 %v82, 66
  %v84 = vpop.permute.xlu0 %83
  %86 = vst.msk [vmem:[#allocation2 + $0x18] sm:$0xf] %vm49, %v84
  %87 = vrot.lane.b32.xlu0 %v43, 112
  %v88 = vpop.permute.xlu0 %87
  %v89 = vrot.slane %v88, 4
  %90 = vrot.lane.b32.xlu0 %v89, 98
  %v91 = vpop.permute.xlu0 %90
  %93 = vst.msk [vmem:[#allocation2 + $0x18] sm:$0xf] %vm54, %v91
  %94 = vrot.lane.b32.xlu0 %v43, 96
  %v95 = vpop.permute.xlu0 %94
  %v96 = vrot.slane %v95, 4
  %97 = vrot.lane.b32.xlu0 %v96, 2
  %v98 = vpop.permute.xlu0 %97
  %100 = vst.msk [vmem:[#allocation2 + $0x20] sm:$0xf] %vm59, %v98
  %101 = vrot.lane.b32.xlu0 %v43, 80
  %v102 = vpop.permute.xlu0 %101
  %v103 = vrot.slane %v102, 4
  %104 = vrot.lane.b32.xlu0 %v103, 34
  %v105 = vpop.permute.xlu0 %104
  %107 = vst.msk [vmem:[#allocation2 + $0x20] sm:$0xf] %vm64, %v105
  %108 = vrot.lane.b32.xlu0 %v43, 64
  %v109 = vpop.permute.xlu0 %108
  %v110 = vrot.slane %v109, 4
  %111 = vrot.lane.b32.xlu0 %v110, 66
  %v112 = vpop.permute.xlu0 %111
  %114 = vst.msk [vmem:[#allocation2 + $0x20] sm:$0xf] %vm49, %v112
  %115 = vrot.lane.b32.xlu0 %v43, 48
  %v116 = vpop.permute.xlu0 %115
  %v117 = vrot.slane %v116, 4
  %118 = vrot.lane.b32.xlu0 %v117, 98
  %v119 = vpop.permute.xlu0 %118
  %121 = vst.msk [vmem:[#allocation2 + $0x20] sm:$0xf] %vm54, %v119
  %122 = vrot.lane.b32.xlu0 %v43, 32
  %v123 = vpop.permute.xlu0 %122
  %v124 = vrot.slane %v123, 4
  %125 = vrot.lane.b32.xlu0 %v124, 2
  %v126 = vpop.permute.xlu0 %125
  %128 = vst.msk [vmem:[#allocation2 + $0x28] sm:$0xf] %vm59, %v126
  %129 = vrot.lane.b32.xlu0 %v43, 16
  %v130 = vpop.permute.xlu0 %129
  %v131 = vrot.slane %v130, 4
  %132 = vrot.lane.b32.xlu0 %v131, 34
  %v133 = vpop.permute.xlu0 %132
  %135 = vst.msk [vmem:[#allocation2 + $0x28] sm:$0xf] %vm64, %v133
  %137 = vrot.lane.b32.xlu0 %v44, 66
  %v138 = vpop.permute.xlu0 %137
  %140 = vst.msk [vmem:[#allocation2 + $0x30] sm:$0xf] %vm49, %v138
  %141 = vrot.lane.b32.xlu0 %v44, 82
  %v142 = vpop.permute.xlu0 %141
  %144 = vst.msk [vmem:[#allocation2 + $0x30] sm:$0xf] %vm54, %v142
  %145 = vrot.lane.b32.xlu0 %v44, 98
  %v146 = vpop.permute.xlu0 %145
  %148 = vst.msk [vmem:[#allocation2 + $0x38] sm:$0xf] %vm59, %v146
  %149 = vrot.lane.b32.xlu0 %v44, 114
  %v150 = vpop.permute.xlu0 %149
  %152 = vst.msk [vmem:[#allocation2 + $0x38] sm:$0xf] %vm64, %v150
  %153 = vrot.lane.b32.xlu0 %v44, 2
  %v154 = vpop.permute.xlu0 %153
  %156 = vst.msk [vmem:[#allocation2 + $0x38] sm:$0xf] %vm49, %v154
  %157 = vrot.lane.b32.xlu0 %v44, 18
  %v158 = vpop.permute.xlu0 %157
  %160 = vst.msk [vmem:[#allocation2 + $0x38] sm:$0xf] %vm54, %v158
  %161 = vrot.lane.b32.xlu0 %v44, 34
  %v162 = vpop.permute.xlu0 %161
  %164 = vst.msk [vmem:[#allocation2 + $0x40] sm:$0xf] %vm59, %v162
  %165 = vrot.lane.b32.xlu0 %v44, 50
  %v166 = vpop.permute.xlu0 %165
  %168 = vst.msk [vmem:[#allocation2 + $0x40] sm:$0xf] %vm64, %v166
  %v169 = vrot.slane %v44, 4
  %170 = vrot.lane.b32.xlu0 %v169, 66
  %v171 = vpop.permute.xlu0 %170
  %173 = vst.msk [vmem:[#allocation2 + $0x40] sm:$0xf] %vm49, %v171
  %174 = vrot.lane.b32.xlu0 %v44, 112
  %v175 = vpop.permute.xlu0 %174
  %v176 = vrot.slane %v175, 4
  %177 = vrot.lane.b32.xlu0 %v176, 98
  %v178 = vpop.permute.xlu0 %177
  %180 = vst.msk [vmem:[#allocation2 + $0x40] sm:$0xf] %vm54, %v178
  %181 = vrot.lane.b32.xlu0 %v44, 96
  %v182 = vpop.permute.xlu0 %181
  %v183 = vrot.slane %v182, 4
  %184 = vrot.lane.b32.xlu0 %v183, 2
  %v185 = vpop.permute.xlu0 %184
  %187 = vst.msk [vmem:[#allocation2 + $0x48] sm:$0xf] %vm59, %v185
  %188 = vrot.lane.b32.xlu0 %v44, 80
  %v189 = vpop.permute.xlu0 %188
  %v190 = vrot.slane %v189, 4
  %191 = vrot.lane.b32.xlu0 %v190, 34
  %v192 = vpop.permute.xlu0 %191
  %194 = vst.msk [vmem:[#allocation2 + $0x48] sm:$0xf] %vm64, %v192
  %195 = vrot.lane.b32.xlu0 %v44, 64
  %v196 = vpop.permute.xlu0 %195
  %v197 = vrot.slane %v196, 4
  %198 = vrot.lane.b32.xlu0 %v197, 66
  %v199 = vpop.permute.xlu0 %198
  %201 = vst.msk [vmem:[#allocation2 + $0x48] sm:$0xf] %vm49, %v199
  %202 = vrot.lane.b32.xlu0 %v44, 48
  %v203 = vpop.permute.xlu0 %202
  %v204 = vrot.slane %v203, 4
  %205 = vrot.lane.b32.xlu0 %v204, 98
  %v206 = vpop.permute.xlu0 %205
  %208 = vst.msk [vmem:[#allocation2 + $0x48] sm:$0xf] %vm54, %v206
  %209 = vrot.lane.b32.xlu0 %v44, 32
  %v210 = vpop.permute.xlu0 %209
  %v211 = vrot.slane %v210, 4
  %212 = vrot.lane.b32.xlu0 %v211, 2
  %v213 = vpop.permute.xlu0 %212
  %215 = vst.msk [vmem:[#allocation2 + $0x50] sm:$0xf] %vm59, %v213
  %216 = vrot.lane.b32.xlu0 %v44, 16
  %v217 = vpop.permute.xlu0 %216
  %v218 = vrot.slane %v217, 4
  %219 = vrot.lane.b32.xlu0 %v218, 34
  %v220 = vpop.permute.xlu0 %219
  %222 = vst.msk [vmem:[#allocation2 + $0x50] sm:$0xf] %vm64, %v220
  %v223 = vld [vmem:[#allocation2] sm:$0xff]
  %v224 = vld [vmem:[#allocation2 + $0x8] sm:$0xff]
  %v225 = vld [vmem:[#allocation2 + $0x10] sm:$0xff]
  %v226 = vld [vmem:[#allocation2 + $0x18] sm:$0xff]
  %v227 = vld [vmem:[#allocation2 + $0x20] sm:$0xff]
  %v228 = vld [vmem:[#allocation2 + $0x28] sm:$0xff]
  %v229 = vld [vmem:[#allocation2 + $0x30] sm:$0xff]
  %v230 = vld [vmem:[#allocation2 + $0x38] sm:$0xff]
  %v231 = vld [vmem:[#allocation2 + $0x40] sm:$0xff]
  %v232 = vld [vmem:[#allocation2 + $0x48] sm:$0xff]
  %v233 = vld [vmem:[#allocation2 + $0x50] sm:$0xff]
  %v234 = vld [vmem:[#allocation2 + $0x58] sm:$0xff]
  %246 = vrot.lane.b32.xlu0 %v223, 127
  %v247 = vpop.permute.xlu0 %246
  %248 = vrot.lane.b32.xlu0 %v224, 127
  %v249 = vpop.permute.xlu0 %248
  %250 = vrot.lane.b32.xlu0 %v225, 127
  %v251 = vpop.permute.xlu0 %250
  %252 = vrot.lane.b32.xlu0 %v226, 127
  %v253 = vpop.permute.xlu0 %252
  %254 = vrot.lane.b32.xlu0 %v227, 127
  %v255 = vpop.permute.xlu0 %254
  %256 = vrot.lane.b32.xlu0 %v228, 127
  %v257 = vpop.permute.xlu0 %256
  %258 = vrot.lane.b32.xlu0 %v229, 127
  %v259 = vpop.permute.xlu0 %258
  %260 = vrot.lane.b32.xlu0 %v230, 127
  %v261 = vpop.permute.xlu0 %260
  %262 = vrot.lane.b32.xlu0 %v231, 127
  %v263 = vpop.permute.xlu0 %262
  %264 = vrot.lane.b32.xlu0 %v232, 127
  %v265 = vpop.permute.xlu0 %264
  %266 = vrot.lane.b32.xlu0 %v233, 127
  %v267 = vpop.permute.xlu0 %266
  %vm268 = vcmask 1039360
  %v269 = vsel %vm268, %v247, %v249
  %v270 = vsel %vm268, %v249, %v251
  %v271 = vsel %vm268, %v251, %v253
  %v272 = vsel %vm268, %v253, %v255
  %v273 = vsel %vm268, %v255, %v257
  %v274 = vsel %vm268, %v257, %v259
  %v275 = vsel %vm268, %v259, %v261
  %v276 = vsel %vm268, %v261, %v263
  %v277 = vsel %vm268, %v263, %v265
  %v278 = vsel %vm268, %v265, %v267
  %279 = vrot.lane.b32.xlu0 %v223, 126
  %v280 = vpop.permute.xlu0 %279
  %281 = vrot.lane.b32.xlu0 %v224, 126
  %v282 = vpop.permute.xlu0 %281
  %283 = vrot.lane.b32.xlu0 %v225, 126
  %v284 = vpop.permute.xlu0 %283
  %285 = vrot.lane.b32.xlu0 %v226, 126
  %v286 = vpop.permute.xlu0 %285
  %287 = vrot.lane.b32.xlu0 %v227, 126
  %v288 = vpop.permute.xlu0 %287
  %289 = vrot.lane.b32.xlu0 %v228, 126
  %v290 = vpop.permute.xlu0 %289
  %291 = vrot.lane.b32.xlu0 %v229, 126
  %v292 = vpop.permute.xlu0 %291
  %293 = vrot.lane.b32.xlu0 %v230, 126
  %v294 = vpop.permute.xlu0 %293
  %295 = vrot.lane.b32.xlu0 %v231, 126
  %v296 = vpop.permute.xlu0 %295
  %297 = vrot.lane.b32.xlu0 %v232, 126
  %v298 = vpop.permute.xlu0 %297
  %299 = vrot.lane.b32.xlu0 %v233, 126
  %v300 = vpop.permute.xlu0 %299
  %vm301 = vcmask 1031168
  %v302 = vsel %vm301, %v280, %v282
  %v303 = vsel %vm301, %v282, %v284
  %v304 = vsel %vm301, %v284, %v286
  %v305 = vsel %vm301, %v286, %v288
  %v306 = vsel %vm301, %v288, %v290
  %v307 = vsel %vm301, %v290, %v292
  %v308 = vsel %vm301, %v292, %v294
  %v309 = vsel %vm301, %v294, %v296
  %v310 = vsel %vm301, %v296, %v298
  %v311 = vsel %vm301, %v298, %v300
  %312 = vrot.lane.b32.xlu0 %v223, 125
  %v313 = vpop.permute.xlu0 %312
  %314 = vrot.lane.b32.xlu0 %v224, 125
  %v315 = vpop.permute.xlu0 %314
  %316 = vrot.lane.b32.xlu0 %v225, 125
  %v317 = vpop.permute.xlu0 %316
  %318 = vrot.lane.b32.xlu0 %v226, 125
  %v319 = vpop.permute.xlu0 %318
  %320 = vrot.lane.b32.xlu0 %v227, 125
  %v321 = vpop.permute.xlu0 %320
  %322 = vrot.lane.b32.xlu0 %v228, 125
  %v323 = vpop.permute.xlu0 %322
  %324 = vrot.lane.b32.xlu0 %v229, 125
  %v325 = vpop.permute.xlu0 %324
  %326 = vrot.lane.b32.xlu0 %v230, 125
  %v327 = vpop.permute.xlu0 %326
  %328 = vrot.lane.b32.xlu0 %v231, 125
  %v329 = vpop.permute.xlu0 %328
  %330 = vrot.lane.b32.xlu0 %v232, 125
  %v331 = vpop.permute.xlu0 %330
  %332 = vrot.lane.b32.xlu0 %v233, 125
  %v333 = vpop.permute.xlu0 %332
  %vm334 = vcmask 1022976
  %v335 = vsel %vm334, %v313, %v315
  %v336 = vsel %vm334, %v315, %v317
  %v337 = vsel %vm334, %v317, %v319
  %v338 = vsel %vm334, %v319, %v321
  %v339 = vsel %vm334, %v321, %v323
  %v340 = vsel %vm334, %v323, %v325
  %v341 = vsel %vm334, %v325, %v327
  %v342 = vsel %vm334, %v327, %v329
  %v343 = vsel %vm334, %v329, %v331
  %v344 = vsel %vm334, %v331, %v333
  %345 = vrot.lane.b32.xlu0 %v223, 124
  %v346 = vpop.permute.xlu0 %345
  %347 = vrot.lane.b32.xlu0 %v224, 124
  %v348 = vpop.permute.xlu0 %347
  %349 = vrot.lane.b32.xlu0 %v225, 124
  %v350 = vpop.permute.xlu0 %349
  %351 = vrot.lane.b32.xlu0 %v226, 124
  %v352 = vpop.permute.xlu0 %351
  %353 = vrot.lane.b32.xlu0 %v227, 124
  %v354 = vpop.permute.xlu0 %353
  %355 = vrot.lane.b32.xlu0 %v228, 124
  %v356 = vpop.permute.xlu0 %355
  %357 = vrot.lane.b32.xlu0 %v229, 124
  %v358 = vpop.permute.xlu0 %357
  %359 = vrot.lane.b32.xlu0 %v230, 124
  %v360 = vpop.permute.xlu0 %359
  %361 = vrot.lane.b32.xlu0 %v231, 124
  %v362 = vpop.permute.xlu0 %361
  %363 = vrot.lane.b32.xlu0 %v232, 124
  %v364 = vpop.permute.xlu0 %363
  %365 = vrot.lane.b32.xlu0 %v233, 124
  %v366 = vpop.permute.xlu0 %365
  %vm367 = vcmask 1014784
  %v368 = vsel %vm367, %v346, %v348
  %v369 = vsel %vm367, %v348, %v350
  %v370 = vsel %vm367, %v350, %v352
  %v371 = vsel %vm367, %v352, %v354
  %v372 = vsel %vm367, %v354, %v356
  %v373 = vsel %vm367, %v356, %v358
  %v374 = vsel %vm367, %v358, %v360
  %v375 = vsel %vm367, %v360, %v362
  %v376 = vsel %vm367, %v362, %v364
  %v377 = vsel %vm367, %v364, %v366
  %378 = vrot.lane.b32.xlu0 %v223, 96
  %v379 = vpop.permute.xlu0 %378
  %380 = vrot.lane.b32.xlu0 %v224, 96
  %v381 = vpop.permute.xlu0 %380
  %382 = vrot.lane.b32.xlu0 %v225, 96
  %v383 = vpop.permute.xlu0 %382
  %384 = vrot.lane.b32.xlu0 %v226, 96
  %v385 = vpop.permute.xlu0 %384
  %386 = vrot.lane.b32.xlu0 %v227, 96
  %v387 = vpop.permute.xlu0 %386
  %388 = vrot.lane.b32.xlu0 %v228, 96
  %v389 = vpop.permute.xlu0 %388
  %390 = vrot.lane.b32.xlu0 %v229, 96
  %v391 = vpop.permute.xlu0 %390
  %392 = vrot.lane.b32.xlu0 %v230, 96
  %v393 = vpop.permute.xlu0 %392
  %394 = vrot.lane.b32.xlu0 %v231, 96
  %v395 = vpop.permute.xlu0 %394
  %396 = vrot.lane.b32.xlu0 %v232, 96
  %v397 = vpop.permute.xlu0 %396
  %398 = vrot.lane.b32.xlu0 %v233, 96
  %v399 = vpop.permute.xlu0 %398
  %vm400 = vcmask 785408
  %v401 = vsel %vm400, %v379, %v381
  %v402 = vsel %vm400, %v381, %v383
  %v403 = vsel %vm400, %v383, %v385
  %v404 = vsel %vm400, %v385, %v387
  %v405 = vsel %vm400, %v387, %v389
  %v406 = vsel %vm400, %v389, %v391
  %v407 = vsel %vm400, %v391, %v393
  %v408 = vsel %vm400, %v393, %v395
  %v409 = vsel %vm400, %v395, %v397
  %v410 = vsel %vm400, %v397, %v399
  %411 = vrot.lane.b32.xlu0 %v223, 95
  %v412 = vpop.permute.xlu0 %411
  %413 = vrot.lane.b32.xlu0 %v224, 95
  %v414 = vpop.permute.xlu0 %413
  %415 = vrot.lane.b32.xlu0 %v225, 95
  %v416 = vpop.permute.xlu0 %415
  %417 = vrot.lane.b32.xlu0 %v226, 95
  %v418 = vpop.permute.xlu0 %417
  %419 = vrot.lane.b32.xlu0 %v227, 95
  %v420 = vpop.permute.xlu0 %419
  %421 = vrot.lane.b32.xlu0 %v228, 95
  %v422 = vpop.permute.xlu0 %421
  %423 = vrot.lane.b32.xlu0 %v229, 95
  %v424 = vpop.permute.xlu0 %423
  %425 = vrot.lane.b32.xlu0 %v230, 95
  %v426 = vpop.permute.xlu0 %425
  %427 = vrot.lane.b32.xlu0 %v231, 95
  %v428 = vpop.permute.xlu0 %427
  %429 = vrot.lane.b32.xlu0 %v232, 95
  %v430 = vpop.permute.xlu0 %429
  %431 = vrot.lane.b32.xlu0 %v233, 95
  %v432 = vpop.permute.xlu0 %431
  %vm433 = vcmask 777216
  %v434 = vsel %vm433, %v412, %v414
  %v435 = vsel %vm433, %v414, %v416
  %v436 = vsel %vm433, %v416, %v418
  %v437 = vsel %vm433, %v418, %v420
  %v438 = vsel %vm433, %v420, %v422
  %v439 = vsel %vm433, %v422, %v424
  %v440 = vsel %vm433, %v424, %v426
  %v441 = vsel %vm433, %v426, %v428
  %v442 = vsel %vm433, %v428, %v430
  %v443 = vsel %vm433, %v430, %v432
  %444 = vrot.lane.b32.xlu0 %v223, 94
  %v445 = vpop.permute.xlu0 %444
  %446 = vrot.lane.b32.xlu0 %v224, 94
  %v447 = vpop.permute.xlu0 %446
  %448 = vrot.lane.b32.xlu0 %v225, 94
  %v449 = vpop.permute.xlu0 %448
  %450 = vrot.lane.b32.xlu0 %v226, 94
  %v451 = vpop.permute.xlu0 %450
  %452 = vrot.lane.b32.xlu0 %v227, 94
  %v453 = vpop.permute.xlu0 %452
  %454 = vrot.lane.b32.xlu0 %v228, 94
  %v455 = vpop.permute.xlu0 %454
  %456 = vrot.lane.b32.xlu0 %v229, 94
  %v457 = vpop.permute.xlu0 %456
  %458 = vrot.lane.b32.xlu0 %v230, 94
  %v459 = vpop.permute.xlu0 %458
  %460 = vrot.lane.b32.xlu0 %v231, 94
  %v461 = vpop.permute.xlu0 %460
  %462 = vrot.lane.b32.xlu0 %v232, 94
  %v463 = vpop.permute.xlu0 %462
  %464 = vrot.lane.b32.xlu0 %v233, 94
  %v465 = vpop.permute.xlu0 %464
  %vm466 = vcmask 769024
  %v467 = vsel %vm466, %v445, %v447
  %v468 = vsel %vm466, %v447, %v449
  %v469 = vsel %vm466, %v449, %v451
  %v470 = vsel %vm466, %v451, %v453
  %v471 = vsel %vm466, %v453, %v455
  %v472 = vsel %vm466, %v455, %v457
  %v473 = vsel %vm466, %v457, %v459
  %v474 = vsel %vm466, %v459, %v461
  %v475 = vsel %vm466, %v461, %v463
  %v476 = vsel %vm466, %v463, %v465
  %477 = vrot.lane.b32.xlu0 %v223, 93
  %v478 = vpop.permute.xlu0 %477
  %479 = vrot.lane.b32.xlu0 %v224, 93
  %v480 = vpop.permute.xlu0 %479
  %481 = vrot.lane.b32.xlu0 %v225, 93
  %v482 = vpop.permute.xlu0 %481
  %483 = vrot.lane.b32.xlu0 %v226, 93
  %v484 = vpop.permute.xlu0 %483
  %485 = vrot.lane.b32.xlu0 %v227, 93
  %v486 = vpop.permute.xlu0 %485
  %487 = vrot.lane.b32.xlu0 %v228, 93
  %v488 = vpop.permute.xlu0 %487
  %489 = vrot.lane.b32.xlu0 %v229, 93
  %v490 = vpop.permute.xlu0 %489
  %491 = vrot.lane.b32.xlu0 %v230, 93
  %v492 = vpop.permute.xlu0 %491
  %493 = vrot.lane.b32.xlu0 %v231, 93
  %v494 = vpop.permute.xlu0 %493
  %495 = vrot.lane.b32.xlu0 %v232, 93
  %v496 = vpop.permute.xlu0 %495
  %497 = vrot.lane.b32.xlu0 %v233, 93
  %v498 = vpop.permute.xlu0 %497
  %vm499 = vcmask 760832
  %v500 = vsel %vm499, %v478, %v480
  %v501 = vsel %vm499, %v480, %v482
  %v502 = vsel %vm499, %v482, %v484
  %v503 = vsel %vm499, %v484, %v486
  %v504 = vsel %vm499, %v486, %v488
  %v505 = vsel %vm499, %v488, %v490
  %v506 = vsel %vm499, %v490, %v492
  %v507 = vsel %vm499, %v492, %v494
  %v508 = vsel %vm499, %v494, %v496
  %v509 = vsel %vm499, %v496, %v498
  %510 = vrot.lane.b32.xlu0 %v223, 92
  %v511 = vpop.permute.xlu0 %510
  %512 = vrot.lane.b32.xlu0 %v224, 92
  %v513 = vpop.permute.xlu0 %512
  %514 = vrot.lane.b32.xlu0 %v225, 92
  %v515 = vpop.permute.xlu0 %514
  %516 = vrot.lane.b32.xlu0 %v226, 92
  %v517 = vpop.permute.xlu0 %516
  %518 = vrot.lane.b32.xlu0 %v227, 92
  %v519 = vpop.permute.xlu0 %518
  %520 = vrot.lane.b32.xlu0 %v228, 92
  %v521 = vpop.permute.xlu0 %520
  %522 = vrot.lane.b32.xlu0 %v229, 92
  %v523 = vpop.permute.xlu0 %522
  %524 = vrot.lane.b32.xlu0 %v230, 92
  %v525 = vpop.permute.xlu0 %524
  %526 = vrot.lane.b32.xlu0 %v231, 92
  %v527 = vpop.permute.xlu0 %526
  %528 = vrot.lane.b32.xlu0 %v232, 92
  %v529 = vpop.permute.xlu0 %528
  %530 = vrot.lane.b32.xlu0 %v233, 92
  %v531 = vpop.permute.xlu0 %530
  %vm532 = vcmask 752640
  %v533 = vsel %vm532, %v511, %v513
  %v534 = vsel %vm532, %v513, %v515
  %v535 = vsel %vm532, %v515, %v517
  %v536 = vsel %vm532, %v517, %v519
  %v537 = vsel %vm532, %v519, %v521
  %v538 = vsel %vm532, %v521, %v523
  %v539 = vsel %vm532, %v523, %v525
  %v540 = vsel %vm532, %v525, %v527
  %v541 = vsel %vm532, %v527, %v529
  %v542 = vsel %vm532, %v529, %v531
  %543 = vrot.lane.b32.xlu0 %v223, 64
  %v544 = vpop.permute.xlu0 %543
  %545 = vrot.lane.b32.xlu0 %v224, 64
  %v546 = vpop.permute.xlu0 %545
  %547 = vrot.lane.b32.xlu0 %v225, 64
  %v548 = vpop.permute.xlu0 %547
  %549 = vrot.lane.b32.xlu0 %v226, 64
  %v550 = vpop.permute.xlu0 %549
  %551 = vrot.lane.b32.xlu0 %v227, 64
  %v552 = vpop.permute.xlu0 %551
  %553 = vrot.lane.b32.xlu0 %v228, 64
  %v554 = vpop.permute.xlu0 %553
  %555 = vrot.lane.b32.xlu0 %v229, 64
  %v556 = vpop.permute.xlu0 %555
  %557 = vrot.lane.b32.xlu0 %v230, 64
  %v558 = vpop.permute.xlu0 %557
  %559 = vrot.lane.b32.xlu0 %v231, 64
  %v560 = vpop.permute.xlu0 %559
  %561 = vrot.lane.b32.xlu0 %v232, 64
  %v562 = vpop.permute.xlu0 %561
  %563 = vrot.lane.b32.xlu0 %v233, 64
  %v564 = vpop.permute.xlu0 %563
  %vm565 = vcmask 523264
  %v566 = vsel %vm565, %v544, %v546
  %v567 = vsel %vm565, %v546, %v548
  %v568 = vsel %vm565, %v548, %v550
  %v569 = vsel %vm565, %v550, %v552
  %v570 = vsel %vm565, %v552, %v554
  %v571 = vsel %vm565, %v554, %v556
  %v572 = vsel %vm565, %v556, %v558
  %v573 = vsel %vm565, %v558, %v560
  %v574 = vsel %vm565, %v560, %v562
  %v575 = vsel %vm565, %v562, %v564
  %576 = vrot.lane.b32.xlu0 %v223, 63
  %v577 = vpop.permute.xlu0 %576
  %578 = vrot.lane.b32.xlu0 %v224, 63
  %v579 = vpop.permute.xlu0 %578
  %580 = vrot.lane.b32.xlu0 %v225, 63
  %v581 = vpop.permute.xlu0 %580
  %582 = vrot.lane.b32.xlu0 %v226, 63
  %v583 = vpop.permute.xlu0 %582
  %584 = vrot.lane.b32.xlu0 %v227, 63
  %v585 = vpop.permute.xlu0 %584
  %586 = vrot.lane.b32.xlu0 %v228, 63
  %v587 = vpop.permute.xlu0 %586
  %588 = vrot.lane.b32.xlu0 %v229, 63
  %v589 = vpop.permute.xlu0 %588
  %590 = vrot.lane.b32.xlu0 %v230, 63
  %v591 = vpop.permute.xlu0 %590
  %592 = vrot.lane.b32.xlu0 %v231, 63
  %v593 = vpop.permute.xlu0 %592
  %594 = vrot.lane.b32.xlu0 %v232, 63
  %v595 = vpop.permute.xlu0 %594
  %596 = vrot.lane.b32.xlu0 %v233, 63
  %v597 = vpop.permute.xlu0 %596
  %vm598 = vcmask 515072
  %v599 = vsel %vm598, %v577, %v579
  %v600 = vsel %vm598, %v579, %v581
  %v601 = vsel %vm598, %v581, %v583
  %v602 = vsel %vm598, %v583, %v585
  %v603 = vsel %vm598, %v585, %v587
  %v604 = vsel %vm598, %v587, %v589
  %v605 = vsel %vm598, %v589, %v591
  %v606 = vsel %vm598, %v591, %v593
  %v607 = vsel %vm598, %v593, %v595
  %v608 = vsel %vm598, %v595, %v597
  %609 = vrot.lane.b32.xlu0 %v224, 62
  %v610 = vpop.permute.xlu0 %609
  %611 = vrot.lane.b32.xlu0 %v225, 62
  %v612 = vpop.permute.xlu0 %611
  %613 = vrot.lane.b32.xlu0 %v226, 62
  %v614 = vpop.permute.xlu0 %613
  %615 = vrot.lane.b32.xlu0 %v227, 62
  %v616 = vpop.permute.xlu0 %615
  %617 = vrot.lane.b32.xlu0 %v228, 62
  %v618 = vpop.permute.xlu0 %617
  %619 = vrot.lane.b32.xlu0 %v229, 62
  %v620 = vpop.permute.xlu0 %619
  %621 = vrot.lane.b32.xlu0 %v230, 62
  %v622 = vpop.permute.xlu0 %621
  %623 = vrot.lane.b32.xlu0 %v231, 62
  %v624 = vpop.permute.xlu0 %623
  %625 = vrot.lane.b32.xlu0 %v232, 62
  %v626 = vpop.permute.xlu0 %625
  %627 = vrot.lane.b32.xlu0 %v233, 62
  %v628 = vpop.permute.xlu0 %627
  %vm629 = vcmask 506880
  %v630 = vsel %vm629, %v610, %v612
  %v631 = vsel %vm629, %v612, %v614
  %v632 = vsel %vm629, %v614, %v616
  %v633 = vsel %vm629, %v616, %v618
  %v634 = vsel %vm629, %v618, %v620
  %v635 = vsel %vm629, %v620, %v622
  %v636 = vsel %vm629, %v622, %v624
  %v637 = vsel %vm629, %v624, %v626
  %v638 = vsel %vm629, %v626, %v628
  %640 = vrot.lane.b32.xlu0 %v224, 61
  %v641 = vpop.permute.xlu0 %640
  %642 = vrot.lane.b32.xlu0 %v225, 61
  %v643 = vpop.permute.xlu0 %642
  %644 = vrot.lane.b32.xlu0 %v226, 61
  %v645 = vpop.permute.xlu0 %644
  %646 = vrot.lane.b32.xlu0 %v227, 61
  %v647 = vpop.permute.xlu0 %646
  %648 = vrot.lane.b32.xlu0 %v228, 61
  %v649 = vpop.permute.xlu0 %648
  %650 = vrot.lane.b32.xlu0 %v229, 61
  %v651 = vpop.permute.xlu0 %650
  %652 = vrot.lane.b32.xlu0 %v230, 61
  %v653 = vpop.permute.xlu0 %652
  %654 = vrot.lane.b32.xlu0 %v231, 61
  %v655 = vpop.permute.xlu0 %654
  %656 = vrot.lane.b32.xlu0 %v232, 61
  %v657 = vpop.permute.xlu0 %656
  %658 = vrot.lane.b32.xlu0 %v233, 61
  %v659 = vpop.permute.xlu0 %658
  %660 = vrot.lane.b32.xlu0 %v234, 61
  %v661 = vpop.permute.xlu0 %660
  %vm662 = vcmask 498688
  %v663 = vsel %vm662, %v641, %v643
  %v664 = vsel %vm662, %v643, %v645
  %v665 = vsel %vm662, %v645, %v647
  %v666 = vsel %vm662, %v647, %v649
  %v667 = vsel %vm662, %v649, %v651
  %v668 = vsel %vm662, %v651, %v653
  %v669 = vsel %vm662, %v653, %v655
  %v670 = vsel %vm662, %v655, %v657
  %v671 = vsel %vm662, %v657, %v659
  %v672 = vsel %vm662, %v659, %v661
  %673 = vrot.lane.b32.xlu0 %v224, 60
  %v674 = vpop.permute.xlu0 %673
  %675 = vrot.lane.b32.xlu0 %v225, 60
  %v676 = vpop.permute.xlu0 %675
  %677 = vrot.lane.b32.xlu0 %v226, 60
  %v678 = vpop.permute.xlu0 %677
  %679 = vrot.lane.b32.xlu0 %v227, 60
  %v680 = vpop.permute.xlu0 %679
  %681 = vrot.lane.b32.xlu0 %v228, 60
  %v682 = vpop.permute.xlu0 %681
  %683 = vrot.lane.b32.xlu0 %v229, 60
  %v684 = vpop.permute.xlu0 %683
  %685 = vrot.lane.b32.xlu0 %v230, 60
  %v686 = vpop.permute.xlu0 %685
  %687 = vrot.lane.b32.xlu0 %v231, 60
  %v688 = vpop.permute.xlu0 %687
  %689 = vrot.lane.b32.xlu0 %v232, 60
  %v690 = vpop.permute.xlu0 %689
  %691 = vrot.lane.b32.xlu0 %v233, 60
  %v692 = vpop.permute.xlu0 %691
  %693 = vrot.lane.b32.xlu0 %v234, 60
  %v694 = vpop.permute.xlu0 %693
  %vm695 = vcmask 490496
  %v696 = vsel %vm695, %v674, %v676
  %v697 = vsel %vm695, %v676, %v678
  %v698 = vsel %vm695, %v678, %v680
  %v699 = vsel %vm695, %v680, %v682
  %v700 = vsel %vm695, %v682, %v684
  %v701 = vsel %vm695, %v684, %v686
  %v702 = vsel %vm695, %v686, %v688
  %v703 = vsel %vm695, %v688, %v690
  %v704 = vsel %vm695, %v690, %v692
  %v705 = vsel %vm695, %v692, %v694
  %706 = vrot.lane.b32.xlu0 %v224, 32
  %v707 = vpop.permute.xlu0 %706
  %708 = vrot.lane.b32.xlu0 %v225, 32
  %v709 = vpop.permute.xlu0 %708
  %710 = vrot.lane.b32.xlu0 %v226, 32
  %v711 = vpop.permute.xlu0 %710
  %712 = vrot.lane.b32.xlu0 %v227, 32
  %v713 = vpop.permute.xlu0 %712
  %714 = vrot.lane.b32.xlu0 %v228, 32
  %v715 = vpop.permute.xlu0 %714
  %716 = vrot.lane.b32.xlu0 %v229, 32
  %v717 = vpop.permute.xlu0 %716
  %718 = vrot.lane.b32.xlu0 %v230, 32
  %v719 = vpop.permute.xlu0 %718
  %720 = vrot.lane.b32.xlu0 %v231, 32
  %v721 = vpop.permute.xlu0 %720
  %722 = vrot.lane.b32.xlu0 %v232, 32
  %v723 = vpop.permute.xlu0 %722
  %724 = vrot.lane.b32.xlu0 %v233, 32
  %v725 = vpop.permute.xlu0 %724
  %726 = vrot.lane.b32.xlu0 %v234, 32
  %v727 = vpop.permute.xlu0 %726
  %vm728 = vcmask 261120
  %v729 = vsel %vm728, %v707, %v709
  %v730 = vsel %vm728, %v709, %v711
  %v731 = vsel %vm728, %v711, %v713
  %v732 = vsel %vm728, %v713, %v715
  %v733 = vsel %vm728, %v715, %v717
  %v734 = vsel %vm728, %v717, %v719
  %v735 = vsel %vm728, %v719, %v721
  %v736 = vsel %vm728, %v721, %v723
  %v737 = vsel %vm728, %v723, %v725
  %v738 = vsel %vm728, %v725, %v727
  %739 = vrot.lane.b32.xlu0 %v234, 127
  %v740 = vpop.permute.xlu0 %739
  %v741 = vsel %vm268, %v267, %v740
  %742 = vrot.lane.b32.xlu0 %v234, 126
  %v743 = vpop.permute.xlu0 %742
  %v744 = vsel %vm301, %v300, %v743
  %745 = vrot.lane.b32.xlu0 %v234, 125
  %v746 = vpop.permute.xlu0 %745
  %v747 = vsel %vm334, %v333, %v746
  %748 = vrot.lane.b32.xlu0 %v224, 97
  %v749 = vpop.permute.xlu0 %748
  %750 = vrot.lane.b32.xlu0 %v225, 97
  %v751 = vpop.permute.xlu0 %750
  %752 = vrot.lane.b32.xlu0 %v226, 97
  %v753 = vpop.permute.xlu0 %752
  %754 = vrot.lane.b32.xlu0 %v227, 97
  %v755 = vpop.permute.xlu0 %754
  %756 = vrot.lane.b32.xlu0 %v228, 97
  %v757 = vpop.permute.xlu0 %756
  %758 = vrot.lane.b32.xlu0 %v229, 97
  %v759 = vpop.permute.xlu0 %758
  %760 = vrot.lane.b32.xlu0 %v230, 97
  %v761 = vpop.permute.xlu0 %760
  %762 = vrot.lane.b32.xlu0 %v231, 97
  %v763 = vpop.permute.xlu0 %762
  %764 = vrot.lane.b32.xlu0 %v232, 97
  %v765 = vpop.permute.xlu0 %764
  %766 = vrot.lane.b32.xlu0 %v233, 97
  %v767 = vpop.permute.xlu0 %766
  %768 = vrot.lane.b32.xlu0 %v234, 97
  %v769 = vpop.permute.xlu0 %768
  %vm770 = vcmask 793600
  %v771 = vsel %vm770, %v749, %v751
  %v772 = vsel %vm770, %v751, %v753
  %v773 = vsel %vm770, %v753, %v755
  %v774 = vsel %vm770, %v755, %v757
  %v775 = vsel %vm770, %v757, %v759
  %v776 = vsel %vm770, %v759, %v761
  %v777 = vsel %vm770, %v761, %v763
  %v778 = vsel %vm770, %v763, %v765
  %v779 = vsel %vm770, %v765, %v767
  %v780 = vsel %vm770, %v767, %v769
  %781 = vrot.lane.b32.xlu0 %v234, 96
  %v782 = vpop.permute.xlu0 %781
  %v783 = vsel %vm400, %v399, %v782
  %784 = vrot.lane.b32.xlu0 %v234, 95
  %v785 = vpop.permute.xlu0 %784
  %v786 = vsel %vm433, %v432, %v785
  %787 = vrot.lane.b32.xlu0 %v234, 94
  %v788 = vpop.permute.xlu0 %787
  %v789 = vsel %vm466, %v465, %v788
  %790 = vrot.lane.b32.xlu0 %v234, 93
  %v791 = vpop.permute.xlu0 %790
  %v792 = vsel %vm499, %v498, %v791
  %793 = vrot.lane.b32.xlu0 %v224, 31
  %v794 = vpop.permute.xlu0 %793
  %795 = vrot.lane.b32.xlu0 %v225, 31
  %v796 = vpop.permute.xlu0 %795
  %797 = vrot.lane.b32.xlu0 %v226, 31
  %v798 = vpop.permute.xlu0 %797
  %799 = vrot.lane.b32.xlu0 %v227, 31
  %v800 = vpop.permute.xlu0 %799
  %801 = vrot.lane.b32.xlu0 %v228, 31
  %v802 = vpop.permute.xlu0 %801
  %803 = vrot.lane.b32.xlu0 %v229, 31
  %v804 = vpop.permute.xlu0 %803
  %805 = vrot.lane.b32.xlu0 %v230, 31
  %v806 = vpop.permute.xlu0 %805
  %807 = vrot.lane.b32.xlu0 %v231, 31
  %v808 = vpop.permute.xlu0 %807
  %809 = vrot.lane.b32.xlu0 %v232, 31
  %v810 = vpop.permute.xlu0 %809
  %811 = vrot.lane.b32.xlu0 %v233, 31
  %v812 = vpop.permute.xlu0 %811
  %813 = vrot.lane.b32.xlu0 %v234, 31
  %v814 = vpop.permute.xlu0 %813
  %815 = vrot.lane.b32.xlu0 %v270, 31
  %v816 = vpop.permute.xlu0 %815
  %817 = vrot.lane.b32.xlu0 %v271, 31
  %v818 = vpop.permute.xlu0 %817
  %819 = vrot.lane.b32.xlu0 %v272, 31
  %v820 = vpop.permute.xlu0 %819
  %821 = vrot.lane.b32.xlu0 %v273, 31
  %v822 = vpop.permute.xlu0 %821
  %823 = vrot.lane.b32.xlu0 %v274, 31
  %v824 = vpop.permute.xlu0 %823
  %825 = vrot.lane.b32.xlu0 %v275, 31
  %v826 = vpop.permute.xlu0 %825
  %827 = vrot.lane.b32.xlu0 %v276, 31
  %v828 = vpop.permute.xlu0 %827
  %829 = vrot.lane.b32.xlu0 %v277, 31
  %v830 = vpop.permute.xlu0 %829
  %831 = vrot.lane.b32.xlu0 %v278, 31
  %v832 = vpop.permute.xlu0 %831
  %833 = vrot.lane.b32.xlu0 %v741, 31
  %v834 = vpop.permute.xlu0 %833
  %835 = vrot.lane.b32.xlu0 %v740, 31
  %v836 = vpop.permute.xlu0 %835
  %837 = vrot.lane.b32.xlu0 %v303, 31
  %v838 = vpop.permute.xlu0 %837
  %839 = vrot.lane.b32.xlu0 %v304, 31
  %v840 = vpop.permute.xlu0 %839
  %841 = vrot.lane.b32.xlu0 %v305, 31
  %v842 = vpop.permute.xlu0 %841
  %843 = vrot.lane.b32.xlu0 %v306, 31
  %v844 = vpop.permute.xlu0 %843
  %845 = vrot.lane.b32.xlu0 %v307, 31
  %v846 = vpop.permute.xlu0 %845
  %847 = vrot.lane.b32.xlu0 %v308, 31
  %v848 = vpop.permute.xlu0 %847
  %849 = vrot.lane.b32.xlu0 %v309, 31
  %v850 = vpop.permute.xlu0 %849
  %851 = vrot.lane.b32.xlu0 %v310, 31
  %v852 = vpop.permute.xlu0 %851
  %853 = vrot.lane.b32.xlu0 %v311, 31
  %v854 = vpop.permute.xlu0 %853
  %855 = vrot.lane.b32.xlu0 %v744, 31
  %v856 = vpop.permute.xlu0 %855
  %857 = vrot.lane.b32.xlu0 %v743, 31
  %v858 = vpop.permute.xlu0 %857
  %859 = vrot.lane.b32.xlu0 %v336, 31
  %v860 = vpop.permute.xlu0 %859
  %861 = vrot.lane.b32.xlu0 %v337, 31
  %v862 = vpop.permute.xlu0 %861
  %863 = vrot.lane.b32.xlu0 %v338, 31
  %v864 = vpop.permute.xlu0 %863
  %865 = vrot.lane.b32.xlu0 %v339, 31
  %v866 = vpop.permute.xlu0 %865
  %867 = vrot.lane.b32.xlu0 %v340, 31
  %v868 = vpop.permute.xlu0 %867
  %869 = vrot.lane.b32.xlu0 %v341, 31
  %v870 = vpop.permute.xlu0 %869
  %871 = vrot.lane.b32.xlu0 %v342, 31
  %v872 = vpop.permute.xlu0 %871
  %873 = vrot.lane.b32.xlu0 %v343, 31
  %v874 = vpop.permute.xlu0 %873
  %875 = vrot.lane.b32.xlu0 %v344, 31
  %v876 = vpop.permute.xlu0 %875
  %877 = vrot.lane.b32.xlu0 %v747, 31
  %v878 = vpop.permute.xlu0 %877
  %879 = vrot.lane.b32.xlu0 %v746, 31
  %v880 = vpop.permute.xlu0 %879
  %881 = vrot.lane.b32.xlu0 %v771, 31
  %v882 = vpop.permute.xlu0 %881
  %883 = vrot.lane.b32.xlu0 %v772, 31
  %v884 = vpop.permute.xlu0 %883
  %885 = vrot.lane.b32.xlu0 %v773, 31
  %v886 = vpop.permute.xlu0 %885
  %887 = vrot.lane.b32.xlu0 %v774, 31
  %v888 = vpop.permute.xlu0 %887
  %889 = vrot.lane.b32.xlu0 %v775, 31
  %v890 = vpop.permute.xlu0 %889
  %891 = vrot.lane.b32.xlu0 %v776, 31
  %v892 = vpop.permute.xlu0 %891
  %893 = vrot.lane.b32.xlu0 %v777, 31
  %v894 = vpop.permute.xlu0 %893
  %895 = vrot.lane.b32.xlu0 %v778, 31
  %v896 = vpop.permute.xlu0 %895
  %897 = vrot.lane.b32.xlu0 %v779, 31
  %v898 = vpop.permute.xlu0 %897
  %899 = vrot.lane.b32.xlu0 %v780, 31
  %v900 = vpop.permute.xlu0 %899
  %901 = vrot.lane.b32.xlu0 %v769, 31
  %v902 = vpop.permute.xlu0 %901
  %903 = vrot.lane.b32.xlu0 %v402, 31
  %v904 = vpop.permute.xlu0 %903
  %905 = vrot.lane.b32.xlu0 %v403, 31
  %v906 = vpop.permute.xlu0 %905
  %907 = vrot.lane.b32.xlu0 %v404, 31
  %v908 = vpop.permute.xlu0 %907
  %909 = vrot.lane.b32.xlu0 %v405, 31
  %v910 = vpop.permute.xlu0 %909
  %911 = vrot.lane.b32.xlu0 %v406, 31
  %v912 = vpop.permute.xlu0 %911
  %913 = vrot.lane.b32.xlu0 %v407, 31
  %v914 = vpop.permute.xlu0 %913
  %915 = vrot.lane.b32.xlu0 %v408, 31
  %v916 = vpop.permute.xlu0 %915
  %917 = vrot.lane.b32.xlu0 %v409, 31
  %v918 = vpop.permute.xlu0 %917
  %919 = vrot.lane.b32.xlu0 %v410, 31
  %v920 = vpop.permute.xlu0 %919
  %921 = vrot.lane.b32.xlu0 %v783, 31
  %v922 = vpop.permute.xlu0 %921
  %923 = vrot.lane.b32.xlu0 %v782, 31
  %v924 = vpop.permute.xlu0 %923
  %925 = vrot.lane.b32.xlu0 %v435, 31
  %v926 = vpop.permute.xlu0 %925
  %927 = vrot.lane.b32.xlu0 %v436, 31
  %v928 = vpop.permute.xlu0 %927
  %929 = vrot.lane.b32.xlu0 %v437, 31
  %v930 = vpop.permute.xlu0 %929
  %931 = vrot.lane.b32.xlu0 %v438, 31
  %v932 = vpop.permute.xlu0 %931
  %933 = vrot.lane.b32.xlu0 %v439, 31
  %v934 = vpop.permute.xlu0 %933
  %935 = vrot.lane.b32.xlu0 %v440, 31
  %v936 = vpop.permute.xlu0 %935
  %937 = vrot.lane.b32.xlu0 %v441, 31
  %v938 = vpop.permute.xlu0 %937
  %939 = vrot.lane.b32.xlu0 %v442, 31
  %v940 = vpop.permute.xlu0 %939
  %941 = vrot.lane.b32.xlu0 %v443, 31
  %v942 = vpop.permute.xlu0 %941
  %943 = vrot.lane.b32.xlu0 %v786, 31
  %v944 = vpop.permute.xlu0 %943
  %945 = vrot.lane.b32.xlu0 %v785, 31
  %v946 = vpop.permute.xlu0 %945
  %947 = vrot.lane.b32.xlu0 %v468, 31
  %v948 = vpop.permute.xlu0 %947
  %949 = vrot.lane.b32.xlu0 %v469, 31
  %v950 = vpop.permute.xlu0 %949
  %951 = vrot.lane.b32.xlu0 %v470, 31
  %v952 = vpop.permute.xlu0 %951
  %953 = vrot.lane.b32.xlu0 %v471, 31
  %v954 = vpop.permute.xlu0 %953
  %955 = vrot.lane.b32.xlu0 %v472, 31
  %v956 = vpop.permute.xlu0 %955
  %957 = vrot.lane.b32.xlu0 %v473, 31
  %v958 = vpop.permute.xlu0 %957
  %959 = vrot.lane.b32.xlu0 %v474, 31
  %v960 = vpop.permute.xlu0 %959
  %961 = vrot.lane.b32.xlu0 %v475, 31
  %v962 = vpop.permute.xlu0 %961
  %963 = vrot.lane.b32.xlu0 %v476, 31
  %v964 = vpop.permute.xlu0 %963
  %965 = vrot.lane.b32.xlu0 %v789, 31
  %v966 = vpop.permute.xlu0 %965
  %967 = vrot.lane.b32.xlu0 %v788, 31
  %v968 = vpop.permute.xlu0 %967
  %969 = vrot.lane.b32.xlu0 %v501, 31
  %v970 = vpop.permute.xlu0 %969
  %971 = vrot.lane.b32.xlu0 %v502, 31
  %v972 = vpop.permute.xlu0 %971
  %973 = vrot.lane.b32.xlu0 %v503, 31
  %v974 = vpop.permute.xlu0 %973
  %975 = vrot.lane.b32.xlu0 %v504, 31
  %v976 = vpop.permute.xlu0 %975
  %977 = vrot.lane.b32.xlu0 %v505, 31
  %v978 = vpop.permute.xlu0 %977
  %979 = vrot.lane.b32.xlu0 %v506, 31
  %v980 = vpop.permute.xlu0 %979
  %981 = vrot.lane.b32.xlu0 %v507, 31
  %v982 = vpop.permute.xlu0 %981
  %983 = vrot.lane.b32.xlu0 %v508, 31
  %v984 = vpop.permute.xlu0 %983
  %985 = vrot.lane.b32.xlu0 %v509, 31
  %v986 = vpop.permute.xlu0 %985
  %987 = vrot.lane.b32.xlu0 %v792, 31
  %v988 = vpop.permute.xlu0 %987
  %989 = vrot.lane.b32.xlu0 %v791, 31
  %v990 = vpop.permute.xlu0 %989
  %vm991 = vcmask 252928
  %v992 = vsel %vm991, %v794, %v796
  %v993 = vsel %vm991, %v796, %v798
  %v994 = vsel %vm991, %v798, %v800
  %v995 = vsel %vm991, %v800, %v802
  %v996 = vsel %vm991, %v802, %v804
  %v997 = vsel %vm991, %v804, %v806
  %v998 = vsel %vm991, %v806, %v808
  %v999 = vsel %vm991, %v808, %v810
  %v1000 = vsel %vm991, %v810, %v812
  %v1001 = vsel %vm991, %v812, %v814
  %v1002 = vsel %vm991, %v816, %v818
  %v1003 = vsel %vm991, %v818, %v820
  %v1004 = vsel %vm991, %v820, %v822
  %v1005 = vsel %vm991, %v822, %v824
  %v1006 = vsel %vm991, %v824, %v826
  %v1007 = vsel %vm991, %v826, %v828
  %v1008 = vsel %vm991, %v828, %v830
  %v1009 = vsel %vm991, %v830, %v832
  %v1010 = vsel %vm991, %v832, %v834
  %v1011 = vsel %vm991, %v834, %v836
  %v1012 = vsel %vm991, %v838, %v840
  %v1013 = vsel %vm991, %v840, %v842
  %v1014 = vsel %vm991, %v842, %v844
  %v1015 = vsel %vm991, %v844, %v846
  %v1016 = vsel %vm991, %v846, %v848
  %v1017 = vsel %vm991, %v848, %v850
  %v1018 = vsel %vm991, %v850, %v852
  %v1019 = vsel %vm991, %v852, %v854
  %v1020 = vsel %vm991, %v854, %v856
  %v1021 = vsel %vm991, %v856, %v858
  %v1022 = vsel %vm991, %v860, %v862
  %v1023 = vsel %vm991, %v862, %v864
  %v1024 = vsel %vm991, %v864, %v866
  %v1025 = vsel %vm991, %v866, %v868
  %v1026 = vsel %vm991, %v868, %v870
  %v1027 = vsel %vm991, %v870, %v872
  %v1028 = vsel %vm991, %v872, %v874
  %v1029 = vsel %vm991, %v874, %v876
  %v1030 = vsel %vm991, %v876, %v878
  %v1031 = vsel %vm991, %v878, %v880
  %v1032 = vsel %vm991, %v882, %v884
  %v1033 = vsel %vm991, %v884, %v886
  %v1034 = vsel %vm991, %v886, %v888
  %v1035 = vsel %vm991, %v888, %v890
  %v1036 = vsel %vm991, %v890, %v892
  %v1037 = vsel %vm991, %v892, %v894
  %v1038 = vsel %vm991, %v894, %v896
  %v1039 = vsel %vm991, %v896, %v898
  %v1040 = vsel %vm991, %v898, %v900
  %v1041 = vsel %vm991, %v900, %v902
  %v1042 = vsel %vm991, %v904, %v906
  %v1043 = vsel %vm991, %v906, %v908
  %v1044 = vsel %vm991, %v908, %v910
  %v1045 = vsel %vm991, %v910, %v912
  %v1046 = vsel %vm991, %v912, %v914
  %v1047 = vsel %vm991, %v914, %v916
  %v1048 = vsel %vm991, %v916, %v918
  %v1049 = vsel %vm991, %v918, %v920
  %v1050 = vsel %vm991, %v920, %v922
  %v1051 = vsel %vm991, %v922, %v924
  %v1052 = vsel %vm991, %v926, %v928
  %v1053 = vsel %vm991, %v928, %v930
  %v1054 = vsel %vm991, %v930, %v932
  %v1055 = vsel %vm991, %v932, %v934
  %v1056 = vsel %vm991, %v934, %v936
  %v1057 = vsel %vm991, %v936, %v938
  %v1058 = vsel %vm991, %v938, %v940
  %v1059 = vsel %vm991, %v940, %v942
  %v1060 = vsel %vm991, %v942, %v944
  %v1061 = vsel %vm991, %v944, %v946
  %v1062 = vsel %vm991, %v948, %v950
  %v1063 = vsel %vm991, %v950, %v952
  %v1064 = vsel %vm991, %v952, %v954
  %v1065 = vsel %vm991, %v954, %v956
  %v1066 = vsel %vm991, %v956, %v958
  %v1067 = vsel %vm991, %v958, %v960
  %v1068 = vsel %vm991, %v960, %v962
  %v1069 = vsel %vm991, %v962, %v964
  %v1070 = vsel %vm991, %v964, %v966
  %v1071 = vsel %vm991, %v966, %v968
  %v1072 = vsel %vm991, %v970, %v972
  %v1073 = vsel %vm991, %v972, %v974
  %v1074 = vsel %vm991, %v974, %v976
  %v1075 = vsel %vm991, %v976, %v978
  %v1076 = vsel %vm991, %v978, %v980
  %v1077 = vsel %vm991, %v980, %v982
  %v1078 = vsel %vm991, %v982, %v984
  %v1079 = vsel %vm991, %v984, %v986
  %v1080 = vsel %vm991, %v986, %v988
  %v1081 = vsel %vm991, %v988, %v990
  %v1082 = vld [vmem:[%s2] sm:$0xff]
  %v1083 = vld [vmem:[%s2 + $0x8] sm:$0xff]
  %v1084 = vld [vmem:[%s3] sm:$0xff]
  %1086 = vset.pattern.permute.xlu0 0
  %1087 = vperm.xlu0 %1086, %v1084
  %v1088 = vpop.permute.xlu0 %1087
  %1090 = vrot.lane.b32.xlu0 %v223, 66
  %v1091 = vpop.permute.xlu0 %1090
  %1092 = vrot.lane.b32.xlu0 %v224, 66
  %v1093 = vpop.permute.xlu0 %1092
  %1094 = vrot.lane.b32.xlu0 %v225, 66
  %v1095 = vpop.permute.xlu0 %1094
  %1096 = vrot.lane.b32.xlu0 %v226, 66
  %v1097 = vpop.permute.xlu0 %1096
  %1098 = vrot.lane.b32.xlu0 %v227, 66
  %v1099 = vpop.permute.xlu0 %1098
  %1100 = vrot.lane.b32.xlu0 %v228, 66
  %v1101 = vpop.permute.xlu0 %1100
  %1102 = vrot.lane.b32.xlu0 %v229, 66
  %v1103 = vpop.permute.xlu0 %1102
  %1104 = vrot.lane.b32.xlu0 %v230, 66
  %v1105 = vpop.permute.xlu0 %1104
  %1106 = vrot.lane.b32.xlu0 %v231, 66
  %v1107 = vpop.permute.xlu0 %1106
  %1108 = vrot.lane.b32.xlu0 %v232, 66
  %v1109 = vpop.permute.xlu0 %1108
  %1110 = vrot.lane.b32.xlu0 %v233, 66
  %v1111 = vpop.permute.xlu0 %1110
  %1112 = vrot.lane.b32.xlu0 %v269, 66
  %v1113 = vpop.permute.xlu0 %1112
  %1114 = vrot.lane.b32.xlu0 %v270, 66
  %v1115 = vpop.permute.xlu0 %1114
  %1116 = vrot.lane.b32.xlu0 %v271, 66
  %v1117 = vpop.permute.xlu0 %1116
  %1118 = vrot.lane.b32.xlu0 %v272, 66
  %v1119 = vpop.permute.xlu0 %1118
  %1120 = vrot.lane.b32.xlu0 %v273, 66
  %v1121 = vpop.permute.xlu0 %1120
  %1122 = vrot.lane.b32.xlu0 %v274, 66
  %v1123 = vpop.permute.xlu0 %1122
  %1124 = vrot.lane.b32.xlu0 %v275, 66
  %v1125 = vpop.permute.xlu0 %1124
  %1126 = vrot.lane.b32.xlu0 %v276, 66
  %v1127 = vpop.permute.xlu0 %1126
  %1128 = vrot.lane.b32.xlu0 %v277, 66
  %v1129 = vpop.permute.xlu0 %1128
  %1130 = vrot.lane.b32.xlu0 %v278, 66
  %v1131 = vpop.permute.xlu0 %1130
  %1132 = vrot.lane.b32.xlu0 %v267, 66
  %v1133 = vpop.permute.xlu0 %1132
  %1134 = vrot.lane.b32.xlu0 %v302, 66
  %v1135 = vpop.permute.xlu0 %1134
  %1136 = vrot.lane.b32.xlu0 %v303, 66
  %v1137 = vpop.permute.xlu0 %1136
  %1138 = vrot.lane.b32.xlu0 %v304, 66
  %v1139 = vpop.permute.xlu0 %1138
  %1140 = vrot.lane.b32.xlu0 %v305, 66
  %v1141 = vpop.permute.xlu0 %1140
  %1142 = vrot.lane.b32.xlu0 %v306, 66
  %v1143 = vpop.permute.xlu0 %1142
  %1144 = vrot.lane.b32.xlu0 %v307, 66
  %v1145 = vpop.permute.xlu0 %1144
  %1146 = vrot.lane.b32.xlu0 %v308, 66
  %v1147 = vpop.permute.xlu0 %1146
  %1148 = vrot.lane.b32.xlu0 %v309, 66
  %v1149 = vpop.permute.xlu0 %1148
  %1150 = vrot.lane.b32.xlu0 %v310, 66
  %v1151 = vpop.permute.xlu0 %1150
  %1152 = vrot.lane.b32.xlu0 %v311, 66
  %v1153 = vpop.permute.xlu0 %1152
  %1154 = vrot.lane.b32.xlu0 %v300, 66
  %v1155 = vpop.permute.xlu0 %1154
  %1156 = vrot.lane.b32.xlu0 %v335, 66
  %v1157 = vpop.permute.xlu0 %1156
  %1158 = vrot.lane.b32.xlu0 %v336, 66
  %v1159 = vpop.permute.xlu0 %1158
  %1160 = vrot.lane.b32.xlu0 %v337, 66
  %v1161 = vpop.permute.xlu0 %1160
  %1162 = vrot.lane.b32.xlu0 %v338, 66
  %v1163 = vpop.permute.xlu0 %1162
  %1164 = vrot.lane.b32.xlu0 %v339, 66
  %v1165 = vpop.permute.xlu0 %1164
  %1166 = vrot.lane.b32.xlu0 %v340, 66
  %v1167 = vpop.permute.xlu0 %1166
  %1168 = vrot.lane.b32.xlu0 %v341, 66
  %v1169 = vpop.permute.xlu0 %1168
  %1170 = vrot.lane.b32.xlu0 %v342, 66
  %v1171 = vpop.permute.xlu0 %1170
  %1172 = vrot.lane.b32.xlu0 %v343, 66
  %v1173 = vpop.permute.xlu0 %1172
  %1174 = vrot.lane.b32.xlu0 %v344, 66
  %v1175 = vpop.permute.xlu0 %1174
  %1176 = vrot.lane.b32.xlu0 %v333, 66
  %v1177 = vpop.permute.xlu0 %1176
  %1178 = vrot.lane.b32.xlu0 %v368, 66
  %v1179 = vpop.permute.xlu0 %1178
  %1180 = vrot.lane.b32.xlu0 %v369, 66
  %v1181 = vpop.permute.xlu0 %1180
  %1182 = vrot.lane.b32.xlu0 %v370, 66
  %v1183 = vpop.permute.xlu0 %1182
  %1184 = vrot.lane.b32.xlu0 %v371, 66
  %v1185 = vpop.permute.xlu0 %1184
  %1186 = vrot.lane.b32.xlu0 %v372, 66
  %v1187 = vpop.permute.xlu0 %1186
  %1188 = vrot.lane.b32.xlu0 %v373, 66
  %v1189 = vpop.permute.xlu0 %1188
  %1190 = vrot.lane.b32.xlu0 %v374, 66
  %v1191 = vpop.permute.xlu0 %1190
  %1192 = vrot.lane.b32.xlu0 %v375, 66
  %v1193 = vpop.permute.xlu0 %1192
  %1194 = vrot.lane.b32.xlu0 %v376, 66
  %v1195 = vpop.permute.xlu0 %1194
  %1196 = vrot.lane.b32.xlu0 %v377, 66
  %v1197 = vpop.permute.xlu0 %1196
  %1198 = vrot.lane.b32.xlu0 %v366, 66
  %v1199 = vpop.permute.xlu0 %1198
  %1200 = vrot.lane.b32.xlu0 %v401, 66
  %v1201 = vpop.permute.xlu0 %1200
  %1202 = vrot.lane.b32.xlu0 %v402, 66
  %v1203 = vpop.permute.xlu0 %1202
  %1204 = vrot.lane.b32.xlu0 %v403, 66
  %v1205 = vpop.permute.xlu0 %1204
  %1206 = vrot.lane.b32.xlu0 %v404, 66
  %v1207 = vpop.permute.xlu0 %1206
  %1208 = vrot.lane.b32.xlu0 %v405, 66
  %v1209 = vpop.permute.xlu0 %1208
  %1210 = vrot.lane.b32.xlu0 %v406, 66
  %v1211 = vpop.permute.xlu0 %1210
  %1212 = vrot.lane.b32.xlu0 %v407, 66
  %v1213 = vpop.permute.xlu0 %1212
  %1214 = vrot.lane.b32.xlu0 %v408, 66
  %v1215 = vpop.permute.xlu0 %1214
  %1216 = vrot.lane.b32.xlu0 %v409, 66
  %v1217 = vpop.permute.xlu0 %1216
  %1218 = vrot.lane.b32.xlu0 %v410, 66
  %v1219 = vpop.permute.xlu0 %1218
  %1220 = vrot.lane.b32.xlu0 %v399, 66
  %v1221 = vpop.permute.xlu0 %1220
  %1222 = vrot.lane.b32.xlu0 %v434, 66
  %v1223 = vpop.permute.xlu0 %1222
  %1224 = vrot.lane.b32.xlu0 %v435, 66
  %v1225 = vpop.permute.xlu0 %1224
  %1226 = vrot.lane.b32.xlu0 %v436, 66
  %v1227 = vpop.permute.xlu0 %1226
  %1228 = vrot.lane.b32.xlu0 %v437, 66
  %v1229 = vpop.permute.xlu0 %1228
  %1230 = vrot.lane.b32.xlu0 %v438, 66
  %v1231 = vpop.permute.xlu0 %1230
  %1232 = vrot.lane.b32.xlu0 %v439, 66
  %v1233 = vpop.permute.xlu0 %1232
  %1234 = vrot.lane.b32.xlu0 %v440, 66
  %v1235 = vpop.permute.xlu0 %1234
  %1236 = vrot.lane.b32.xlu0 %v441, 66
  %v1237 = vpop.permute.xlu0 %1236
  %1238 = vrot.lane.b32.xlu0 %v442, 66
  %v1239 = vpop.permute.xlu0 %1238
  %1240 = vrot.lane.b32.xlu0 %v443, 66
  %v1241 = vpop.permute.xlu0 %1240
  %1242 = vrot.lane.b32.xlu0 %v432, 66
  %v1243 = vpop.permute.xlu0 %1242
  %1244 = vrot.lane.b32.xlu0 %v467, 66
  %v1245 = vpop.permute.xlu0 %1244
  %1246 = vrot.lane.b32.xlu0 %v468, 66
  %v1247 = vpop.permute.xlu0 %1246
  %1248 = vrot.lane.b32.xlu0 %v469, 66
  %v1249 = vpop.permute.xlu0 %1248
  %1250 = vrot.lane.b32.xlu0 %v470, 66
  %v1251 = vpop.permute.xlu0 %1250
  %1252 = vrot.lane.b32.xlu0 %v471, 66
  %v1253 = vpop.permute.xlu0 %1252
  %1254 = vrot.lane.b32.xlu0 %v472, 66
  %v1255 = vpop.permute.xlu0 %1254
  %1256 = vrot.lane.b32.xlu0 %v473, 66
  %v1257 = vpop.permute.xlu0 %1256
  %1258 = vrot.lane.b32.xlu0 %v474, 66
  %v1259 = vpop.permute.xlu0 %1258
  %1260 = vrot.lane.b32.xlu0 %v475, 66
  %v1261 = vpop.permute.xlu0 %1260
  %1262 = vrot.lane.b32.xlu0 %v476, 66
  %v1263 = vpop.permute.xlu0 %1262
  %1264 = vrot.lane.b32.xlu0 %v465, 66
  %v1265 = vpop.permute.xlu0 %1264
  %1266 = vrot.lane.b32.xlu0 %v500, 66
  %v1267 = vpop.permute.xlu0 %1266
  %1268 = vrot.lane.b32.xlu0 %v501, 66
  %v1269 = vpop.permute.xlu0 %1268
  %1270 = vrot.lane.b32.xlu0 %v502, 66
  %v1271 = vpop.permute.xlu0 %1270
  %1272 = vrot.lane.b32.xlu0 %v503, 66
  %v1273 = vpop.permute.xlu0 %1272
  %1274 = vrot.lane.b32.xlu0 %v504, 66
  %v1275 = vpop.permute.xlu0 %1274
  %1276 = vrot.lane.b32.xlu0 %v505, 66
  %v1277 = vpop.permute.xlu0 %1276
  %1278 = vrot.lane.b32.xlu0 %v506, 66
  %v1279 = vpop.permute.xlu0 %1278
  %1280 = vrot.lane.b32.xlu0 %v507, 66
  %v1281 = vpop.permute.xlu0 %1280
  %1282 = vrot.lane.b32.xlu0 %v508, 66
  %v1283 = vpop.permute.xlu0 %1282
  %1284 = vrot.lane.b32.xlu0 %v509, 66
  %v1285 = vpop.permute.xlu0 %1284
  %1286 = vrot.lane.b32.xlu0 %v498, 66
  %v1287 = vpop.permute.xlu0 %1286
  %1288 = vrot.lane.b32.xlu0 %v533, 66
  %v1289 = vpop.permute.xlu0 %1288
  %1290 = vrot.lane.b32.xlu0 %v534, 66
  %v1291 = vpop.permute.xlu0 %1290
  %1292 = vrot.lane.b32.xlu0 %v535, 66
  %v1293 = vpop.permute.xlu0 %1292
  %1294 = vrot.lane.b32.xlu0 %v536, 66
  %v1295 = vpop.permute.xlu0 %1294
  %1296 = vrot.lane.b32.xlu0 %v537, 66
  %v1297 = vpop.permute.xlu0 %1296
  %1298 = vrot.lane.b32.xlu0 %v538, 66
  %v1299 = vpop.permute.xlu0 %1298
  %1300 = vrot.lane.b32.xlu0 %v539, 66
  %v1301 = vpop.permute.xlu0 %1300
  %1302 = vrot.lane.b32.xlu0 %v540, 66
  %v1303 = vpop.permute.xlu0 %1302
  %1304 = vrot.lane.b32.xlu0 %v541, 66
  %v1305 = vpop.permute.xlu0 %1304
  %1306 = vrot.lane.b32.xlu0 %v542, 66
  %v1307 = vpop.permute.xlu0 %1306
  %1308 = vrot.lane.b32.xlu0 %v531, 66
  %v1309 = vpop.permute.xlu0 %1308
  %1310 = vrot.lane.b32.xlu0 %v566, 66
  %v1311 = vpop.permute.xlu0 %1310
  %1312 = vrot.lane.b32.xlu0 %v567, 66
  %v1313 = vpop.permute.xlu0 %1312
  %1314 = vrot.lane.b32.xlu0 %v568, 66
  %v1315 = vpop.permute.xlu0 %1314
  %1316 = vrot.lane.b32.xlu0 %v569, 66
  %v1317 = vpop.permute.xlu0 %1316
  %1318 = vrot.lane.b32.xlu0 %v570, 66
  %v1319 = vpop.permute.xlu0 %1318
  %1320 = vrot.lane.b32.xlu0 %v571, 66
  %v1321 = vpop.permute.xlu0 %1320
  %1322 = vrot.lane.b32.xlu0 %v572, 66
  %v1323 = vpop.permute.xlu0 %1322
  %1324 = vrot.lane.b32.xlu0 %v573, 66
  %v1325 = vpop.permute.xlu0 %1324
  %1326 = vrot.lane.b32.xlu0 %v574, 66
  %v1327 = vpop.permute.xlu0 %1326
  %1328 = vrot.lane.b32.xlu0 %v575, 66
  %v1329 = vpop.permute.xlu0 %1328
  %1330 = vrot.lane.b32.xlu0 %v564, 66
  %v1331 = vpop.permute.xlu0 %1330
  %1332 = vrot.lane.b32.xlu0 %v599, 66
  %v1333 = vpop.permute.xlu0 %1332
  %1334 = vrot.lane.b32.xlu0 %v600, 66
  %v1335 = vpop.permute.xlu0 %1334
  %1336 = vrot.lane.b32.xlu0 %v601, 66
  %v1337 = vpop.permute.xlu0 %1336
  %1338 = vrot.lane.b32.xlu0 %v602, 66
  %v1339 = vpop.permute.xlu0 %1338
  %1340 = vrot.lane.b32.xlu0 %v603, 66
  %v1341 = vpop.permute.xlu0 %1340
  %1342 = vrot.lane.b32.xlu0 %v604, 66
  %v1343 = vpop.permute.xlu0 %1342
  %1344 = vrot.lane.b32.xlu0 %v605, 66
  %v1345 = vpop.permute.xlu0 %1344
  %1346 = vrot.lane.b32.xlu0 %v606, 66
  %v1347 = vpop.permute.xlu0 %1346
  %1348 = vrot.lane.b32.xlu0 %v607, 66
  %v1349 = vpop.permute.xlu0 %1348
  %1350 = vrot.lane.b32.xlu0 %v608, 66
  %v1351 = vpop.permute.xlu0 %1350
  %1352 = vrot.lane.b32.xlu0 %v597, 66
  %v1353 = vpop.permute.xlu0 %1352
  %1354 = vrot.lane.b32.xlu0 %v610, 66
  %v1355 = vpop.permute.xlu0 %1354
  %1356 = vrot.lane.b32.xlu0 %v630, 66
  %v1357 = vpop.permute.xlu0 %1356
  %1358 = vrot.lane.b32.xlu0 %v631, 66
  %v1359 = vpop.permute.xlu0 %1358
  %1360 = vrot.lane.b32.xlu0 %v632, 66
  %v1361 = vpop.permute.xlu0 %1360
  %1362 = vrot.lane.b32.xlu0 %v633, 66
  %v1363 = vpop.permute.xlu0 %1362
  %1364 = vrot.lane.b32.xlu0 %v634, 66
  %v1365 = vpop.permute.xlu0 %1364
  %1366 = vrot.lane.b32.xlu0 %v635, 66
  %v1367 = vpop.permute.xlu0 %1366
  %1368 = vrot.lane.b32.xlu0 %v636, 66
  %v1369 = vpop.permute.xlu0 %1368
  %1370 = vrot.lane.b32.xlu0 %v637, 66
  %v1371 = vpop.permute.xlu0 %1370
  %1372 = vrot.lane.b32.xlu0 %v638, 66
  %v1373 = vpop.permute.xlu0 %1372
  %1374 = vrot.lane.b32.xlu0 %v628, 66
  %v1375 = vpop.permute.xlu0 %1374
  %1376 = vrot.lane.b32.xlu0 %v641, 66
  %v1377 = vpop.permute.xlu0 %1376
  %1378 = vrot.lane.b32.xlu0 %v663, 66
  %v1379 = vpop.permute.xlu0 %1378
  %1380 = vrot.lane.b32.xlu0 %v664, 66
  %v1381 = vpop.permute.xlu0 %1380
  %1382 = vrot.lane.b32.xlu0 %v665, 66
  %v1383 = vpop.permute.xlu0 %1382
  %1384 = vrot.lane.b32.xlu0 %v666, 66
  %v1385 = vpop.permute.xlu0 %1384
  %1386 = vrot.lane.b32.xlu0 %v667, 66
  %v1387 = vpop.permute.xlu0 %1386
  %1388 = vrot.lane.b32.xlu0 %v668, 66
  %v1389 = vpop.permute.xlu0 %1388
  %1390 = vrot.lane.b32.xlu0 %v669, 66
  %v1391 = vpop.permute.xlu0 %1390
  %1392 = vrot.lane.b32.xlu0 %v670, 66
  %v1393 = vpop.permute.xlu0 %1392
  %1394 = vrot.lane.b32.xlu0 %v671, 66
  %v1395 = vpop.permute.xlu0 %1394
  %1396 = vrot.lane.b32.xlu0 %v672, 66
  %v1397 = vpop.permute.xlu0 %1396
  %1398 = vrot.lane.b32.xlu0 %v674, 66
  %v1399 = vpop.permute.xlu0 %1398
  %1400 = vrot.lane.b32.xlu0 %v696, 66
  %v1401 = vpop.permute.xlu0 %1400
  %1402 = vrot.lane.b32.xlu0 %v697, 66
  %v1403 = vpop.permute.xlu0 %1402
  %1404 = vrot.lane.b32.xlu0 %v698, 66
  %v1405 = vpop.permute.xlu0 %1404
  %1406 = vrot.lane.b32.xlu0 %v699, 66
  %v1407 = vpop.permute.xlu0 %1406
  %1408 = vrot.lane.b32.xlu0 %v700, 66
  %v1409 = vpop.permute.xlu0 %1408
  %1410 = vrot.lane.b32.xlu0 %v701, 66
  %v1411 = vpop.permute.xlu0 %1410
  %1412 = vrot.lane.b32.xlu0 %v702, 66
  %v1413 = vpop.permute.xlu0 %1412
  %1414 = vrot.lane.b32.xlu0 %v703, 66
  %v1415 = vpop.permute.xlu0 %1414
  %1416 = vrot.lane.b32.xlu0 %v704, 66
  %v1417 = vpop.permute.xlu0 %1416
  %1418 = vrot.lane.b32.xlu0 %v705, 66
  %v1419 = vpop.permute.xlu0 %1418
  %1420 = vrot.lane.b32.xlu0 %v707, 66
  %v1421 = vpop.permute.xlu0 %1420
  %1422 = vrot.lane.b32.xlu0 %v729, 66
  %v1423 = vpop.permute.xlu0 %1422
  %1424 = vrot.lane.b32.xlu0 %v730, 66
  %v1425 = vpop.permute.xlu0 %1424
  %1426 = vrot.lane.b32.xlu0 %v731, 66
  %v1427 = vpop.permute.xlu0 %1426
  %1428 = vrot.lane.b32.xlu0 %v732, 66
  %v1429 = vpop.permute.xlu0 %1428
  %1430 = vrot.lane.b32.xlu0 %v733, 66
  %v1431 = vpop.permute.xlu0 %1430
  %1432 = vrot.lane.b32.xlu0 %v734, 66
  %v1433 = vpop.permute.xlu0 %1432
  %1434 = vrot.lane.b32.xlu0 %v735, 66
  %v1435 = vpop.permute.xlu0 %1434
  %1436 = vrot.lane.b32.xlu0 %v736, 66
  %v1437 = vpop.permute.xlu0 %1436
  %1438 = vrot.lane.b32.xlu0 %v737, 66
  %v1439 = vpop.permute.xlu0 %1438
  %1440 = vrot.lane.b32.xlu0 %v738, 66
  %v1441 = vpop.permute.xlu0 %1440
  %1442 = vrot.lane.b32.xlu0 %v794, 66
  %v1443 = vpop.permute.xlu0 %1442
  %1444 = vrot.lane.b32.xlu0 %v992, 66
  %v1445 = vpop.permute.xlu0 %1444
  %1446 = vrot.lane.b32.xlu0 %v993, 66
  %v1447 = vpop.permute.xlu0 %1446
  %1448 = vrot.lane.b32.xlu0 %v994, 66
  %v1449 = vpop.permute.xlu0 %1448
  %1450 = vrot.lane.b32.xlu0 %v995, 66
  %v1451 = vpop.permute.xlu0 %1450
  %1452 = vrot.lane.b32.xlu0 %v996, 66
  %v1453 = vpop.permute.xlu0 %1452
  %1454 = vrot.lane.b32.xlu0 %v997, 66
  %v1455 = vpop.permute.xlu0 %1454
  %1456 = vrot.lane.b32.xlu0 %v998, 66
  %v1457 = vpop.permute.xlu0 %1456
  %1458 = vrot.lane.b32.xlu0 %v999, 66
  %v1459 = vpop.permute.xlu0 %1458
  %1460 = vrot.lane.b32.xlu0 %v1000, 66
  %v1461 = vpop.permute.xlu0 %1460
  %1462 = vrot.lane.b32.xlu0 %v1001, 66
  %v1463 = vpop.permute.xlu0 %1462
  %1464 = vrot.lane.b32.xlu0 %v816, 66
  %v1465 = vpop.permute.xlu0 %1464
  %1466 = vrot.lane.b32.xlu0 %v1002, 66
  %v1467 = vpop.permute.xlu0 %1466
  %1468 = vrot.lane.b32.xlu0 %v1003, 66
  %v1469 = vpop.permute.xlu0 %1468
  %1470 = vrot.lane.b32.xlu0 %v1004, 66
  %v1471 = vpop.permute.xlu0 %1470
  %1472 = vrot.lane.b32.xlu0 %v1005, 66
  %v1473 = vpop.permute.xlu0 %1472
  %1474 = vrot.lane.b32.xlu0 %v1006, 66
  %v1475 = vpop.permute.xlu0 %1474
  %1476 = vrot.lane.b32.xlu0 %v1007, 66
  %v1477 = vpop.permute.xlu0 %1476
  %1478 = vrot.lane.b32.xlu0 %v1008, 66
  %v1479 = vpop.permute.xlu0 %1478
  %1480 = vrot.lane.b32.xlu0 %v1009, 66
  %v1481 = vpop.permute.xlu0 %1480
  %1482 = vrot.lane.b32.xlu0 %v1010, 66
  %v1483 = vpop.permute.xlu0 %1482
  %1484 = vrot.lane.b32.xlu0 %v1011, 66
  %v1485 = vpop.permute.xlu0 %1484
  %1486 = vrot.lane.b32.xlu0 %v838, 66
  %v1487 = vpop.permute.xlu0 %1486
  %1488 = vrot.lane.b32.xlu0 %v1012, 66
  %v1489 = vpop.permute.xlu0 %1488
  %1490 = vrot.lane.b32.xlu0 %v1013, 66
  %v1491 = vpop.permute.xlu0 %1490
  %1492 = vrot.lane.b32.xlu0 %v1014, 66
  %v1493 = vpop.permute.xlu0 %1492
  %1494 = vrot.lane.b32.xlu0 %v1015, 66
  %v1495 = vpop.permute.xlu0 %1494
  %1496 = vrot.lane.b32.xlu0 %v1016, 66
  %v1497 = vpop.permute.xlu0 %1496
  %1498 = vrot.lane.b32.xlu0 %v1017, 66
  %v1499 = vpop.permute.xlu0 %1498
  %1500 = vrot.lane.b32.xlu0 %v1018, 66
  %v1501 = vpop.permute.xlu0 %1500
  %1502 = vrot.lane.b32.xlu0 %v1019, 66
  %v1503 = vpop.permute.xlu0 %1502
  %1504 = vrot.lane.b32.xlu0 %v1020, 66
  %v1505 = vpop.permute.xlu0 %1504
  %1506 = vrot.lane.b32.xlu0 %v1021, 66
  %v1507 = vpop.permute.xlu0 %1506
  %1508 = vrot.lane.b32.xlu0 %v860, 66
  %v1509 = vpop.permute.xlu0 %1508
  %1510 = vrot.lane.b32.xlu0 %v1022, 66
  %v1511 = vpop.permute.xlu0 %1510
  %1512 = vrot.lane.b32.xlu0 %v1023, 66
  %v1513 = vpop.permute.xlu0 %1512
  %1514 = vrot.lane.b32.xlu0 %v1024, 66
  %v1515 = vpop.permute.xlu0 %1514
  %1516 = vrot.lane.b32.xlu0 %v1025, 66
  %v1517 = vpop.permute.xlu0 %1516
  %1518 = vrot.lane.b32.xlu0 %v1026, 66
  %v1519 = vpop.permute.xlu0 %1518
  %1520 = vrot.lane.b32.xlu0 %v1027, 66
  %v1521 = vpop.permute.xlu0 %1520
  %1522 = vrot.lane.b32.xlu0 %v1028, 66
  %v1523 = vpop.permute.xlu0 %1522
  %1524 = vrot.lane.b32.xlu0 %v1029, 66
  %v1525 = vpop.permute.xlu0 %1524
  %1526 = vrot.lane.b32.xlu0 %v1030, 66
  %v1527 = vpop.permute.xlu0 %1526
  %1528 = vrot.lane.b32.xlu0 %v1031, 66
  %v1529 = vpop.permute.xlu0 %1528
  %1530 = vrot.lane.b32.xlu0 %v882, 66
  %v1531 = vpop.permute.xlu0 %1530
  %1532 = vrot.lane.b32.xlu0 %v1032, 66
  %v1533 = vpop.permute.xlu0 %1532
  %1534 = vrot.lane.b32.xlu0 %v1033, 66
  %v1535 = vpop.permute.xlu0 %1534
  %1536 = vrot.lane.b32.xlu0 %v1034, 66
  %v1537 = vpop.permute.xlu0 %1536
  %1538 = vrot.lane.b32.xlu0 %v1035, 66
  %v1539 = vpop.permute.xlu0 %1538
  %1540 = vrot.lane.b32.xlu0 %v1036, 66
  %v1541 = vpop.permute.xlu0 %1540
  %1542 = vrot.lane.b32.xlu0 %v1037, 66
  %v1543 = vpop.permute.xlu0 %1542
  %1544 = vrot.lane.b32.xlu0 %v1038, 66
  %v1545 = vpop.permute.xlu0 %1544
  %1546 = vrot.lane.b32.xlu0 %v1039, 66
  %v1547 = vpop.permute.xlu0 %1546
  %1548 = vrot.lane.b32.xlu0 %v1040, 66
  %v1549 = vpop.permute.xlu0 %1548
  %1550 = vrot.lane.b32.xlu0 %v1041, 66
  %v1551 = vpop.permute.xlu0 %1550
  %1552 = vrot.lane.b32.xlu0 %v904, 66
  %v1553 = vpop.permute.xlu0 %1552
  %1554 = vrot.lane.b32.xlu0 %v1042, 66
  %v1555 = vpop.permute.xlu0 %1554
  %1556 = vrot.lane.b32.xlu0 %v1043, 66
  %v1557 = vpop.permute.xlu0 %1556
  %1558 = vrot.lane.b32.xlu0 %v1044, 66
  %v1559 = vpop.permute.xlu0 %1558
  %1560 = vrot.lane.b32.xlu0 %v1045, 66
  %v1561 = vpop.permute.xlu0 %1560
  %1562 = vrot.lane.b32.xlu0 %v1046, 66
  %v1563 = vpop.permute.xlu0 %1562
  %1564 = vrot.lane.b32.xlu0 %v1047, 66
  %v1565 = vpop.permute.xlu0 %1564
  %1566 = vrot.lane.b32.xlu0 %v1048, 66
  %v1567 = vpop.permute.xlu0 %1566
  %1568 = vrot.lane.b32.xlu0 %v1049, 66
  %v1569 = vpop.permute.xlu0 %1568
  %1570 = vrot.lane.b32.xlu0 %v1050, 66
  %v1571 = vpop.permute.xlu0 %1570
  %1572 = vrot.lane.b32.xlu0 %v1051, 66
  %v1573 = vpop.permute.xlu0 %1572
  %1574 = vrot.lane.b32.xlu0 %v926, 66
  %v1575 = vpop.permute.xlu0 %1574
  %1576 = vrot.lane.b32.xlu0 %v1052, 66
  %v1577 = vpop.permute.xlu0 %1576
  %1578 = vrot.lane.b32.xlu0 %v1053, 66
  %v1579 = vpop.permute.xlu0 %1578
  %1580 = vrot.lane.b32.xlu0 %v1054, 66
  %v1581 = vpop.permute.xlu0 %1580
  %1582 = vrot.lane.b32.xlu0 %v1055, 66
  %v1583 = vpop.permute.xlu0 %1582
  %1584 = vrot.lane.b32.xlu0 %v1056, 66
  %v1585 = vpop.permute.xlu0 %1584
  %1586 = vrot.lane.b32.xlu0 %v1057, 66
  %v1587 = vpop.permute.xlu0 %1586
  %1588 = vrot.lane.b32.xlu0 %v1058, 66
  %v1589 = vpop.permute.xlu0 %1588
  %1590 = vrot.lane.b32.xlu0 %v1059, 66
  %v1591 = vpop.permute.xlu0 %1590
  %1592 = vrot.lane.b32.xlu0 %v1060, 66
  %v1593 = vpop.permute.xlu0 %1592
  %1594 = vrot.lane.b32.xlu0 %v1061, 66
  %v1595 = vpop.permute.xlu0 %1594
  %1596 = vrot.lane.b32.xlu0 %v948, 66
  %v1597 = vpop.permute.xlu0 %1596
  %1598 = vrot.lane.b32.xlu0 %v1062, 66
  %v1599 = vpop.permute.xlu0 %1598
  %1600 = vrot.lane.b32.xlu0 %v1063, 66
  %v1601 = vpop.permute.xlu0 %1600
  %1602 = vrot.lane.b32.xlu0 %v1064, 66
  %v1603 = vpop.permute.xlu0 %1602
  %1604 = vrot.lane.b32.xlu0 %v1065, 66
  %v1605 = vpop.permute.xlu0 %1604
  %1606 = vrot.lane.b32.xlu0 %v1066, 66
  %v1607 = vpop.permute.xlu0 %1606
  %1608 = vrot.lane.b32.xlu0 %v1067, 66
  %v1609 = vpop.permute.xlu0 %1608
  %1610 = vrot.lane.b32.xlu0 %v1068, 66
  %v1611 = vpop.permute.xlu0 %1610
  %1612 = vrot.lane.b32.xlu0 %v1069, 66
  %v1613 = vpop.permute.xlu0 %1612
  %1614 = vrot.lane.b32.xlu0 %v1070, 66
  %v1615 = vpop.permute.xlu0 %1614
  %1616 = vrot.lane.b32.xlu0 %v1071, 66
  %v1617 = vpop.permute.xlu0 %1616
  %1618 = vrot.lane.b32.xlu0 %v970, 66
  %v1619 = vpop.permute.xlu0 %1618
  %1620 = vrot.lane.b32.xlu0 %v1072, 66
  %v1621 = vpop.permute.xlu0 %1620
  %1622 = vrot.lane.b32.xlu0 %v1073, 66
  %v1623 = vpop.permute.xlu0 %1622
  %1624 = vrot.lane.b32.xlu0 %v1074, 66
  %v1625 = vpop.permute.xlu0 %1624
  %1626 = vrot.lane.b32.xlu0 %v1075, 66
  %v1627 = vpop.permute.xlu0 %1626
  %1628 = vrot.lane.b32.xlu0 %v1076, 66
  %v1629 = vpop.permute.xlu0 %1628
  %1630 = vrot.lane.b32.xlu0 %v1077, 66
  %v1631 = vpop.permute.xlu0 %1630
  %1632 = vrot.lane.b32.xlu0 %v1078, 66
  %v1633 = vpop.permute.xlu0 %1632
  %1634 = vrot.lane.b32.xlu0 %v1079, 66
  %v1635 = vpop.permute.xlu0 %1634
  %1636 = vrot.lane.b32.xlu0 %v1080, 66
  %v1637 = vpop.permute.xlu0 %1636
  %1638 = vrot.lane.b32.xlu0 %v1081, 66
  %v1639 = vpop.permute.xlu0 %1638
  %vm1640 = vcmask 539648
  %v1641 = vsel %vm1640, %v1091, %v1093
  %v1642 = vsel %vm1640, %v1093, %v1095
  %v1643 = vsel %vm1640, %v1095, %v1097
  %v1644 = vsel %vm1640, %v1097, %v1099
  %v1645 = vsel %vm1640, %v1099, %v1101
  %v1646 = vsel %vm1640, %v1101, %v1103
  %v1647 = vsel %vm1640, %v1103, %v1105
  %v1648 = vsel %vm1640, %v1105, %v1107
  %v1649 = vsel %vm1640, %v1107, %v1109
  %v1650 = vsel %vm1640, %v1109, %v1111
  %v1651 = vsel %vm1640, %v1113, %v1115
  %v1652 = vsel %vm1640, %v1115, %v1117
  %v1653 = vsel %vm1640, %v1117, %v1119
  %v1654 = vsel %vm1640, %v1119, %v1121
  %v1655 = vsel %vm1640, %v1121, %v1123
  %v1656 = vsel %vm1640, %v1123, %v1125
  %v1657 = vsel %vm1640, %v1125, %v1127
  %v1658 = vsel %vm1640, %v1127, %v1129
  %v1659 = vsel %vm1640, %v1129, %v1131
  %v1660 = vsel %vm1640, %v1131, %v1133
  %v1661 = vsel %vm1640, %v1135, %v1137
  %v1662 = vsel %vm1640, %v1137, %v1139
  %v1663 = vsel %vm1640, %v1139, %v1141
  %v1664 = vsel %vm1640, %v1141, %v1143
  %v1665 = vsel %vm1640, %v1143, %v1145
  %v1666 = vsel %vm1640, %v1145, %v1147
  %v1667 = vsel %vm1640, %v1147, %v1149
  %v1668 = vsel %vm1640, %v1149, %v1151
  %v1669 = vsel %vm1640, %v1151, %v1153
  %v1670 = vsel %vm1640, %v1153, %v1155
  %v1671 = vsel %vm1640, %v1157, %v1159
  %v1672 = vsel %vm1640, %v1159, %v1161
  %v1673 = vsel %vm1640, %v1161, %v1163
  %v1674 = vsel %vm1640, %v1163, %v1165
  %v1675 = vsel %vm1640, %v1165, %v1167
  %v1676 = vsel %vm1640, %v1167, %v1169
  %v1677 = vsel %vm1640, %v1169, %v1171
  %v1678 = vsel %vm1640, %v1171, %v1173
  %v1679 = vsel %vm1640, %v1173, %v1175
  %v1680 = vsel %vm1640, %v1175, %v1177
  %v1681 = vsel %vm1640, %v1179, %v1181
  %v1682 = vsel %vm1640, %v1181, %v1183
  %v1683 = vsel %vm1640, %v1183, %v1185
  %v1684 = vsel %vm1640, %v1185, %v1187
  %v1685 = vsel %vm1640, %v1187, %v1189
  %v1686 = vsel %vm1640, %v1189, %v1191
  %v1687 = vsel %vm1640, %v1191, %v1193
  %v1688 = vsel %vm1640, %v1193, %v1195
  %v1689 = vsel %vm1640, %v1195, %v1197
  %v1690 = vsel %vm1640, %v1197, %v1199
  %v1691 = vsel %vm1640, %v1201, %v1203
  %v1692 = vsel %vm1640, %v1203, %v1205
  %v1693 = vsel %vm1640, %v1205, %v1207
  %v1694 = vsel %vm1640, %v1207, %v1209
  %v1695 = vsel %vm1640, %v1209, %v1211
  %v1696 = vsel %vm1640, %v1211, %v1213
  %v1697 = vsel %vm1640, %v1213, %v1215
  %v1698 = vsel %vm1640, %v1215, %v1217
  %v1699 = vsel %vm1640, %v1217, %v1219
  %v1700 = vsel %vm1640, %v1219, %v1221
  %v1701 = vsel %vm1640, %v1223, %v1225
  %v1702 = vsel %vm1640, %v1225, %v1227
  %v1703 = vsel %vm1640, %v1227, %v1229
  %v1704 = vsel %vm1640, %v1229, %v1231
  %v1705 = vsel %vm1640, %v1231, %v1233
  %v1706 = vsel %vm1640, %v1233, %v1235
  %v1707 = vsel %vm1640, %v1235, %v1237
  %v1708 = vsel %vm1640, %v1237, %v1239
  %v1709 = vsel %vm1640, %v1239, %v1241
  %v1710 = vsel %vm1640, %v1241, %v1243
  %v1711 = vsel %vm1640, %v1245, %v1247
  %v1712 = vsel %vm1640, %v1247, %v1249
  %v1713 = vsel %vm1640, %v1249, %v1251
  %v1714 = vsel %vm1640, %v1251, %v1253
  %v1715 = vsel %vm1640, %v1253, %v1255
  %v1716 = vsel %vm1640, %v1255, %v1257
  %v1717 = vsel %vm1640, %v1257, %v1259
  %v1718 = vsel %vm1640, %v1259, %v1261
  %v1719 = vsel %vm1640, %v1261, %v1263
  %v1720 = vsel %vm1640, %v1263, %v1265
  %v1721 = vsel %vm1640, %v1267, %v1269
  %v1722 = vsel %vm1640, %v1269, %v1271
  %v1723 = vsel %vm1640, %v1271, %v1273
  %v1724 = vsel %vm1640, %v1273, %v1275
  %v1725 = vsel %vm1640, %v1275, %v1277
  %v1726 = vsel %vm1640, %v1277, %v1279
  %v1727 = vsel %vm1640, %v1279, %v1281
  %v1728 = vsel %vm1640, %v1281, %v1283
  %v1729 = vsel %vm1640, %v1283, %v1285
  %v1730 = vsel %vm1640, %v1285, %v1287
  %v1731 = vsel %vm1640, %v1289, %v1291
  %v1732 = vsel %vm1640, %v1291, %v1293
  %v1733 = vsel %vm1640, %v1293, %v1295
  %v1734 = vsel %vm1640, %v1295, %v1297
  %v1735 = vsel %vm1640, %v1297, %v1299
  %v1736 = vsel %vm1640, %v1299, %v1301
  %v1737 = vsel %vm1640, %v1301, %v1303
  %v1738 = vsel %vm1640, %v1303, %v1305
  %v1739 = vsel %vm1640, %v1305, %v1307
  %v1740 = vsel %vm1640, %v1307, %v1309
  %v1741 = vsel %vm1640, %v1311, %v1313
  %v1742 = vsel %vm1640, %v1313, %v1315
  %v1743 = vsel %vm1640, %v1315, %v1317
  %v1744 = vsel %vm1640, %v1317, %v1319
  %v1745 = vsel %vm1640, %v1319, %v1321
  %v1746 = vsel %vm1640, %v1321, %v1323
  %v1747 = vsel %vm1640, %v1323, %v1325
  %v1748 = vsel %vm1640, %v1325, %v1327
  %v1749 = vsel %vm1640, %v1327, %v1329
  %v1750 = vsel %vm1640, %v1329, %v1331
  %v1751 = vsel %vm1640, %v1333, %v1335
  %v1752 = vsel %vm1640, %v1335, %v1337
  %v1753 = vsel %vm1640, %v1337, %v1339
  %v1754 = vsel %vm1640, %v1339, %v1341
  %v1755 = vsel %vm1640, %v1341, %v1343
  %v1756 = vsel %vm1640, %v1343, %v1345
  %v1757 = vsel %vm1640, %v1345, %v1347
  %v1758 = vsel %vm1640, %v1347, %v1349
  %v1759 = vsel %vm1640, %v1349, %v1351
  %v1760 = vsel %vm1640, %v1351, %v1353
  %v1761 = vsel %vm1640, %v1355, %v1357
  %v1762 = vsel %vm1640, %v1357, %v1359
  %v1763 = vsel %vm1640, %v1359, %v1361
  %v1764 = vsel %vm1640, %v1361, %v1363
  %v1765 = vsel %vm1640, %v1363, %v1365
  %v1766 = vsel %vm1640, %v1365, %v1367
  %v1767 = vsel %vm1640, %v1367, %v1369
  %v1768 = vsel %vm1640, %v1369, %v1371
  %v1769 = vsel %vm1640, %v1371, %v1373
  %v1770 = vsel %vm1640, %v1373, %v1375
  %v1771 = vsel %vm1640, %v1377, %v1379
  %v1772 = vsel %vm1640, %v1379, %v1381
  %v1773 = vsel %vm1640, %v1381, %v1383
  %v1774 = vsel %vm1640, %v1383, %v1385
  %v1775 = vsel %vm1640, %v1385, %v1387
  %v1776 = vsel %vm1640, %v1387, %v1389
  %v1777 = vsel %vm1640, %v1389, %v1391
  %v1778 = vsel %vm1640, %v1391, %v1393
  %v1779 = vsel %vm1640, %v1393, %v1395
  %v1780 = vsel %vm1640, %v1395, %v1397
  %v1781 = vsel %vm1640, %v1399, %v1401
  %v1782 = vsel %vm1640, %v1401, %v1403
  %v1783 = vsel %vm1640, %v1403, %v1405
  %v1784 = vsel %vm1640, %v1405, %v1407
  %v1785 = vsel %vm1640, %v1407, %v1409
  %v1786 = vsel %vm1640, %v1409, %v1411
  %v1787 = vsel %vm1640, %v1411, %v1413
  %v1788 = vsel %vm1640, %v1413, %v1415
  %v1789 = vsel %vm1640, %v1415, %v1417
  %v1790 = vsel %vm1640, %v1417, %v1419
  %v1791 = vsel %vm1640, %v1421, %v1423
  %v1792 = vsel %vm1640, %v1423, %v1425
  %v1793 = vsel %vm1640, %v1425, %v1427
  %v1794 = vsel %vm1640, %v1427, %v1429
  %v1795 = vsel %vm1640, %v1429, %v1431
  %v1796 = vsel %vm1640, %v1431, %v1433
  %v1797 = vsel %vm1640, %v1433, %v1435
  %v1798 = vsel %vm1640, %v1435, %v1437
  %v1799 = vsel %vm1640, %v1437, %v1439
  %v1800 = vsel %vm1640, %v1439, %v1441
  %v1801 = vsel %vm1640, %v1443, %v1445
  %v1802 = vsel %vm1640, %v1445, %v1447
  %v1803 = vsel %vm1640, %v1447, %v1449
  %v1804 = vsel %vm1640, %v1449, %v1451
  %v1805 = vsel %vm1640, %v1451, %v1453
  %v1806 = vsel %vm1640, %v1453, %v1455
  %v1807 = vsel %vm1640, %v1455, %v1457
  %v1808 = vsel %vm1640, %v1457, %v1459
  %v1809 = vsel %vm1640, %v1459, %v1461
  %v1810 = vsel %vm1640, %v1461, %v1463
  %v1811 = vsel %vm1640, %v1465, %v1467
  %v1812 = vsel %vm1640, %v1467, %v1469
  %v1813 = vsel %vm1640, %v1469, %v1471
  %v1814 = vsel %vm1640, %v1471, %v1473
  %v1815 = vsel %vm1640, %v1473, %v1475
  %v1816 = vsel %vm1640, %v1475, %v1477
  %v1817 = vsel %vm1640, %v1477, %v1479
  %v1818 = vsel %vm1640, %v1479, %v1481
  %v1819 = vsel %vm1640, %v1481, %v1483
  %v1820 = vsel %vm1640, %v1483, %v1485
  %v1821 = vsel %vm1640, %v1487, %v1489
  %v1822 = vsel %vm1640, %v1489, %v1491
  %v1823 = vsel %vm1640, %v1491, %v1493
  %v1824 = vsel %vm1640, %v1493, %v1495
  %v1825 = vsel %vm1640, %v1495, %v1497
  %v1826 = vsel %vm1640, %v1497, %v1499
  %v1827 = vsel %vm1640, %v1499, %v1501
  %v1828 = vsel %vm1640, %v1501, %v1503
  %v1829 = vsel %vm1640, %v1503, %v1505
  %v1830 = vsel %vm1640, %v1505, %v1507
  %v1831 = vsel %vm1640, %v1509, %v1511
  %v1832 = vsel %vm1640, %v1511, %v1513
  %v1833 = vsel %vm1640, %v1513, %v1515
  %v1834 = vsel %vm1640, %v1515, %v1517
  %v1835 = vsel %vm1640, %v1517, %v1519
  %v1836 = vsel %vm1640, %v1519, %v1521
  %v1837 = vsel %vm1640, %v1521, %v1523
  %v1838 = vsel %vm1640, %v1523, %v1525
  %v1839 = vsel %vm1640, %v1525, %v1527
  %v1840 = vsel %vm1640, %v1527, %v1529
  %v1841 = vsel %vm1640, %v1531, %v1533
  %v1842 = vsel %vm1640, %v1533, %v1535
  %v1843 = vsel %vm1640, %v1535, %v1537
  %v1844 = vsel %vm1640, %v1537, %v1539
  %v1845 = vsel %vm1640, %v1539, %v1541
  %v1846 = vsel %vm1640, %v1541, %v1543
  %v1847 = vsel %vm1640, %v1543, %v1545
  %v1848 = vsel %vm1640, %v1545, %v1547
  %v1849 = vsel %vm1640, %v1547, %v1549
  %v1850 = vsel %vm1640, %v1549, %v1551
  %v1851 = vsel %vm1640, %v1553, %v1555
  %v1852 = vsel %vm1640, %v1555, %v1557
  %v1853 = vsel %vm1640, %v1557, %v1559
  %v1854 = vsel %vm1640, %v1559, %v1561
  %v1855 = vsel %vm1640, %v1561, %v1563
  %v1856 = vsel %vm1640, %v1563, %v1565
  %v1857 = vsel %vm1640, %v1565, %v1567
  %v1858 = vsel %vm1640, %v1567, %v1569
  %v1859 = vsel %vm1640, %v1569, %v1571
  %v1860 = vsel %vm1640, %v1571, %v1573
  %v1861 = vsel %vm1640, %v1575, %v1577
  %v1862 = vsel %vm1640, %v1577, %v1579
  %v1863 = vsel %vm1640, %v1579, %v1581
  %v1864 = vsel %vm1640, %v1581, %v1583
  %v1865 = vsel %vm1640, %v1583, %v1585
  %v1866 = vsel %vm1640, %v1585, %v1587
  %v1867 = vsel %vm1640, %v1587, %v1589
  %v1868 = vsel %vm1640, %v1589, %v1591
  %v1869 = vsel %vm1640, %v1591, %v1593
  %v1870 = vsel %vm1640, %v1593, %v1595
  %v1871 = vsel %vm1640, %v1597, %v1599
  %v1872 = vsel %vm1640, %v1599, %v1601
  %v1873 = vsel %vm1640, %v1601, %v1603
  %v1874 = vsel %vm1640, %v1603, %v1605
  %v1875 = vsel %vm1640, %v1605, %v1607
  %v1876 = vsel %vm1640, %v1607, %v1609
  %v1877 = vsel %vm1640, %v1609, %v1611
  %v1878 = vsel %vm1640, %v1611, %v1613
  %v1879 = vsel %vm1640, %v1613, %v1615
  %v1880 = vsel %vm1640, %v1615, %v1617
  %v1881 = vsel %vm1640, %v1619, %v1621
  %v1882 = vsel %vm1640, %v1621, %v1623
  %v1883 = vsel %vm1640, %v1623, %v1625
  %v1884 = vsel %vm1640, %v1625, %v1627
  %v1885 = vsel %vm1640, %v1627, %v1629
  %v1886 = vsel %vm1640, %v1629, %v1631
  %v1887 = vsel %vm1640, %v1631, %v1633
  %v1888 = vsel %vm1640, %v1633, %v1635
  %v1889 = vsel %vm1640, %v1635, %v1637
  %v1890 = vsel %vm1640, %v1637, %v1639
  %vm2141 = vcmask 588800
  %v2143 = vsel %vm2141, %v1083, 0
  %2145 = vmatprep.subr.mxu0 %v1642
  %2146 = vmatpush1.msra.mxu0 %v1641
  %2147 = vmatprep.subr.mxu0 %v1652
  %2148 = vmatpush1.msra.mxu0 %v1651
  %2149 = vmatprep.subr.mxu0 %v1662
  %2150 = vmatpush1.msra.mxu0 %v1661
  %2151 = vmatprep.subr.mxu0 %v1672
  %2152 = vmatpush1.msra.mxu0 %v1671
  %2153 = vmatprep.subr.mxu0 %v1682
  %2154 = vmatpush1.msra.mxu0 %v1681
  %2155 = vmatprep.subr.mxu0 %v1692
  %2156 = vmatpush1.msra.mxu0 %v1691
  %2157 = vmatprep.subr.mxu0 %v1702
  %2158 = vmatpush1.msra.mxu0 %v1701
  %2159 = vmatprep.subr.mxu0 %v1712
  %2160 = vmatpush1.msra.mxu0 %v1711
  %2161 = vmatprep.subr.mxu0 %v1722
  %2162 = vmatpush1.msra.mxu0 %v1721
  %2163 = vmatprep.subr.mxu0 %v1732
  %2164 = vmatpush1.msra.mxu0 %v1731
  %2165 = vmatprep.subr.mxu0 %v1742
  %2166 = vmatpush1.msra.mxu0 %v1741
  %2167 = vmatprep.subr.mxu0 %v1752
  %2168 = vmatpush1.msra.mxu0 %v1751
  %2169 = vmatprep.subr.mxu0 %v1762
  %2170 = vmatpush1.msra.mxu0 %v1761
  %2171 = vmatprep.subr.mxu0 %v1772
  %2172 = vmatpush1.msra.mxu0 %v1771
  %2173 = vmatprep.subr.mxu0 %v1782
  %2174 = vmatpush1.msra.mxu0 %v1781
  %2175 = vmatprep.subr.mxu0 %v1792
  %2176 = vmatpush1.msra.mxu0 %v1791
  %2177 = vmatprep.subr.mxu0 %v1802
  %2178 = vmatpush1.msra.mxu0 %v1801
  %2179 = vmatprep.subr.mxu0 %v1812
  %2180 = vmatpush1.msra.mxu0 %v1811
  %2181 = vmatprep.subr.mxu0 %v1822
  %2182 = vmatpush1.msra.mxu0 %v1821
  %2183 = vmatprep.subr.mxu0 %v1832
  %2184 = vmatpush1.msra.mxu0 %v1831
  %2185 = vmatprep.subr.mxu0 %v1842
  %2186 = vmatpush1.msra.mxu0 %v1841
  %2187 = vmatprep.subr.mxu0 %v1852
  %2188 = vmatpush1.msra.mxu0 %v1851
  %2189 = vmatprep.subr.mxu0 %v1862
  %2190 = vmatpush1.msra.mxu0 %v1861
  %2191 = vmatprep.subr.mxu0 %v1872
  %2192 = vmatpush1.msra.mxu0 %v1871
  %2193 = vmatprep.subr.mxu0 %v1882
  %2194 = vmatpush1.msra.mxu0 %v1881
  %2195 = vmatprep.subr.mxu0 0.0
  %2196 = vmatpush1.msra.mxu0 0.0
  %2197 = vmatprep.subr.mxu0 0.0
  %2198 = vmatpush1.msra.mxu0 0.0
  %2199 = vmatprep.subr.mxu0 0.0
  %2200 = vmatpush1.msra.mxu0 0.0
  %2201 = vmatprep.subr.mxu0 0.0
  %2202 = vmatpush1.msra.mxu0 0.0
  %2203 = vmatprep.subr.mxu0 0.0
  %2204 = vmatpush1.msra.mxu0 0.0
  %2205 = vmatprep.subr.mxu0 0.0
  %2206 = vmatpush1.msra.mxu0 0.0
  %2207 = vmatprep.subr.mxu0 0.0
  %2208 = vmatpush1.msra.mxu0 0.0
  %2209 = vmatprep.mubr.f32.mxu0 %v2143
  %2210 = vmatmul.mubr.f32.gmra.mrb[0].mxu0 %v1082
  %v2211 = vpop.f32.mrb[0].mxu0
  %v2212 = vadd.f32 %v1088, %v2211
  %v2213 = vpop.f32.mrb[0].mxu0
  %v2214 = vadd.f32 %v1088, %v2213
  %2215 = vdwg.mxu0
  %2216 = vmatprep.subr.mxu0 %v1644
  %2217 = vmatpush1.msra.mxu0 %v1643
  %2218 = vmatprep.subr.mxu0 %v1654
  %2219 = vmatpush1.msra.mxu0 %v1653
  %2220 = vmatprep.subr.mxu0 %v1664
  %2221 = vmatpush1.msra.mxu0 %v1663
  %2222 = vmatprep.subr.mxu0 %v1674
  %2223 = vmatpush1.msra.mxu0 %v1673
  %2224 = vmatprep.subr.mxu0 %v1684
  %2225 = vmatpush1.msra.mxu0 %v1683
  %2226 = vmatprep.subr.mxu0 %v1694
  %2227 = vmatpush1.msra.mxu0 %v1693
  %2228 = vmatprep.subr.mxu0 %v1704
  %2229 = vmatpush1.msra.mxu0 %v1703
  %2230 = vmatprep.subr.mxu0 %v1714
  %2231 = vmatpush1.msra.mxu0 %v1713
  %2232 = vmatprep.subr.mxu0 %v1724
  %2233 = vmatpush1.msra.mxu0 %v1723
  %2234 = vmatprep.subr.mxu0 %v1734
  %2235 = vmatpush1.msra.mxu0 %v1733
  %2236 = vmatprep.subr.mxu0 %v1744
  %2237 = vmatpush1.msra.mxu0 %v1743
  %2238 = vmatprep.subr.mxu0 %v1754
  %2239 = vmatpush1.msra.mxu0 %v1753
  %2240 = vmatprep.subr.mxu0 %v1764
  %2241 = vmatpush1.msra.mxu0 %v1763
  %2242 = vmatprep.subr.mxu0 %v1774
  %2243 = vmatpush1.msra.mxu0 %v1773
  %2244 = vmatprep.subr.mxu0 %v1784
  %2245 = vmatpush1.msra.mxu0 %v1783
  %2246 = vmatprep.subr.mxu0 %v1794
  %2247 = vmatpush1.msra.mxu0 %v1793
  %2248 = vmatprep.subr.mxu0 %v1804
  %2249 = vmatpush1.msra.mxu0 %v1803
  %2250 = vmatprep.subr.mxu0 %v1814
  %2251 = vmatpush1.msra.mxu0 %v1813
  %2252 = vmatprep.subr.mxu0 %v1824
  %2253 = vmatpush1.msra.mxu0 %v1823
  %2254 = vmatprep.subr.mxu0 %v1834
  %2255 = vmatpush1.msra.mxu0 %v1833
  %2256 = vmatprep.subr.mxu0 %v1844
  %2257 = vmatpush1.msra.mxu0 %v1843
  %2258 = vmatprep.subr.mxu0 %v1854
  %2259 = vmatpush1.msra.mxu0 %v1853
  %2260 = vmatprep.subr.mxu0 %v1864
  %2261 = vmatpush1.msra.mxu0 %v1863
  %2262 = vmatprep.subr.mxu0 %v1874
  %2263 = vmatpush1.msra.mxu0 %v1873
  %2264 = vmatprep.subr.mxu0 %v1884
  %2265 = vmatpush1.msra.mxu0 %v1883
  %2266 = vmatprep.subr.mxu0 0.0
  %2267 = vmatpush1.msra.mxu0 0.0
  %2268 = vmatprep.subr.mxu0 0.0
  %2269 = vmatpush1.msra.mxu0 0.0
  %2270 = vmatprep.subr.mxu0 0.0
  %2271 = vmatpush1.msra.mxu0 0.0
  %2272 = vmatprep.subr.mxu0 0.0
  %2273 = vmatpush1.msra.mxu0 0.0
  %2274 = vmatprep.subr.mxu0 0.0
  %2275 = vmatpush1.msra.mxu0 0.0
  %2276 = vmatprep.subr.mxu0 0.0
  %2277 = vmatpush1.msra.mxu0 0.0
  %2278 = vmatprep.subr.mxu0 0.0
  %2279 = vmatpush1.msra.mxu0 0.0
  %2280 = vmatprep.mubr.f32.mxu0 %v2143
  %2281 = vmatmul.mubr.f32.gmra.mrb[0].mxu0 %v1082
  %v2282 = vpop.f32.mrb[0].mxu0
  %v2283 = vadd.f32 %v1088, %v2282
  %v2284 = vpop.f32.mrb[0].mxu0
  %v2285 = vadd.f32 %v1088, %v2284
  %2286 = vdwg.mxu0
  %2287 = vmatprep.subr.mxu0 %v1646
  %2288 = vmatpush1.msra.mxu0 %v1645
  %2289 = vmatprep.subr.mxu0 %v1656
  %2290 = vmatpush1.msra.mxu0 %v1655
  %2291 = vmatprep.subr.mxu0 %v1666
  %2292 = vmatpush1.msra.mxu0 %v1665
  %2293 = vmatprep.subr.mxu0 %v1676
  %2294 = vmatpush1.msra.mxu0 %v1675
  %2295 = vmatprep.subr.mxu0 %v1686
  %2296 = vmatpush1.msra.mxu0 %v1685
  %2297 = vmatprep.subr.mxu0 %v1696
  %2298 = vmatpush1.msra.mxu0 %v1695
  %2299 = vmatprep.subr.mxu0 %v1706
  %2300 = vmatpush1.msra.mxu0 %v1705
  %2301 = vmatprep.subr.mxu0 %v1716
  %2302 = vmatpush1.msra.mxu0 %v1715
  %2303 = vmatprep.subr.mxu0 %v1726
  %2304 = vmatpush1.msra.mxu0 %v1725
  %2305 = vmatprep.subr.mxu0 %v1736
  %2306 = vmatpush1.msra.mxu0 %v1735
  %2307 = vmatprep.subr.mxu0 %v1746
  %2308 = vmatpush1.msra.mxu0 %v1745
  %2309 = vmatprep.subr.mxu0 %v1756
  %2310 = vmatpush1.msra.mxu0 %v1755
  %2311 = vmatprep.subr.mxu0 %v1766
  %2312 = vmatpush1.msra.mxu0 %v1765
  %2313 = vmatprep.subr.mxu0 %v1776
  %2314 = vmatpush1.msra.mxu0 %v1775
  %2315 = vmatprep.subr.mxu0 %v1786
  %2316 = vmatpush1.msra.mxu0 %v1785
  %2317 = vmatprep.subr.mxu0 %v1796
  %2318 = vmatpush1.msra.mxu0 %v1795
  %2319 = vmatprep.subr.mxu0 %v1806
  %2320 = vmatpush1.msra.mxu0 %v1805
  %2321 = vmatprep.subr.mxu0 %v1816
  %2322 = vmatpush1.msra.mxu0 %v1815
  %2323 = vmatprep.subr.mxu0 %v1826
  %2324 = vmatpush1.msra.mxu0 %v1825
  %2325 = vmatprep.subr.mxu0 %v1836
  %2326 = vmatpush1.msra.mxu0 %v1835
  %2327 = vmatprep.subr.mxu0 %v1846
  %2328 = vmatpush1.msra.mxu0 %v1845
  %2329 = vmatprep.subr.mxu0 %v1856
  %2330 = vmatpush1.msra.mxu0 %v1855
  %2331 = vmatprep.subr.mxu0 %v1866
  %2332 = vmatpush1.msra.mxu0 %v1865
  %2333 = vmatprep.subr.mxu0 %v1876
  %2334 = vmatpush1.msra.mxu0 %v1875
  %2335 = vmatprep.subr.mxu0 %v1886
  %2336 = vmatpush1.msra.mxu0 %v1885
  %2337 = vmatprep.subr.mxu0 0.0
  %2338 = vmatpush1.msra.mxu0 0.0
  %2339 = vmatprep.subr.mxu0 0.0
  %2340 = vmatpush1.msra.mxu0 0.0
  %2341 = vmatprep.subr.mxu0 0.0
  %2342 = vmatpush1.msra.mxu0 0.0
  %2343 = vmatprep.subr.mxu0 0.0
  %2344 = vmatpush1.msra.mxu0 0.0
  %2345 = vmatprep.subr.mxu0 0.0
  %2346 = vmatpush1.msra.mxu0 0.0
  %2347 = vmatprep.subr.mxu0 0.0
  %2348 = vmatpush1.msra.mxu0 0.0
  %2349 = vmatprep.subr.mxu0 0.0
  %2350 = vmatpush1.msra.mxu0 0.0
  %2351 = vmatprep.mubr.f32.mxu0 %v2143
  %2352 = vmatmul.mubr.f32.gmra.mrb[0].mxu0 %v1082
  %v2353 = vpop.f32.mrb[0].mxu0
  %v2354 = vadd.f32 %v1088, %v2353
  %v2355 = vpop.f32.mrb[0].mxu0
  %v2356 = vadd.f32 %v1088, %v2355
  %2357 = vdwg.mxu0
  %2358 = vmatprep.subr.mxu0 %v1648
  %2359 = vmatpush1.msra.mxu0 %v1647
  %2360 = vmatprep.subr.mxu0 %v1658
  %2361 = vmatpush1.msra.mxu0 %v1657
  %2362 = vmatprep.subr.mxu0 %v1668
  %2363 = vmatpush1.msra.mxu0 %v1667
  %2364 = vmatprep.subr.mxu0 %v1678
  %2365 = vmatpush1.msra.mxu0 %v1677
  %2366 = vmatprep.subr.mxu0 %v1688
  %2367 = vmatpush1.msra.mxu0 %v1687
  %2368 = vmatprep.subr.mxu0 %v1698
  %2369 = vmatpush1.msra.mxu0 %v1697
  %2370 = vmatprep.subr.mxu0 %v1708
  %2371 = vmatpush1.msra.mxu0 %v1707
  %2372 = vmatprep.subr.mxu0 %v1718
  %2373 = vmatpush1.msra.mxu0 %v1717
  %2374 = vmatprep.subr.mxu0 %v1728
  %2375 = vmatpush1.msra.mxu0 %v1727
  %2376 = vmatprep.subr.mxu0 %v1738
  %2377 = vmatpush1.msra.mxu0 %v1737
  %2378 = vmatprep.subr.mxu0 %v1748
  %2379 = vmatpush1.msra.mxu0 %v1747
  %2380 = vmatprep.subr.mxu0 %v1758
  %2381 = vmatpush1.msra.mxu0 %v1757
  %2382 = vmatprep.subr.mxu0 %v1768
  %2383 = vmatpush1.msra.mxu0 %v1767
  %2384 = vmatprep.subr.mxu0 %v1778
  %2385 = vmatpush1.msra.mxu0 %v1777
  %2386 = vmatprep.subr.mxu0 %v1788
  %2387 = vmatpush1.msra.mxu0 %v1787
  %2388 = vmatprep.subr.mxu0 %v1798
  %2389 = vmatpush1.msra.mxu0 %v1797
  %2390 = vmatprep.subr.mxu0 %v1808
  %2391 = vmatpush1.msra.mxu0 %v1807
  %2392 = vmatprep.subr.mxu0 %v1818
  %2393 = vmatpush1.msra.mxu0 %v1817
  %2394 = vmatprep.subr.mxu0 %v1828
  %2395 = vmatpush1.msra.mxu0 %v1827
  %2396 = vmatprep.subr.mxu0 %v1838
  %2397 = vmatpush1.msra.mxu0 %v1837
  %2398 = vmatprep.subr.mxu0 %v1848
  %2399 = vmatpush1.msra.mxu0 %v1847
  %2400 = vmatprep.subr.mxu0 %v1858
  %2401 = vmatpush1.msra.mxu0 %v1857
  %2402 = vmatprep.subr.mxu0 %v1868
  %2403 = vmatpush1.msra.mxu0 %v1867
  %2404 = vmatprep.subr.mxu0 %v1878
  %2405 = vmatpush1.msra.mxu0 %v1877
  %2406 = vmatprep.subr.mxu0 %v1888
  %2407 = vmatpush1.msra.mxu0 %v1887
  %2408 = vmatprep.subr.mxu0 0.0
  %2409 = vmatpush1.msra.mxu0 0.0
  %2410 = vmatprep.subr.mxu0 0.0
  %2411 = vmatpush1.msra.mxu0 0.0
  %2412 = vmatprep.subr.mxu0 0.0
  %2413 = vmatpush1.msra.mxu0 0.0
  %2414 = vmatprep.subr.mxu0 0.0
  %2415 = vmatpush1.msra.mxu0 0.0
  %2416 = vmatprep.subr.mxu0 0.0
  %2417 = vmatpush1.msra.mxu0 0.0
  %2418 = vmatprep.subr.mxu0 0.0
  %2419 = vmatpush1.msra.mxu0 0.0
  %2420 = vmatprep.subr.mxu0 0.0
  %2421 = vmatpush1.msra.mxu0 0.0
  %2422 = vmatprep.mubr.f32.mxu0 %v2143
  %2423 = vmatmul.mubr.f32.gmra.mrb[0].mxu0 %v1082
  %v2424 = vpop.f32.mrb[0].mxu0
  %v2425 = vadd.f32 %v1088, %v2424
  %v2426 = vpop.f32.mrb[0].mxu0
  %v2427 = vadd.f32 %v1088, %v2426
  %2428 = vdwg.mxu0
  %2429 = vmatprep.subr.mxu0 %v1650
  %2430 = vmatpush1.msra.mxu0 %v1649
  %2431 = vmatprep.subr.mxu0 %v1660
  %2432 = vmatpush1.msra.mxu0 %v1659
  %2433 = vmatprep.subr.mxu0 %v1670
  %2434 = vmatpush1.msra.mxu0 %v1669
  %2435 = vmatprep.subr.mxu0 %v1680
  %2436 = vmatpush1.msra.mxu0 %v1679
  %2437 = vmatprep.subr.mxu0 %v1690
  %2438 = vmatpush1.msra.mxu0 %v1689
  %2439 = vmatprep.subr.mxu0 %v1700
  %2440 = vmatpush1.msra.mxu0 %v1699
  %2441 = vmatprep.subr.mxu0 %v1710
  %2442 = vmatpush1.msra.mxu0 %v1709
  %2443 = vmatprep.subr.mxu0 %v1720
  %2444 = vmatpush1.msra.mxu0 %v1719
  %2445 = vmatprep.subr.mxu0 %v1730
  %2446 = vmatpush1.msra.mxu0 %v1729
  %2447 = vmatprep.subr.mxu0 %v1740
  %2448 = vmatpush1.msra.mxu0 %v1739
  %2449 = vmatprep.subr.mxu0 %v1750
  %2450 = vmatpush1.msra.mxu0 %v1749
  %2451 = vmatprep.subr.mxu0 %v1760
  %2452 = vmatpush1.msra.mxu0 %v1759
  %2453 = vmatprep.subr.mxu0 %v1770
  %2454 = vmatpush1.msra.mxu0 %v1769
  %2455 = vmatprep.subr.mxu0 %v1780
  %2456 = vmatpush1.msra.mxu0 %v1779
  %2457 = vmatprep.subr.mxu0 %v1790
  %2458 = vmatpush1.msra.mxu0 %v1789
  %2459 = vmatprep.subr.mxu0 %v1800
  %2460 = vmatpush1.msra.mxu0 %v1799
  %2461 = vmatprep.subr.mxu0 %v1810
  %2462 = vmatpush1.msra.mxu0 %v1809
  %2463 = vmatprep.subr.mxu0 %v1820
  %2464 = vmatpush1.msra.mxu0 %v1819
  %2465 = vmatprep.subr.mxu0 %v1830
  %2466 = vmatpush1.msra.mxu0 %v1829
  %2467 = vmatprep.subr.mxu0 %v1840
  %2468 = vmatpush1.msra.mxu0 %v1839
  %2469 = vmatprep.subr.mxu0 %v1850
  %2470 = vmatpush1.msra.mxu0 %v1849
  %2471 = vmatprep.subr.mxu0 %v1860
  %2472 = vmatpush1.msra.mxu0 %v1859
  %2473 = vmatprep.subr.mxu0 %v1870
  %2474 = vmatpush1.msra.mxu0 %v1869
  %2475 = vmatprep.subr.mxu0 %v1880
  %2476 = vmatpush1.msra.mxu0 %v1879
  %2477 = vmatprep.subr.mxu0 %v1890
  %2478 = vmatpush1.msra.mxu0 %v1889
  %2479 = vmatprep.subr.mxu0 0.0
  %2480 = vmatpush1.msra.mxu0 0.0
  %2481 = vmatprep.subr.mxu0 0.0
  %2482 = vmatpush1.msra.mxu0 0.0
  %2483 = vmatprep.subr.mxu0 0.0
  %2484 = vmatpush1.msra.mxu0 0.0
  %2485 = vmatprep.subr.mxu0 0.0
  %2486 = vmatpush1.msra.mxu0 0.0
  %2487 = vmatprep.subr.mxu0 0.0
  %2488 = vmatpush1.msra.mxu0 0.0
  %2489 = vmatprep.subr.mxu0 0.0
  %2490 = vmatpush1.msra.mxu0 0.0
  %2491 = vmatprep.subr.mxu0 0.0
  %2492 = vmatpush1.msra.mxu0 0.0
  %2493 = vmatprep.mubr.f32.mxu0 %v2143
  %2494 = vmatmul.mubr.f32.gmra.mrb[0].mxu0 %v1082
  %v2495 = vpop.f32.mrb[0].mxu0
  %v2496 = vadd.f32 %v1088, %v2495
  %v2497 = vpop.f32.mrb[0].mxu0
  %v2498 = vadd.f32 %v1088, %v2497
  %2499 = vdwg.mxu0
  %v2502 = vlaneseq
  %v2503 = vshrl.u32 %v2502, 7
  %v2504 = vsub.s32 0, %v2503
  %v2505 = vrot.slane %v29, %v2504
  %v2506 = vlaneseq
  %v2507 = vshrl.u32 %v2506, 7
  %v2508 = vsub.s32 1, %v2507
  %v2509 = vrot.slane %v29, %v2508
  %v2510 = vlaneseq
  %v2511 = vshrl.u32 %v2510, 7
  %v2512 = vsub.s32 2, %v2511
  %v2513 = vrot.slane %v29, %v2512
  %v2514 = vlaneseq
  %v2515 = vshrl.u32 %v2514, 7
  %v2516 = vsub.s32 3, %v2515
  %v2517 = vrot.slane %v29, %v2516
  %v2518 = vlaneseq
  %v2519 = vshrl.u32 %v2518, 7
  %v2520 = vsub.s32 4, %v2519
  %v2521 = vrot.slane %v29, %v2520
  %v2522 = vlaneseq
  %v2523 = vshrl.u32 %v2522, 7
  %v2524 = vsub.s32 5, %v2523
  %v2525 = vrot.slane %v29, %v2524
  %v2526 = vlaneseq
  %v2527 = vshrl.u32 %v2526, 7
  %v2528 = vsub.s32 6, %v2527
  %v2529 = vrot.slane %v29, %v2528
  %v2530 = vlaneseq
  %v2531 = vshrl.u32 %v2530, 7
  %v2532 = vsub.s32 7, %v2531
  %v2533 = vrot.slane %v29, %v2532
  %v2534 = vlaneseq
  %v2535 = vshrl.u32 %v2534, 7
  %v2536 = vsub.s32 0, %v2535
  %v2537 = vrot.slane %v30, %v2536
  %v2538 = vlaneseq
  %v2539 = vshrl.u32 %v2538, 7
  %v2540 = vsub.s32 1, %v2539
  %v2541 = vrot.slane %v30, %v2540
  %v2552 = vmul.f32 %v2212, %v2505
  %v2553 = vmul.f32 %v2214, %v2509
  %v2554 = vmul.f32 %v2283, %v2513
  %v2555 = vmul.f32 %v2285, %v2517
  %v2556 = vmul.f32 %v2354, %v2521
  %v2557 = vmul.f32 %v2356, %v2525
  %v2558 = vmul.f32 %v2425, %v2529
  %v2559 = vmul.f32 %v2427, %v2533
  %v2560 = vmul.f32 %v2496, %v2537
  %v2561 = vmul.f32 %v2498, %v2541
  %v2562 = vadd.f32 %v2552, %v2553
  %v2563 = vadd.f32 %v2562, %v2554
  %v2564 = vadd.f32 %v2563, %v2555
  %v2565 = vadd.f32 %v2564, %v2556
  %v2566 = vadd.f32 %v2565, %v2557
  %v2567 = vadd.f32 %v2566, %v2558
  %v2568 = vadd.f32 %v2567, %v2559
  %v2569 = vadd.f32 %v2568, %v2560
  %v2570 = vadd.f32 %v2569, %v2561
  %2571 = vadd.xlane.f32.xlu0 %v2570
  %v2572 = vpop.xlane.xlu0 %2571
  %v2573 = vmul.f32 %v2572, 0.001953125
  %v2574 = vsub.f32 %v2212, %v2573
  %v2575 = vsub.f32 %v2214, %v2573
  %v2576 = vsub.f32 %v2283, %v2573
  %v2577 = vsub.f32 %v2285, %v2573
  %v2578 = vsub.f32 %v2354, %v2573
  %v2579 = vsub.f32 %v2356, %v2573
  %v2580 = vsub.f32 %v2425, %v2573
  %v2581 = vsub.f32 %v2427, %v2573
  %v2582 = vsub.f32 %v2496, %v2573
  %v2583 = vsub.f32 %v2498, %v2573
  %v2584 = vmul.f32 %v2574, %v2505
  %v2585 = vmul.f32 %v2575, %v2509
  %v2586 = vmul.f32 %v2576, %v2513
  %v2587 = vmul.f32 %v2577, %v2517
  %v2588 = vmul.f32 %v2578, %v2521
  %v2589 = vmul.f32 %v2579, %v2525
  %v2590 = vmul.f32 %v2580, %v2529
  %v2591 = vmul.f32 %v2581, %v2533
  %v2592 = vmul.f32 %v2582, %v2537
  %v2593 = vmul.f32 %v2583, %v2541
  %v2594 = vmul.f32 %v2584, %v2584
  %v2595 = vmul.f32 %v2585, %v2585
  %v2596 = vmul.f32 %v2586, %v2586
  %v2597 = vmul.f32 %v2587, %v2587
  %v2598 = vmul.f32 %v2588, %v2588
  %v2599 = vmul.f32 %v2589, %v2589
  %v2600 = vmul.f32 %v2590, %v2590
  %v2601 = vmul.f32 %v2591, %v2591
  %v2602 = vmul.f32 %v2592, %v2592
  %v2603 = vmul.f32 %v2593, %v2593
  %v2604 = vadd.f32 %v2594, %v2595
  %v2605 = vadd.f32 %v2604, %v2596
  %v2606 = vadd.f32 %v2605, %v2597
  %v2607 = vadd.f32 %v2606, %v2598
  %v2608 = vadd.f32 %v2607, %v2599
  %v2609 = vadd.f32 %v2608, %v2600
  %v2610 = vadd.f32 %v2609, %v2601
  %v2611 = vadd.f32 %v2610, %v2602
  %v2612 = vadd.f32 %v2611, %v2603
  %2613 = vadd.xlane.f32.xlu0 %v2612
  %v2614 = vpop.xlane.xlu0 %2613
  %v2615 = vmul.f32 %v2614, 0.001953125
  %v2616 = vadd.f32 %v2615, 1e-05
  %v2617 = vrsqrt.pop %v2616
  %v2618 = vmul.f32 %v2584, %v2617
  %v2619 = vmul.f32 %v2585, %v2617
  %v2620 = vmul.f32 %v2586, %v2617
  %v2621 = vmul.f32 %v2587, %v2617
  %v2622 = vmul.f32 %v2588, %v2617
  %v2623 = vmul.f32 %v2589, %v2617
  %v2624 = vmul.f32 %v2590, %v2617
  %v2625 = vmul.f32 %v2591, %v2617
  %v2626 = vmul.f32 %v2592, %v2617
  %v2627 = vmul.f32 %v2593, %v2617
  %2628 = vset.pattern.permute.xlu0 1
  %2629 = vperm.xlu0 %2628, %v1084
  %v2630 = vpop.permute.xlu0 %2629
  %v2632 = vmul.f32 %v2618, %v2630
  %v2633 = vmul.f32 %v2619, %v2630
  %v2634 = vmul.f32 %v2620, %v2630
  %v2635 = vmul.f32 %v2621, %v2630
  %v2636 = vmul.f32 %v2622, %v2630
  %v2637 = vmul.f32 %v2623, %v2630
  %v2638 = vmul.f32 %v2624, %v2630
  %v2639 = vmul.f32 %v2625, %v2630
  %v2640 = vmul.f32 %v2626, %v2630
  %v2641 = vmul.f32 %v2627, %v2630
  %2642 = vset.pattern.permute.xlu0 2
  %2643 = vperm.xlu0 %2642, %v1084
  %v2644 = vpop.permute.xlu0 %2643
  %v2646 = vadd.f32 %v2632, %v2644
  %v2647 = vadd.f32 %v2633, %v2644
  %v2648 = vadd.f32 %v2634, %v2644
  %v2649 = vadd.f32 %v2635, %v2644
  %v2650 = vadd.f32 %v2636, %v2644
  %v2651 = vadd.f32 %v2637, %v2644
  %v2652 = vadd.f32 %v2638, %v2644
  %v2653 = vadd.f32 %v2639, %v2644
  %v2654 = vadd.f32 %v2640, %v2644
  %v2655 = vadd.f32 %v2641, %v2644
  %v2656 = vmax.f32 %v2646, 0.0
  %v2657 = vmax.f32 %v2647, 0.0
  %v2658 = vmax.f32 %v2648, 0.0
  %v2659 = vmax.f32 %v2649, 0.0
  %v2660 = vmax.f32 %v2650, 0.0
  %v2661 = vmax.f32 %v2651, 0.0
  %v2662 = vmax.f32 %v2652, 0.0
  %v2663 = vmax.f32 %v2653, 0.0
  %v2664 = vmax.f32 %v2654, 0.0
  %v2665 = vmax.f32 %v2655, 0.0
  %v2666 = vmul.f32 %v2656, %v2505
  %v2667 = vmul.f32 %v2657, %v2509
  %v2668 = vmul.f32 %v2658, %v2513
  %v2669 = vmul.f32 %v2659, %v2517
  %v2670 = vmul.f32 %v2660, %v2521
  %v2671 = vmul.f32 %v2661, %v2525
  %v2672 = vmul.f32 %v2662, %v2529
  %v2673 = vmul.f32 %v2663, %v2533
  %v2674 = vmul.f32 %v2664, %v2537
  %v2675 = vmul.f32 %v2665, %v2541
  %2687 = vrot.lane.b32.xlu0 0.0, 127
  %v2688 = vpop.permute.xlu0 %2687
  %2689 = vrot.lane.b32.xlu0 %v2666, 127
  %v2690 = vpop.permute.xlu0 %2689
  %2691 = vrot.lane.b32.xlu0 %v2667, 127
  %v2692 = vpop.permute.xlu0 %2691
  %2693 = vrot.lane.b32.xlu0 %v2668, 127
  %v2694 = vpop.permute.xlu0 %2693
  %2695 = vrot.lane.b32.xlu0 %v2669, 127
  %v2696 = vpop.permute.xlu0 %2695
  %2697 = vrot.lane.b32.xlu0 %v2670, 127
  %v2698 = vpop.permute.xlu0 %2697
  %2699 = vrot.lane.b32.xlu0 %v2671, 127
  %v2700 = vpop.permute.xlu0 %2699
  %2701 = vrot.lane.b32.xlu0 %v2672, 127
  %v2702 = vpop.permute.xlu0 %2701
  %2703 = vrot.lane.b32.xlu0 %v2673, 127
  %v2704 = vpop.permute.xlu0 %2703
  %2705 = vrot.lane.b32.xlu0 %v2674, 127
  %v2706 = vpop.permute.xlu0 %2705
  %2707 = vrot.lane.b32.xlu0 %v2675, 127
  %v2708 = vpop.permute.xlu0 %2707
  %v2709 = vsel %vm268, %v2688, %v2690
  %v2710 = vsel %vm268, %v2690, %v2692
  %v2711 = vsel %vm268, %v2692, %v2694
  %v2712 = vsel %vm268, %v2694, %v2696
  %v2713 = vsel %vm268, %v2696, %v2698
  %v2714 = vsel %vm268, %v2698, %v2700
  %v2715 = vsel %vm268, %v2700, %v2702
  %v2716 = vsel %vm268, %v2702, %v2704
  %v2717 = vsel %vm268, %v2704, %v2706
  %v2718 = vsel %vm268, %v2706, %v2708
  %2719 = vrot.lane.b32.xlu0 0.0, 126
  %v2720 = vpop.permute.xlu0 %2719
  %2721 = vrot.lane.b32.xlu0 %v2666, 126
  %v2722 = vpop.permute.xlu0 %2721
  %2723 = vrot.lane.b32.xlu0 %v2667, 126
  %v2724 = vpop.permute.xlu0 %2723
  %2725 = vrot.lane.b32.xlu0 %v2668, 126
  %v2726 = vpop.permute.xlu0 %2725
  %2727 = vrot.lane.b32.xlu0 %v2669, 126
  %v2728 = vpop.permute.xlu0 %2727
  %2729 = vrot.lane.b32.xlu0 %v2670, 126
  %v2730 = vpop.permute.xlu0 %2729
  %2731 = vrot.lane.b32.xlu0 %v2671, 126
  %v2732 = vpop.permute.xlu0 %2731
  %2733 = vrot.lane.b32.xlu0 %v2672, 126
  %v2734 = vpop.permute.xlu0 %2733
  %2735 = vrot.lane.b32.xlu0 %v2673, 126
  %v2736 = vpop.permute.xlu0 %2735
  %2737 = vrot.lane.b32.xlu0 %v2674, 126
  %v2738 = vpop.permute.xlu0 %2737
  %2739 = vrot.lane.b32.xlu0 %v2675, 126
  %v2740 = vpop.permute.xlu0 %2739
  %v2741 = vsel %vm301, %v2720, %v2722
  %v2742 = vsel %vm301, %v2722, %v2724
  %v2743 = vsel %vm301, %v2724, %v2726
  %v2744 = vsel %vm301, %v2726, %v2728
  %v2745 = vsel %vm301, %v2728, %v2730
  %v2746 = vsel %vm301, %v2730, %v2732
  %v2747 = vsel %vm301, %v2732, %v2734
  %v2748 = vsel %vm301, %v2734, %v2736
  %v2749 = vsel %vm301, %v2736, %v2738
  %v2750 = vsel %vm301, %v2738, %v2740
  %2751 = vrot.lane.b32.xlu0 0.0, 125
  %v2752 = vpop.permute.xlu0 %2751
  %2753 = vrot.lane.b32.xlu0 %v2666, 125
  %v2754 = vpop.permute.xlu0 %2753
  %2755 = vrot.lane.b32.xlu0 %v2667, 125
  %v2756 = vpop.permute.xlu0 %2755
  %2757 = vrot.lane.b32.xlu0 %v2668, 125
  %v2758 = vpop.permute.xlu0 %2757
  %2759 = vrot.lane.b32.xlu0 %v2669, 125
  %v2760 = vpop.permute.xlu0 %2759
  %2761 = vrot.lane.b32.xlu0 %v2670, 125
  %v2762 = vpop.permute.xlu0 %2761
  %2763 = vrot.lane.b32.xlu0 %v2671, 125
  %v2764 = vpop.permute.xlu0 %2763
  %2765 = vrot.lane.b32.xlu0 %v2672, 125
  %v2766 = vpop.permute.xlu0 %2765
  %2767 = vrot.lane.b32.xlu0 %v2673, 125
  %v2768 = vpop.permute.xlu0 %2767
  %2769 = vrot.lane.b32.xlu0 %v2674, 125
  %v2770 = vpop.permute.xlu0 %2769
  %2771 = vrot.lane.b32.xlu0 %v2675, 125
  %v2772 = vpop.permute.xlu0 %2771
  %v2773 = vsel %vm334, %v2752, %v2754
  %v2774 = vsel %vm334, %v2754, %v2756
  %v2775 = vsel %vm334, %v2756, %v2758
  %v2776 = vsel %vm334, %v2758, %v2760
  %v2777 = vsel %vm334, %v2760, %v2762
  %v2778 = vsel %vm334, %v2762, %v2764
  %v2779 = vsel %vm334, %v2764, %v2766
  %v2780 = vsel %vm334, %v2766, %v2768
  %v2781 = vsel %vm334, %v2768, %v2770
  %v2782 = vsel %vm334, %v2770, %v2772
  %2783 = vrot.lane.b32.xlu0 0.0, 124
  %v2784 = vpop.permute.xlu0 %2783
  %2785 = vrot.lane.b32.xlu0 %v2666, 124
  %v2786 = vpop.permute.xlu0 %2785
  %2787 = vrot.lane.b32.xlu0 %v2667, 124
  %v2788 = vpop.permute.xlu0 %2787
  %2789 = vrot.lane.b32.xlu0 %v2668, 124
  %v2790 = vpop.permute.xlu0 %2789
  %2791 = vrot.lane.b32.xlu0 %v2669, 124
  %v2792 = vpop.permute.xlu0 %2791
  %2793 = vrot.lane.b32.xlu0 %v2670, 124
  %v2794 = vpop.permute.xlu0 %2793
  %2795 = vrot.lane.b32.xlu0 %v2671, 124
  %v2796 = vpop.permute.xlu0 %2795
  %2797 = vrot.lane.b32.xlu0 %v2672, 124
  %v2798 = vpop.permute.xlu0 %2797
  %2799 = vrot.lane.b32.xlu0 %v2673, 124
  %v2800 = vpop.permute.xlu0 %2799
  %2801 = vrot.lane.b32.xlu0 %v2674, 124
  %v2802 = vpop.permute.xlu0 %2801
  %2803 = vrot.lane.b32.xlu0 %v2675, 124
  %v2804 = vpop.permute.xlu0 %2803
  %v2805 = vsel %vm367, %v2784, %v2786
  %v2806 = vsel %vm367, %v2786, %v2788
  %v2807 = vsel %vm367, %v2788, %v2790
  %v2808 = vsel %vm367, %v2790, %v2792
  %v2809 = vsel %vm367, %v2792, %v2794
  %v2810 = vsel %vm367, %v2794, %v2796
  %v2811 = vsel %vm367, %v2796, %v2798
  %v2812 = vsel %vm367, %v2798, %v2800
  %v2813 = vsel %vm367, %v2800, %v2802
  %v2814 = vsel %vm367, %v2802, %v2804
  %2815 = vrot.lane.b32.xlu0 0.0, 96
  %v2816 = vpop.permute.xlu0 %2815
  %2817 = vrot.lane.b32.xlu0 %v2666, 96
  %v2818 = vpop.permute.xlu0 %2817
  %2819 = vrot.lane.b32.xlu0 %v2667, 96
  %v2820 = vpop.permute.xlu0 %2819
  %2821 = vrot.lane.b32.xlu0 %v2668, 96
  %v2822 = vpop.permute.xlu0 %2821
  %2823 = vrot.lane.b32.xlu0 %v2669, 96
  %v2824 = vpop.permute.xlu0 %2823
  %2825 = vrot.lane.b32.xlu0 %v2670, 96
  %v2826 = vpop.permute.xlu0 %2825
  %2827 = vrot.lane.b32.xlu0 %v2671, 96
  %v2828 = vpop.permute.xlu0 %2827
  %2829 = vrot.lane.b32.xlu0 %v2672, 96
  %v2830 = vpop.permute.xlu0 %2829
  %2831 = vrot.lane.b32.xlu0 %v2673, 96
  %v2832 = vpop.permute.xlu0 %2831
  %2833 = vrot.lane.b32.xlu0 %v2674, 96
  %v2834 = vpop.permute.xlu0 %2833
  %2835 = vrot.lane.b32.xlu0 %v2675, 96
  %v2836 = vpop.permute.xlu0 %2835
  %v2837 = vsel %vm400, %v2816, %v2818
  %v2838 = vsel %vm400, %v2818, %v2820
  %v2839 = vsel %vm400, %v2820, %v2822
  %v2840 = vsel %vm400, %v2822, %v2824
  %v2841 = vsel %vm400, %v2824, %v2826
  %v2842 = vsel %vm400, %v2826, %v2828
  %v2843 = vsel %vm400, %v2828, %v2830
  %v2844 = vsel %vm400, %v2830, %v2832
  %v2845 = vsel %vm400, %v2832, %v2834
  %v2846 = vsel %vm400, %v2834, %v2836
  %2847 = vrot.lane.b32.xlu0 0.0, 95
  %v2848 = vpop.permute.xlu0 %2847
  %2849 = vrot.lane.b32.xlu0 %v2666, 95
  %v2850 = vpop.permute.xlu0 %2849
  %2851 = vrot.lane.b32.xlu0 %v2667, 95
  %v2852 = vpop.permute.xlu0 %2851
  %2853 = vrot.lane.b32.xlu0 %v2668, 95
  %v2854 = vpop.permute.xlu0 %2853
  %2855 = vrot.lane.b32.xlu0 %v2669, 95
  %v2856 = vpop.permute.xlu0 %2855
  %2857 = vrot.lane.b32.xlu0 %v2670, 95
  %v2858 = vpop.permute.xlu0 %2857
  %2859 = vrot.lane.b32.xlu0 %v2671, 95
  %v2860 = vpop.permute.xlu0 %2859
  %2861 = vrot.lane.b32.xlu0 %v2672, 95
  %v2862 = vpop.permute.xlu0 %2861
  %2863 = vrot.lane.b32.xlu0 %v2673, 95
  %v2864 = vpop.permute.xlu0 %2863
  %2865 = vrot.lane.b32.xlu0 %v2674, 95
  %v2866 = vpop.permute.xlu0 %2865
  %2867 = vrot.lane.b32.xlu0 %v2675, 95
  %v2868 = vpop.permute.xlu0 %2867
  %v2869 = vsel %vm433, %v2848, %v2850
  %v2870 = vsel %vm433, %v2850, %v2852
  %v2871 = vsel %vm433, %v2852, %v2854
  %v2872 = vsel %vm433, %v2854, %v2856
  %v2873 = vsel %vm433, %v2856, %v2858
  %v2874 = vsel %vm433, %v2858, %v2860
  %v2875 = vsel %vm433, %v2860, %v2862
  %v2876 = vsel %vm433, %v2862, %v2864
  %v2877 = vsel %vm433, %v2864, %v2866
  %v2878 = vsel %vm433, %v2866, %v2868
  %2879 = vrot.lane.b32.xlu0 0.0, 94
  %v2880 = vpop.permute.xlu0 %2879
  %2881 = vrot.lane.b32.xlu0 %v2666, 94
  %v2882 = vpop.permute.xlu0 %2881
  %2883 = vrot.lane.b32.xlu0 %v2667, 94
  %v2884 = vpop.permute.xlu0 %2883
  %2885 = vrot.lane.b32.xlu0 %v2668, 94
  %v2886 = vpop.permute.xlu0 %2885
  %2887 = vrot.lane.b32.xlu0 %v2669, 94
  %v2888 = vpop.permute.xlu0 %2887
  %2889 = vrot.lane.b32.xlu0 %v2670, 94
  %v2890 = vpop.permute.xlu0 %2889
  %2891 = vrot.lane.b32.xlu0 %v2671, 94
  %v2892 = vpop.permute.xlu0 %2891
  %2893 = vrot.lane.b32.xlu0 %v2672, 94
  %v2894 = vpop.permute.xlu0 %2893
  %2895 = vrot.lane.b32.xlu0 %v2673, 94
  %v2896 = vpop.permute.xlu0 %2895
  %2897 = vrot.lane.b32.xlu0 %v2674, 94
  %v2898 = vpop.permute.xlu0 %2897
  %2899 = vrot.lane.b32.xlu0 %v2675, 94
  %v2900 = vpop.permute.xlu0 %2899
  %v2901 = vsel %vm466, %v2880, %v2882
  %v2902 = vsel %vm466, %v2882, %v2884
  %v2903 = vsel %vm466, %v2884, %v2886
  %v2904 = vsel %vm466, %v2886, %v2888
  %v2905 = vsel %vm466, %v2888, %v2890
  %v2906 = vsel %vm466, %v2890, %v2892
  %v2907 = vsel %vm466, %v2892, %v2894
  %v2908 = vsel %vm466, %v2894, %v2896
  %v2909 = vsel %vm466, %v2896, %v2898
  %v2910 = vsel %vm466, %v2898, %v2900
  %2911 = vrot.lane.b32.xlu0 0.0, 93
  %v2912 = vpop.permute.xlu0 %2911
  %2913 = vrot.lane.b32.xlu0 %v2666, 93
  %v2914 = vpop.permute.xlu0 %2913
  %2915 = vrot.lane.b32.xlu0 %v2667, 93
  %v2916 = vpop.permute.xlu0 %2915
  %2917 = vrot.lane.b32.xlu0 %v2668, 93
  %v2918 = vpop.permute.xlu0 %2917
  %2919 = vrot.lane.b32.xlu0 %v2669, 93
  %v2920 = vpop.permute.xlu0 %2919
  %2921 = vrot.lane.b32.xlu0 %v2670, 93
  %v2922 = vpop.permute.xlu0 %2921
  %2923 = vrot.lane.b32.xlu0 %v2671, 93
  %v2924 = vpop.permute.xlu0 %2923
  %2925 = vrot.lane.b32.xlu0 %v2672, 93
  %v2926 = vpop.permute.xlu0 %2925
  %2927 = vrot.lane.b32.xlu0 %v2673, 93
  %v2928 = vpop.permute.xlu0 %2927
  %2929 = vrot.lane.b32.xlu0 %v2674, 93
  %v2930 = vpop.permute.xlu0 %2929
  %2931 = vrot.lane.b32.xlu0 %v2675, 93
  %v2932 = vpop.permute.xlu0 %2931
  %v2933 = vsel %vm499, %v2912, %v2914
  %v2934 = vsel %vm499, %v2914, %v2916
  %v2935 = vsel %vm499, %v2916, %v2918
  %v2936 = vsel %vm499, %v2918, %v2920
  %v2937 = vsel %vm499, %v2920, %v2922
  %v2938 = vsel %vm499, %v2922, %v2924
  %v2939 = vsel %vm499, %v2924, %v2926
  %v2940 = vsel %vm499, %v2926, %v2928
  %v2941 = vsel %vm499, %v2928, %v2930
  %v2942 = vsel %vm499, %v2930, %v2932
  %2943 = vrot.lane.b32.xlu0 0.0, 92
  %v2944 = vpop.permute.xlu0 %2943
  %2945 = vrot.lane.b32.xlu0 %v2666, 92
  %v2946 = vpop.permute.xlu0 %2945
  %2947 = vrot.lane.b32.xlu0 %v2667, 92
  %v2948 = vpop.permute.xlu0 %2947
  %2949 = vrot.lane.b32.xlu0 %v2668, 92
  %v2950 = vpop.permute.xlu0 %2949
  %2951 = vrot.lane.b32.xlu0 %v2669, 92
  %v2952 = vpop.permute.xlu0 %2951
  %2953 = vrot.lane.b32.xlu0 %v2670, 92
  %v2954 = vpop.permute.xlu0 %2953
  %2955 = vrot.lane.b32.xlu0 %v2671, 92
  %v2956 = vpop.permute.xlu0 %2955
  %2957 = vrot.lane.b32.xlu0 %v2672, 92
  %v2958 = vpop.permute.xlu0 %2957
  %2959 = vrot.lane.b32.xlu0 %v2673, 92
  %v2960 = vpop.permute.xlu0 %2959
  %2961 = vrot.lane.b32.xlu0 %v2674, 92
  %v2962 = vpop.permute.xlu0 %2961
  %2963 = vrot.lane.b32.xlu0 %v2675, 92
  %v2964 = vpop.permute.xlu0 %2963
  %v2965 = vsel %vm532, %v2944, %v2946
  %v2966 = vsel %vm532, %v2946, %v2948
  %v2967 = vsel %vm532, %v2948, %v2950
  %v2968 = vsel %vm532, %v2950, %v2952
  %v2969 = vsel %vm532, %v2952, %v2954
  %v2970 = vsel %vm532, %v2954, %v2956
  %v2971 = vsel %vm532, %v2956, %v2958
  %v2972 = vsel %vm532, %v2958, %v2960
  %v2973 = vsel %vm532, %v2960, %v2962
  %v2974 = vsel %vm532, %v2962, %v2964
  %2975 = vrot.lane.b32.xlu0 0.0, 64
  %v2976 = vpop.permute.xlu0 %2975
  %2977 = vrot.lane.b32.xlu0 %v2666, 64
  %v2978 = vpop.permute.xlu0 %2977
  %2979 = vrot.lane.b32.xlu0 %v2667, 64
  %v2980 = vpop.permute.xlu0 %2979
  %2981 = vrot.lane.b32.xlu0 %v2668, 64
  %v2982 = vpop.permute.xlu0 %2981
  %2983 = vrot.lane.b32.xlu0 %v2669, 64
  %v2984 = vpop.permute.xlu0 %2983
  %2985 = vrot.lane.b32.xlu0 %v2670, 64
  %v2986 = vpop.permute.xlu0 %2985
  %2987 = vrot.lane.b32.xlu0 %v2671, 64
  %v2988 = vpop.permute.xlu0 %2987
  %2989 = vrot.lane.b32.xlu0 %v2672, 64
  %v2990 = vpop.permute.xlu0 %2989
  %2991 = vrot.lane.b32.xlu0 %v2673, 64
  %v2992 = vpop.permute.xlu0 %2991
  %2993 = vrot.lane.b32.xlu0 %v2674, 64
  %v2994 = vpop.permute.xlu0 %2993
  %2995 = vrot.lane.b32.xlu0 %v2675, 64
  %v2996 = vpop.permute.xlu0 %2995
  %v2997 = vsel %vm565, %v2976, %v2978
  %v2998 = vsel %vm565, %v2978, %v2980
  %v2999 = vsel %vm565, %v2980, %v2982
  %v3000 = vsel %vm565, %v2982, %v2984
  %v3001 = vsel %vm565, %v2984, %v2986
  %v3002 = vsel %vm565, %v2986, %v2988
  %v3003 = vsel %vm565, %v2988, %v2990
  %v3004 = vsel %vm565, %v2990, %v2992
  %v3005 = vsel %vm565, %v2992, %v2994
  %v3006 = vsel %vm565, %v2994, %v2996
  %3007 = vrot.lane.b32.xlu0 0.0, 63
  %v3008 = vpop.permute.xlu0 %3007
  %3009 = vrot.lane.b32.xlu0 %v2666, 63
  %v3010 = vpop.permute.xlu0 %3009
  %3011 = vrot.lane.b32.xlu0 %v2667, 63
  %v3012 = vpop.permute.xlu0 %3011
  %3013 = vrot.lane.b32.xlu0 %v2668, 63
  %v3014 = vpop.permute.xlu0 %3013
  %3015 = vrot.lane.b32.xlu0 %v2669, 63
  %v3016 = vpop.permute.xlu0 %3015
  %3017 = vrot.lane.b32.xlu0 %v2670, 63
  %v3018 = vpop.permute.xlu0 %3017
  %3019 = vrot.lane.b32.xlu0 %v2671, 63
  %v3020 = vpop.permute.xlu0 %3019
  %3021 = vrot.lane.b32.xlu0 %v2672, 63
  %v3022 = vpop.permute.xlu0 %3021
  %3023 = vrot.lane.b32.xlu0 %v2673, 63
  %v3024 = vpop.permute.xlu0 %3023
  %3025 = vrot.lane.b32.xlu0 %v2674, 63
  %v3026 = vpop.permute.xlu0 %3025
  %3027 = vrot.lane.b32.xlu0 %v2675, 63
  %v3028 = vpop.permute.xlu0 %3027
  %v3029 = vsel %vm598, %v3008, %v3010
  %v3030 = vsel %vm598, %v3010, %v3012
  %v3031 = vsel %vm598, %v3012, %v3014
  %v3032 = vsel %vm598, %v3014, %v3016
  %v3033 = vsel %vm598, %v3016, %v3018
  %v3034 = vsel %vm598, %v3018, %v3020
  %v3035 = vsel %vm598, %v3020, %v3022
  %v3036 = vsel %vm598, %v3022, %v3024
  %v3037 = vsel %vm598, %v3024, %v3026
  %v3038 = vsel %vm598, %v3026, %v3028
  %3039 = vrot.lane.b32.xlu0 %v2666, 62
  %v3040 = vpop.permute.xlu0 %3039
  %3041 = vrot.lane.b32.xlu0 %v2667, 62
  %v3042 = vpop.permute.xlu0 %3041
  %3043 = vrot.lane.b32.xlu0 %v2668, 62
  %v3044 = vpop.permute.xlu0 %3043
  %3045 = vrot.lane.b32.xlu0 %v2669, 62
  %v3046 = vpop.permute.xlu0 %3045
  %3047 = vrot.lane.b32.xlu0 %v2670, 62
  %v3048 = vpop.permute.xlu0 %3047
  %3049 = vrot.lane.b32.xlu0 %v2671, 62
  %v3050 = vpop.permute.xlu0 %3049
  %3051 = vrot.lane.b32.xlu0 %v2672, 62
  %v3052 = vpop.permute.xlu0 %3051
  %3053 = vrot.lane.b32.xlu0 %v2673, 62
  %v3054 = vpop.permute.xlu0 %3053
  %3055 = vrot.lane.b32.xlu0 %v2674, 62
  %v3056 = vpop.permute.xlu0 %3055
  %3057 = vrot.lane.b32.xlu0 %v2675, 62
  %v3058 = vpop.permute.xlu0 %3057
  %v3059 = vsel %vm629, %v3040, %v3042
  %v3060 = vsel %vm629, %v3042, %v3044
  %v3061 = vsel %vm629, %v3044, %v3046
  %v3062 = vsel %vm629, %v3046, %v3048
  %v3063 = vsel %vm629, %v3048, %v3050
  %v3064 = vsel %vm629, %v3050, %v3052
  %v3065 = vsel %vm629, %v3052, %v3054
  %v3066 = vsel %vm629, %v3054, %v3056
  %v3067 = vsel %vm629, %v3056, %v3058
  %3068 = vrot.lane.b32.xlu0 %v2666, 61
  %v3069 = vpop.permute.xlu0 %3068
  %3070 = vrot.lane.b32.xlu0 %v2667, 61
  %v3071 = vpop.permute.xlu0 %3070
  %3072 = vrot.lane.b32.xlu0 %v2668, 61
  %v3073 = vpop.permute.xlu0 %3072
  %3074 = vrot.lane.b32.xlu0 %v2669, 61
  %v3075 = vpop.permute.xlu0 %3074
  %3076 = vrot.lane.b32.xlu0 %v2670, 61
  %v3077 = vpop.permute.xlu0 %3076
  %3078 = vrot.lane.b32.xlu0 %v2671, 61
  %v3079 = vpop.permute.xlu0 %3078
  %3080 = vrot.lane.b32.xlu0 %v2672, 61
  %v3081 = vpop.permute.xlu0 %3080
  %3082 = vrot.lane.b32.xlu0 %v2673, 61
  %v3083 = vpop.permute.xlu0 %3082
  %3084 = vrot.lane.b32.xlu0 %v2674, 61
  %v3085 = vpop.permute.xlu0 %3084
  %3086 = vrot.lane.b32.xlu0 %v2675, 61
  %v3087 = vpop.permute.xlu0 %3086
  %3088 = vrot.lane.b32.xlu0 0.0, 61
  %v3089 = vpop.permute.xlu0 %3088
  %v3090 = vsel %vm662, %v3069, %v3071
  %v3091 = vsel %vm662, %v3071, %v3073
  %v3092 = vsel %vm662, %v3073, %v3075
  %v3093 = vsel %vm662, %v3075, %v3077
  %v3094 = vsel %vm662, %v3077, %v3079
  %v3095 = vsel %vm662, %v3079, %v3081
  %v3096 = vsel %vm662, %v3081, %v3083
  %v3097 = vsel %vm662, %v3083, %v3085
  %v3098 = vsel %vm662, %v3085, %v3087
  %v3099 = vsel %vm662, %v3087, %v3089
  %3100 = vrot.lane.b32.xlu0 %v2666, 60
  %v3101 = vpop.permute.xlu0 %3100
  %3102 = vrot.lane.b32.xlu0 %v2667, 60
  %v3103 = vpop.permute.xlu0 %3102
  %3104 = vrot.lane.b32.xlu0 %v2668, 60
  %v3105 = vpop.permute.xlu0 %3104
  %3106 = vrot.lane.b32.xlu0 %v2669, 60
  %v3107 = vpop.permute.xlu0 %3106
  %3108 = vrot.lane.b32.xlu0 %v2670, 60
  %v3109 = vpop.permute.xlu0 %3108
  %3110 = vrot.lane.b32.xlu0 %v2671, 60
  %v3111 = vpop.permute.xlu0 %3110
  %3112 = vrot.lane.b32.xlu0 %v2672, 60
  %v3113 = vpop.permute.xlu0 %3112
  %3114 = vrot.lane.b32.xlu0 %v2673, 60
  %v3115 = vpop.permute.xlu0 %3114
  %3116 = vrot.lane.b32.xlu0 %v2674, 60
  %v3117 = vpop.permute.xlu0 %3116
  %3118 = vrot.lane.b32.xlu0 %v2675, 60
  %v3119 = vpop.permute.xlu0 %3118
  %3120 = vrot.lane.b32.xlu0 0.0, 60
  %v3121 = vpop.permute.xlu0 %3120
  %v3122 = vsel %vm695, %v3101, %v3103
  %v3123 = vsel %vm695, %v3103, %v3105
  %v3124 = vsel %vm695, %v3105, %v3107
  %v3125 = vsel %vm695, %v3107, %v3109
  %v3126 = vsel %vm695, %v3109, %v3111
  %v3127 = vsel %vm695, %v3111, %v3113
  %v3128 = vsel %vm695, %v3113, %v3115
  %v3129 = vsel %vm695, %v3115, %v3117
  %v3130 = vsel %vm695, %v3117, %v3119
  %v3131 = vsel %vm695, %v3119, %v3121
  %3132 = vrot.lane.b32.xlu0 %v2666, 32
  %v3133 = vpop.permute.xlu0 %3132
  %3134 = vrot.lane.b32.xlu0 %v2667, 32
  %v3135 = vpop.permute.xlu0 %3134
  %3136 = vrot.lane.b32.xlu0 %v2668, 32
  %v3137 = vpop.permute.xlu0 %3136
  %3138 = vrot.lane.b32.xlu0 %v2669, 32
  %v3139 = vpop.permute.xlu0 %3138
  %3140 = vrot.lane.b32.xlu0 %v2670, 32
  %v3141 = vpop.permute.xlu0 %3140
  %3142 = vrot.lane.b32.xlu0 %v2671, 32
  %v3143 = vpop.permute.xlu0 %3142
  %3144 = vrot.lane.b32.xlu0 %v2672, 32
  %v3145 = vpop.permute.xlu0 %3144
  %3146 = vrot.lane.b32.xlu0 %v2673, 32
  %v3147 = vpop.permute.xlu0 %3146
  %3148 = vrot.lane.b32.xlu0 %v2674, 32
  %v3149 = vpop.permute.xlu0 %3148
  %3150 = vrot.lane.b32.xlu0 %v2675, 32
  %v3151 = vpop.permute.xlu0 %3150
  %3152 = vrot.lane.b32.xlu0 0.0, 32
  %v3153 = vpop.permute.xlu0 %3152
  %v3154 = vsel %vm728, %v3133, %v3135
  %v3155 = vsel %vm728, %v3135, %v3137
  %v3156 = vsel %vm728, %v3137, %v3139
  %v3157 = vsel %vm728, %v3139, %v3141
  %v3158 = vsel %vm728, %v3141, %v3143
  %v3159 = vsel %vm728, %v3143, %v3145
  %v3160 = vsel %vm728, %v3145, %v3147
  %v3161 = vsel %vm728, %v3147, %v3149
  %v3162 = vsel %vm728, %v3149, %v3151
  %v3163 = vsel %vm728, %v3151, %v3153
  %v3164 = vsel %vm268, %v2708, %v2688
  %v3165 = vsel %vm301, %v2740, %v2720
  %v3166 = vsel %vm334, %v2772, %v2752
  %3167 = vrot.lane.b32.xlu0 %v2666, 97
  %v3168 = vpop.permute.xlu0 %3167
  %3169 = vrot.lane.b32.xlu0 %v2667, 97
  %v3170 = vpop.permute.xlu0 %3169
  %3171 = vrot.lane.b32.xlu0 %v2668, 97
  %v3172 = vpop.permute.xlu0 %3171
  %3173 = vrot.lane.b32.xlu0 %v2669, 97
  %v3174 = vpop.permute.xlu0 %3173
  %3175 = vrot.lane.b32.xlu0 %v2670, 97
  %v3176 = vpop.permute.xlu0 %3175
  %3177 = vrot.lane.b32.xlu0 %v2671, 97
  %v3178 = vpop.permute.xlu0 %3177
  %3179 = vrot.lane.b32.xlu0 %v2672, 97
  %v3180 = vpop.permute.xlu0 %3179
  %3181 = vrot.lane.b32.xlu0 %v2673, 97
  %v3182 = vpop.permute.xlu0 %3181
  %3183 = vrot.lane.b32.xlu0 %v2674, 97
  %v3184 = vpop.permute.xlu0 %3183
  %3185 = vrot.lane.b32.xlu0 %v2675, 97
  %v3186 = vpop.permute.xlu0 %3185
  %3187 = vrot.lane.b32.xlu0 0.0, 97
  %v3188 = vpop.permute.xlu0 %3187
  %v3189 = vsel %vm770, %v3168, %v3170
  %v3190 = vsel %vm770, %v3170, %v3172
  %v3191 = vsel %vm770, %v3172, %v3174
  %v3192 = vsel %vm770, %v3174, %v3176
  %v3193 = vsel %vm770, %v3176, %v3178
  %v3194 = vsel %vm770, %v3178, %v3180
  %v3195 = vsel %vm770, %v3180, %v3182
  %v3196 = vsel %vm770, %v3182, %v3184
  %v3197 = vsel %vm770, %v3184, %v3186
  %v3198 = vsel %vm770, %v3186, %v3188
  %v3199 = vsel %vm400, %v2836, %v2816
  %v3200 = vsel %vm433, %v2868, %v2848
  %v3201 = vsel %vm466, %v2900, %v2880
  %v3202 = vsel %vm499, %v2932, %v2912
  %3203 = vrot.lane.b32.xlu0 %v2666, 31
  %v3204 = vpop.permute.xlu0 %3203
  %3205 = vrot.lane.b32.xlu0 %v2667, 31
  %v3206 = vpop.permute.xlu0 %3205
  %3207 = vrot.lane.b32.xlu0 %v2668, 31
  %v3208 = vpop.permute.xlu0 %3207
  %3209 = vrot.lane.b32.xlu0 %v2669, 31
  %v3210 = vpop.permute.xlu0 %3209
  %3211 = vrot.lane.b32.xlu0 %v2670, 31
  %v3212 = vpop.permute.xlu0 %3211
  %3213 = vrot.lane.b32.xlu0 %v2671, 31
  %v3214 = vpop.permute.xlu0 %3213
  %3215 = vrot.lane.b32.xlu0 %v2672, 31
  %v3216 = vpop.permute.xlu0 %3215
  %3217 = vrot.lane.b32.xlu0 %v2673, 31
  %v3218 = vpop.permute.xlu0 %3217
  %3219 = vrot.lane.b32.xlu0 %v2674, 31
  %v3220 = vpop.permute.xlu0 %3219
  %3221 = vrot.lane.b32.xlu0 %v2675, 31
  %v3222 = vpop.permute.xlu0 %3221
  %3223 = vrot.lane.b32.xlu0 0.0, 31
  %v3224 = vpop.permute.xlu0 %3223
  %3225 = vrot.lane.b32.xlu0 %v2710, 31
  %v3226 = vpop.permute.xlu0 %3225
  %3227 = vrot.lane.b32.xlu0 %v2711, 31
  %v3228 = vpop.permute.xlu0 %3227
  %3229 = vrot.lane.b32.xlu0 %v2712, 31
  %v3230 = vpop.permute.xlu0 %3229
  %3231 = vrot.lane.b32.xlu0 %v2713, 31
  %v3232 = vpop.permute.xlu0 %3231
  %3233 = vrot.lane.b32.xlu0 %v2714, 31
  %v3234 = vpop.permute.xlu0 %3233
  %3235 = vrot.lane.b32.xlu0 %v2715, 31
  %v3236 = vpop.permute.xlu0 %3235
  %3237 = vrot.lane.b32.xlu0 %v2716, 31
  %v3238 = vpop.permute.xlu0 %3237
  %3239 = vrot.lane.b32.xlu0 %v2717, 31
  %v3240 = vpop.permute.xlu0 %3239
  %3241 = vrot.lane.b32.xlu0 %v2718, 31
  %v3242 = vpop.permute.xlu0 %3241
  %3243 = vrot.lane.b32.xlu0 %v3164, 31
  %v3244 = vpop.permute.xlu0 %3243
  %3245 = vrot.lane.b32.xlu0 %v2688, 31
  %v3246 = vpop.permute.xlu0 %3245
  %3247 = vrot.lane.b32.xlu0 %v2742, 31
  %v3248 = vpop.permute.xlu0 %3247
  %3249 = vrot.lane.b32.xlu0 %v2743, 31
  %v3250 = vpop.permute.xlu0 %3249
  %3251 = vrot.lane.b32.xlu0 %v2744, 31
  %v3252 = vpop.permute.xlu0 %3251
  %3253 = vrot.lane.b32.xlu0 %v2745, 31
  %v3254 = vpop.permute.xlu0 %3253
  %3255 = vrot.lane.b32.xlu0 %v2746, 31
  %v3256 = vpop.permute.xlu0 %3255
  %3257 = vrot.lane.b32.xlu0 %v2747, 31
  %v3258 = vpop.permute.xlu0 %3257
  %3259 = vrot.lane.b32.xlu0 %v2748, 31
  %v3260 = vpop.permute.xlu0 %3259
  %3261 = vrot.lane.b32.xlu0 %v2749, 31
  %v3262 = vpop.permute.xlu0 %3261
  %3263 = vrot.lane.b32.xlu0 %v2750, 31
  %v3264 = vpop.permute.xlu0 %3263
  %3265 = vrot.lane.b32.xlu0 %v3165, 31
  %v3266 = vpop.permute.xlu0 %3265
  %3267 = vrot.lane.b32.xlu0 %v2720, 31
  %v3268 = vpop.permute.xlu0 %3267
  %3269 = vrot.lane.b32.xlu0 %v2774, 31
  %v3270 = vpop.permute.xlu0 %3269
  %3271 = vrot.lane.b32.xlu0 %v2775, 31
  %v3272 = vpop.permute.xlu0 %3271
  %3273 = vrot.lane.b32.xlu0 %v2776, 31
  %v3274 = vpop.permute.xlu0 %3273
  %3275 = vrot.lane.b32.xlu0 %v2777, 31
  %v3276 = vpop.permute.xlu0 %3275
  %3277 = vrot.lane.b32.xlu0 %v2778, 31
  %v3278 = vpop.permute.xlu0 %3277
  %3279 = vrot.lane.b32.xlu0 %v2779, 31
  %v3280 = vpop.permute.xlu0 %3279
  %3281 = vrot.lane.b32.xlu0 %v2780, 31
  %v3282 = vpop.permute.xlu0 %3281
  %3283 = vrot.lane.b32.xlu0 %v2781, 31
  %v3284 = vpop.permute.xlu0 %3283
  %3285 = vrot.lane.b32.xlu0 %v2782, 31
  %v3286 = vpop.permute.xlu0 %3285
  %3287 = vrot.lane.b32.xlu0 %v3166, 31
  %v3288 = vpop.permute.xlu0 %3287
  %3289 = vrot.lane.b32.xlu0 %v2752, 31
  %v3290 = vpop.permute.xlu0 %3289
  %3291 = vrot.lane.b32.xlu0 %v3189, 31
  %v3292 = vpop.permute.xlu0 %3291
  %3293 = vrot.lane.b32.xlu0 %v3190, 31
  %v3294 = vpop.permute.xlu0 %3293
  %3295 = vrot.lane.b32.xlu0 %v3191, 31
  %v3296 = vpop.permute.xlu0 %3295
  %3297 = vrot.lane.b32.xlu0 %v3192, 31
  %v3298 = vpop.permute.xlu0 %3297
  %3299 = vrot.lane.b32.xlu0 %v3193, 31
  %v3300 = vpop.permute.xlu0 %3299
  %3301 = vrot.lane.b32.xlu0 %v3194, 31
  %v3302 = vpop.permute.xlu0 %3301
  %3303 = vrot.lane.b32.xlu0 %v3195, 31
  %v3304 = vpop.permute.xlu0 %3303
  %3305 = vrot.lane.b32.xlu0 %v3196, 31
  %v3306 = vpop.permute.xlu0 %3305
  %3307 = vrot.lane.b32.xlu0 %v3197, 31
  %v3308 = vpop.permute.xlu0 %3307
  %3309 = vrot.lane.b32.xlu0 %v3198, 31
  %v3310 = vpop.permute.xlu0 %3309
  %3311 = vrot.lane.b32.xlu0 %v3188, 31
  %v3312 = vpop.permute.xlu0 %3311
  %3313 = vrot.lane.b32.xlu0 %v2838, 31
  %v3314 = vpop.permute.xlu0 %3313
  %3315 = vrot.lane.b32.xlu0 %v2839, 31
  %v3316 = vpop.permute.xlu0 %3315
  %3317 = vrot.lane.b32.xlu0 %v2840, 31
  %v3318 = vpop.permute.xlu0 %3317
  %3319 = vrot.lane.b32.xlu0 %v2841, 31
  %v3320 = vpop.permute.xlu0 %3319
  %3321 = vrot.lane.b32.xlu0 %v2842, 31
  %v3322 = vpop.permute.xlu0 %3321
  %3323 = vrot.lane.b32.xlu0 %v2843, 31
  %v3324 = vpop.permute.xlu0 %3323
  %3325 = vrot.lane.b32.xlu0 %v2844, 31
  %v3326 = vpop.permute.xlu0 %3325
  %3327 = vrot.lane.b32.xlu0 %v2845, 31
  %v3328 = vpop.permute.xlu0 %3327
  %3329 = vrot.lane.b32.xlu0 %v2846, 31
  %v3330 = vpop.permute.xlu0 %3329
  %3331 = vrot.lane.b32.xlu0 %v3199, 31
  %v3332 = vpop.permute.xlu0 %3331
  %3333 = vrot.lane.b32.xlu0 %v2816, 31
  %v3334 = vpop.permute.xlu0 %3333
  %3335 = vrot.lane.b32.xlu0 %v2870, 31
  %v3336 = vpop.permute.xlu0 %3335
  %3337 = vrot.lane.b32.xlu0 %v2871, 31
  %v3338 = vpop.permute.xlu0 %3337
  %3339 = vrot.lane.b32.xlu0 %v2872, 31
  %v3340 = vpop.permute.xlu0 %3339
  %3341 = vrot.lane.b32.xlu0 %v2873, 31
  %v3342 = vpop.permute.xlu0 %3341
  %3343 = vrot.lane.b32.xlu0 %v2874, 31
  %v3344 = vpop.permute.xlu0 %3343
  %3345 = vrot.lane.b32.xlu0 %v2875, 31
  %v3346 = vpop.permute.xlu0 %3345
  %3347 = vrot.lane.b32.xlu0 %v2876, 31
  %v3348 = vpop.permute.xlu0 %3347
  %3349 = vrot.lane.b32.xlu0 %v2877, 31
  %v3350 = vpop.permute.xlu0 %3349
  %3351 = vrot.lane.b32.xlu0 %v2878, 31
  %v3352 = vpop.permute.xlu0 %3351
  %3353 = vrot.lane.b32.xlu0 %v3200, 31
  %v3354 = vpop.permute.xlu0 %3353
  %3355 = vrot.lane.b32.xlu0 %v2848, 31
  %v3356 = vpop.permute.xlu0 %3355
  %3357 = vrot.lane.b32.xlu0 %v2902, 31
  %v3358 = vpop.permute.xlu0 %3357
  %3359 = vrot.lane.b32.xlu0 %v2903, 31
  %v3360 = vpop.permute.xlu0 %3359
  %3361 = vrot.lane.b32.xlu0 %v2904, 31
  %v3362 = vpop.permute.xlu0 %3361
  %3363 = vrot.lane.b32.xlu0 %v2905, 31
  %v3364 = vpop.permute.xlu0 %3363
  %3365 = vrot.lane.b32.xlu0 %v2906, 31
  %v3366 = vpop.permute.xlu0 %3365
  %3367 = vrot.lane.b32.xlu0 %v2907, 31
  %v3368 = vpop.permute.xlu0 %3367
  %3369 = vrot.lane.b32.xlu0 %v2908, 31
  %v3370 = vpop.permute.xlu0 %3369
  %3371 = vrot.lane.b32.xlu0 %v2909, 31
  %v3372 = vpop.permute.xlu0 %3371
  %3373 = vrot.lane.b32.xlu0 %v2910, 31
  %v3374 = vpop.permute.xlu0 %3373
  %3375 = vrot.lane.b32.xlu0 %v3201, 31
  %v3376 = vpop.permute.xlu0 %3375
  %3377 = vrot.lane.b32.xlu0 %v2880, 31
  %v3378 = vpop.permute.xlu0 %3377
  %3379 = vrot.lane.b32.xlu0 %v2934, 31
  %v3380 = vpop.permute.xlu0 %3379
  %3381 = vrot.lane.b32.xlu0 %v2935, 31
  %v3382 = vpop.permute.xlu0 %3381
  %3383 = vrot.lane.b32.xlu0 %v2936, 31
  %v3384 = vpop.permute.xlu0 %3383
  %3385 = vrot.lane.b32.xlu0 %v2937, 31
  %v3386 = vpop.permute.xlu0 %3385
  %3387 = vrot.lane.b32.xlu0 %v2938, 31
  %v3388 = vpop.permute.xlu0 %3387
  %3389 = vrot.lane.b32.xlu0 %v2939, 31
  %v3390 = vpop.permute.xlu0 %3389
  %3391 = vrot.lane.b32.xlu0 %v2940, 31
  %v3392 = vpop.permute.xlu0 %3391
  %3393 = vrot.lane.b32.xlu0 %v2941, 31
  %v3394 = vpop.permute.xlu0 %3393
  %3395 = vrot.lane.b32.xlu0 %v2942, 31
  %v3396 = vpop.permute.xlu0 %3395
  %3397 = vrot.lane.b32.xlu0 %v3202, 31
  %v3398 = vpop.permute.xlu0 %3397
  %3399 = vrot.lane.b32.xlu0 %v2912, 31
  %v3400 = vpop.permute.xlu0 %3399
  %v3401 = vsel %vm991, %v3204, %v3206
  %v3402 = vsel %vm991, %v3206, %v3208
  %v3403 = vsel %vm991, %v3208, %v3210
  %v3404 = vsel %vm991, %v3210, %v3212
  %v3405 = vsel %vm991, %v3212, %v3214
  %v3406 = vsel %vm991, %v3214, %v3216
  %v3407 = vsel %vm991, %v3216, %v3218
  %v3408 = vsel %vm991, %v3218, %v3220
  %v3409 = vsel %vm991, %v3220, %v3222
  %v3410 = vsel %vm991, %v3222, %v3224
  %v3411 = vsel %vm991, %v3226, %v3228
  %v3412 = vsel %vm991, %v3228, %v3230
  %v3413 = vsel %vm991, %v3230, %v3232
  %v3414 = vsel %vm991, %v3232, %v3234
  %v3415 = vsel %vm991, %v3234, %v3236
  %v3416 = vsel %vm991, %v3236, %v3238
  %v3417 = vsel %vm991, %v3238, %v3240
  %v3418 = vsel %vm991, %v3240, %v3242
  %v3419 = vsel %vm991, %v3242, %v3244
  %v3420 = vsel %vm991, %v3244, %v3246
  %v3421 = vsel %vm991, %v3248, %v3250
  %v3422 = vsel %vm991, %v3250, %v3252
  %v3423 = vsel %vm991, %v3252, %v3254
  %v3424 = vsel %vm991, %v3254, %v3256
  %v3425 = vsel %vm991, %v3256, %v3258
  %v3426 = vsel %vm991, %v3258, %v3260
  %v3427 = vsel %vm991, %v3260, %v3262
  %v3428 = vsel %vm991, %v3262, %v3264
  %v3429 = vsel %vm991, %v3264, %v3266
  %v3430 = vsel %vm991, %v3266, %v3268
  %v3431 = vsel %vm991, %v3270, %v3272
  %v3432 = vsel %vm991, %v3272, %v3274
  %v3433 = vsel %vm991, %v3274, %v3276
  %v3434 = vsel %vm991, %v3276, %v3278
  %v3435 = vsel %vm991, %v3278, %v3280
  %v3436 = vsel %vm991, %v3280, %v3282
  %v3437 = vsel %vm991, %v3282, %v3284
  %v3438 = vsel %vm991, %v3284, %v3286
  %v3439 = vsel %vm991, %v3286, %v3288
  %v3440 = vsel %vm991, %v3288, %v3290
  %v3441 = vsel %vm991, %v3292, %v3294
  %v3442 = vsel %vm991, %v3294, %v3296
  %v3443 = vsel %vm991, %v3296, %v3298
  %v3444 = vsel %vm991, %v3298, %v3300
  %v3445 = vsel %vm991, %v3300, %v3302
  %v3446 = vsel %vm991, %v3302, %v3304
  %v3447 = vsel %vm991, %v3304, %v3306
  %v3448 = vsel %vm991, %v3306, %v3308
  %v3449 = vsel %vm991, %v3308, %v3310
  %v3450 = vsel %vm991, %v3310, %v3312
  %v3451 = vsel %vm991, %v3314, %v3316
  %v3452 = vsel %vm991, %v3316, %v3318
  %v3453 = vsel %vm991, %v3318, %v3320
  %v3454 = vsel %vm991, %v3320, %v3322
  %v3455 = vsel %vm991, %v3322, %v3324
  %v3456 = vsel %vm991, %v3324, %v3326
  %v3457 = vsel %vm991, %v3326, %v3328
  %v3458 = vsel %vm991, %v3328, %v3330
  %v3459 = vsel %vm991, %v3330, %v3332
  %v3460 = vsel %vm991, %v3332, %v3334
  %v3461 = vsel %vm991, %v3336, %v3338
  %v3462 = vsel %vm991, %v3338, %v3340
  %v3463 = vsel %vm991, %v3340, %v3342
  %v3464 = vsel %vm991, %v3342, %v3344
  %v3465 = vsel %vm991, %v3344, %v3346
  %v3466 = vsel %vm991, %v3346, %v3348
  %v3467 = vsel %vm991, %v3348, %v3350
  %v3468 = vsel %vm991, %v3350, %v3352
  %v3469 = vsel %vm991, %v3352, %v3354
  %v3470 = vsel %vm991, %v3354, %v3356
  %v3471 = vsel %vm991, %v3358, %v3360
  %v3472 = vsel %vm991, %v3360, %v3362
  %v3473 = vsel %vm991, %v3362, %v3364
  %v3474 = vsel %vm991, %v3364, %v3366
  %v3475 = vsel %vm991, %v3366, %v3368
  %v3476 = vsel %vm991, %v3368, %v3370
  %v3477 = vsel %vm991, %v3370, %v3372
  %v3478 = vsel %vm991, %v3372, %v3374
  %v3479 = vsel %vm991, %v3374, %v3376
  %v3480 = vsel %vm991, %v3376, %v3378
  %v3481 = vsel %vm991, %v3380, %v3382
  %v3482 = vsel %vm991, %v3382, %v3384
  %v3483 = vsel %vm991, %v3384, %v3386
  %v3484 = vsel %vm991, %v3386, %v3388
  %v3485 = vsel %vm991, %v3388, %v3390
  %v3486 = vsel %vm991, %v3390, %v3392
  %v3487 = vsel %vm991, %v3392, %v3394
  %v3488 = vsel %vm991, %v3394, %v3396
  %v3489 = vsel %vm991, %v3396, %v3398
  %v3490 = vsel %vm991, %v3398, %v3400
  %v3491 = vld [vmem:[%s4] sm:$0xff]
  %v3492 = vld [vmem:[%s4 + $0x8] sm:$0xff]
  %v3493 = vld [vmem:[%s4 + $0x10] sm:$0xff]
  %v3494 = vld [vmem:[%s4 + $0x18] sm:$0xff]
  %v3495 = vld [vmem:[%s5] sm:$0xff]
  %v3496 = vld [vmem:[%s5 + $0x8] sm:$0xff]
  %3498 = vset.pattern.permute.xlu0 0
  %3499 = vperm.xlu0 %3498, %v3495
  %v3500 = vpop.permute.xlu0 %3499
  %3503 = vset.pattern.permute.xlu0 0
  %3504 = vperm.xlu0 %3503, %v3496
  %v3505 = vpop.permute.xlu0 %3504
  %3507 = vrot.lane.b32.xlu0 0.0, 66
  %v3508 = vpop.permute.xlu0 %3507
  %3509 = vrot.lane.b32.xlu0 %v2666, 66
  %v3510 = vpop.permute.xlu0 %3509
  %3511 = vrot.lane.b32.xlu0 %v2667, 66
  %v3512 = vpop.permute.xlu0 %3511
  %3513 = vrot.lane.b32.xlu0 %v2668, 66
  %v3514 = vpop.permute.xlu0 %3513
  %3515 = vrot.lane.b32.xlu0 %v2669, 66
  %v3516 = vpop.permute.xlu0 %3515
  %3517 = vrot.lane.b32.xlu0 %v2670, 66
  %v3518 = vpop.permute.xlu0 %3517
  %3519 = vrot.lane.b32.xlu0 %v2671, 66
  %v3520 = vpop.permute.xlu0 %3519
  %3521 = vrot.lane.b32.xlu0 %v2672, 66
  %v3522 = vpop.permute.xlu0 %3521
  %3523 = vrot.lane.b32.xlu0 %v2673, 66
  %v3524 = vpop.permute.xlu0 %3523
  %3525 = vrot.lane.b32.xlu0 %v2674, 66
  %v3526 = vpop.permute.xlu0 %3525
  %3527 = vrot.lane.b32.xlu0 %v2675, 66
  %v3528 = vpop.permute.xlu0 %3527
  %3529 = vrot.lane.b32.xlu0 %v2709, 66
  %v3530 = vpop.permute.xlu0 %3529
  %3531 = vrot.lane.b32.xlu0 %v2710, 66
  %v3532 = vpop.permute.xlu0 %3531
  %3533 = vrot.lane.b32.xlu0 %v2711, 66
  %v3534 = vpop.permute.xlu0 %3533
  %3535 = vrot.lane.b32.xlu0 %v2712, 66
  %v3536 = vpop.permute.xlu0 %3535
  %3537 = vrot.lane.b32.xlu0 %v2713, 66
  %v3538 = vpop.permute.xlu0 %3537
  %3539 = vrot.lane.b32.xlu0 %v2714, 66
  %v3540 = vpop.permute.xlu0 %3539
  %3541 = vrot.lane.b32.xlu0 %v2715, 66
  %v3542 = vpop.permute.xlu0 %3541
  %3543 = vrot.lane.b32.xlu0 %v2716, 66
  %v3544 = vpop.permute.xlu0 %3543
  %3545 = vrot.lane.b32.xlu0 %v2717, 66
  %v3546 = vpop.permute.xlu0 %3545
  %3547 = vrot.lane.b32.xlu0 %v2718, 66
  %v3548 = vpop.permute.xlu0 %3547
  %3549 = vrot.lane.b32.xlu0 %v2708, 66
  %v3550 = vpop.permute.xlu0 %3549
  %3551 = vrot.lane.b32.xlu0 %v2741, 66
  %v3552 = vpop.permute.xlu0 %3551
  %3553 = vrot.lane.b32.xlu0 %v2742, 66
  %v3554 = vpop.permute.xlu0 %3553
  %3555 = vrot.lane.b32.xlu0 %v2743, 66
  %v3556 = vpop.permute.xlu0 %3555
  %3557 = vrot.lane.b32.xlu0 %v2744, 66
  %v3558 = vpop.permute.xlu0 %3557
  %3559 = vrot.lane.b32.xlu0 %v2745, 66
  %v3560 = vpop.permute.xlu0 %3559
  %3561 = vrot.lane.b32.xlu0 %v2746, 66
  %v3562 = vpop.permute.xlu0 %3561
  %3563 = vrot.lane.b32.xlu0 %v2747, 66
  %v3564 = vpop.permute.xlu0 %3563
  %3565 = vrot.lane.b32.xlu0 %v2748, 66
  %v3566 = vpop.permute.xlu0 %3565
  %3567 = vrot.lane.b32.xlu0 %v2749, 66
  %v3568 = vpop.permute.xlu0 %3567
  %3569 = vrot.lane.b32.xlu0 %v2750, 66
  %v3570 = vpop.permute.xlu0 %3569
  %3571 = vrot.lane.b32.xlu0 %v2740, 66
  %v3572 = vpop.permute.xlu0 %3571
  %3573 = vrot.lane.b32.xlu0 %v2773, 66
  %v3574 = vpop.permute.xlu0 %3573
  %3575 = vrot.lane.b32.xlu0 %v2774, 66
  %v3576 = vpop.permute.xlu0 %3575
  %3577 = vrot.lane.b32.xlu0 %v2775, 66
  %v3578 = vpop.permute.xlu0 %3577
  %3579 = vrot.lane.b32.xlu0 %v2776, 66
  %v3580 = vpop.permute.xlu0 %3579
  %3581 = vrot.lane.b32.xlu0 %v2777, 66
  %v3582 = vpop.permute.xlu0 %3581
  %3583 = vrot.lane.b32.xlu0 %v2778, 66
  %v3584 = vpop.permute.xlu0 %3583
  %3585 = vrot.lane.b32.xlu0 %v2779, 66
  %v3586 = vpop.permute.xlu0 %3585
  %3587 = vrot.lane.b32.xlu0 %v2780, 66
  %v3588 = vpop.permute.xlu0 %3587
  %3589 = vrot.lane.b32.xlu0 %v2781, 66
  %v3590 = vpop.permute.xlu0 %3589
  %3591 = vrot.lane.b32.xlu0 %v2782, 66
  %v3592 = vpop.permute.xlu0 %3591
  %3593 = vrot.lane.b32.xlu0 %v2772, 66
  %v3594 = vpop.permute.xlu0 %3593
  %3595 = vrot.lane.b32.xlu0 %v2805, 66
  %v3596 = vpop.permute.xlu0 %3595
  %3597 = vrot.lane.b32.xlu0 %v2806, 66
  %v3598 = vpop.permute.xlu0 %3597
  %3599 = vrot.lane.b32.xlu0 %v2807, 66
  %v3600 = vpop.permute.xlu0 %3599
  %3601 = vrot.lane.b32.xlu0 %v2808, 66
  %v3602 = vpop.permute.xlu0 %3601
  %3603 = vrot.lane.b32.xlu0 %v2809, 66
  %v3604 = vpop.permute.xlu0 %3603
  %3605 = vrot.lane.b32.xlu0 %v2810, 66
  %v3606 = vpop.permute.xlu0 %3605
  %3607 = vrot.lane.b32.xlu0 %v2811, 66
  %v3608 = vpop.permute.xlu0 %3607
  %3609 = vrot.lane.b32.xlu0 %v2812, 66
  %v3610 = vpop.permute.xlu0 %3609
  %3611 = vrot.lane.b32.xlu0 %v2813, 66
  %v3612 = vpop.permute.xlu0 %3611
  %3613 = vrot.lane.b32.xlu0 %v2814, 66
  %v3614 = vpop.permute.xlu0 %3613
  %3615 = vrot.lane.b32.xlu0 %v2804, 66
  %v3616 = vpop.permute.xlu0 %3615
  %3617 = vrot.lane.b32.xlu0 %v2837, 66
  %v3618 = vpop.permute.xlu0 %3617
  %3619 = vrot.lane.b32.xlu0 %v2838, 66
  %v3620 = vpop.permute.xlu0 %3619
  %3621 = vrot.lane.b32.xlu0 %v2839, 66
  %v3622 = vpop.permute.xlu0 %3621
  %3623 = vrot.lane.b32.xlu0 %v2840, 66
  %v3624 = vpop.permute.xlu0 %3623
  %3625 = vrot.lane.b32.xlu0 %v2841, 66
  %v3626 = vpop.permute.xlu0 %3625
  %3627 = vrot.lane.b32.xlu0 %v2842, 66
  %v3628 = vpop.permute.xlu0 %3627
  %3629 = vrot.lane.b32.xlu0 %v2843, 66
  %v3630 = vpop.permute.xlu0 %3629
  %3631 = vrot.lane.b32.xlu0 %v2844, 66
  %v3632 = vpop.permute.xlu0 %3631
  %3633 = vrot.lane.b32.xlu0 %v2845, 66
  %v3634 = vpop.permute.xlu0 %3633
  %3635 = vrot.lane.b32.xlu0 %v2846, 66
  %v3636 = vpop.permute.xlu0 %3635
  %3637 = vrot.lane.b32.xlu0 %v2836, 66
  %v3638 = vpop.permute.xlu0 %3637
  %3639 = vrot.lane.b32.xlu0 %v2869, 66
  %v3640 = vpop.permute.xlu0 %3639
  %3641 = vrot.lane.b32.xlu0 %v2870, 66
  %v3642 = vpop.permute.xlu0 %3641
  %3643 = vrot.lane.b32.xlu0 %v2871, 66
  %v3644 = vpop.permute.xlu0 %3643
  %3645 = vrot.lane.b32.xlu0 %v2872, 66
  %v3646 = vpop.permute.xlu0 %3645
  %3647 = vrot.lane.b32.xlu0 %v2873, 66
  %v3648 = vpop.permute.xlu0 %3647
  %3649 = vrot.lane.b32.xlu0 %v2874, 66
  %v3650 = vpop.permute.xlu0 %3649
  %3651 = vrot.lane.b32.xlu0 %v2875, 66
  %v3652 = vpop.permute.xlu0 %3651
  %3653 = vrot.lane.b32.xlu0 %v2876, 66
  %v3654 = vpop.permute.xlu0 %3653
  %3655 = vrot.lane.b32.xlu0 %v2877, 66
  %v3656 = vpop.permute.xlu0 %3655
  %3657 = vrot.lane.b32.xlu0 %v2878, 66
  %v3658 = vpop.permute.xlu0 %3657
  %3659 = vrot.lane.b32.xlu0 %v2868, 66
  %v3660 = vpop.permute.xlu0 %3659
  %3661 = vrot.lane.b32.xlu0 %v2901, 66
  %v3662 = vpop.permute.xlu0 %3661
  %3663 = vrot.lane.b32.xlu0 %v2902, 66
  %v3664 = vpop.permute.xlu0 %3663
  %3665 = vrot.lane.b32.xlu0 %v2903, 66
  %v3666 = vpop.permute.xlu0 %3665
  %3667 = vrot.lane.b32.xlu0 %v2904, 66
  %v3668 = vpop.permute.xlu0 %3667
  %3669 = vrot.lane.b32.xlu0 %v2905, 66
  %v3670 = vpop.permute.xlu0 %3669
  %3671 = vrot.lane.b32.xlu0 %v2906, 66
  %v3672 = vpop.permute.xlu0 %3671
  %3673 = vrot.lane.b32.xlu0 %v2907, 66
  %v3674 = vpop.permute.xlu0 %3673
  %3675 = vrot.lane.b32.xlu0 %v2908, 66
  %v3676 = vpop.permute.xlu0 %3675
  %3677 = vrot.lane.b32.xlu0 %v2909, 66
  %v3678 = vpop.permute.xlu0 %3677
  %3679 = vrot.lane.b32.xlu0 %v2910, 66
  %v3680 = vpop.permute.xlu0 %3679
  %3681 = vrot.lane.b32.xlu0 %v2900, 66
  %v3682 = vpop.permute.xlu0 %3681
  %3683 = vrot.lane.b32.xlu0 %v2933, 66
  %v3684 = vpop.permute.xlu0 %3683
  %3685 = vrot.lane.b32.xlu0 %v2934, 66
  %v3686 = vpop.permute.xlu0 %3685
  %3687 = vrot.lane.b32.xlu0 %v2935, 66
  %v3688 = vpop.permute.xlu0 %3687
  %3689 = vrot.lane.b32.xlu0 %v2936, 66
  %v3690 = vpop.permute.xlu0 %3689
  %3691 = vrot.lane.b32.xlu0 %v2937, 66
  %v3692 = vpop.permute.xlu0 %3691
  %3693 = vrot.lane.b32.xlu0 %v2938, 66
  %v3694 = vpop.permute.xlu0 %3693
  %3695 = vrot.lane.b32.xlu0 %v2939, 66
  %v3696 = vpop.permute.xlu0 %3695
  %3697 = vrot.lane.b32.xlu0 %v2940, 66
  %v3698 = vpop.permute.xlu0 %3697
  %3699 = vrot.lane.b32.xlu0 %v2941, 66
  %v3700 = vpop.permute.xlu0 %3699
  %3701 = vrot.lane.b32.xlu0 %v2942, 66
  %v3702 = vpop.permute.xlu0 %3701
  %3703 = vrot.lane.b32.xlu0 %v2932, 66
  %v3704 = vpop.permute.xlu0 %3703
  %3705 = vrot.lane.b32.xlu0 %v2965, 66
  %v3706 = vpop.permute.xlu0 %3705
  %3707 = vrot.lane.b32.xlu0 %v2966, 66
  %v3708 = vpop.permute.xlu0 %3707
  %3709 = vrot.lane.b32.xlu0 %v2967, 66
  %v3710 = vpop.permute.xlu0 %3709
  %3711 = vrot.lane.b32.xlu0 %v2968, 66
  %v3712 = vpop.permute.xlu0 %3711
  %3713 = vrot.lane.b32.xlu0 %v2969, 66
  %v3714 = vpop.permute.xlu0 %3713
  %3715 = vrot.lane.b32.xlu0 %v2970, 66
  %v3716 = vpop.permute.xlu0 %3715
  %3717 = vrot.lane.b32.xlu0 %v2971, 66
  %v3718 = vpop.permute.xlu0 %3717
  %3719 = vrot.lane.b32.xlu0 %v2972, 66
  %v3720 = vpop.permute.xlu0 %3719
  %3721 = vrot.lane.b32.xlu0 %v2973, 66
  %v3722 = vpop.permute.xlu0 %3721
  %3723 = vrot.lane.b32.xlu0 %v2974, 66
  %v3724 = vpop.permute.xlu0 %3723
  %3725 = vrot.lane.b32.xlu0 %v2964, 66
  %v3726 = vpop.permute.xlu0 %3725
  %3727 = vrot.lane.b32.xlu0 %v2997, 66
  %v3728 = vpop.permute.xlu0 %3727
  %3729 = vrot.lane.b32.xlu0 %v2998, 66
  %v3730 = vpop.permute.xlu0 %3729
  %3731 = vrot.lane.b32.xlu0 %v2999, 66
  %v3732 = vpop.permute.xlu0 %3731
  %3733 = vrot.lane.b32.xlu0 %v3000, 66
  %v3734 = vpop.permute.xlu0 %3733
  %3735 = vrot.lane.b32.xlu0 %v3001, 66
  %v3736 = vpop.permute.xlu0 %3735
  %3737 = vrot.lane.b32.xlu0 %v3002, 66
  %v3738 = vpop.permute.xlu0 %3737
  %3739 = vrot.lane.b32.xlu0 %v3003, 66
  %v3740 = vpop.permute.xlu0 %3739
  %3741 = vrot.lane.b32.xlu0 %v3004, 66
  %v3742 = vpop.permute.xlu0 %3741
  %3743 = vrot.lane.b32.xlu0 %v3005, 66
  %v3744 = vpop.permute.xlu0 %3743
  %3745 = vrot.lane.b32.xlu0 %v3006, 66
  %v3746 = vpop.permute.xlu0 %3745
  %3747 = vrot.lane.b32.xlu0 %v2996, 66
  %v3748 = vpop.permute.xlu0 %3747
  %3749 = vrot.lane.b32.xlu0 %v3029, 66
  %v3750 = vpop.permute.xlu0 %3749
  %3751 = vrot.lane.b32.xlu0 %v3030, 66
  %v3752 = vpop.permute.xlu0 %3751
  %3753 = vrot.lane.b32.xlu0 %v3031, 66
  %v3754 = vpop.permute.xlu0 %3753
  %3755 = vrot.lane.b32.xlu0 %v3032, 66
  %v3756 = vpop.permute.xlu0 %3755
  %3757 = vrot.lane.b32.xlu0 %v3033, 66
  %v3758 = vpop.permute.xlu0 %3757
  %3759 = vrot.lane.b32.xlu0 %v3034, 66
  %v3760 = vpop.permute.xlu0 %3759
  %3761 = vrot.lane.b32.xlu0 %v3035, 66
  %v3762 = vpop.permute.xlu0 %3761
  %3763 = vrot.lane.b32.xlu0 %v3036, 66
  %v3764 = vpop.permute.xlu0 %3763
  %3765 = vrot.lane.b32.xlu0 %v3037, 66
  %v3766 = vpop.permute.xlu0 %3765
  %3767 = vrot.lane.b32.xlu0 %v3038, 66
  %v3768 = vpop.permute.xlu0 %3767
  %3769 = vrot.lane.b32.xlu0 %v3028, 66
  %v3770 = vpop.permute.xlu0 %3769
  %3771 = vrot.lane.b32.xlu0 %v3040, 66
  %v3772 = vpop.permute.xlu0 %3771
  %3773 = vrot.lane.b32.xlu0 %v3059, 66
  %v3774 = vpop.permute.xlu0 %3773
  %3775 = vrot.lane.b32.xlu0 %v3060, 66
  %v3776 = vpop.permute.xlu0 %3775
  %3777 = vrot.lane.b32.xlu0 %v3061, 66
  %v3778 = vpop.permute.xlu0 %3777
  %3779 = vrot.lane.b32.xlu0 %v3062, 66
  %v3780 = vpop.permute.xlu0 %3779
  %3781 = vrot.lane.b32.xlu0 %v3063, 66
  %v3782 = vpop.permute.xlu0 %3781
  %3783 = vrot.lane.b32.xlu0 %v3064, 66
  %v3784 = vpop.permute.xlu0 %3783
  %3785 = vrot.lane.b32.xlu0 %v3065, 66
  %v3786 = vpop.permute.xlu0 %3785
  %3787 = vrot.lane.b32.xlu0 %v3066, 66
  %v3788 = vpop.permute.xlu0 %3787
  %3789 = vrot.lane.b32.xlu0 %v3067, 66
  %v3790 = vpop.permute.xlu0 %3789
  %3791 = vrot.lane.b32.xlu0 %v3058, 66
  %v3792 = vpop.permute.xlu0 %3791
  %3793 = vrot.lane.b32.xlu0 %v3069, 66
  %v3794 = vpop.permute.xlu0 %3793
  %3795 = vrot.lane.b32.xlu0 %v3090, 66
  %v3796 = vpop.permute.xlu0 %3795
  %3797 = vrot.lane.b32.xlu0 %v3091, 66
  %v3798 = vpop.permute.xlu0 %3797
  %3799 = vrot.lane.b32.xlu0 %v3092, 66
  %v3800 = vpop.permute.xlu0 %3799
  %3801 = vrot.lane.b32.xlu0 %v3093, 66
  %v3802 = vpop.permute.xlu0 %3801
  %3803 = vrot.lane.b32.xlu0 %v3094, 66
  %v3804 = vpop.permute.xlu0 %3803
  %3805 = vrot.lane.b32.xlu0 %v3095, 66
  %v3806 = vpop.permute.xlu0 %3805
  %3807 = vrot.lane.b32.xlu0 %v3096, 66
  %v3808 = vpop.permute.xlu0 %3807
  %3809 = vrot.lane.b32.xlu0 %v3097, 66
  %v3810 = vpop.permute.xlu0 %3809
  %3811 = vrot.lane.b32.xlu0 %v3098, 66
  %v3812 = vpop.permute.xlu0 %3811
  %3813 = vrot.lane.b32.xlu0 %v3099, 66
  %v3814 = vpop.permute.xlu0 %3813
  %3815 = vrot.lane.b32.xlu0 %v3101, 66
  %v3816 = vpop.permute.xlu0 %3815
  %3817 = vrot.lane.b32.xlu0 %v3122, 66
  %v3818 = vpop.permute.xlu0 %3817
  %3819 = vrot.lane.b32.xlu0 %v3123, 66
  %v3820 = vpop.permute.xlu0 %3819
  %3821 = vrot.lane.b32.xlu0 %v3124, 66
  %v3822 = vpop.permute.xlu0 %3821
  %3823 = vrot.lane.b32.xlu0 %v3125, 66
  %v3824 = vpop.permute.xlu0 %3823
  %3825 = vrot.lane.b32.xlu0 %v3126, 66
  %v3826 = vpop.permute.xlu0 %3825
  %3827 = vrot.lane.b32.xlu0 %v3127, 66
  %v3828 = vpop.permute.xlu0 %3827
  %3829 = vrot.lane.b32.xlu0 %v3128, 66
  %v3830 = vpop.permute.xlu0 %3829
  %3831 = vrot.lane.b32.xlu0 %v3129, 66
  %v3832 = vpop.permute.xlu0 %3831
  %3833 = vrot.lane.b32.xlu0 %v3130, 66
  %v3834 = vpop.permute.xlu0 %3833
  %3835 = vrot.lane.b32.xlu0 %v3131, 66
  %v3836 = vpop.permute.xlu0 %3835
  %3837 = vrot.lane.b32.xlu0 %v3133, 66
  %v3838 = vpop.permute.xlu0 %3837
  %3839 = vrot.lane.b32.xlu0 %v3154, 66
  %v3840 = vpop.permute.xlu0 %3839
  %3841 = vrot.lane.b32.xlu0 %v3155, 66
  %v3842 = vpop.permute.xlu0 %3841
  %3843 = vrot.lane.b32.xlu0 %v3156, 66
  %v3844 = vpop.permute.xlu0 %3843
  %3845 = vrot.lane.b32.xlu0 %v3157, 66
  %v3846 = vpop.permute.xlu0 %3845
  %3847 = vrot.lane.b32.xlu0 %v3158, 66
  %v3848 = vpop.permute.xlu0 %3847
  %3849 = vrot.lane.b32.xlu0 %v3159, 66
  %v3850 = vpop.permute.xlu0 %3849
  %3851 = vrot.lane.b32.xlu0 %v3160, 66
  %v3852 = vpop.permute.xlu0 %3851
  %3853 = vrot.lane.b32.xlu0 %v3161, 66
  %v3854 = vpop.permute.xlu0 %3853
  %3855 = vrot.lane.b32.xlu0 %v3162, 66
  %v3856 = vpop.permute.xlu0 %3855
  %3857 = vrot.lane.b32.xlu0 %v3163, 66
  %v3858 = vpop.permute.xlu0 %3857
  %3859 = vrot.lane.b32.xlu0 %v3204, 66
  %v3860 = vpop.permute.xlu0 %3859
  %3861 = vrot.lane.b32.xlu0 %v3401, 66
  %v3862 = vpop.permute.xlu0 %3861
  %3863 = vrot.lane.b32.xlu0 %v3402, 66
  %v3864 = vpop.permute.xlu0 %3863
  %3865 = vrot.lane.b32.xlu0 %v3403, 66
  %v3866 = vpop.permute.xlu0 %3865
  %3867 = vrot.lane.b32.xlu0 %v3404, 66
  %v3868 = vpop.permute.xlu0 %3867
  %3869 = vrot.lane.b32.xlu0 %v3405, 66
  %v3870 = vpop.permute.xlu0 %3869
  %3871 = vrot.lane.b32.xlu0 %v3406, 66
  %v3872 = vpop.permute.xlu0 %3871
  %3873 = vrot.lane.b32.xlu0 %v3407, 66
  %v3874 = vpop.permute.xlu0 %3873
  %3875 = vrot.lane.b32.xlu0 %v3408, 66
  %v3876 = vpop.permute.xlu0 %3875
  %3877 = vrot.lane.b32.xlu0 %v3409, 66
  %v3878 = vpop.permute.xlu0 %3877
  %3879 = vrot.lane.b32.xlu0 %v3410, 66
  %v3880 = vpop.permute.xlu0 %3879
  %3881 = vrot.lane.b32.xlu0 %v3226, 66
  %v3882 = vpop.permute.xlu0 %3881
  %3883 = vrot.lane.b32.xlu0 %v3411, 66
  %v3884 = vpop.permute.xlu0 %3883
  %3885 = vrot.lane.b32.xlu0 %v3412, 66
  %v3886 = vpop.permute.xlu0 %3885
  %3887 = vrot.lane.b32.xlu0 %v3413, 66
  %v3888 = vpop.permute.xlu0 %3887
  %3889 = vrot.lane.b32.xlu0 %v3414, 66
  %v3890 = vpop.permute.xlu0 %3889
  %3891 = vrot.lane.b32.xlu0 %v3415, 66
  %v3892 = vpop.permute.xlu0 %3891
  %3893 = vrot.lane.b32.xlu0 %v3416, 66
  %v3894 = vpop.permute.xlu0 %3893
  %3895 = vrot.lane.b32.xlu0 %v3417, 66
  %v3896 = vpop.permute.xlu0 %3895
  %3897 = vrot.lane.b32.xlu0 %v3418, 66
  %v3898 = vpop.permute.xlu0 %3897
  %3899 = vrot.lane.b32.xlu0 %v3419, 66
  %v3900 = vpop.permute.xlu0 %3899
  %3901 = vrot.lane.b32.xlu0 %v3420, 66
  %v3902 = vpop.permute.xlu0 %3901
  %3903 = vrot.lane.b32.xlu0 %v3248, 66
  %v3904 = vpop.permute.xlu0 %3903
  %3905 = vrot.lane.b32.xlu0 %v3421, 66
  %v3906 = vpop.permute.xlu0 %3905
  %3907 = vrot.lane.b32.xlu0 %v3422, 66
  %v3908 = vpop.permute.xlu0 %3907
  %3909 = vrot.lane.b32.xlu0 %v3423, 66
  %v3910 = vpop.permute.xlu0 %3909
  %3911 = vrot.lane.b32.xlu0 %v3424, 66
  %v3912 = vpop.permute.xlu0 %3911
  %3913 = vrot.lane.b32.xlu0 %v3425, 66
  %v3914 = vpop.permute.xlu0 %3913
  %3915 = vrot.lane.b32.xlu0 %v3426, 66
  %v3916 = vpop.permute.xlu0 %3915
  %3917 = vrot.lane.b32.xlu0 %v3427, 66
  %v3918 = vpop.permute.xlu0 %3917
  %3919 = vrot.lane.b32.xlu0 %v3428, 66
  %v3920 = vpop.permute.xlu0 %3919
  %3921 = vrot.lane.b32.xlu0 %v3429, 66
  %v3922 = vpop.permute.xlu0 %3921
  %3923 = vrot.lane.b32.xlu0 %v3430, 66
  %v3924 = vpop.permute.xlu0 %3923
  %3925 = vrot.lane.b32.xlu0 %v3270, 66
  %v3926 = vpop.permute.xlu0 %3925
  %3927 = vrot.lane.b32.xlu0 %v3431, 66
  %v3928 = vpop.permute.xlu0 %3927
  %3929 = vrot.lane.b32.xlu0 %v3432, 66
  %v3930 = vpop.permute.xlu0 %3929
  %3931 = vrot.lane.b32.xlu0 %v3433, 66
  %v3932 = vpop.permute.xlu0 %3931
  %3933 = vrot.lane.b32.xlu0 %v3434, 66
  %v3934 = vpop.permute.xlu0 %3933
  %3935 = vrot.lane.b32.xlu0 %v3435, 66
  %v3936 = vpop.permute.xlu0 %3935
  %3937 = vrot.lane.b32.xlu0 %v3436, 66
  %v3938 = vpop.permute.xlu0 %3937
  %3939 = vrot.lane.b32.xlu0 %v3437, 66
  %v3940 = vpop.permute.xlu0 %3939
  %3941 = vrot.lane.b32.xlu0 %v3438, 66
  %v3942 = vpop.permute.xlu0 %3941
  %3943 = vrot.lane.b32.xlu0 %v3439, 66
  %v3944 = vpop.permute.xlu0 %3943
  %3945 = vrot.lane.b32.xlu0 %v3440, 66
  %v3946 = vpop.permute.xlu0 %3945
  %3947 = vrot.lane.b32.xlu0 %v3292, 66
  %v3948 = vpop.permute.xlu0 %3947
  %3949 = vrot.lane.b32.xlu0 %v3441, 66
  %v3950 = vpop.permute.xlu0 %3949
  %3951 = vrot.lane.b32.xlu0 %v3442, 66
  %v3952 = vpop.permute.xlu0 %3951
  %3953 = vrot.lane.b32.xlu0 %v3443, 66
  %v3954 = vpop.permute.xlu0 %3953
  %3955 = vrot.lane.b32.xlu0 %v3444, 66
  %v3956 = vpop.permute.xlu0 %3955
  %3957 = vrot.lane.b32.xlu0 %v3445, 66
  %v3958 = vpop.permute.xlu0 %3957
  %3959 = vrot.lane.b32.xlu0 %v3446, 66
  %v3960 = vpop.permute.xlu0 %3959
  %3961 = vrot.lane.b32.xlu0 %v3447, 66
  %v3962 = vpop.permute.xlu0 %3961
  %3963 = vrot.lane.b32.xlu0 %v3448, 66
  %v3964 = vpop.permute.xlu0 %3963
  %3965 = vrot.lane.b32.xlu0 %v3449, 66
  %v3966 = vpop.permute.xlu0 %3965
  %3967 = vrot.lane.b32.xlu0 %v3450, 66
  %v3968 = vpop.permute.xlu0 %3967
  %3969 = vrot.lane.b32.xlu0 %v3314, 66
  %v3970 = vpop.permute.xlu0 %3969
  %3971 = vrot.lane.b32.xlu0 %v3451, 66
  %v3972 = vpop.permute.xlu0 %3971
  %3973 = vrot.lane.b32.xlu0 %v3452, 66
  %v3974 = vpop.permute.xlu0 %3973
  %3975 = vrot.lane.b32.xlu0 %v3453, 66
  %v3976 = vpop.permute.xlu0 %3975
  %3977 = vrot.lane.b32.xlu0 %v3454, 66
  %v3978 = vpop.permute.xlu0 %3977
  %3979 = vrot.lane.b32.xlu0 %v3455, 66
  %v3980 = vpop.permute.xlu0 %3979
  %3981 = vrot.lane.b32.xlu0 %v3456, 66
  %v3982 = vpop.permute.xlu0 %3981
  %3983 = vrot.lane.b32.xlu0 %v3457, 66
  %v3984 = vpop.permute.xlu0 %3983
  %3985 = vrot.lane.b32.xlu0 %v3458, 66
  %v3986 = vpop.permute.xlu0 %3985
  %3987 = vrot.lane.b32.xlu0 %v3459, 66
  %v3988 = vpop.permute.xlu0 %3987
  %3989 = vrot.lane.b32.xlu0 %v3460, 66
  %v3990 = vpop.permute.xlu0 %3989
  %3991 = vrot.lane.b32.xlu0 %v3336, 66
  %v3992 = vpop.permute.xlu0 %3991
  %3993 = vrot.lane.b32.xlu0 %v3461, 66
  %v3994 = vpop.permute.xlu0 %3993
  %3995 = vrot.lane.b32.xlu0 %v3462, 66
  %v3996 = vpop.permute.xlu0 %3995
  %3997 = vrot.lane.b32.xlu0 %v3463, 66
  %v3998 = vpop.permute.xlu0 %3997
  %3999 = vrot.lane.b32.xlu0 %v3464, 66
  %v4000 = vpop.permute.xlu0 %3999
  %4001 = vrot.lane.b32.xlu0 %v3465, 66
  %v4002 = vpop.permute.xlu0 %4001
  %4003 = vrot.lane.b32.xlu0 %v3466, 66
  %v4004 = vpop.permute.xlu0 %4003
  %4005 = vrot.lane.b32.xlu0 %v3467, 66
  %v4006 = vpop.permute.xlu0 %4005
  %4007 = vrot.lane.b32.xlu0 %v3468, 66
  %v4008 = vpop.permute.xlu0 %4007
  %4009 = vrot.lane.b32.xlu0 %v3469, 66
  %v4010 = vpop.permute.xlu0 %4009
  %4011 = vrot.lane.b32.xlu0 %v3470, 66
  %v4012 = vpop.permute.xlu0 %4011
  %4013 = vrot.lane.b32.xlu0 %v3358, 66
  %v4014 = vpop.permute.xlu0 %4013
  %4015 = vrot.lane.b32.xlu0 %v3471, 66
  %v4016 = vpop.permute.xlu0 %4015
  %4017 = vrot.lane.b32.xlu0 %v3472, 66
  %v4018 = vpop.permute.xlu0 %4017
  %4019 = vrot.lane.b32.xlu0 %v3473, 66
  %v4020 = vpop.permute.xlu0 %4019
  %4021 = vrot.lane.b32.xlu0 %v3474, 66
  %v4022 = vpop.permute.xlu0 %4021
  %4023 = vrot.lane.b32.xlu0 %v3475, 66
  %v4024 = vpop.permute.xlu0 %4023
  %4025 = vrot.lane.b32.xlu0 %v3476, 66
  %v4026 = vpop.permute.xlu0 %4025
  %4027 = vrot.lane.b32.xlu0 %v3477, 66
  %v4028 = vpop.permute.xlu0 %4027
  %4029 = vrot.lane.b32.xlu0 %v3478, 66
  %v4030 = vpop.permute.xlu0 %4029
  %4031 = vrot.lane.b32.xlu0 %v3479, 66
  %v4032 = vpop.permute.xlu0 %4031
  %4033 = vrot.lane.b32.xlu0 %v3480, 66
  %v4034 = vpop.permute.xlu0 %4033
  %4035 = vrot.lane.b32.xlu0 %v3380, 66
  %v4036 = vpop.permute.xlu0 %4035
  %4037 = vrot.lane.b32.xlu0 %v3481, 66
  %v4038 = vpop.permute.xlu0 %4037
  %4039 = vrot.lane.b32.xlu0 %v3482, 66
  %v4040 = vpop.permute.xlu0 %4039
  %4041 = vrot.lane.b32.xlu0 %v3483, 66
  %v4042 = vpop.permute.xlu0 %4041
  %4043 = vrot.lane.b32.xlu0 %v3484, 66
  %v4044 = vpop.permute.xlu0 %4043
  %4045 = vrot.lane.b32.xlu0 %v3485, 66
  %v4046 = vpop.permute.xlu0 %4045
  %4047 = vrot.lane.b32.xlu0 %v3486, 66
  %v4048 = vpop.permute.xlu0 %4047
  %4049 = vrot.lane.b32.xlu0 %v3487, 66
  %v4050 = vpop.permute.xlu0 %4049
  %4051 = vrot.lane.b32.xlu0 %v3488, 66
  %v4052 = vpop.permute.xlu0 %4051
  %4053 = vrot.lane.b32.xlu0 %v3489, 66
  %v4054 = vpop.permute.xlu0 %4053
  %4055 = vrot.lane.b32.xlu0 %v3490, 66
  %v4056 = vpop.permute.xlu0 %4055
  %v4057 = vsel %vm1640, %v3508, %v3510
  %v4058 = vsel %vm1640, %v3510, %v3512
  %v4059 = vsel %vm1640, %v3512, %v3514
  %v4060 = vsel %vm1640, %v3514, %v3516
  %v4061 = vsel %vm1640, %v3516, %v3518
  %v4062 = vsel %vm1640, %v3518, %v3520
  %v4063 = vsel %vm1640, %v3520, %v3522
  %v4064 = vsel %vm1640, %v3522, %v3524
  %v4065 = vsel %vm1640, %v3524, %v3526
  %v4066 = vsel %vm1640, %v3526, %v3528
  %v4067 = vsel %vm1640, %v3530, %v3532
  %v4068 = vsel %vm1640, %v3532, %v3534
  %v4069 = vsel %vm1640, %v3534, %v3536
  %v4070 = vsel %vm1640, %v3536, %v3538
  %v4071 = vsel %vm1640, %v3538, %v3540
  %v4072 = vsel %vm1640, %v3540, %v3542
  %v4073 = vsel %vm1640, %v3542, %v3544
  %v4074 = vsel %vm1640, %v3544, %v3546
  %v4075 = vsel %vm1640, %v3546, %v3548
  %v4076 = vsel %vm1640, %v3548, %v3550
  %v4077 = vsel %vm1640, %v3552, %v3554
  %v4078 = vsel %vm1640, %v3554, %v3556
  %v4079 = vsel %vm1640, %v3556, %v3558
  %v4080 = vsel %vm1640, %v3558, %v3560
  %v4081 = vsel %vm1640, %v3560, %v3562
  %v4082 = vsel %vm1640, %v3562, %v3564
  %v4083 = vsel %vm1640, %v3564, %v3566
  %v4084 = vsel %vm1640, %v3566, %v3568
  %v4085 = vsel %vm1640, %v3568, %v3570
  %v4086 = vsel %vm1640, %v3570, %v3572
  %v4087 = vsel %vm1640, %v3574, %v3576
  %v4088 = vsel %vm1640, %v3576, %v3578
  %v4089 = vsel %vm1640, %v3578, %v3580
  %v4090 = vsel %vm1640, %v3580, %v3582
  %v4091 = vsel %vm1640, %v3582, %v3584
  %v4092 = vsel %vm1640, %v3584, %v3586
  %v4093 = vsel %vm1640, %v3586, %v3588
  %v4094 = vsel %vm1640, %v3588, %v3590
  %v4095 = vsel %vm1640, %v3590, %v3592
  %v4096 = vsel %vm1640, %v3592, %v3594
  %v4097 = vsel %vm1640, %v3596, %v3598
  %v4098 = vsel %vm1640, %v3598, %v3600
  %v4099 = vsel %vm1640, %v3600, %v3602
  %v4100 = vsel %vm1640, %v3602, %v3604
  %v4101 = vsel %vm1640, %v3604, %v3606
  %v4102 = vsel %vm1640, %v3606, %v3608
  %v4103 = vsel %vm1640, %v3608, %v3610
  %v4104 = vsel %vm1640, %v3610, %v3612
  %v4105 = vsel %vm1640, %v3612, %v3614
  %v4106 = vsel %vm1640, %v3614, %v3616
  %v4107 = vsel %vm1640, %v3618, %v3620
  %v4108 = vsel %vm1640, %v3620, %v3622
  %v4109 = vsel %vm1640, %v3622, %v3624
  %v4110 = vsel %vm1640, %v3624, %v3626
  %v4111 = vsel %vm1640, %v3626, %v3628
  %v4112 = vsel %vm1640, %v3628, %v3630
  %v4113 = vsel %vm1640, %v3630, %v3632
  %v4114 = vsel %vm1640, %v3632, %v3634
  %v4115 = vsel %vm1640, %v3634, %v3636
  %v4116 = vsel %vm1640, %v3636, %v3638
  %v4117 = vsel %vm1640, %v3640, %v3642
  %v4118 = vsel %vm1640, %v3642, %v3644
  %v4119 = vsel %vm1640, %v3644, %v3646
  %v4120 = vsel %vm1640, %v3646, %v3648
  %v4121 = vsel %vm1640, %v3648, %v3650
  %v4122 = vsel %vm1640, %v3650, %v3652
  %v4123 = vsel %vm1640, %v3652, %v3654
  %v4124 = vsel %vm1640, %v3654, %v3656
  %v4125 = vsel %vm1640, %v3656, %v3658
  %v4126 = vsel %vm1640, %v3658, %v3660
  %v4127 = vsel %vm1640, %v3662, %v3664
  %v4128 = vsel %vm1640, %v3664, %v3666
  %v4129 = vsel %vm1640, %v3666, %v3668
  %v4130 = vsel %vm1640, %v3668, %v3670
  %v4131 = vsel %vm1640, %v3670, %v3672
  %v4132 = vsel %vm1640, %v3672, %v3674
  %v4133 = vsel %vm1640, %v3674, %v3676
  %v4134 = vsel %vm1640, %v3676, %v3678
  %v4135 = vsel %vm1640, %v3678, %v3680
  %v4136 = vsel %vm1640, %v3680, %v3682
  %v4137 = vsel %vm1640, %v3684, %v3686
  %v4138 = vsel %vm1640, %v3686, %v3688
  %v4139 = vsel %vm1640, %v3688, %v3690
  %v4140 = vsel %vm1640, %v3690, %v3692
  %v4141 = vsel %vm1640, %v3692, %v3694
  %v4142 = vsel %vm1640, %v3694, %v3696
  %v4143 = vsel %vm1640, %v3696, %v3698
  %v4144 = vsel %vm1640, %v3698, %v3700
  %v4145 = vsel %vm1640, %v3700, %v3702
  %v4146 = vsel %vm1640, %v3702, %v3704
  %v4147 = vsel %vm1640, %v3706, %v3708
  %v4148 = vsel %vm1640, %v3708, %v3710
  %v4149 = vsel %vm1640, %v3710, %v3712
  %v4150 = vsel %vm1640, %v3712, %v3714
  %v4151 = vsel %vm1640, %v3714, %v3716
  %v4152 = vsel %vm1640, %v3716, %v3718
  %v4153 = vsel %vm1640, %v3718, %v3720
  %v4154 = vsel %vm1640, %v3720, %v3722
  %v4155 = vsel %vm1640, %v3722, %v3724
  %v4156 = vsel %vm1640, %v3724, %v3726
  %v4157 = vsel %vm1640, %v3728, %v3730
  %v4158 = vsel %vm1640, %v3730, %v3732
  %v4159 = vsel %vm1640, %v3732, %v3734
  %v4160 = vsel %vm1640, %v3734, %v3736
  %v4161 = vsel %vm1640, %v3736, %v3738
  %v4162 = vsel %vm1640, %v3738, %v3740
  %v4163 = vsel %vm1640, %v3740, %v3742
  %v4164 = vsel %vm1640, %v3742, %v3744
  %v4165 = vsel %vm1640, %v3744, %v3746
  %v4166 = vsel %vm1640, %v3746, %v3748
  %v4167 = vsel %vm1640, %v3750, %v3752
  %v4168 = vsel %vm1640, %v3752, %v3754
  %v4169 = vsel %vm1640, %v3754, %v3756
  %v4170 = vsel %vm1640, %v3756, %v3758
  %v4171 = vsel %vm1640, %v3758, %v3760
  %v4172 = vsel %vm1640, %v3760, %v3762
  %v4173 = vsel %vm1640, %v3762, %v3764
  %v4174 = vsel %vm1640, %v3764, %v3766
  %v4175 = vsel %vm1640, %v3766, %v3768
  %v4176 = vsel %vm1640, %v3768, %v3770
  %v4177 = vsel %vm1640, %v3772, %v3774
  %v4178 = vsel %vm1640, %v3774, %v3776
  %v4179 = vsel %vm1640, %v3776, %v3778
  %v4180 = vsel %vm1640, %v3778, %v3780
  %v4181 = vsel %vm1640, %v3780, %v3782
  %v4182 = vsel %vm1640, %v3782, %v3784
  %v4183 = vsel %vm1640, %v3784, %v3786
  %v4184 = vsel %vm1640, %v3786, %v3788
  %v4185 = vsel %vm1640, %v3788, %v3790
  %v4186 = vsel %vm1640, %v3790, %v3792
  %v4187 = vsel %vm1640, %v3794, %v3796
  %v4188 = vsel %vm1640, %v3796, %v3798
  %v4189 = vsel %vm1640, %v3798, %v3800
  %v4190 = vsel %vm1640, %v3800, %v3802
  %v4191 = vsel %vm1640, %v3802, %v3804
  %v4192 = vsel %vm1640, %v3804, %v3806
  %v4193 = vsel %vm1640, %v3806, %v3808
  %v4194 = vsel %vm1640, %v3808, %v3810
  %v4195 = vsel %vm1640, %v3810, %v3812
  %v4196 = vsel %vm1640, %v3812, %v3814
  %v4197 = vsel %vm1640, %v3816, %v3818
  %v4198 = vsel %vm1640, %v3818, %v3820
  %v4199 = vsel %vm1640, %v3820, %v3822
  %v4200 = vsel %vm1640, %v3822, %v3824
  %v4201 = vsel %vm1640, %v3824, %v3826
  %v4202 = vsel %vm1640, %v3826, %v3828
  %v4203 = vsel %vm1640, %v3828, %v3830
  %v4204 = vsel %vm1640, %v3830, %v3832
  %v4205 = vsel %vm1640, %v3832, %v3834
  %v4206 = vsel %vm1640, %v3834, %v3836
  %v4207 = vsel %vm1640, %v3838, %v3840
  %v4208 = vsel %vm1640, %v3840, %v3842
  %v4209 = vsel %vm1640, %v3842, %v3844
  %v4210 = vsel %vm1640, %v3844, %v3846
  %v4211 = vsel %vm1640, %v3846, %v3848
  %v4212 = vsel %vm1640, %v3848, %v3850
  %v4213 = vsel %vm1640, %v3850, %v3852
  %v4214 = vsel %vm1640, %v3852, %v3854
  %v4215 = vsel %vm1640, %v3854, %v3856
  %v4216 = vsel %vm1640, %v3856, %v3858
  %v4217 = vsel %vm1640, %v3860, %v3862
  %v4218 = vsel %vm1640, %v3862, %v3864
  %v4219 = vsel %vm1640, %v3864, %v3866
  %v4220 = vsel %vm1640, %v3866, %v3868
  %v4221 = vsel %vm1640, %v3868, %v3870
  %v4222 = vsel %vm1640, %v3870, %v3872
  %v4223 = vsel %vm1640, %v3872, %v3874
  %v4224 = vsel %vm1640, %v3874, %v3876
  %v4225 = vsel %vm1640, %v3876, %v3878
  %v4226 = vsel %vm1640, %v3878, %v3880
  %v4227 = vsel %vm1640, %v3882, %v3884
  %v4228 = vsel %vm1640, %v3884, %v3886
  %v4229 = vsel %vm1640, %v3886, %v3888
  %v4230 = vsel %vm1640, %v3888, %v3890
  %v4231 = vsel %vm1640, %v3890, %v3892
  %v4232 = vsel %vm1640, %v3892, %v3894
  %v4233 = vsel %vm1640, %v3894, %v3896
  %v4234 = vsel %vm1640, %v3896, %v3898
  %v4235 = vsel %vm1640, %v3898, %v3900
  %v4236 = vsel %vm1640, %v3900, %v3902
  %v4237 = vsel %vm1640, %v3904, %v3906
  %v4238 = vsel %vm1640, %v3906, %v3908
  %v4239 = vsel %vm1640, %v3908, %v3910
  %v4240 = vsel %vm1640, %v3910, %v3912
  %v4241 = vsel %vm1640, %v3912, %v3914
  %v4242 = vsel %vm1640, %v3914, %v3916
  %v4243 = vsel %vm1640, %v3916, %v3918
  %v4244 = vsel %vm1640, %v3918, %v3920
  %v4245 = vsel %vm1640, %v3920, %v3922
  %v4246 = vsel %vm1640, %v3922, %v3924
  %v4247 = vsel %vm1640, %v3926, %v3928
  %v4248 = vsel %vm1640, %v3928, %v3930
  %v4249 = vsel %vm1640, %v3930, %v3932
  %v4250 = vsel %vm1640, %v3932, %v3934
  %v4251 = vsel %vm1640, %v3934, %v3936
  %v4252 = vsel %vm1640, %v3936, %v3938
  %v4253 = vsel %vm1640, %v3938, %v3940
  %v4254 = vsel %vm1640, %v3940, %v3942
  %v4255 = vsel %vm1640, %v3942, %v3944
  %v4256 = vsel %vm1640, %v3944, %v3946
  %v4257 = vsel %vm1640, %v3948, %v3950
  %v4258 = vsel %vm1640, %v3950, %v3952
  %v4259 = vsel %vm1640, %v3952, %v3954
  %v4260 = vsel %vm1640, %v3954, %v3956
  %v4261 = vsel %vm1640, %v3956, %v3958
  %v4262 = vsel %vm1640, %v3958, %v3960
  %v4263 = vsel %vm1640, %v3960, %v3962
  %v4264 = vsel %vm1640, %v3962, %v3964
  %v4265 = vsel %vm1640, %v3964, %v3966
  %v4266 = vsel %vm1640, %v3966, %v3968
  %v4267 = vsel %vm1640, %v3970, %v3972
  %v4268 = vsel %vm1640, %v3972, %v3974
  %v4269 = vsel %vm1640, %v3974, %v3976
  %v4270 = vsel %vm1640, %v3976, %v3978
  %v4271 = vsel %vm1640, %v3978, %v3980
  %v4272 = vsel %vm1640, %v3980, %v3982
  %v4273 = vsel %vm1640, %v3982, %v3984
  %v4274 = vsel %vm1640, %v3984, %v3986
  %v4275 = vsel %vm1640, %v3986, %v3988
  %v4276 = vsel %vm1640, %v3988, %v3990
  %v4277 = vsel %vm1640, %v3992, %v3994
  %v4278 = vsel %vm1640, %v3994, %v3996
  %v4279 = vsel %vm1640, %v3996, %v3998
  %v4280 = vsel %vm1640, %v3998, %v4000
  %v4281 = vsel %vm1640, %v4000, %v4002
  %v4282 = vsel %vm1640, %v4002, %v4004
  %v4283 = vsel %vm1640, %v4004, %v4006
  %v4284 = vsel %vm1640, %v4006, %v4008
  %v4285 = vsel %vm1640, %v4008, %v4010
  %v4286 = vsel %vm1640, %v4010, %v4012
  %v4287 = vsel %vm1640, %v4014, %v4016
  %v4288 = vsel %vm1640, %v4016, %v4018
  %v4289 = vsel %vm1640, %v4018, %v4020
  %v4290 = vsel %vm1640, %v4020, %v4022
  %v4291 = vsel %vm1640, %v4022, %v4024
  %v4292 = vsel %vm1640, %v4024, %v4026
  %v4293 = vsel %vm1640, %v4026, %v4028
  %v4294 = vsel %vm1640, %v4028, %v4030
  %v4295 = vsel %vm1640, %v4030, %v4032
  %v4296 = vsel %vm1640, %v4032, %v4034
  %v4297 = vsel %vm1640, %v4036, %v4038
  %v4298 = vsel %vm1640, %v4038, %v4040
  %v4299 = vsel %vm1640, %v4040, %v4042
  %v4300 = vsel %vm1640, %v4042, %v4044
  %v4301 = vsel %vm1640, %v4044, %v4046
  %v4302 = vsel %vm1640, %v4046, %v4048
  %v4303 = vsel %vm1640, %v4048, %v4050
  %v4304 = vsel %vm1640, %v4050, %v4052
  %v4305 = vsel %vm1640, %v4052, %v4054
  %v4306 = vsel %vm1640, %v4054, %v4056
  %v4558 = vsel %vm2141, %v3492, 0
  %v4561 = vsel %vm2141, %v3494, 0
  %4563 = vmatprep.subr.mxu0 %v4058
  %4564 = vmatpush1.msra.mxu0 %v4057
  %4565 = vmatprep.subr.mxu0 %v4068
  %4566 = vmatpush1.msra.mxu0 %v4067
  %4567 = vmatprep.subr.mxu0 %v4078
  %4568 = vmatpush1.msra.mxu0 %v4077
  %4569 = vmatprep.subr.mxu0 %v4088
  %4570 = vmatpush1.msra.mxu0 %v4087
  %4571 = vmatprep.subr.mxu0 %v4098
  %4572 = vmatpush1.msra.mxu0 %v4097
  %4573 = vmatprep.subr.mxu0 %v4108
  %4574 = vmatpush1.msra.mxu0 %v4107
  %4575 = vmatprep.subr.mxu0 %v4118
  %4576 = vmatpush1.msra.mxu0 %v4117
  %4577 = vmatprep.subr.mxu0 %v4128
  %4578 = vmatpush1.msra.mxu0 %v4127
  %4579 = vmatprep.subr.mxu0 %v4138
  %4580 = vmatpush1.msra.mxu0 %v4137
  %4581 = vmatprep.subr.mxu0 %v4148
  %4582 = vmatpush1.msra.mxu0 %v4147
  %4583 = vmatprep.subr.mxu0 %v4158
  %4584 = vmatpush1.msra.mxu0 %v4157
  %4585 = vmatprep.subr.mxu0 %v4168
  %4586 = vmatpush1.msra.mxu0 %v4167
  %4587 = vmatprep.subr.mxu0 %v4178
  %4588 = vmatpush1.msra.mxu0 %v4177
  %4589 = vmatprep.subr.mxu0 %v4188
  %4590 = vmatpush1.msra.mxu0 %v4187
  %4591 = vmatprep.subr.mxu0 %v4198
  %4592 = vmatpush1.msra.mxu0 %v4197
  %4593 = vmatprep.subr.mxu0 %v4208
  %4594 = vmatpush1.msra.mxu0 %v4207
  %4595 = vmatprep.subr.mxu0 %v4218
  %4596 = vmatpush1.msra.mxu0 %v4217
  %4597 = vmatprep.subr.mxu0 %v4228
  %4598 = vmatpush1.msra.mxu0 %v4227
  %4599 = vmatprep.subr.mxu0 %v4238
  %4600 = vmatpush1.msra.mxu0 %v4237
  %4601 = vmatprep.subr.mxu0 %v4248
  %4602 = vmatpush1.msra.mxu0 %v4247
  %4603 = vmatprep.subr.mxu0 %v4258
  %4604 = vmatpush1.msra.mxu0 %v4257
  %4605 = vmatprep.subr.mxu0 %v4268
  %4606 = vmatpush1.msra.mxu0 %v4267
  %4607 = vmatprep.subr.mxu0 %v4278
  %4608 = vmatpush1.msra.mxu0 %v4277
  %4609 = vmatprep.subr.mxu0 %v4288
  %4610 = vmatpush1.msra.mxu0 %v4287
  %4611 = vmatprep.subr.mxu0 %v4298
  %4612 = vmatpush1.msra.mxu0 %v4297
  %4613 = vmatprep.subr.mxu0 0.0
  %4614 = vmatpush1.msra.mxu0 0.0
  %4615 = vmatprep.subr.mxu0 0.0
  %4616 = vmatpush1.msra.mxu0 0.0
  %4617 = vmatprep.subr.mxu0 0.0
  %4618 = vmatpush1.msra.mxu0 0.0
  %4619 = vmatprep.subr.mxu0 0.0
  %4620 = vmatpush1.msra.mxu0 0.0
  %4621 = vmatprep.subr.mxu0 0.0
  %4622 = vmatpush1.msra.mxu0 0.0
  %4623 = vmatprep.subr.mxu0 0.0
  %4624 = vmatpush1.msra.mxu0 0.0
  %4625 = vmatprep.subr.mxu0 0.0
  %4626 = vmatpush1.msra.mxu0 0.0
  %4627 = vmatprep.mubr.f32.mxu0 %v4558
  %4628 = vmatmul.mubr.f32.gmra.mrb[0].mxu0 %v3491
  %v4629 = vpop.f32.mrb[0].mxu0
  %v4630 = vadd.f32 %v3500, %v4629
  %v4631 = vpop.f32.mrb[0].mxu0
  %v4632 = vadd.f32 %v3500, %v4631
  %4633 = vmatprep.mubr.f32.mxu0 %v4561
  %4634 = vmatmul.mubr.f32.gmra.mrb[0].mxu0 %v3493
  %v4635 = vpop.f32.mrb[0].mxu0
  %v4636 = vadd.f32 %v3505, %v4635
  %v4637 = vpop.f32.mrb[0].mxu0
  %v4638 = vadd.f32 %v3505, %v4637
  %4639 = vdwg.mxu0
  %4640 = vmatprep.subr.mxu0 %v4060
  %4641 = vmatpush1.msra.mxu0 %v4059
  %4642 = vmatprep.subr.mxu0 %v4070
  %4643 = vmatpush1.msra.mxu0 %v4069
  %4644 = vmatprep.subr.mxu0 %v4080
  %4645 = vmatpush1.msra.mxu0 %v4079
  %4646 = vmatprep.subr.mxu0 %v4090
  %4647 = vmatpush1.msra.mxu0 %v4089
  %4648 = vmatprep.subr.mxu0 %v4100
  %4649 = vmatpush1.msra.mxu0 %v4099
  %4650 = vmatprep.subr.mxu0 %v4110
  %4651 = vmatpush1.msra.mxu0 %v4109
  %4652 = vmatprep.subr.mxu0 %v4120
  %4653 = vmatpush1.msra.mxu0 %v4119
  %4654 = vmatprep.subr.mxu0 %v4130
  %4655 = vmatpush1.msra.mxu0 %v4129
  %4656 = vmatprep.subr.mxu0 %v4140
  %4657 = vmatpush1.msra.mxu0 %v4139
  %4658 = vmatprep.subr.mxu0 %v4150
  %4659 = vmatpush1.msra.mxu0 %v4149
  %4660 = vmatprep.subr.mxu0 %v4160
  %4661 = vmatpush1.msra.mxu0 %v4159
  %4662 = vmatprep.subr.mxu0 %v4170
  %4663 = vmatpush1.msra.mxu0 %v4169
  %4664 = vmatprep.subr.mxu0 %v4180
  %4665 = vmatpush1.msra.mxu0 %v4179
  %4666 = vmatprep.subr.mxu0 %v4190
  %4667 = vmatpush1.msra.mxu0 %v4189
  %4668 = vmatprep.subr.mxu0 %v4200
  %4669 = vmatpush1.msra.mxu0 %v4199
  %4670 = vmatprep.subr.mxu0 %v4210
  %4671 = vmatpush1.msra.mxu0 %v4209
  %4672 = vmatprep.subr.mxu0 %v4220
  %4673 = vmatpush1.msra.mxu0 %v4219
  %4674 = vmatprep.subr.mxu0 %v4230
  %4675 = vmatpush1.msra.mxu0 %v4229
  %4676 = vmatprep.subr.mxu0 %v4240
  %4677 = vmatpush1.msra.mxu0 %v4239
  %4678 = vmatprep.subr.mxu0 %v4250
  %4679 = vmatpush1.msra.mxu0 %v4249
  %4680 = vmatprep.subr.mxu0 %v4260
  %4681 = vmatpush1.msra.mxu0 %v4259
  %4682 = vmatprep.subr.mxu0 %v4270
  %4683 = vmatpush1.msra.mxu0 %v4269
  %4684 = vmatprep.subr.mxu0 %v4280
  %4685 = vmatpush1.msra.mxu0 %v4279
  %4686 = vmatprep.subr.mxu0 %v4290
  %4687 = vmatpush1.msra.mxu0 %v4289
  %4688 = vmatprep.subr.mxu0 %v4300
  %4689 = vmatpush1.msra.mxu0 %v4299
  %4690 = vmatprep.subr.mxu0 0.0
  %4691 = vmatpush1.msra.mxu0 0.0
  %4692 = vmatprep.subr.mxu0 0.0
  %4693 = vmatpush1.msra.mxu0 0.0
  %4694 = vmatprep.subr.mxu0 0.0
  %4695 = vmatpush1.msra.mxu0 0.0
  %4696 = vmatprep.subr.mxu0 0.0
  %4697 = vmatpush1.msra.mxu0 0.0
  %4698 = vmatprep.subr.mxu0 0.0
  %4699 = vmatpush1.msra.mxu0 0.0
  %4700 = vmatprep.subr.mxu0 0.0
  %4701 = vmatpush1.msra.mxu0 0.0
  %4702 = vmatprep.subr.mxu0 0.0
  %4703 = vmatpush1.msra.mxu0 0.0
  %4704 = vmatprep.mubr.f32.mxu0 %v4558
  %4705 = vmatmul.mubr.f32.gmra.mrb[0].mxu0 %v3491
  %v4706 = vpop.f32.mrb[0].mxu0
  %v4707 = vadd.f32 %v3500, %v4706
  %v4708 = vpop.f32.mrb[0].mxu0
  %v4709 = vadd.f32 %v3500, %v4708
  %4710 = vmatprep.mubr.f32.mxu0 %v4561
  %4711 = vmatmul.mubr.f32.gmra.mrb[0].mxu0 %v3493
  %v4712 = vpop.f32.mrb[0].mxu0
  %v4713 = vadd.f32 %v3505, %v4712
  %v4714 = vpop.f32.mrb[0].mxu0
  %v4715 = vadd.f32 %v3505, %v4714
  %4716 = vdwg.mxu0
  %4717 = vmatprep.subr.mxu0 %v4062
  %4718 = vmatpush1.msra.mxu0 %v4061
  %4719 = vmatprep.subr.mxu0 %v4072
  %4720 = vmatpush1.msra.mxu0 %v4071
  %4721 = vmatprep.subr.mxu0 %v4082
  %4722 = vmatpush1.msra.mxu0 %v4081
  %4723 = vmatprep.subr.mxu0 %v4092
  %4724 = vmatpush1.msra.mxu0 %v4091
  %4725 = vmatprep.subr.mxu0 %v4102
  %4726 = vmatpush1.msra.mxu0 %v4101
  %4727 = vmatprep.subr.mxu0 %v4112
  %4728 = vmatpush1.msra.mxu0 %v4111
  %4729 = vmatprep.subr.mxu0 %v4122
  %4730 = vmatpush1.msra.mxu0 %v4121
  %4731 = vmatprep.subr.mxu0 %v4132
  %4732 = vmatpush1.msra.mxu0 %v4131
  %4733 = vmatprep.subr.mxu0 %v4142
  %4734 = vmatpush1.msra.mxu0 %v4141
  %4735 = vmatprep.subr.mxu0 %v4152
  %4736 = vmatpush1.msra.mxu0 %v4151
  %4737 = vmatprep.subr.mxu0 %v4162
  %4738 = vmatpush1.msra.mxu0 %v4161
  %4739 = vmatprep.subr.mxu0 %v4172
  %4740 = vmatpush1.msra.mxu0 %v4171
  %4741 = vmatprep.subr.mxu0 %v4182
  %4742 = vmatpush1.msra.mxu0 %v4181
  %4743 = vmatprep.subr.mxu0 %v4192
  %4744 = vmatpush1.msra.mxu0 %v4191
  %4745 = vmatprep.subr.mxu0 %v4202
  %4746 = vmatpush1.msra.mxu0 %v4201
  %4747 = vmatprep.subr.mxu0 %v4212
  %4748 = vmatpush1.msra.mxu0 %v4211
  %4749 = vmatprep.subr.mxu0 %v4222
  %4750 = vmatpush1.msra.mxu0 %v4221
  %4751 = vmatprep.subr.mxu0 %v4232
  %4752 = vmatpush1.msra.mxu0 %v4231
  %4753 = vmatprep.subr.mxu0 %v4242
  %4754 = vmatpush1.msra.mxu0 %v4241
  %4755 = vmatprep.subr.mxu0 %v4252
  %4756 = vmatpush1.msra.mxu0 %v4251
  %4757 = vmatprep.subr.mxu0 %v4262
  %4758 = vmatpush1.msra.mxu0 %v4261
  %4759 = vmatprep.subr.mxu0 %v4272
  %4760 = vmatpush1.msra.mxu0 %v4271
  %4761 = vmatprep.subr.mxu0 %v4282
  %4762 = vmatpush1.msra.mxu0 %v4281
  %4763 = vmatprep.subr.mxu0 %v4292
  %4764 = vmatpush1.msra.mxu0 %v4291
  %4765 = vmatprep.subr.mxu0 %v4302
  %4766 = vmatpush1.msra.mxu0 %v4301
  %4767 = vmatprep.subr.mxu0 0.0
  %4768 = vmatpush1.msra.mxu0 0.0
  %4769 = vmatprep.subr.mxu0 0.0
  %4770 = vmatpush1.msra.mxu0 0.0
  %4771 = vmatprep.subr.mxu0 0.0
  %4772 = vmatpush1.msra.mxu0 0.0
  %4773 = vmatprep.subr.mxu0 0.0
  %4774 = vmatpush1.msra.mxu0 0.0
  %4775 = vmatprep.subr.mxu0 0.0
  %4776 = vmatpush1.msra.mxu0 0.0
  %4777 = vmatprep.subr.mxu0 0.0
  %4778 = vmatpush1.msra.mxu0 0.0
  %4779 = vmatprep.subr.mxu0 0.0
  %4780 = vmatpush1.msra.mxu0 0.0
  %4781 = vmatprep.mubr.f32.mxu0 %v4558
  %4782 = vmatmul.mubr.f32.gmra.mrb[0].mxu0 %v3491
  %v4783 = vpop.f32.mrb[0].mxu0
  %v4784 = vadd.f32 %v3500, %v4783
  %v4785 = vpop.f32.mrb[0].mxu0
  %v4786 = vadd.f32 %v3500, %v4785
  %4787 = vmatprep.mubr.f32.mxu0 %v4561
  %4788 = vmatmul.mubr.f32.gmra.mrb[0].mxu0 %v3493
  %v4789 = vpop.f32.mrb[0].mxu0
  %v4790 = vadd.f32 %v3505, %v4789
  %v4791 = vpop.f32.mrb[0].mxu0
  %v4792 = vadd.f32 %v3505, %v4791
  %4793 = vdwg.mxu0
  %4794 = vmatprep.subr.mxu0 %v4064
  %4795 = vmatpush1.msra.mxu0 %v4063
  %4796 = vmatprep.subr.mxu0 %v4074
  %4797 = vmatpush1.msra.mxu0 %v4073
  %4798 = vmatprep.subr.mxu0 %v4084
  %4799 = vmatpush1.msra.mxu0 %v4083
  %4800 = vmatprep.subr.mxu0 %v4094
  %4801 = vmatpush1.msra.mxu0 %v4093
  %4802 = vmatprep.subr.mxu0 %v4104
  %4803 = vmatpush1.msra.mxu0 %v4103
  %4804 = vmatprep.subr.mxu0 %v4114
  %4805 = vmatpush1.msra.mxu0 %v4113
  %4806 = vmatprep.subr.mxu0 %v4124
  %4807 = vmatpush1.msra.mxu0 %v4123
  %4808 = vmatprep.subr.mxu0 %v4134
  %4809 = vmatpush1.msra.mxu0 %v4133
  %4810 = vmatprep.subr.mxu0 %v4144
  %4811 = vmatpush1.msra.mxu0 %v4143
  %4812 = vmatprep.subr.mxu0 %v4154
  %4813 = vmatpush1.msra.mxu0 %v4153
  %4814 = vmatprep.subr.mxu0 %v4164
  %4815 = vmatpush1.msra.mxu0 %v4163
  %4816 = vmatprep.subr.mxu0 %v4174
  %4817 = vmatpush1.msra.mxu0 %v4173
  %4818 = vmatprep.subr.mxu0 %v4184
  %4819 = vmatpush1.msra.mxu0 %v4183
  %4820 = vmatprep.subr.mxu0 %v4194
  %4821 = vmatpush1.msra.mxu0 %v4193
  %4822 = vmatprep.subr.mxu0 %v4204
  %4823 = vmatpush1.msra.mxu0 %v4203
  %4824 = vmatprep.subr.mxu0 %v4214
  %4825 = vmatpush1.msra.mxu0 %v4213
  %4826 = vmatprep.subr.mxu0 %v4224
  %4827 = vmatpush1.msra.mxu0 %v4223
  %4828 = vmatprep.subr.mxu0 %v4234
  %4829 = vmatpush1.msra.mxu0 %v4233
  %4830 = vmatprep.subr.mxu0 %v4244
  %4831 = vmatpush1.msra.mxu0 %v4243
  %4832 = vmatprep.subr.mxu0 %v4254
  %4833 = vmatpush1.msra.mxu0 %v4253
  %4834 = vmatprep.subr.mxu0 %v4264
  %4835 = vmatpush1.msra.mxu0 %v4263
  %4836 = vmatprep.subr.mxu0 %v4274
  %4837 = vmatpush1.msra.mxu0 %v4273
  %4838 = vmatprep.subr.mxu0 %v4284
  %4839 = vmatpush1.msra.mxu0 %v4283
  %4840 = vmatprep.subr.mxu0 %v4294
  %4841 = vmatpush1.msra.mxu0 %v4293
  %4842 = vmatprep.subr.mxu0 %v4304
  %4843 = vmatpush1.msra.mxu0 %v4303
  %4844 = vmatprep.subr.mxu0 0.0
  %4845 = vmatpush1.msra.mxu0 0.0
  %4846 = vmatprep.subr.mxu0 0.0
  %4847 = vmatpush1.msra.mxu0 0.0
  %4848 = vmatprep.subr.mxu0 0.0
  %4849 = vmatpush1.msra.mxu0 0.0
  %4850 = vmatprep.subr.mxu0 0.0
  %4851 = vmatpush1.msra.mxu0 0.0
  %4852 = vmatprep.subr.mxu0 0.0
  %4853 = vmatpush1.msra.mxu0 0.0
  %4854 = vmatprep.subr.mxu0 0.0
  %4855 = vmatpush1.msra.mxu0 0.0
  %4856 = vmatprep.subr.mxu0 0.0
  %4857 = vmatpush1.msra.mxu0 0.0
  %4858 = vmatprep.mubr.f32.mxu0 %v4558
  %4859 = vmatmul.mubr.f32.gmra.mrb[0].mxu0 %v3491
  %v4860 = vpop.f32.mrb[0].mxu0
  %v4861 = vadd.f32 %v3500, %v4860
  %v4862 = vpop.f32.mrb[0].mxu0
  %v4863 = vadd.f32 %v3500, %v4862
  %4864 = vmatprep.mubr.f32.mxu0 %v4561
  %4865 = vmatmul.mubr.f32.gmra.mrb[0].mxu0 %v3493
  %v4866 = vpop.f32.mrb[0].mxu0
  %v4867 = vadd.f32 %v3505, %v4866
  %v4868 = vpop.f32.mrb[0].mxu0
  %v4869 = vadd.f32 %v3505, %v4868
  %4870 = vdwg.mxu0
  %4871 = vmatprep.subr.mxu0 %v4066
  %4872 = vmatpush1.msra.mxu0 %v4065
  %4873 = vmatprep.subr.mxu0 %v4076
  %4874 = vmatpush1.msra.mxu0 %v4075
  %4875 = vmatprep.subr.mxu0 %v4086
  %4876 = vmatpush1.msra.mxu0 %v4085
  %4877 = vmatprep.subr.mxu0 %v4096
  %4878 = vmatpush1.msra.mxu0 %v4095
  %4879 = vmatprep.subr.mxu0 %v4106
  %4880 = vmatpush1.msra.mxu0 %v4105
  %4881 = vmatprep.subr.mxu0 %v4116
  %4882 = vmatpush1.msra.mxu0 %v4115
  %4883 = vmatprep.subr.mxu0 %v4126
  %4884 = vmatpush1.msra.mxu0 %v4125
  %4885 = vmatprep.subr.mxu0 %v4136
  %4886 = vmatpush1.msra.mxu0 %v4135
  %4887 = vmatprep.subr.mxu0 %v4146
  %4888 = vmatpush1.msra.mxu0 %v4145
  %4889 = vmatprep.subr.mxu0 %v4156
  %4890 = vmatpush1.msra.mxu0 %v4155
  %4891 = vmatprep.subr.mxu0 %v4166
  %4892 = vmatpush1.msra.mxu0 %v4165
  %4893 = vmatprep.subr.mxu0 %v4176
  %4894 = vmatpush1.msra.mxu0 %v4175
  %4895 = vmatprep.subr.mxu0 %v4186
  %4896 = vmatpush1.msra.mxu0 %v4185
  %4897 = vmatprep.subr.mxu0 %v4196
  %4898 = vmatpush1.msra.mxu0 %v4195
  %4899 = vmatprep.subr.mxu0 %v4206
  %4900 = vmatpush1.msra.mxu0 %v4205
  %4901 = vmatprep.subr.mxu0 %v4216
  %4902 = vmatpush1.msra.mxu0 %v4215
  %4903 = vmatprep.subr.mxu0 %v4226
  %4904 = vmatpush1.msra.mxu0 %v4225
  %4905 = vmatprep.subr.mxu0 %v4236
  %4906 = vmatpush1.msra.mxu0 %v4235
  %4907 = vmatprep.subr.mxu0 %v4246
  %4908 = vmatpush1.msra.mxu0 %v4245
  %4909 = vmatprep.subr.mxu0 %v4256
  %4910 = vmatpush1.msra.mxu0 %v4255
  %4911 = vmatprep.subr.mxu0 %v4266
  %4912 = vmatpush1.msra.mxu0 %v4265
  %4913 = vmatprep.subr.mxu0 %v4276
  %4914 = vmatpush1.msra.mxu0 %v4275
  %4915 = vmatprep.subr.mxu0 %v4286
  %4916 = vmatpush1.msra.mxu0 %v4285
  %4917 = vmatprep.subr.mxu0 %v4296
  %4918 = vmatpush1.msra.mxu0 %v4295
  %4919 = vmatprep.subr.mxu0 %v4306
  %4920 = vmatpush1.msra.mxu0 %v4305
  %4921 = vmatprep.subr.mxu0 0.0
  %4922 = vmatpush1.msra.mxu0 0.0
  %4923 = vmatprep.subr.mxu0 0.0
  %4924 = vmatpush1.msra.mxu0 0.0
  %4925 = vmatprep.subr.mxu0 0.0
  %4926 = vmatpush1.msra.mxu0 0.0
  %4927 = vmatprep.subr.mxu0 0.0
  %4928 = vmatpush1.msra.mxu0 0.0
  %4929 = vmatprep.subr.mxu0 0.0
  %4930 = vmatpush1.msra.mxu0 0.0
  %4931 = vmatprep.subr.mxu0 0.0
  %4932 = vmatpush1.msra.mxu0 0.0
  %4933 = vmatprep.subr.mxu0 0.0
  %4934 = vmatpush1.msra.mxu0 0.0
  %4935 = vmatprep.mubr.f32.mxu0 %v4558
  %4936 = vmatmul.mubr.f32.gmra.mrb[0].mxu0 %v3491
  %v4937 = vpop.f32.mrb[0].mxu0
  %v4938 = vadd.f32 %v3500, %v4937
  %v4939 = vpop.f32.mrb[0].mxu0
  %v4940 = vadd.f32 %v3500, %v4939
  %4941 = vmatprep.mubr.f32.mxu0 %v4561
  %4942 = vmatmul.mubr.f32.gmra.mrb[0].mxu0 %v3493
  %v4943 = vpop.f32.mrb[0].mxu0
  %v4944 = vadd.f32 %v3505, %v4943
  %v4945 = vpop.f32.mrb[0].mxu0
  %v4946 = vadd.f32 %v3505, %v4945
  %4947 = vdwg.mxu0
  %v4948 = vmul.f32 %v4630, %v2505
  %v4949 = vmul.f32 %v4632, %v2509
  %v4950 = vmul.f32 %v4707, %v2513
  %v4951 = vmul.f32 %v4709, %v2517
  %v4952 = vmul.f32 %v4784, %v2521
  %v4953 = vmul.f32 %v4786, %v2525
  %v4954 = vmul.f32 %v4861, %v2529
  %v4955 = vmul.f32 %v4863, %v2533
  %v4956 = vmul.f32 %v4938, %v2537
  %v4957 = vmul.f32 %v4940, %v2541
  %v4958 = vmul.f32 %v4636, %v2505
  %v4959 = vmul.f32 %v4638, %v2509
  %v4960 = vmul.f32 %v4713, %v2513
  %v4961 = vmul.f32 %v4715, %v2517
  %v4962 = vmul.f32 %v4790, %v2521
  %v4963 = vmul.f32 %v4792, %v2525
  %v4964 = vmul.f32 %v4867, %v2529
  %v4965 = vmul.f32 %v4869, %v2533
  %v4966 = vmul.f32 %v4944, %v2537
  %v4967 = vmul.f32 %v4946, %v2541
  %v4968 = vadd.f32 %v4948, %v4949
  %v4969 = vadd.f32 %v4968, %v4950
  %v4970 = vadd.f32 %v4969, %v4951
  %v4971 = vadd.f32 %v4970, %v4952
  %v4972 = vadd.f32 %v4971, %v4953
  %v4973 = vadd.f32 %v4972, %v4954
  %v4974 = vadd.f32 %v4973, %v4955
  %v4975 = vadd.f32 %v4974, %v4956
  %v4976 = vadd.f32 %v4975, %v4957
  %4977 = vadd.xlane.f32.xlu0 %v4976
  %v4978 = vpop.xlane.xlu0 %4977
  %v4979 = vadd.f32 %v4958, %v4959
  %v4980 = vadd.f32 %v4979, %v4960
  %v4981 = vadd.f32 %v4980, %v4961
  %v4982 = vadd.f32 %v4981, %v4962
  %v4983 = vadd.f32 %v4982, %v4963
  %v4984 = vadd.f32 %v4983, %v4964
  %v4985 = vadd.f32 %v4984, %v4965
  %v4986 = vadd.f32 %v4985, %v4966
  %v4987 = vadd.f32 %v4986, %v4967
  %4988 = vadd.xlane.f32.xlu0 %v4987
  %v4989 = vpop.xlane.xlu0 %4988
  %v4990 = vmul.f32 %v4978, 0.001953125
  %v4991 = vmul.f32 %v4989, 0.001953125
  %v4992 = vsub.f32 %v4630, %v4990
  %v4993 = vsub.f32 %v4632, %v4990
  %v4994 = vsub.f32 %v4707, %v4990
  %v4995 = vsub.f32 %v4709, %v4990
  %v4996 = vsub.f32 %v4784, %v4990
  %v4997 = vsub.f32 %v4786, %v4990
  %v4998 = vsub.f32 %v4861, %v4990
  %v4999 = vsub.f32 %v4863, %v4990
  %v5000 = vsub.f32 %v4938, %v4990
  %v5001 = vsub.f32 %v4940, %v4990
  %v5002 = vsub.f32 %v4636, %v4991
  %v5003 = vsub.f32 %v4638, %v4991
  %v5004 = vsub.f32 %v4713, %v4991
  %v5005 = vsub.f32 %v4715, %v4991
  %v5006 = vsub.f32 %v4790, %v4991
  %v5007 = vsub.f32 %v4792, %v4991
  %v5008 = vsub.f32 %v4867, %v4991
  %v5009 = vsub.f32 %v4869, %v4991
  %v5010 = vsub.f32 %v4944, %v4991
  %v5011 = vsub.f32 %v4946, %v4991
  %v5012 = vmul.f32 %v4992, %v2505
  %v5013 = vmul.f32 %v4993, %v2509
  %v5014 = vmul.f32 %v4994, %v2513
  %v5015 = vmul.f32 %v4995, %v2517
  %v5016 = vmul.f32 %v4996, %v2521
  %v5017 = vmul.f32 %v4997, %v2525
  %v5018 = vmul.f32 %v4998, %v2529
  %v5019 = vmul.f32 %v4999, %v2533
  %v5020 = vmul.f32 %v5000, %v2537
  %v5021 = vmul.f32 %v5001, %v2541
  %v5022 = vmul.f32 %v5002, %v2505
  %v5023 = vmul.f32 %v5003, %v2509
  %v5024 = vmul.f32 %v5004, %v2513
  %v5025 = vmul.f32 %v5005, %v2517
  %v5026 = vmul.f32 %v5006, %v2521
  %v5027 = vmul.f32 %v5007, %v2525
  %v5028 = vmul.f32 %v5008, %v2529
  %v5029 = vmul.f32 %v5009, %v2533
  %v5030 = vmul.f32 %v5010, %v2537
  %v5031 = vmul.f32 %v5011, %v2541
  %v5032 = vmul.f32 %v5012, %v5012
  %v5033 = vmul.f32 %v5013, %v5013
  %v5034 = vmul.f32 %v5014, %v5014
  %v5035 = vmul.f32 %v5015, %v5015
  %v5036 = vmul.f32 %v5016, %v5016
  %v5037 = vmul.f32 %v5017, %v5017
  %v5038 = vmul.f32 %v5018, %v5018
  %v5039 = vmul.f32 %v5019, %v5019
  %v5040 = vmul.f32 %v5020, %v5020
  %v5041 = vmul.f32 %v5021, %v5021
  %v5042 = vmul.f32 %v5022, %v5022
  %v5043 = vmul.f32 %v5023, %v5023
  %v5044 = vmul.f32 %v5024, %v5024
  %v5045 = vmul.f32 %v5025, %v5025
  %v5046 = vmul.f32 %v5026, %v5026
  %v5047 = vmul.f32 %v5027, %v5027
  %v5048 = vmul.f32 %v5028, %v5028
  %v5049 = vmul.f32 %v5029, %v5029
  %v5050 = vmul.f32 %v5030, %v5030
  %v5051 = vmul.f32 %v5031, %v5031
  %v5052 = vadd.f32 %v5032, %v5033
  %v5053 = vadd.f32 %v5052, %v5034
  %v5054 = vadd.f32 %v5053, %v5035
  %v5055 = vadd.f32 %v5054, %v5036
  %v5056 = vadd.f32 %v5055, %v5037
  %v5057 = vadd.f32 %v5056, %v5038
  %v5058 = vadd.f32 %v5057, %v5039
  %v5059 = vadd.f32 %v5058, %v5040
  %v5060 = vadd.f32 %v5059, %v5041
  %5061 = vadd.xlane.f32.xlu0 %v5060
  %v5062 = vpop.xlane.xlu0 %5061
  %v5063 = vadd.f32 %v5042, %v5043
  %v5064 = vadd.f32 %v5063, %v5044
  %v5065 = vadd.f32 %v5064, %v5045
  %v5066 = vadd.f32 %v5065, %v5046
  %v5067 = vadd.f32 %v5066, %v5047
  %v5068 = vadd.f32 %v5067, %v5048
  %v5069 = vadd.f32 %v5068, %v5049
  %v5070 = vadd.f32 %v5069, %v5050
  %v5071 = vadd.f32 %v5070, %v5051
  %5072 = vadd.xlane.f32.xlu0 %v5071
  %v5073 = vpop.xlane.xlu0 %5072
  %v5074 = vmul.f32 %v5062, 0.001953125
  %v5075 = vmul.f32 %v5073, 0.001953125
  %v5076 = vadd.f32 %v5074, 1e-05
  %v5077 = vadd.f32 %v5075, 1e-05
  %v5078 = vrsqrt.pop %v5076
  %v5079 = vrsqrt.pop %v5077
  %v5080 = vmul.f32 %v5012, %v5078
  %v5081 = vmul.f32 %v5013, %v5078
  %v5082 = vmul.f32 %v5014, %v5078
  %v5083 = vmul.f32 %v5015, %v5078
  %v5084 = vmul.f32 %v5016, %v5078
  %v5085 = vmul.f32 %v5017, %v5078
  %v5086 = vmul.f32 %v5018, %v5078
  %v5087 = vmul.f32 %v5019, %v5078
  %v5088 = vmul.f32 %v5020, %v5078
  %v5089 = vmul.f32 %v5021, %v5078
  %v5090 = vmul.f32 %v5022, %v5079
  %v5091 = vmul.f32 %v5023, %v5079
  %v5092 = vmul.f32 %v5024, %v5079
  %v5093 = vmul.f32 %v5025, %v5079
  %v5094 = vmul.f32 %v5026, %v5079
  %v5095 = vmul.f32 %v5027, %v5079
  %v5096 = vmul.f32 %v5028, %v5079
  %v5097 = vmul.f32 %v5029, %v5079
  %v5098 = vmul.f32 %v5030, %v5079
  %v5099 = vmul.f32 %v5031, %v5079
  %5100 = vset.pattern.permute.xlu0 1
  %5101 = vperm.xlu0 %5100, %v3495
  %v5102 = vpop.permute.xlu0 %5101
  %5104 = vset.pattern.permute.xlu0 1
  %5105 = vperm.xlu0 %5104, %v3496
  %v5106 = vpop.permute.xlu0 %5105
  %v5108 = vmul.f32 %v5080, %v5102
  %v5109 = vmul.f32 %v5081, %v5102
  %v5110 = vmul.f32 %v5082, %v5102
  %v5111 = vmul.f32 %v5083, %v5102
  %v5112 = vmul.f32 %v5084, %v5102
  %v5113 = vmul.f32 %v5085, %v5102
  %v5114 = vmul.f32 %v5086, %v5102
  %v5115 = vmul.f32 %v5087, %v5102
  %v5116 = vmul.f32 %v5088, %v5102
  %v5117 = vmul.f32 %v5089, %v5102
  %v5118 = vmul.f32 %v5090, %v5106
  %v5119 = vmul.f32 %v5091, %v5106
  %v5120 = vmul.f32 %v5092, %v5106
  %v5121 = vmul.f32 %v5093, %v5106
  %v5122 = vmul.f32 %v5094, %v5106
  %v5123 = vmul.f32 %v5095, %v5106
  %v5124 = vmul.f32 %v5096, %v5106
  %v5125 = vmul.f32 %v5097, %v5106
  %v5126 = vmul.f32 %v5098, %v5106
  %v5127 = vmul.f32 %v5099, %v5106
  %5128 = vset.pattern.permute.xlu0 2
  %5129 = vperm.xlu0 %5128, %v3495
  %v5130 = vpop.permute.xlu0 %5129
  %5132 = vset.pattern.permute.xlu0 2
  %5133 = vperm.xlu0 %5132, %v3496
  %v5134 = vpop.permute.xlu0 %5133
  %v5136 = vadd.f32 %v5108, %v5130
  %v5137 = vadd.f32 %v5109, %v5130
  %v5138 = vadd.f32 %v5110, %v5130
  %v5139 = vadd.f32 %v5111, %v5130
  %v5140 = vadd.f32 %v5112, %v5130
  %v5141 = vadd.f32 %v5113, %v5130
  %v5142 = vadd.f32 %v5114, %v5130
  %v5143 = vadd.f32 %v5115, %v5130
  %v5144 = vadd.f32 %v5116, %v5130
  %v5145 = vadd.f32 %v5117, %v5130
  %v5146 = vadd.f32 %v5118, %v5134
  %v5147 = vadd.f32 %v5119, %v5134
  %v5148 = vadd.f32 %v5120, %v5134
  %v5149 = vadd.f32 %v5121, %v5134
  %v5150 = vadd.f32 %v5122, %v5134
  %v5151 = vadd.f32 %v5123, %v5134
  %v5152 = vadd.f32 %v5124, %v5134
  %v5153 = vadd.f32 %v5125, %v5134
  %v5154 = vadd.f32 %v5126, %v5134
  %v5155 = vadd.f32 %v5127, %v5134
  %v5156 = vmax.f32 %v5136, 0.0
  %v5157 = vmax.f32 %v5137, 0.0
  %v5158 = vmax.f32 %v5138, 0.0
  %v5159 = vmax.f32 %v5139, 0.0
  %v5160 = vmax.f32 %v5140, 0.0
  %v5161 = vmax.f32 %v5141, 0.0
  %v5162 = vmax.f32 %v5142, 0.0
  %v5163 = vmax.f32 %v5143, 0.0
  %v5164 = vmax.f32 %v5144, 0.0
  %v5165 = vmax.f32 %v5145, 0.0
  %v5166 = vmax.f32 %v5146, 0.0
  %v5167 = vmax.f32 %v5147, 0.0
  %v5168 = vmax.f32 %v5148, 0.0
  %v5169 = vmax.f32 %v5149, 0.0
  %v5170 = vmax.f32 %v5150, 0.0
  %v5171 = vmax.f32 %v5151, 0.0
  %v5172 = vmax.f32 %v5152, 0.0
  %v5173 = vmax.f32 %v5153, 0.0
  %v5174 = vmax.f32 %v5154, 0.0
  %v5175 = vmax.f32 %v5155, 0.0
  %v5176 = vmul.f32 %v5156, %v2505
  %v5177 = vmul.f32 %v5157, %v2509
  %v5178 = vmul.f32 %v5158, %v2513
  %v5179 = vmul.f32 %v5159, %v2517
  %v5180 = vmul.f32 %v5160, %v2521
  %v5181 = vmul.f32 %v5161, %v2525
  %v5182 = vmul.f32 %v5162, %v2529
  %v5183 = vmul.f32 %v5163, %v2533
  %v5184 = vmul.f32 %v5164, %v2537
  %v5185 = vmul.f32 %v5165, %v2541
  %v5186 = vmul.f32 %v5166, %v2505
  %v5187 = vmul.f32 %v5167, %v2509
  %v5188 = vmul.f32 %v5168, %v2513
  %v5189 = vmul.f32 %v5169, %v2517
  %v5190 = vmul.f32 %v5170, %v2521
  %v5191 = vmul.f32 %v5171, %v2525
  %v5192 = vmul.f32 %v5172, %v2529
  %v5193 = vmul.f32 %v5173, %v2533
  %v5194 = vmul.f32 %v5174, %v2537
  %v5195 = vmul.f32 %v5175, %v2541
  %5216 = vrot.lane.b32.xlu0 %v5176, 127
  %v5217 = vpop.permute.xlu0 %5216
  %5218 = vrot.lane.b32.xlu0 %v5177, 127
  %v5219 = vpop.permute.xlu0 %5218
  %5220 = vrot.lane.b32.xlu0 %v5178, 127
  %v5221 = vpop.permute.xlu0 %5220
  %5222 = vrot.lane.b32.xlu0 %v5179, 127
  %v5223 = vpop.permute.xlu0 %5222
  %5224 = vrot.lane.b32.xlu0 %v5180, 127
  %v5225 = vpop.permute.xlu0 %5224
  %5226 = vrot.lane.b32.xlu0 %v5181, 127
  %v5227 = vpop.permute.xlu0 %5226
  %5228 = vrot.lane.b32.xlu0 %v5182, 127
  %v5229 = vpop.permute.xlu0 %5228
  %5230 = vrot.lane.b32.xlu0 %v5183, 127
  %v5231 = vpop.permute.xlu0 %5230
  %5232 = vrot.lane.b32.xlu0 %v5184, 127
  %v5233 = vpop.permute.xlu0 %5232
  %5234 = vrot.lane.b32.xlu0 %v5185, 127
  %v5235 = vpop.permute.xlu0 %5234
  %5236 = vrot.lane.b32.xlu0 %v5186, 127
  %v5237 = vpop.permute.xlu0 %5236
  %5238 = vrot.lane.b32.xlu0 %v5187, 127
  %v5239 = vpop.permute.xlu0 %5238
  %5240 = vrot.lane.b32.xlu0 %v5188, 127
  %v5241 = vpop.permute.xlu0 %5240
  %5242 = vrot.lane.b32.xlu0 %v5189, 127
  %v5243 = vpop.permute.xlu0 %5242
  %5244 = vrot.lane.b32.xlu0 %v5190, 127
  %v5245 = vpop.permute.xlu0 %5244
  %5246 = vrot.lane.b32.xlu0 %v5191, 127
  %v5247 = vpop.permute.xlu0 %5246
  %5248 = vrot.lane.b32.xlu0 %v5192, 127
  %v5249 = vpop.permute.xlu0 %5248
  %5250 = vrot.lane.b32.xlu0 %v5193, 127
  %v5251 = vpop.permute.xlu0 %5250
  %5252 = vrot.lane.b32.xlu0 %v5194, 127
  %v5253 = vpop.permute.xlu0 %5252
  %5254 = vrot.lane.b32.xlu0 %v5195, 127
  %v5255 = vpop.permute.xlu0 %5254
  %v5256 = vsel %vm268, %v2688, %v5217
  %v5257 = vsel %vm268, %v5217, %v5219
  %v5258 = vsel %vm268, %v5219, %v5221
  %v5259 = vsel %vm268, %v5221, %v5223
  %v5260 = vsel %vm268, %v5223, %v5225
  %v5261 = vsel %vm268, %v5225, %v5227
  %v5262 = vsel %vm268, %v5227, %v5229
  %v5263 = vsel %vm268, %v5229, %v5231
  %v5264 = vsel %vm268, %v5231, %v5233
  %v5265 = vsel %vm268, %v5233, %v5235
  %v5266 = vsel %vm268, %v2688, %v5237
  %v5267 = vsel %vm268, %v5237, %v5239
  %v5268 = vsel %vm268, %v5239, %v5241
  %v5269 = vsel %vm268, %v5241, %v5243
  %v5270 = vsel %vm268, %v5243, %v5245
  %v5271 = vsel %vm268, %v5245, %v5247
  %v5272 = vsel %vm268, %v5247, %v5249
  %v5273 = vsel %vm268, %v5249, %v5251
  %v5274 = vsel %vm268, %v5251, %v5253
  %v5275 = vsel %vm268, %v5253, %v5255
  %5276 = vrot.lane.b32.xlu0 %v5176, 126
  %v5277 = vpop.permute.xlu0 %5276
  %5278 = vrot.lane.b32.xlu0 %v5177, 126
  %v5279 = vpop.permute.xlu0 %5278
  %5280 = vrot.lane.b32.xlu0 %v5178, 126
  %v5281 = vpop.permute.xlu0 %5280
  %5282 = vrot.lane.b32.xlu0 %v5179, 126
  %v5283 = vpop.permute.xlu0 %5282
  %5284 = vrot.lane.b32.xlu0 %v5180, 126
  %v5285 = vpop.permute.xlu0 %5284
  %5286 = vrot.lane.b32.xlu0 %v5181, 126
  %v5287 = vpop.permute.xlu0 %5286
  %5288 = vrot.lane.b32.xlu0 %v5182, 126
  %v5289 = vpop.permute.xlu0 %5288
  %5290 = vrot.lane.b32.xlu0 %v5183, 126
  %v5291 = vpop.permute.xlu0 %5290
  %5292 = vrot.lane.b32.xlu0 %v5184, 126
  %v5293 = vpop.permute.xlu0 %5292
  %5294 = vrot.lane.b32.xlu0 %v5185, 126
  %v5295 = vpop.permute.xlu0 %5294
  %5296 = vrot.lane.b32.xlu0 %v5186, 126
  %v5297 = vpop.permute.xlu0 %5296
  %5298 = vrot.lane.b32.xlu0 %v5187, 126
  %v5299 = vpop.permute.xlu0 %5298
  %5300 = vrot.lane.b32.xlu0 %v5188, 126
  %v5301 = vpop.permute.xlu0 %5300
  %5302 = vrot.lane.b32.xlu0 %v5189, 126
  %v5303 = vpop.permute.xlu0 %5302
  %5304 = vrot.lane.b32.xlu0 %v5190, 126
  %v5305 = vpop.permute.xlu0 %5304
  %5306 = vrot.lane.b32.xlu0 %v5191, 126
  %v5307 = vpop.permute.xlu0 %5306
  %5308 = vrot.lane.b32.xlu0 %v5192, 126
  %v5309 = vpop.permute.xlu0 %5308
  %5310 = vrot.lane.b32.xlu0 %v5193, 126
  %v5311 = vpop.permute.xlu0 %5310
  %5312 = vrot.lane.b32.xlu0 %v5194, 126
  %v5313 = vpop.permute.xlu0 %5312
  %5314 = vrot.lane.b32.xlu0 %v5195, 126
  %v5315 = vpop.permute.xlu0 %5314
  %v5316 = vsel %vm301, %v2720, %v5277
  %v5317 = vsel %vm301, %v5277, %v5279
  %v5318 = vsel %vm301, %v5279, %v5281
  %v5319 = vsel %vm301, %v5281, %v5283
  %v5320 = vsel %vm301, %v5283, %v5285
  %v5321 = vsel %vm301, %v5285, %v5287
  %v5322 = vsel %vm301, %v5287, %v5289
  %v5323 = vsel %vm301, %v5289, %v5291
  %v5324 = vsel %vm301, %v5291, %v5293
  %v5325 = vsel %vm301, %v5293, %v5295
  %v5326 = vsel %vm301, %v2720, %v5297
  %v5327 = vsel %vm301, %v5297, %v5299
  %v5328 = vsel %vm301, %v5299, %v5301
  %v5329 = vsel %vm301, %v5301, %v5303
  %v5330 = vsel %vm301, %v5303, %v5305
  %v5331 = vsel %vm301, %v5305, %v5307
  %v5332 = vsel %vm301, %v5307, %v5309
  %v5333 = vsel %vm301, %v5309, %v5311
  %v5334 = vsel %vm301, %v5311, %v5313
  %v5335 = vsel %vm301, %v5313, %v5315
  %5336 = vrot.lane.b32.xlu0 %v5176, 125
  %v5337 = vpop.permute.xlu0 %5336
  %5338 = vrot.lane.b32.xlu0 %v5177, 125
  %v5339 = vpop.permute.xlu0 %5338
  %5340 = vrot.lane.b32.xlu0 %v5178, 125
  %v5341 = vpop.permute.xlu0 %5340
  %5342 = vrot.lane.b32.xlu0 %v5179, 125
  %v5343 = vpop.permute.xlu0 %5342
  %5344 = vrot.lane.b32.xlu0 %v5180, 125
  %v5345 = vpop.permute.xlu0 %5344
  %5346 = vrot.lane.b32.xlu0 %v5181, 125
  %v5347 = vpop.permute.xlu0 %5346
  %5348 = vrot.lane.b32.xlu0 %v5182, 125
  %v5349 = vpop.permute.xlu0 %5348
  %5350 = vrot.lane.b32.xlu0 %v5183, 125
  %v5351 = vpop.permute.xlu0 %5350
  %5352 = vrot.lane.b32.xlu0 %v5184, 125
  %v5353 = vpop.permute.xlu0 %5352
  %5354 = vrot.lane.b32.xlu0 %v5185, 125
  %v5355 = vpop.permute.xlu0 %5354
  %5356 = vrot.lane.b32.xlu0 %v5186, 125
  %v5357 = vpop.permute.xlu0 %5356
  %5358 = vrot.lane.b32.xlu0 %v5187, 125
  %v5359 = vpop.permute.xlu0 %5358
  %5360 = vrot.lane.b32.xlu0 %v5188, 125
  %v5361 = vpop.permute.xlu0 %5360
  %5362 = vrot.lane.b32.xlu0 %v5189, 125
  %v5363 = vpop.permute.xlu0 %5362
  %5364 = vrot.lane.b32.xlu0 %v5190, 125
  %v5365 = vpop.permute.xlu0 %5364
  %5366 = vrot.lane.b32.xlu0 %v5191, 125
  %v5367 = vpop.permute.xlu0 %5366
  %5368 = vrot.lane.b32.xlu0 %v5192, 125
  %v5369 = vpop.permute.xlu0 %5368
  %5370 = vrot.lane.b32.xlu0 %v5193, 125
  %v5371 = vpop.permute.xlu0 %5370
  %5372 = vrot.lane.b32.xlu0 %v5194, 125
  %v5373 = vpop.permute.xlu0 %5372
  %5374 = vrot.lane.b32.xlu0 %v5195, 125
  %v5375 = vpop.permute.xlu0 %5374
  %v5376 = vsel %vm334, %v2752, %v5337
  %v5377 = vsel %vm334, %v5337, %v5339
  %v5378 = vsel %vm334, %v5339, %v5341
  %v5379 = vsel %vm334, %v5341, %v5343
  %v5380 = vsel %vm334, %v5343, %v5345
  %v5381 = vsel %vm334, %v5345, %v5347
  %v5382 = vsel %vm334, %v5347, %v5349
  %v5383 = vsel %vm334, %v5349, %v5351
  %v5384 = vsel %vm334, %v5351, %v5353
  %v5385 = vsel %vm334, %v5353, %v5355
  %v5386 = vsel %vm334, %v2752, %v5357
  %v5387 = vsel %vm334, %v5357, %v5359
  %v5388 = vsel %vm334, %v5359, %v5361
  %v5389 = vsel %vm334, %v5361, %v5363
  %v5390 = vsel %vm334, %v5363, %v5365
  %v5391 = vsel %vm334, %v5365, %v5367
  %v5392 = vsel %vm334, %v5367, %v5369
  %v5393 = vsel %vm334, %v5369, %v5371
  %v5394 = vsel %vm334, %v5371, %v5373
  %v5395 = vsel %vm334, %v5373, %v5375
  %5396 = vrot.lane.b32.xlu0 %v5176, 124
  %v5397 = vpop.permute.xlu0 %5396
  %5398 = vrot.lane.b32.xlu0 %v5177, 124
  %v5399 = vpop.permute.xlu0 %5398
  %5400 = vrot.lane.b32.xlu0 %v5178, 124
  %v5401 = vpop.permute.xlu0 %5400
  %5402 = vrot.lane.b32.xlu0 %v5179, 124
  %v5403 = vpop.permute.xlu0 %5402
  %5404 = vrot.lane.b32.xlu0 %v5180, 124
  %v5405 = vpop.permute.xlu0 %5404
  %5406 = vrot.lane.b32.xlu0 %v5181, 124
  %v5407 = vpop.permute.xlu0 %5406
  %5408 = vrot.lane.b32.xlu0 %v5182, 124
  %v5409 = vpop.permute.xlu0 %5408
  %5410 = vrot.lane.b32.xlu0 %v5183, 124
  %v5411 = vpop.permute.xlu0 %5410
  %5412 = vrot.lane.b32.xlu0 %v5184, 124
  %v5413 = vpop.permute.xlu0 %5412
  %5414 = vrot.lane.b32.xlu0 %v5185, 124
  %v5415 = vpop.permute.xlu0 %5414
  %5416 = vrot.lane.b32.xlu0 %v5186, 124
  %v5417 = vpop.permute.xlu0 %5416
  %5418 = vrot.lane.b32.xlu0 %v5187, 124
  %v5419 = vpop.permute.xlu0 %5418
  %5420 = vrot.lane.b32.xlu0 %v5188, 124
  %v5421 = vpop.permute.xlu0 %5420
  %5422 = vrot.lane.b32.xlu0 %v5189, 124
  %v5423 = vpop.permute.xlu0 %5422
  %5424 = vrot.lane.b32.xlu0 %v5190, 124
  %v5425 = vpop.permute.xlu0 %5424
  %5426 = vrot.lane.b32.xlu0 %v5191, 124
  %v5427 = vpop.permute.xlu0 %5426
  %5428 = vrot.lane.b32.xlu0 %v5192, 124
  %v5429 = vpop.permute.xlu0 %5428
  %5430 = vrot.lane.b32.xlu0 %v5193, 124
  %v5431 = vpop.permute.xlu0 %5430
  %5432 = vrot.lane.b32.xlu0 %v5194, 124
  %v5433 = vpop.permute.xlu0 %5432
  %5434 = vrot.lane.b32.xlu0 %v5195, 124
  %v5435 = vpop.permute.xlu0 %5434
  %v5436 = vsel %vm367, %v2784, %v5397
  %v5437 = vsel %vm367, %v5397, %v5399
  %v5438 = vsel %vm367, %v5399, %v5401
  %v5439 = vsel %vm367, %v5401, %v5403
  %v5440 = vsel %vm367, %v5403, %v5405
  %v5441 = vsel %vm367, %v5405, %v5407
  %v5442 = vsel %vm367, %v5407, %v5409
  %v5443 = vsel %vm367, %v5409, %v5411
  %v5444 = vsel %vm367, %v5411, %v5413
  %v5445 = vsel %vm367, %v5413, %v5415
  %v5446 = vsel %vm367, %v2784, %v5417
  %v5447 = vsel %vm367, %v5417, %v5419
  %v5448 = vsel %vm367, %v5419, %v5421
  %v5449 = vsel %vm367, %v5421, %v5423
  %v5450 = vsel %vm367, %v5423, %v5425
  %v5451 = vsel %vm367, %v5425, %v5427
  %v5452 = vsel %vm367, %v5427, %v5429
  %v5453 = vsel %vm367, %v5429, %v5431
  %v5454 = vsel %vm367, %v5431, %v5433
  %v5455 = vsel %vm367, %v5433, %v5435
  %5456 = vrot.lane.b32.xlu0 %v5176, 96
  %v5457 = vpop.permute.xlu0 %5456
  %5458 = vrot.lane.b32.xlu0 %v5177, 96
  %v5459 = vpop.permute.xlu0 %5458
  %5460 = vrot.lane.b32.xlu0 %v5178, 96
  %v5461 = vpop.permute.xlu0 %5460
  %5462 = vrot.lane.b32.xlu0 %v5179, 96
  %v5463 = vpop.permute.xlu0 %5462
  %5464 = vrot.lane.b32.xlu0 %v5180, 96
  %v5465 = vpop.permute.xlu0 %5464
  %5466 = vrot.lane.b32.xlu0 %v5181, 96
  %v5467 = vpop.permute.xlu0 %5466
  %5468 = vrot.lane.b32.xlu0 %v5182, 96
  %v5469 = vpop.permute.xlu0 %5468
  %5470 = vrot.lane.b32.xlu0 %v5183, 96
  %v5471 = vpop.permute.xlu0 %5470
  %5472 = vrot.lane.b32.xlu0 %v5184, 96
  %v5473 = vpop.permute.xlu0 %5472
  %5474 = vrot.lane.b32.xlu0 %v5185, 96
  %v5475 = vpop.permute.xlu0 %5474
  %5476 = vrot.lane.b32.xlu0 %v5186, 96
  %v5477 = vpop.permute.xlu0 %5476
  %5478 = vrot.lane.b32.xlu0 %v5187, 96
  %v5479 = vpop.permute.xlu0 %5478
  %5480 = vrot.lane.b32.xlu0 %v5188, 96
  %v5481 = vpop.permute.xlu0 %5480
  %5482 = vrot.lane.b32.xlu0 %v5189, 96
  %v5483 = vpop.permute.xlu0 %5482
  %5484 = vrot.lane.b32.xlu0 %v5190, 96
  %v5485 = vpop.permute.xlu0 %5484
  %5486 = vrot.lane.b32.xlu0 %v5191, 96
  %v5487 = vpop.permute.xlu0 %5486
  %5488 = vrot.lane.b32.xlu0 %v5192, 96
  %v5489 = vpop.permute.xlu0 %5488
  %5490 = vrot.lane.b32.xlu0 %v5193, 96
  %v5491 = vpop.permute.xlu0 %5490
  %5492 = vrot.lane.b32.xlu0 %v5194, 96
  %v5493 = vpop.permute.xlu0 %5492
  %5494 = vrot.lane.b32.xlu0 %v5195, 96
  %v5495 = vpop.permute.xlu0 %5494
  %v5496 = vsel %vm400, %v2816, %v5457
  %v5497 = vsel %vm400, %v5457, %v5459
  %v5498 = vsel %vm400, %v5459, %v5461
  %v5499 = vsel %vm400, %v5461, %v5463
  %v5500 = vsel %vm400, %v5463, %v5465
  %v5501 = vsel %vm400, %v5465, %v5467
  %v5502 = vsel %vm400, %v5467, %v5469
  %v5503 = vsel %vm400, %v5469, %v5471
  %v5504 = vsel %vm400, %v5471, %v5473
  %v5505 = vsel %vm400, %v5473, %v5475
  %v5506 = vsel %vm400, %v2816, %v5477
  %v5507 = vsel %vm400, %v5477, %v5479
  %v5508 = vsel %vm400, %v5479, %v5481
  %v5509 = vsel %vm400, %v5481, %v5483
  %v5510 = vsel %vm400, %v5483, %v5485
  %v5511 = vsel %vm400, %v5485, %v5487
  %v5512 = vsel %vm400, %v5487, %v5489
  %v5513 = vsel %vm400, %v5489, %v5491
  %v5514 = vsel %vm400, %v5491, %v5493
  %v5515 = vsel %vm400, %v5493, %v5495
  %5516 = vrot.lane.b32.xlu0 %v5176, 95
  %v5517 = vpop.permute.xlu0 %5516
  %5518 = vrot.lane.b32.xlu0 %v5177, 95
  %v5519 = vpop.permute.xlu0 %5518
  %5520 = vrot.lane.b32.xlu0 %v5178, 95
  %v5521 = vpop.permute.xlu0 %5520
  %5522 = vrot.lane.b32.xlu0 %v5179, 95
  %v5523 = vpop.permute.xlu0 %5522
  %5524 = vrot.lane.b32.xlu0 %v5180, 95
  %v5525 = vpop.permute.xlu0 %5524
  %5526 = vrot.lane.b32.xlu0 %v5181, 95
  %v5527 = vpop.permute.xlu0 %5526
  %5528 = vrot.lane.b32.xlu0 %v5182, 95
  %v5529 = vpop.permute.xlu0 %5528
  %5530 = vrot.lane.b32.xlu0 %v5183, 95
  %v5531 = vpop.permute.xlu0 %5530
  %5532 = vrot.lane.b32.xlu0 %v5184, 95
  %v5533 = vpop.permute.xlu0 %5532
  %5534 = vrot.lane.b32.xlu0 %v5185, 95
  %v5535 = vpop.permute.xlu0 %5534
  %5536 = vrot.lane.b32.xlu0 %v5186, 95
  %v5537 = vpop.permute.xlu0 %5536
  %5538 = vrot.lane.b32.xlu0 %v5187, 95
  %v5539 = vpop.permute.xlu0 %5538
  %5540 = vrot.lane.b32.xlu0 %v5188, 95
  %v5541 = vpop.permute.xlu0 %5540
  %5542 = vrot.lane.b32.xlu0 %v5189, 95
  %v5543 = vpop.permute.xlu0 %5542
  %5544 = vrot.lane.b32.xlu0 %v5190, 95
  %v5545 = vpop.permute.xlu0 %5544
  %5546 = vrot.lane.b32.xlu0 %v5191, 95
  %v5547 = vpop.permute.xlu0 %5546
  %5548 = vrot.lane.b32.xlu0 %v5192, 95
  %v5549 = vpop.permute.xlu0 %5548
  %5550 = vrot.lane.b32.xlu0 %v5193, 95
  %v5551 = vpop.permute.xlu0 %5550
  %5552 = vrot.lane.b32.xlu0 %v5194, 95
  %v5553 = vpop.permute.xlu0 %5552
  %5554 = vrot.lane.b32.xlu0 %v5195, 95
  %v5555 = vpop.permute.xlu0 %5554
  %v5556 = vsel %vm433, %v2848, %v5517
  %v5557 = vsel %vm433, %v5517, %v5519
  %v5558 = vsel %vm433, %v5519, %v5521
  %v5559 = vsel %vm433, %v5521, %v5523
  %v5560 = vsel %vm433, %v5523, %v5525
  %v5561 = vsel %vm433, %v5525, %v5527
  %v5562 = vsel %vm433, %v5527, %v5529
  %v5563 = vsel %vm433, %v5529, %v5531
  %v5564 = vsel %vm433, %v5531, %v5533
  %v5565 = vsel %vm433, %v5533, %v5535
  %v5566 = vsel %vm433, %v2848, %v5537
  %v5567 = vsel %vm433, %v5537, %v5539
  %v5568 = vsel %vm433, %v5539, %v5541
  %v5569 = vsel %vm433, %v5541, %v5543
  %v5570 = vsel %vm433, %v5543, %v5545
  %v5571 = vsel %vm433, %v5545, %v5547
  %v5572 = vsel %vm433, %v5547, %v5549
  %v5573 = vsel %vm433, %v5549, %v5551
  %v5574 = vsel %vm433, %v5551, %v5553
  %v5575 = vsel %vm433, %v5553, %v5555
  %5576 = vrot.lane.b32.xlu0 %v5176, 94
  %v5577 = vpop.permute.xlu0 %5576
  %5578 = vrot.lane.b32.xlu0 %v5177, 94
  %v5579 = vpop.permute.xlu0 %5578
  %5580 = vrot.lane.b32.xlu0 %v5178, 94
  %v5581 = vpop.permute.xlu0 %5580
  %5582 = vrot.lane.b32.xlu0 %v5179, 94
  %v5583 = vpop.permute.xlu0 %5582
  %5584 = vrot.lane.b32.xlu0 %v5180, 94
  %v5585 = vpop.permute.xlu0 %5584
  %5586 = vrot.lane.b32.xlu0 %v5181, 94
  %v5587 = vpop.permute.xlu0 %5586
  %5588 = vrot.lane.b32.xlu0 %v5182, 94
  %v5589 = vpop.permute.xlu0 %5588
  %5590 = vrot.lane.b32.xlu0 %v5183, 94
  %v5591 = vpop.permute.xlu0 %5590
  %5592 = vrot.lane.b32.xlu0 %v5184, 94
  %v5593 = vpop.permute.xlu0 %5592
  %5594 = vrot.lane.b32.xlu0 %v5185, 94
  %v5595 = vpop.permute.xlu0 %5594
  %5596 = vrot.lane.b32.xlu0 %v5186, 94
  %v5597 = vpop.permute.xlu0 %5596
  %5598 = vrot.lane.b32.xlu0 %v5187, 94
  %v5599 = vpop.permute.xlu0 %5598
  %5600 = vrot.lane.b32.xlu0 %v5188, 94
  %v5601 = vpop.permute.xlu0 %5600
  %5602 = vrot.lane.b32.xlu0 %v5189, 94
  %v5603 = vpop.permute.xlu0 %5602
  %5604 = vrot.lane.b32.xlu0 %v5190, 94
  %v5605 = vpop.permute.xlu0 %5604
  %5606 = vrot.lane.b32.xlu0 %v5191, 94
  %v5607 = vpop.permute.xlu0 %5606
  %5608 = vrot.lane.b32.xlu0 %v5192, 94
  %v5609 = vpop.permute.xlu0 %5608
  %5610 = vrot.lane.b32.xlu0 %v5193, 94
  %v5611 = vpop.permute.xlu0 %5610
  %5612 = vrot.lane.b32.xlu0 %v5194, 94
  %v5613 = vpop.permute.xlu0 %5612
  %5614 = vrot.lane.b32.xlu0 %v5195, 94
  %v5615 = vpop.permute.xlu0 %5614
  %v5616 = vsel %vm466, %v2880, %v5577
  %v5617 = vsel %vm466, %v5577, %v5579
  %v5618 = vsel %vm466, %v5579, %v5581
  %v5619 = vsel %vm466, %v5581, %v5583
  %v5620 = vsel %vm466, %v5583, %v5585
  %v5621 = vsel %vm466, %v5585, %v5587
  %v5622 = vsel %vm466, %v5587, %v5589
  %v5623 = vsel %vm466, %v5589, %v5591
  %v5624 = vsel %vm466, %v5591, %v5593
  %v5625 = vsel %vm466, %v5593, %v5595
  %v5626 = vsel %vm466, %v2880, %v5597
  %v5627 = vsel %vm466, %v5597, %v5599
  %v5628 = vsel %vm466, %v5599, %v5601
  %v5629 = vsel %vm466, %v5601, %v5603
  %v5630 = vsel %vm466, %v5603, %v5605
  %v5631 = vsel %vm466, %v5605, %v5607
  %v5632 = vsel %vm466, %v5607, %v5609
  %v5633 = vsel %vm466, %v5609, %v5611
  %v5634 = vsel %vm466, %v5611, %v5613
  %v5635 = vsel %vm466, %v5613, %v5615
  %5636 = vrot.lane.b32.xlu0 %v5176, 93
  %v5637 = vpop.permute.xlu0 %5636
  %5638 = vrot.lane.b32.xlu0 %v5177, 93
  %v5639 = vpop.permute.xlu0 %5638
  %5640 = vrot.lane.b32.xlu0 %v5178, 93
  %v5641 = vpop.permute.xlu0 %5640
  %5642 = vrot.lane.b32.xlu0 %v5179, 93
  %v5643 = vpop.permute.xlu0 %5642
  %5644 = vrot.lane.b32.xlu0 %v5180, 93
  %v5645 = vpop.permute.xlu0 %5644
  %5646 = vrot.lane.b32.xlu0 %v5181, 93
  %v5647 = vpop.permute.xlu0 %5646
  %5648 = vrot.lane.b32.xlu0 %v5182, 93
  %v5649 = vpop.permute.xlu0 %5648
  %5650 = vrot.lane.b32.xlu0 %v5183, 93
  %v5651 = vpop.permute.xlu0 %5650
  %5652 = vrot.lane.b32.xlu0 %v5184, 93
  %v5653 = vpop.permute.xlu0 %5652
  %5654 = vrot.lane.b32.xlu0 %v5185, 93
  %v5655 = vpop.permute.xlu0 %5654
  %5656 = vrot.lane.b32.xlu0 %v5186, 93
  %v5657 = vpop.permute.xlu0 %5656
  %5658 = vrot.lane.b32.xlu0 %v5187, 93
  %v5659 = vpop.permute.xlu0 %5658
  %5660 = vrot.lane.b32.xlu0 %v5188, 93
  %v5661 = vpop.permute.xlu0 %5660
  %5662 = vrot.lane.b32.xlu0 %v5189, 93
  %v5663 = vpop.permute.xlu0 %5662
  %5664 = vrot.lane.b32.xlu0 %v5190, 93
  %v5665 = vpop.permute.xlu0 %5664
  %5666 = vrot.lane.b32.xlu0 %v5191, 93
  %v5667 = vpop.permute.xlu0 %5666
  %5668 = vrot.lane.b32.xlu0 %v5192, 93
  %v5669 = vpop.permute.xlu0 %5668
  %5670 = vrot.lane.b32.xlu0 %v5193, 93
  %v5671 = vpop.permute.xlu0 %5670
  %5672 = vrot.lane.b32.xlu0 %v5194, 93
  %v5673 = vpop.permute.xlu0 %5672
  %5674 = vrot.lane.b32.xlu0 %v5195, 93
  %v5675 = vpop.permute.xlu0 %5674
  %v5676 = vsel %vm499, %v2912, %v5637
  %v5677 = vsel %vm499, %v5637, %v5639
  %v5678 = vsel %vm499, %v5639, %v5641
  %v5679 = vsel %vm499, %v5641, %v5643
  %v5680 = vsel %vm499, %v5643, %v5645
  %v5681 = vsel %vm499, %v5645, %v5647
  %v5682 = vsel %vm499, %v5647, %v5649
  %v5683 = vsel %vm499, %v5649, %v5651
  %v5684 = vsel %vm499, %v5651, %v5653
  %v5685 = vsel %vm499, %v5653, %v5655
  %v5686 = vsel %vm499, %v2912, %v5657
  %v5687 = vsel %vm499, %v5657, %v5659
  %v5688 = vsel %vm499, %v5659, %v5661
  %v5689 = vsel %vm499, %v5661, %v5663
  %v5690 = vsel %vm499, %v5663, %v5665
  %v5691 = vsel %vm499, %v5665, %v5667
  %v5692 = vsel %vm499, %v5667, %v5669
  %v5693 = vsel %vm499, %v5669, %v5671
  %v5694 = vsel %vm499, %v5671, %v5673
  %v5695 = vsel %vm499, %v5673, %v5675
  %5696 = vrot.lane.b32.xlu0 %v5176, 92
  %v5697 = vpop.permute.xlu0 %5696
  %5698 = vrot.lane.b32.xlu0 %v5177, 92
  %v5699 = vpop.permute.xlu0 %5698
  %5700 = vrot.lane.b32.xlu0 %v5178, 92
  %v5701 = vpop.permute.xlu0 %5700
  %5702 = vrot.lane.b32.xlu0 %v5179, 92
  %v5703 = vpop.permute.xlu0 %5702
  %5704 = vrot.lane.b32.xlu0 %v5180, 92
  %v5705 = vpop.permute.xlu0 %5704
  %5706 = vrot.lane.b32.xlu0 %v5181, 92
  %v5707 = vpop.permute.xlu0 %5706
  %5708 = vrot.lane.b32.xlu0 %v5182, 92
  %v5709 = vpop.permute.xlu0 %5708
  %5710 = vrot.lane.b32.xlu0 %v5183, 92
  %v5711 = vpop.permute.xlu0 %5710
  %5712 = vrot.lane.b32.xlu0 %v5184, 92
  %v5713 = vpop.permute.xlu0 %5712
  %5714 = vrot.lane.b32.xlu0 %v5185, 92
  %v5715 = vpop.permute.xlu0 %5714
  %5716 = vrot.lane.b32.xlu0 %v5186, 92
  %v5717 = vpop.permute.xlu0 %5716
  %5718 = vrot.lane.b32.xlu0 %v5187, 92
  %v5719 = vpop.permute.xlu0 %5718
  %5720 = vrot.lane.b32.xlu0 %v5188, 92
  %v5721 = vpop.permute.xlu0 %5720
  %5722 = vrot.lane.b32.xlu0 %v5189, 92
  %v5723 = vpop.permute.xlu0 %5722
  %5724 = vrot.lane.b32.xlu0 %v5190, 92
  %v5725 = vpop.permute.xlu0 %5724
  %5726 = vrot.lane.b32.xlu0 %v5191, 92
  %v5727 = vpop.permute.xlu0 %5726
  %5728 = vrot.lane.b32.xlu0 %v5192, 92
  %v5729 = vpop.permute.xlu0 %5728
  %5730 = vrot.lane.b32.xlu0 %v5193, 92
  %v5731 = vpop.permute.xlu0 %5730
  %5732 = vrot.lane.b32.xlu0 %v5194, 92
  %v5733 = vpop.permute.xlu0 %5732
  %5734 = vrot.lane.b32.xlu0 %v5195, 92
  %v5735 = vpop.permute.xlu0 %5734
  %v5736 = vsel %vm532, %v2944, %v5697
  %v5737 = vsel %vm532, %v5697, %v5699
  %v5738 = vsel %vm532, %v5699, %v5701
  %v5739 = vsel %vm532, %v5701, %v5703
  %v5740 = vsel %vm532, %v5703, %v5705
  %v5741 = vsel %vm532, %v5705, %v5707
  %v5742 = vsel %vm532, %v5707, %v5709
  %v5743 = vsel %vm532, %v5709, %v5711
  %v5744 = vsel %vm532, %v5711, %v5713
  %v5745 = vsel %vm532, %v5713, %v5715
  %v5746 = vsel %vm532, %v2944, %v5717
  %v5747 = vsel %vm532, %v5717, %v5719
  %v5748 = vsel %vm532, %v5719, %v5721
  %v5749 = vsel %vm532, %v5721, %v5723
  %v5750 = vsel %vm532, %v5723, %v5725
  %v5751 = vsel %vm532, %v5725, %v5727
  %v5752 = vsel %vm532, %v5727, %v5729
  %v5753 = vsel %vm532, %v5729, %v5731
  %v5754 = vsel %vm532, %v5731, %v5733
  %v5755 = vsel %vm532, %v5733, %v5735
  %5756 = vrot.lane.b32.xlu0 %v5176, 64
  %v5757 = vpop.permute.xlu0 %5756
  %5758 = vrot.lane.b32.xlu0 %v5177, 64
  %v5759 = vpop.permute.xlu0 %5758
  %5760 = vrot.lane.b32.xlu0 %v5178, 64
  %v5761 = vpop.permute.xlu0 %5760
  %5762 = vrot.lane.b32.xlu0 %v5179, 64
  %v5763 = vpop.permute.xlu0 %5762
  %5764 = vrot.lane.b32.xlu0 %v5180, 64
  %v5765 = vpop.permute.xlu0 %5764
  %5766 = vrot.lane.b32.xlu0 %v5181, 64
  %v5767 = vpop.permute.xlu0 %5766
  %5768 = vrot.lane.b32.xlu0 %v5182, 64
  %v5769 = vpop.permute.xlu0 %5768
  %5770 = vrot.lane.b32.xlu0 %v5183, 64
  %v5771 = vpop.permute.xlu0 %5770
  %5772 = vrot.lane.b32.xlu0 %v5184, 64
  %v5773 = vpop.permute.xlu0 %5772
  %5774 = vrot.lane.b32.xlu0 %v5185, 64
  %v5775 = vpop.permute.xlu0 %5774
  %5776 = vrot.lane.b32.xlu0 %v5186, 64
  %v5777 = vpop.permute.xlu0 %5776
  %5778 = vrot.lane.b32.xlu0 %v5187, 64
  %v5779 = vpop.permute.xlu0 %5778
  %5780 = vrot.lane.b32.xlu0 %v5188, 64
  %v5781 = vpop.permute.xlu0 %5780
  %5782 = vrot.lane.b32.xlu0 %v5189, 64
  %v5783 = vpop.permute.xlu0 %5782
  %5784 = vrot.lane.b32.xlu0 %v5190, 64
  %v5785 = vpop.permute.xlu0 %5784
  %5786 = vrot.lane.b32.xlu0 %v5191, 64
  %v5787 = vpop.permute.xlu0 %5786
  %5788 = vrot.lane.b32.xlu0 %v5192, 64
  %v5789 = vpop.permute.xlu0 %5788
  %5790 = vrot.lane.b32.xlu0 %v5193, 64
  %v5791 = vpop.permute.xlu0 %5790
  %5792 = vrot.lane.b32.xlu0 %v5194, 64
  %v5793 = vpop.permute.xlu0 %5792
  %5794 = vrot.lane.b32.xlu0 %v5195, 64
  %v5795 = vpop.permute.xlu0 %5794
  %v5796 = vsel %vm565, %v2976, %v5757
  %v5797 = vsel %vm565, %v5757, %v5759
  %v5798 = vsel %vm565, %v5759, %v5761
  %v5799 = vsel %vm565, %v5761, %v5763
  %v5800 = vsel %vm565, %v5763, %v5765
  %v5801 = vsel %vm565, %v5765, %v5767
  %v5802 = vsel %vm565, %v5767, %v5769
  %v5803 = vsel %vm565, %v5769, %v5771
  %v5804 = vsel %vm565, %v5771, %v5773
  %v5805 = vsel %vm565, %v5773, %v5775
  %v5806 = vsel %vm565, %v2976, %v5777
  %v5807 = vsel %vm565, %v5777, %v5779
  %v5808 = vsel %vm565, %v5779, %v5781
  %v5809 = vsel %vm565, %v5781, %v5783
  %v5810 = vsel %vm565, %v5783, %v5785
  %v5811 = vsel %vm565, %v5785, %v5787
  %v5812 = vsel %vm565, %v5787, %v5789
  %v5813 = vsel %vm565, %v5789, %v5791
  %v5814 = vsel %vm565, %v5791, %v5793
  %v5815 = vsel %vm565, %v5793, %v5795
  %5816 = vrot.lane.b32.xlu0 %v5176, 63
  %v5817 = vpop.permute.xlu0 %5816
  %5818 = vrot.lane.b32.xlu0 %v5177, 63
  %v5819 = vpop.permute.xlu0 %5818
  %5820 = vrot.lane.b32.xlu0 %v5178, 63
  %v5821 = vpop.permute.xlu0 %5820
  %5822 = vrot.lane.b32.xlu0 %v5179, 63
  %v5823 = vpop.permute.xlu0 %5822
  %5824 = vrot.lane.b32.xlu0 %v5180, 63
  %v5825 = vpop.permute.xlu0 %5824
  %5826 = vrot.lane.b32.xlu0 %v5181, 63
  %v5827 = vpop.permute.xlu0 %5826
  %5828 = vrot.lane.b32.xlu0 %v5182, 63
  %v5829 = vpop.permute.xlu0 %5828
  %5830 = vrot.lane.b32.xlu0 %v5183, 63
  %v5831 = vpop.permute.xlu0 %5830
  %5832 = vrot.lane.b32.xlu0 %v5184, 63
  %v5833 = vpop.permute.xlu0 %5832
  %5834 = vrot.lane.b32.xlu0 %v5185, 63
  %v5835 = vpop.permute.xlu0 %5834
  %5836 = vrot.lane.b32.xlu0 %v5186, 63
  %v5837 = vpop.permute.xlu0 %5836
  %5838 = vrot.lane.b32.xlu0 %v5187, 63
  %v5839 = vpop.permute.xlu0 %5838
  %5840 = vrot.lane.b32.xlu0 %v5188, 63
  %v5841 = vpop.permute.xlu0 %5840
  %5842 = vrot.lane.b32.xlu0 %v5189, 63
  %v5843 = vpop.permute.xlu0 %5842
  %5844 = vrot.lane.b32.xlu0 %v5190, 63
  %v5845 = vpop.permute.xlu0 %5844
  %5846 = vrot.lane.b32.xlu0 %v5191, 63
  %v5847 = vpop.permute.xlu0 %5846
  %5848 = vrot.lane.b32.xlu0 %v5192, 63
  %v5849 = vpop.permute.xlu0 %5848
  %5850 = vrot.lane.b32.xlu0 %v5193, 63
  %v5851 = vpop.permute.xlu0 %5850
  %5852 = vrot.lane.b32.xlu0 %v5194, 63
  %v5853 = vpop.permute.xlu0 %5852
  %5854 = vrot.lane.b32.xlu0 %v5195, 63
  %v5855 = vpop.permute.xlu0 %5854
  %v5856 = vsel %vm598, %v3008, %v5817
  %v5857 = vsel %vm598, %v5817, %v5819
  %v5858 = vsel %vm598, %v5819, %v5821
  %v5859 = vsel %vm598, %v5821, %v5823
  %v5860 = vsel %vm598, %v5823, %v5825
  %v5861 = vsel %vm598, %v5825, %v5827
  %v5862 = vsel %vm598, %v5827, %v5829
  %v5863 = vsel %vm598, %v5829, %v5831
  %v5864 = vsel %vm598, %v5831, %v5833
  %v5865 = vsel %vm598, %v5833, %v5835
  %v5866 = vsel %vm598, %v3008, %v5837
  %v5867 = vsel %vm598, %v5837, %v5839
  %v5868 = vsel %vm598, %v5839, %v5841
  %v5869 = vsel %vm598, %v5841, %v5843
  %v5870 = vsel %vm598, %v5843, %v5845
  %v5871 = vsel %vm598, %v5845, %v5847
  %v5872 = vsel %vm598, %v5847, %v5849
  %v5873 = vsel %vm598, %v5849, %v5851
  %v5874 = vsel %vm598, %v5851, %v5853
  %v5875 = vsel %vm598, %v5853, %v5855
  %5876 = vrot.lane.b32.xlu0 %v5176, 62
  %v5877 = vpop.permute.xlu0 %5876
  %5878 = vrot.lane.b32.xlu0 %v5177, 62
  %v5879 = vpop.permute.xlu0 %5878
  %5880 = vrot.lane.b32.xlu0 %v5178, 62
  %v5881 = vpop.permute.xlu0 %5880
  %5882 = vrot.lane.b32.xlu0 %v5179, 62
  %v5883 = vpop.permute.xlu0 %5882
  %5884 = vrot.lane.b32.xlu0 %v5180, 62
  %v5885 = vpop.permute.xlu0 %5884
  %5886 = vrot.lane.b32.xlu0 %v5181, 62
  %v5887 = vpop.permute.xlu0 %5886
  %5888 = vrot.lane.b32.xlu0 %v5182, 62
  %v5889 = vpop.permute.xlu0 %5888
  %5890 = vrot.lane.b32.xlu0 %v5183, 62
  %v5891 = vpop.permute.xlu0 %5890
  %5892 = vrot.lane.b32.xlu0 %v5184, 62
  %v5893 = vpop.permute.xlu0 %5892
  %5894 = vrot.lane.b32.xlu0 %v5185, 62
  %v5895 = vpop.permute.xlu0 %5894
  %5896 = vrot.lane.b32.xlu0 %v5186, 62
  %v5897 = vpop.permute.xlu0 %5896
  %5898 = vrot.lane.b32.xlu0 %v5187, 62
  %v5899 = vpop.permute.xlu0 %5898
  %5900 = vrot.lane.b32.xlu0 %v5188, 62
  %v5901 = vpop.permute.xlu0 %5900
  %5902 = vrot.lane.b32.xlu0 %v5189, 62
  %v5903 = vpop.permute.xlu0 %5902
  %5904 = vrot.lane.b32.xlu0 %v5190, 62
  %v5905 = vpop.permute.xlu0 %5904
  %5906 = vrot.lane.b32.xlu0 %v5191, 62
  %v5907 = vpop.permute.xlu0 %5906
  %5908 = vrot.lane.b32.xlu0 %v5192, 62
  %v5909 = vpop.permute.xlu0 %5908
  %5910 = vrot.lane.b32.xlu0 %v5193, 62
  %v5911 = vpop.permute.xlu0 %5910
  %5912 = vrot.lane.b32.xlu0 %v5194, 62
  %v5913 = vpop.permute.xlu0 %5912
  %5914 = vrot.lane.b32.xlu0 %v5195, 62
  %v5915 = vpop.permute.xlu0 %5914
  %v5916 = vsel %vm629, %v5877, %v5879
  %v5917 = vsel %vm629, %v5879, %v5881
  %v5918 = vsel %vm629, %v5881, %v5883
  %v5919 = vsel %vm629, %v5883, %v5885
  %v5920 = vsel %vm629, %v5885, %v5887
  %v5921 = vsel %vm629, %v5887, %v5889
  %v5922 = vsel %vm629, %v5889, %v5891
  %v5923 = vsel %vm629, %v5891, %v5893
  %v5924 = vsel %vm629, %v5893, %v5895
  %v5925 = vsel %vm629, %v5897, %v5899
  %v5926 = vsel %vm629, %v5899, %v5901
  %v5927 = vsel %vm629, %v5901, %v5903
  %v5928 = vsel %vm629, %v5903, %v5905
  %v5929 = vsel %vm629, %v5905, %v5907
  %v5930 = vsel %vm629, %v5907, %v5909
  %v5931 = vsel %vm629, %v5909, %v5911
  %v5932 = vsel %vm629, %v5911, %v5913
  %v5933 = vsel %vm629, %v5913, %v5915
  %5934 = vrot.lane.b32.xlu0 %v5176, 61
  %v5935 = vpop.permute.xlu0 %5934
  %5936 = vrot.lane.b32.xlu0 %v5177, 61
  %v5937 = vpop.permute.xlu0 %5936
  %5938 = vrot.lane.b32.xlu0 %v5178, 61
  %v5939 = vpop.permute.xlu0 %5938
  %5940 = vrot.lane.b32.xlu0 %v5179, 61
  %v5941 = vpop.permute.xlu0 %5940
  %5942 = vrot.lane.b32.xlu0 %v5180, 61
  %v5943 = vpop.permute.xlu0 %5942
  %5944 = vrot.lane.b32.xlu0 %v5181, 61
  %v5945 = vpop.permute.xlu0 %5944
  %5946 = vrot.lane.b32.xlu0 %v5182, 61
  %v5947 = vpop.permute.xlu0 %5946
  %5948 = vrot.lane.b32.xlu0 %v5183, 61
  %v5949 = vpop.permute.xlu0 %5948
  %5950 = vrot.lane.b32.xlu0 %v5184, 61
  %v5951 = vpop.permute.xlu0 %5950
  %5952 = vrot.lane.b32.xlu0 %v5185, 61
  %v5953 = vpop.permute.xlu0 %5952
  %5954 = vrot.lane.b32.xlu0 %v5186, 61
  %v5955 = vpop.permute.xlu0 %5954
  %5956 = vrot.lane.b32.xlu0 %v5187, 61
  %v5957 = vpop.permute.xlu0 %5956
  %5958 = vrot.lane.b32.xlu0 %v5188, 61
  %v5959 = vpop.permute.xlu0 %5958
  %5960 = vrot.lane.b32.xlu0 %v5189, 61
  %v5961 = vpop.permute.xlu0 %5960
  %5962 = vrot.lane.b32.xlu0 %v5190, 61
  %v5963 = vpop.permute.xlu0 %5962
  %5964 = vrot.lane.b32.xlu0 %v5191, 61
  %v5965 = vpop.permute.xlu0 %5964
  %5966 = vrot.lane.b32.xlu0 %v5192, 61
  %v5967 = vpop.permute.xlu0 %5966
  %5968 = vrot.lane.b32.xlu0 %v5193, 61
  %v5969 = vpop.permute.xlu0 %5968
  %5970 = vrot.lane.b32.xlu0 %v5194, 61
  %v5971 = vpop.permute.xlu0 %5970
  %5972 = vrot.lane.b32.xlu0 %v5195, 61
  %v5973 = vpop.permute.xlu0 %5972
  %v5974 = vsel %vm662, %v5935, %v5937
  %v5975 = vsel %vm662, %v5937, %v5939
  %v5976 = vsel %vm662, %v5939, %v5941
  %v5977 = vsel %vm662, %v5941, %v5943
  %v5978 = vsel %vm662, %v5943, %v5945
  %v5979 = vsel %vm662, %v5945, %v5947
  %v5980 = vsel %vm662, %v5947, %v5949
  %v5981 = vsel %vm662, %v5949, %v5951
  %v5982 = vsel %vm662, %v5951, %v5953
  %v5983 = vsel %vm662, %v5953, %v3089
  %v5984 = vsel %vm662, %v5955, %v5957
  %v5985 = vsel %vm662, %v5957, %v5959
  %v5986 = vsel %vm662, %v5959, %v5961
  %v5987 = vsel %vm662, %v5961, %v5963
  %v5988 = vsel %vm662, %v5963, %v5965
  %v5989 = vsel %vm662, %v5965, %v5967
  %v5990 = vsel %vm662, %v5967, %v5969
  %v5991 = vsel %vm662, %v5969, %v5971
  %v5992 = vsel %vm662, %v5971, %v5973
  %v5993 = vsel %vm662, %v5973, %v3089
  %5994 = vrot.lane.b32.xlu0 %v5176, 60
  %v5995 = vpop.permute.xlu0 %5994
  %5996 = vrot.lane.b32.xlu0 %v5177, 60
  %v5997 = vpop.permute.xlu0 %5996
  %5998 = vrot.lane.b32.xlu0 %v5178, 60
  %v5999 = vpop.permute.xlu0 %5998
  %6000 = vrot.lane.b32.xlu0 %v5179, 60
  %v6001 = vpop.permute.xlu0 %6000
  %6002 = vrot.lane.b32.xlu0 %v5180, 60
  %v6003 = vpop.permute.xlu0 %6002
  %6004 = vrot.lane.b32.xlu0 %v5181, 60
  %v6005 = vpop.permute.xlu0 %6004
  %6006 = vrot.lane.b32.xlu0 %v5182, 60
  %v6007 = vpop.permute.xlu0 %6006
  %6008 = vrot.lane.b32.xlu0 %v5183, 60
  %v6009 = vpop.permute.xlu0 %6008
  %6010 = vrot.lane.b32.xlu0 %v5184, 60
  %v6011 = vpop.permute.xlu0 %6010
  %6012 = vrot.lane.b32.xlu0 %v5185, 60
  %v6013 = vpop.permute.xlu0 %6012
  %6014 = vrot.lane.b32.xlu0 %v5186, 60
  %v6015 = vpop.permute.xlu0 %6014
  %6016 = vrot.lane.b32.xlu0 %v5187, 60
  %v6017 = vpop.permute.xlu0 %6016
  %6018 = vrot.lane.b32.xlu0 %v5188, 60
  %v6019 = vpop.permute.xlu0 %6018
  %6020 = vrot.lane.b32.xlu0 %v5189, 60
  %v6021 = vpop.permute.xlu0 %6020
  %6022 = vrot.lane.b32.xlu0 %v5190, 60
  %v6023 = vpop.permute.xlu0 %6022
  %6024 = vrot.lane.b32.xlu0 %v5191, 60
  %v6025 = vpop.permute.xlu0 %6024
  %6026 = vrot.lane.b32.xlu0 %v5192, 60
  %v6027 = vpop.permute.xlu0 %6026
  %6028 = vrot.lane.b32.xlu0 %v5193, 60
  %v6029 = vpop.permute.xlu0 %6028
  %6030 = vrot.lane.b32.xlu0 %v5194, 60
  %v6031 = vpop.permute.xlu0 %6030
  %6032 = vrot.lane.b32.xlu0 %v5195, 60
  %v6033 = vpop.permute.xlu0 %6032
  %v6034 = vsel %vm695, %v5995, %v5997
  %v6035 = vsel %vm695, %v5997, %v5999
  %v6036 = vsel %vm695, %v5999, %v6001
  %v6037 = vsel %vm695, %v6001, %v6003
  %v6038 = vsel %vm695, %v6003, %v6005
  %v6039 = vsel %vm695, %v6005, %v6007
  %v6040 = vsel %vm695, %v6007, %v6009
  %v6041 = vsel %vm695, %v6009, %v6011
  %v6042 = vsel %vm695, %v6011, %v6013
  %v6043 = vsel %vm695, %v6013, %v3121
  %v6044 = vsel %vm695, %v6015, %v6017
  %v6045 = vsel %vm695, %v6017, %v6019
  %v6046 = vsel %vm695, %v6019, %v6021
  %v6047 = vsel %vm695, %v6021, %v6023
  %v6048 = vsel %vm695, %v6023, %v6025
  %v6049 = vsel %vm695, %v6025, %v6027
  %v6050 = vsel %vm695, %v6027, %v6029
  %v6051 = vsel %vm695, %v6029, %v6031
  %v6052 = vsel %vm695, %v6031, %v6033
  %v6053 = vsel %vm695, %v6033, %v3121
  %6054 = vrot.lane.b32.xlu0 %v5176, 32
  %v6055 = vpop.permute.xlu0 %6054
  %6056 = vrot.lane.b32.xlu0 %v5177, 32
  %v6057 = vpop.permute.xlu0 %6056
  %6058 = vrot.lane.b32.xlu0 %v5178, 32
  %v6059 = vpop.permute.xlu0 %6058
  %6060 = vrot.lane.b32.xlu0 %v5179, 32
  %v6061 = vpop.permute.xlu0 %6060
  %6062 = vrot.lane.b32.xlu0 %v5180, 32
  %v6063 = vpop.permute.xlu0 %6062
  %6064 = vrot.lane.b32.xlu0 %v5181, 32
  %v6065 = vpop.permute.xlu0 %6064
  %6066 = vrot.lane.b32.xlu0 %v5182, 32
  %v6067 = vpop.permute.xlu0 %6066
  %6068 = vrot.lane.b32.xlu0 %v5183, 32
  %v6069 = vpop.permute.xlu0 %6068
  %6070 = vrot.lane.b32.xlu0 %v5184, 32
  %v6071 = vpop.permute.xlu0 %6070
  %6072 = vrot.lane.b32.xlu0 %v5185, 32
  %v6073 = vpop.permute.xlu0 %6072
  %6074 = vrot.lane.b32.xlu0 %v5186, 32
  %v6075 = vpop.permute.xlu0 %6074
  %6076 = vrot.lane.b32.xlu0 %v5187, 32
  %v6077 = vpop.permute.xlu0 %6076
  %6078 = vrot.lane.b32.xlu0 %v5188, 32
  %v6079 = vpop.permute.xlu0 %6078
  %6080 = vrot.lane.b32.xlu0 %v5189, 32
  %v6081 = vpop.permute.xlu0 %6080
  %6082 = vrot.lane.b32.xlu0 %v5190, 32
  %v6083 = vpop.permute.xlu0 %6082
  %6084 = vrot.lane.b32.xlu0 %v5191, 32
  %v6085 = vpop.permute.xlu0 %6084
  %6086 = vrot.lane.b32.xlu0 %v5192, 32
  %v6087 = vpop.permute.xlu0 %6086
  %6088 = vrot.lane.b32.xlu0 %v5193, 32
  %v6089 = vpop.permute.xlu0 %6088
  %6090 = vrot.lane.b32.xlu0 %v5194, 32
  %v6091 = vpop.permute.xlu0 %6090
  %6092 = vrot.lane.b32.xlu0 %v5195, 32
  %v6093 = vpop.permute.xlu0 %6092
  %v6094 = vsel %vm728, %v6055, %v6057
  %v6095 = vsel %vm728, %v6057, %v6059
  %v6096 = vsel %vm728, %v6059, %v6061
  %v6097 = vsel %vm728, %v6061, %v6063
  %v6098 = vsel %vm728, %v6063, %v6065
  %v6099 = vsel %vm728, %v6065, %v6067
  %v6100 = vsel %vm728, %v6067, %v6069
  %v6101 = vsel %vm728, %v6069, %v6071
  %v6102 = vsel %vm728, %v6071, %v6073
  %v6103 = vsel %vm728, %v6073, %v3153
  %v6104 = vsel %vm728, %v6075, %v6077
  %v6105 = vsel %vm728, %v6077, %v6079
  %v6106 = vsel %vm728, %v6079, %v6081
  %v6107 = vsel %vm728, %v6081, %v6083
  %v6108 = vsel %vm728, %v6083, %v6085
  %v6109 = vsel %vm728, %v6085, %v6087
  %v6110 = vsel %vm728, %v6087, %v6089
  %v6111 = vsel %vm728, %v6089, %v6091
  %v6112 = vsel %vm728, %v6091, %v6093
  %v6113 = vsel %vm728, %v6093, %v3153
  %v6114 = vsel %vm268, %v5235, %v2688
  %v6115 = vsel %vm268, %v5255, %v2688
  %v6116 = vsel %vm301, %v5295, %v2720
  %v6117 = vsel %vm301, %v5315, %v2720
  %v6118 = vsel %vm334, %v5355, %v2752
  %v6119 = vsel %vm334, %v5375, %v2752
  %6120 = vrot.lane.b32.xlu0 %v5176, 97
  %v6121 = vpop.permute.xlu0 %6120
  %6122 = vrot.lane.b32.xlu0 %v5177, 97
  %v6123 = vpop.permute.xlu0 %6122
  %6124 = vrot.lane.b32.xlu0 %v5178, 97
  %v6125 = vpop.permute.xlu0 %6124
  %6126 = vrot.lane.b32.xlu0 %v5179, 97
  %v6127 = vpop.permute.xlu0 %6126
  %6128 = vrot.lane.b32.xlu0 %v5180, 97
  %v6129 = vpop.permute.xlu0 %6128
  %6130 = vrot.lane.b32.xlu0 %v5181, 97
  %v6131 = vpop.permute.xlu0 %6130
  %6132 = vrot.lane.b32.xlu0 %v5182, 97
  %v6133 = vpop.permute.xlu0 %6132
  %6134 = vrot.lane.b32.xlu0 %v5183, 97
  %v6135 = vpop.permute.xlu0 %6134
  %6136 = vrot.lane.b32.xlu0 %v5184, 97
  %v6137 = vpop.permute.xlu0 %6136
  %6138 = vrot.lane.b32.xlu0 %v5185, 97
  %v6139 = vpop.permute.xlu0 %6138
  %6140 = vrot.lane.b32.xlu0 %v5186, 97
  %v6141 = vpop.permute.xlu0 %6140
  %6142 = vrot.lane.b32.xlu0 %v5187, 97
  %v6143 = vpop.permute.xlu0 %6142
  %6144 = vrot.lane.b32.xlu0 %v5188, 97
  %v6145 = vpop.permute.xlu0 %6144
  %6146 = vrot.lane.b32.xlu0 %v5189, 97
  %v6147 = vpop.permute.xlu0 %6146
  %6148 = vrot.lane.b32.xlu0 %v5190, 97
  %v6149 = vpop.permute.xlu0 %6148
  %6150 = vrot.lane.b32.xlu0 %v5191, 97
  %v6151 = vpop.permute.xlu0 %6150
  %6152 = vrot.lane.b32.xlu0 %v5192, 97
  %v6153 = vpop.permute.xlu0 %6152
  %6154 = vrot.lane.b32.xlu0 %v5193, 97
  %v6155 = vpop.permute.xlu0 %6154
  %6156 = vrot.lane.b32.xlu0 %v5194, 97
  %v6157 = vpop.permute.xlu0 %6156
  %6158 = vrot.lane.b32.xlu0 %v5195, 97
  %v6159 = vpop.permute.xlu0 %6158
  %v6160 = vsel %vm770, %v6121, %v6123
  %v6161 = vsel %vm770, %v6123, %v6125
  %v6162 = vsel %vm770, %v6125, %v6127
  %v6163 = vsel %vm770, %v6127, %v6129
  %v6164 = vsel %vm770, %v6129, %v6131
  %v6165 = vsel %vm770, %v6131, %v6133
  %v6166 = vsel %vm770, %v6133, %v6135
  %v6167 = vsel %vm770, %v6135, %v6137
  %v6168 = vsel %vm770, %v6137, %v6139
  %v6169 = vsel %vm770, %v6139, %v3188
  %v6170 = vsel %vm770, %v6141, %v6143
  %v6171 = vsel %vm770, %v6143, %v6145
  %v6172 = vsel %vm770, %v6145, %v6147
  %v6173 = vsel %vm770, %v6147, %v6149
  %v6174 = vsel %vm770, %v6149, %v6151
  %v6175 = vsel %vm770, %v6151, %v6153
  %v6176 = vsel %vm770, %v6153, %v6155
  %v6177 = vsel %vm770, %v6155, %v6157
  %v6178 = vsel %vm770, %v6157, %v6159
  %v6179 = vsel %vm770, %v6159, %v3188
  %v6180 = vsel %vm400, %v5475, %v2816
  %v6181 = vsel %vm400, %v5495, %v2816
  %v6182 = vsel %vm433, %v5535, %v2848
  %v6183 = vsel %vm433, %v5555, %v2848
  %v6184 = vsel %vm466, %v5595, %v2880
  %v6185 = vsel %vm466, %v5615, %v2880
  %v6186 = vsel %vm499, %v5655, %v2912
  %v6187 = vsel %vm499, %v5675, %v2912
  %6188 = vrot.lane.b32.xlu0 %v5176, 31
  %v6189 = vpop.permute.xlu0 %6188
  %6190 = vrot.lane.b32.xlu0 %v5177, 31
  %v6191 = vpop.permute.xlu0 %6190
  %6192 = vrot.lane.b32.xlu0 %v5178, 31
  %v6193 = vpop.permute.xlu0 %6192
  %6194 = vrot.lane.b32.xlu0 %v5179, 31
  %v6195 = vpop.permute.xlu0 %6194
  %6196 = vrot.lane.b32.xlu0 %v5180, 31
  %v6197 = vpop.permute.xlu0 %6196
  %6198 = vrot.lane.b32.xlu0 %v5181, 31
  %v6199 = vpop.permute.xlu0 %6198
  %6200 = vrot.lane.b32.xlu0 %v5182, 31
  %v6201 = vpop.permute.xlu0 %6200
  %6202 = vrot.lane.b32.xlu0 %v5183, 31
  %v6203 = vpop.permute.xlu0 %6202
  %6204 = vrot.lane.b32.xlu0 %v5184, 31
  %v6205 = vpop.permute.xlu0 %6204
  %6206 = vrot.lane.b32.xlu0 %v5185, 31
  %v6207 = vpop.permute.xlu0 %6206
  %6208 = vrot.lane.b32.xlu0 %v5186, 31
  %v6209 = vpop.permute.xlu0 %6208
  %6210 = vrot.lane.b32.xlu0 %v5187, 31
  %v6211 = vpop.permute.xlu0 %6210
  %6212 = vrot.lane.b32.xlu0 %v5188, 31
  %v6213 = vpop.permute.xlu0 %6212
  %6214 = vrot.lane.b32.xlu0 %v5189, 31
  %v6215 = vpop.permute.xlu0 %6214
  %6216 = vrot.lane.b32.xlu0 %v5190, 31
  %v6217 = vpop.permute.xlu0 %6216
  %6218 = vrot.lane.b32.xlu0 %v5191, 31
  %v6219 = vpop.permute.xlu0 %6218
  %6220 = vrot.lane.b32.xlu0 %v5192, 31
  %v6221 = vpop.permute.xlu0 %6220
  %6222 = vrot.lane.b32.xlu0 %v5193, 31
  %v6223 = vpop.permute.xlu0 %6222
  %6224 = vrot.lane.b32.xlu0 %v5194, 31
  %v6225 = vpop.permute.xlu0 %6224
  %6226 = vrot.lane.b32.xlu0 %v5195, 31
  %v6227 = vpop.permute.xlu0 %6226
  %6228 = vrot.lane.b32.xlu0 %v5257, 31
  %v6229 = vpop.permute.xlu0 %6228
  %6230 = vrot.lane.b32.xlu0 %v5258, 31
  %v6231 = vpop.permute.xlu0 %6230
  %6232 = vrot.lane.b32.xlu0 %v5259, 31
  %v6233 = vpop.permute.xlu0 %6232
  %6234 = vrot.lane.b32.xlu0 %v5260, 31
  %v6235 = vpop.permute.xlu0 %6234
  %6236 = vrot.lane.b32.xlu0 %v5261, 31
  %v6237 = vpop.permute.xlu0 %6236
  %6238 = vrot.lane.b32.xlu0 %v5262, 31
  %v6239 = vpop.permute.xlu0 %6238
  %6240 = vrot.lane.b32.xlu0 %v5263, 31
  %v6241 = vpop.permute.xlu0 %6240
  %6242 = vrot.lane.b32.xlu0 %v5264, 31
  %v6243 = vpop.permute.xlu0 %6242
  %6244 = vrot.lane.b32.xlu0 %v5265, 31
  %v6245 = vpop.permute.xlu0 %6244
  %6246 = vrot.lane.b32.xlu0 %v6114, 31
  %v6247 = vpop.permute.xlu0 %6246
  %6248 = vrot.lane.b32.xlu0 %v5267, 31
  %v6249 = vpop.permute.xlu0 %6248
  %6250 = vrot.lane.b32.xlu0 %v5268, 31
  %v6251 = vpop.permute.xlu0 %6250
  %6252 = vrot.lane.b32.xlu0 %v5269, 31
  %v6253 = vpop.permute.xlu0 %6252
  %6254 = vrot.lane.b32.xlu0 %v5270, 31
  %v6255 = vpop.permute.xlu0 %6254
  %6256 = vrot.lane.b32.xlu0 %v5271, 31
  %v6257 = vpop.permute.xlu0 %6256
  %6258 = vrot.lane.b32.xlu0 %v5272, 31
  %v6259 = vpop.permute.xlu0 %6258
  %6260 = vrot.lane.b32.xlu0 %v5273, 31
  %v6261 = vpop.permute.xlu0 %6260
  %6262 = vrot.lane.b32.xlu0 %v5274, 31
  %v6263 = vpop.permute.xlu0 %6262
  %6264 = vrot.lane.b32.xlu0 %v5275, 31
  %v6265 = vpop.permute.xlu0 %6264
  %6266 = vrot.lane.b32.xlu0 %v6115, 31
  %v6267 = vpop.permute.xlu0 %6266
  %6268 = vrot.lane.b32.xlu0 %v5317, 31
  %v6269 = vpop.permute.xlu0 %6268
  %6270 = vrot.lane.b32.xlu0 %v5318, 31
  %v6271 = vpop.permute.xlu0 %6270
  %6272 = vrot.lane.b32.xlu0 %v5319, 31
  %v6273 = vpop.permute.xlu0 %6272
  %6274 = vrot.lane.b32.xlu0 %v5320, 31
  %v6275 = vpop.permute.xlu0 %6274
  %6276 = vrot.lane.b32.xlu0 %v5321, 31
  %v6277 = vpop.permute.xlu0 %6276
  %6278 = vrot.lane.b32.xlu0 %v5322, 31
  %v6279 = vpop.permute.xlu0 %6278
  %6280 = vrot.lane.b32.xlu0 %v5323, 31
  %v6281 = vpop.permute.xlu0 %6280
  %6282 = vrot.lane.b32.xlu0 %v5324, 31
  %v6283 = vpop.permute.xlu0 %6282
  %6284 = vrot.lane.b32.xlu0 %v5325, 31
  %v6285 = vpop.permute.xlu0 %6284
  %6286 = vrot.lane.b32.xlu0 %v6116, 31
  %v6287 = vpop.permute.xlu0 %6286
  %6288 = vrot.lane.b32.xlu0 %v5327, 31
  %v6289 = vpop.permute.xlu0 %6288
  %6290 = vrot.lane.b32.xlu0 %v5328, 31
  %v6291 = vpop.permute.xlu0 %6290
  %6292 = vrot.lane.b32.xlu0 %v5329, 31
  %v6293 = vpop.permute.xlu0 %6292
  %6294 = vrot.lane.b32.xlu0 %v5330, 31
  %v6295 = vpop.permute.xlu0 %6294
  %6296 = vrot.lane.b32.xlu0 %v5331, 31
  %v6297 = vpop.permute.xlu0 %6296
  %6298 = vrot.lane.b32.xlu0 %v5332, 31
  %v6299 = vpop.permute.xlu0 %6298
  %6300 = vrot.lane.b32.xlu0 %v5333, 31
  %v6301 = vpop.permute.xlu0 %6300
  %6302 = vrot.lane.b32.xlu0 %v5334, 31
  %v6303 = vpop.permute.xlu0 %6302
  %6304 = vrot.lane.b32.xlu0 %v5335, 31
  %v6305 = vpop.permute.xlu0 %6304
  %6306 = vrot.lane.b32.xlu0 %v6117, 31
  %v6307 = vpop.permute.xlu0 %6306
  %6308 = vrot.lane.b32.xlu0 %v5377, 31
  %v6309 = vpop.permute.xlu0 %6308
  %6310 = vrot.lane.b32.xlu0 %v5378, 31
  %v6311 = vpop.permute.xlu0 %6310
  %6312 = vrot.lane.b32.xlu0 %v5379, 31
  %v6313 = vpop.permute.xlu0 %6312
  %6314 = vrot.lane.b32.xlu0 %v5380, 31
  %v6315 = vpop.permute.xlu0 %6314
  %6316 = vrot.lane.b32.xlu0 %v5381, 31
  %v6317 = vpop.permute.xlu0 %6316
  %6318 = vrot.lane.b32.xlu0 %v5382, 31
  %v6319 = vpop.permute.xlu0 %6318
  %6320 = vrot.lane.b32.xlu0 %v5383, 31
  %v6321 = vpop.permute.xlu0 %6320
  %6322 = vrot.lane.b32.xlu0 %v5384, 31
  %v6323 = vpop.permute.xlu0 %6322
  %6324 = vrot.lane.b32.xlu0 %v5385, 31
  %v6325 = vpop.permute.xlu0 %6324
  %6326 = vrot.lane.b32.xlu0 %v6118, 31
  %v6327 = vpop.permute.xlu0 %6326
  %6328 = vrot.lane.b32.xlu0 %v5387, 31
  %v6329 = vpop.permute.xlu0 %6328
  %6330 = vrot.lane.b32.xlu0 %v5388, 31
  %v6331 = vpop.permute.xlu0 %6330
  %6332 = vrot.lane.b32.xlu0 %v5389, 31
  %v6333 = vpop.permute.xlu0 %6332
  %6334 = vrot.lane.b32.xlu0 %v5390, 31
  %v6335 = vpop.permute.xlu0 %6334
  %6336 = vrot.lane.b32.xlu0 %v5391, 31
  %v6337 = vpop.permute.xlu0 %6336
  %6338 = vrot.lane.b32.xlu0 %v5392, 31
  %v6339 = vpop.permute.xlu0 %6338
  %6340 = vrot.lane.b32.xlu0 %v5393, 31
  %v6341 = vpop.permute.xlu0 %6340
  %6342 = vrot.lane.b32.xlu0 %v5394, 31
  %v6343 = vpop.permute.xlu0 %6342
  %6344 = vrot.lane.b32.xlu0 %v5395, 31
  %v6345 = vpop.permute.xlu0 %6344
  %6346 = vrot.lane.b32.xlu0 %v6119, 31
  %v6347 = vpop.permute.xlu0 %6346
  %6348 = vrot.lane.b32.xlu0 %v6160, 31
  %v6349 = vpop.permute.xlu0 %6348
  %6350 = vrot.lane.b32.xlu0 %v6161, 31
  %v6351 = vpop.permute.xlu0 %6350
  %6352 = vrot.lane.b32.xlu0 %v6162, 31
  %v6353 = vpop.permute.xlu0 %6352
  %6354 = vrot.lane.b32.xlu0 %v6163, 31
  %v6355 = vpop.permute.xlu0 %6354
  %6356 = vrot.lane.b32.xlu0 %v6164, 31
  %v6357 = vpop.permute.xlu0 %6356
  %6358 = vrot.lane.b32.xlu0 %v6165, 31
  %v6359 = vpop.permute.xlu0 %6358
  %6360 = vrot.lane.b32.xlu0 %v6166, 31
  %v6361 = vpop.permute.xlu0 %6360
  %6362 = vrot.lane.b32.xlu0 %v6167, 31
  %v6363 = vpop.permute.xlu0 %6362
  %6364 = vrot.lane.b32.xlu0 %v6168, 31
  %v6365 = vpop.permute.xlu0 %6364
  %6366 = vrot.lane.b32.xlu0 %v6169, 31
  %v6367 = vpop.permute.xlu0 %6366
  %6368 = vrot.lane.b32.xlu0 %v6170, 31
  %v6369 = vpop.permute.xlu0 %6368
  %6370 = vrot.lane.b32.xlu0 %v6171, 31
  %v6371 = vpop.permute.xlu0 %6370
  %6372 = vrot.lane.b32.xlu0 %v6172, 31
  %v6373 = vpop.permute.xlu0 %6372
  %6374 = vrot.lane.b32.xlu0 %v6173, 31
  %v6375 = vpop.permute.xlu0 %6374
  %6376 = vrot.lane.b32.xlu0 %v6174, 31
  %v6377 = vpop.permute.xlu0 %6376
  %6378 = vrot.lane.b32.xlu0 %v6175, 31
  %v6379 = vpop.permute.xlu0 %6378
  %6380 = vrot.lane.b32.xlu0 %v6176, 31
  %v6381 = vpop.permute.xlu0 %6380
  %6382 = vrot.lane.b32.xlu0 %v6177, 31
  %v6383 = vpop.permute.xlu0 %6382
  %6384 = vrot.lane.b32.xlu0 %v6178, 31
  %v6385 = vpop.permute.xlu0 %6384
  %6386 = vrot.lane.b32.xlu0 %v6179, 31
  %v6387 = vpop.permute.xlu0 %6386
  %6388 = vrot.lane.b32.xlu0 %v5497, 31
  %v6389 = vpop.permute.xlu0 %6388
  %6390 = vrot.lane.b32.xlu0 %v5498, 31
  %v6391 = vpop.permute.xlu0 %6390
  %6392 = vrot.lane.b32.xlu0 %v5499, 31
  %v6393 = vpop.permute.xlu0 %6392
  %6394 = vrot.lane.b32.xlu0 %v5500, 31
  %v6395 = vpop.permute.xlu0 %6394
  %6396 = vrot.lane.b32.xlu0 %v5501, 31
  %v6397 = vpop.permute.xlu0 %6396
  %6398 = vrot.lane.b32.xlu0 %v5502, 31
  %v6399 = vpop.permute.xlu0 %6398
  %6400 = vrot.lane.b32.xlu0 %v5503, 31
  %v6401 = vpop.permute.xlu0 %6400
  %6402 = vrot.lane.b32.xlu0 %v5504, 31
  %v6403 = vpop.permute.xlu0 %6402
  %6404 = vrot.lane.b32.xlu0 %v5505, 31
  %v6405 = vpop.permute.xlu0 %6404
  %6406 = vrot.lane.b32.xlu0 %v6180, 31
  %v6407 = vpop.permute.xlu0 %6406
  %6408 = vrot.lane.b32.xlu0 %v5507, 31
  %v6409 = vpop.permute.xlu0 %6408
  %6410 = vrot.lane.b32.xlu0 %v5508, 31
  %v6411 = vpop.permute.xlu0 %6410
  %6412 = vrot.lane.b32.xlu0 %v5509, 31
  %v6413 = vpop.permute.xlu0 %6412
  %6414 = vrot.lane.b32.xlu0 %v5510, 31
  %v6415 = vpop.permute.xlu0 %6414
  %6416 = vrot.lane.b32.xlu0 %v5511, 31
  %v6417 = vpop.permute.xlu0 %6416
  %6418 = vrot.lane.b32.xlu0 %v5512, 31
  %v6419 = vpop.permute.xlu0 %6418
  %6420 = vrot.lane.b32.xlu0 %v5513, 31
  %v6421 = vpop.permute.xlu0 %6420
  %6422 = vrot.lane.b32.xlu0 %v5514, 31
  %v6423 = vpop.permute.xlu0 %6422
  %6424 = vrot.lane.b32.xlu0 %v5515, 31
  %v6425 = vpop.permute.xlu0 %6424
  %6426 = vrot.lane.b32.xlu0 %v6181, 31
  %v6427 = vpop.permute.xlu0 %6426
  %6428 = vrot.lane.b32.xlu0 %v5557, 31
  %v6429 = vpop.permute.xlu0 %6428
  %6430 = vrot.lane.b32.xlu0 %v5558, 31
  %v6431 = vpop.permute.xlu0 %6430
  %6432 = vrot.lane.b32.xlu0 %v5559, 31
  %v6433 = vpop.permute.xlu0 %6432
  %6434 = vrot.lane.b32.xlu0 %v5560, 31
  %v6435 = vpop.permute.xlu0 %6434
  %6436 = vrot.lane.b32.xlu0 %v5561, 31
  %v6437 = vpop.permute.xlu0 %6436
  %6438 = vrot.lane.b32.xlu0 %v5562, 31
  %v6439 = vpop.permute.xlu0 %6438
  %6440 = vrot.lane.b32.xlu0 %v5563, 31
  %v6441 = vpop.permute.xlu0 %6440
  %6442 = vrot.lane.b32.xlu0 %v5564, 31
  %v6443 = vpop.permute.xlu0 %6442
  %6444 = vrot.lane.b32.xlu0 %v5565, 31
  %v6445 = vpop.permute.xlu0 %6444
  %6446 = vrot.lane.b32.xlu0 %v6182, 31
  %v6447 = vpop.permute.xlu0 %6446
  %6448 = vrot.lane.b32.xlu0 %v5567, 31
  %v6449 = vpop.permute.xlu0 %6448
  %6450 = vrot.lane.b32.xlu0 %v5568, 31
  %v6451 = vpop.permute.xlu0 %6450
  %6452 = vrot.lane.b32.xlu0 %v5569, 31
  %v6453 = vpop.permute.xlu0 %6452
  %6454 = vrot.lane.b32.xlu0 %v5570, 31
  %v6455 = vpop.permute.xlu0 %6454
  %6456 = vrot.lane.b32.xlu0 %v5571, 31
  %v6457 = vpop.permute.xlu0 %6456
  %6458 = vrot.lane.b32.xlu0 %v5572, 31
  %v6459 = vpop.permute.xlu0 %6458
  %6460 = vrot.lane.b32.xlu0 %v5573, 31
  %v6461 = vpop.permute.xlu0 %6460
  %6462 = vrot.lane.b32.xlu0 %v5574, 31
  %v6463 = vpop.permute.xlu0 %6462
  %6464 = vrot.lane.b32.xlu0 %v5575, 31
  %v6465 = vpop.permute.xlu0 %6464
  %6466 = vrot.lane.b32.xlu0 %v6183, 31
  %v6467 = vpop.permute.xlu0 %6466
  %6468 = vrot.lane.b32.xlu0 %v5617, 31
  %v6469 = vpop.permute.xlu0 %6468
  %6470 = vrot.lane.b32.xlu0 %v5618, 31
  %v6471 = vpop.permute.xlu0 %6470
  %6472 = vrot.lane.b32.xlu0 %v5619, 31
  %v6473 = vpop.permute.xlu0 %6472
  %6474 = vrot.lane.b32.xlu0 %v5620, 31
  %v6475 = vpop.permute.xlu0 %6474
  %6476 = vrot.lane.b32.xlu0 %v5621, 31
  %v6477 = vpop.permute.xlu0 %6476
  %6478 = vrot.lane.b32.xlu0 %v5622, 31
  %v6479 = vpop.permute.xlu0 %6478
  %6480 = vrot.lane.b32.xlu0 %v5623, 31
  %v6481 = vpop.permute.xlu0 %6480
  %6482 = vrot.lane.b32.xlu0 %v5624, 31
  %v6483 = vpop.permute.xlu0 %6482
  %6484 = vrot.lane.b32.xlu0 %v5625, 31
  %v6485 = vpop.permute.xlu0 %6484
  %6486 = vrot.lane.b32.xlu0 %v6184, 31
  %v6487 = vpop.permute.xlu0 %6486
  %6488 = vrot.lane.b32.xlu0 %v5627, 31
  %v6489 = vpop.permute.xlu0 %6488
  %6490 = vrot.lane.b32.xlu0 %v5628, 31
  %v6491 = vpop.permute.xlu0 %6490
  %6492 = vrot.lane.b32.xlu0 %v5629, 31
  %v6493 = vpop.permute.xlu0 %6492
  %6494 = vrot.lane.b32.xlu0 %v5630, 31
  %v6495 = vpop.permute.xlu0 %6494
  %6496 = vrot.lane.b32.xlu0 %v5631, 31
  %v6497 = vpop.permute.xlu0 %6496
  %6498 = vrot.lane.b32.xlu0 %v5632, 31
  %v6499 = vpop.permute.xlu0 %6498
  %6500 = vrot.lane.b32.xlu0 %v5633, 31
  %v6501 = vpop.permute.xlu0 %6500
  %6502 = vrot.lane.b32.xlu0 %v5634, 31
  %v6503 = vpop.permute.xlu0 %6502
  %6504 = vrot.lane.b32.xlu0 %v5635, 31
  %v6505 = vpop.permute.xlu0 %6504
  %6506 = vrot.lane.b32.xlu0 %v6185, 31
  %v6507 = vpop.permute.xlu0 %6506
  %6508 = vrot.lane.b32.xlu0 %v5677, 31
  %v6509 = vpop.permute.xlu0 %6508
  %6510 = vrot.lane.b32.xlu0 %v5678, 31
  %v6511 = vpop.permute.xlu0 %6510
  %6512 = vrot.lane.b32.xlu0 %v5679, 31
  %v6513 = vpop.permute.xlu0 %6512
  %6514 = vrot.lane.b32.xlu0 %v5680, 31
  %v6515 = vpop.permute.xlu0 %6514
  %6516 = vrot.lane.b32.xlu0 %v5681, 31
  %v6517 = vpop.permute.xlu0 %6516
  %6518 = vrot.lane.b32.xlu0 %v5682, 31
  %v6519 = vpop.permute.xlu0 %6518
  %6520 = vrot.lane.b32.xlu0 %v5683, 31
  %v6521 = vpop.permute.xlu0 %6520
  %6522 = vrot.lane.b32.xlu0 %v5684, 31
  %v6523 = vpop.permute.xlu0 %6522
  %6524 = vrot.lane.b32.xlu0 %v5685, 31
  %v6525 = vpop.permute.xlu0 %6524
  %6526 = vrot.lane.b32.xlu0 %v6186, 31
  %v6527 = vpop.permute.xlu0 %6526
  %6528 = vrot.lane.b32.xlu0 %v5687, 31
  %v6529 = vpop.permute.xlu0 %6528
  %6530 = vrot.lane.b32.xlu0 %v5688, 31
  %v6531 = vpop.permute.xlu0 %6530
  %6532 = vrot.lane.b32.xlu0 %v5689, 31
  %v6533 = vpop.permute.xlu0 %6532
  %6534 = vrot.lane.b32.xlu0 %v5690, 31
  %v6535 = vpop.permute.xlu0 %6534
  %6536 = vrot.lane.b32.xlu0 %v5691, 31
  %v6537 = vpop.permute.xlu0 %6536
  %6538 = vrot.lane.b32.xlu0 %v5692, 31
  %v6539 = vpop.permute.xlu0 %6538
  %6540 = vrot.lane.b32.xlu0 %v5693, 31
  %v6541 = vpop.permute.xlu0 %6540
  %6542 = vrot.lane.b32.xlu0 %v5694, 31
  %v6543 = vpop.permute.xlu0 %6542
  %6544 = vrot.lane.b32.xlu0 %v5695, 31
  %v6545 = vpop.permute.xlu0 %6544
  %6546 = vrot.lane.b32.xlu0 %v6187, 31
  %v6547 = vpop.permute.xlu0 %6546
  %v6548 = vsel %vm991, %v6189, %v6191
  %v6549 = vsel %vm991, %v6191, %v6193
  %v6550 = vsel %vm991, %v6193, %v6195
  %v6551 = vsel %vm991, %v6195, %v6197
  %v6552 = vsel %vm991, %v6197, %v6199
  %v6553 = vsel %vm991, %v6199, %v6201
  %v6554 = vsel %vm991, %v6201, %v6203
  %v6555 = vsel %vm991, %v6203, %v6205
  %v6556 = vsel %vm991, %v6205, %v6207
  %v6557 = vsel %vm991, %v6207, %v3224
  %v6558 = vsel %vm991, %v6209, %v6211
  %v6559 = vsel %vm991, %v6211, %v6213
  %v6560 = vsel %vm991, %v6213, %v6215
  %v6561 = vsel %vm991, %v6215, %v6217
  %v6562 = vsel %vm991, %v6217, %v6219
  %v6563 = vsel %vm991, %v6219, %v6221
  %v6564 = vsel %vm991, %v6221, %v6223
  %v6565 = vsel %vm991, %v6223, %v6225
  %v6566 = vsel %vm991, %v6225, %v6227
  %v6567 = vsel %vm991, %v6227, %v3224
  %v6568 = vsel %vm991, %v6229, %v6231
  %v6569 = vsel %vm991, %v6231, %v6233
  %v6570 = vsel %vm991, %v6233, %v6235
  %v6571 = vsel %vm991, %v6235, %v6237
  %v6572 = vsel %vm991, %v6237, %v6239
  %v6573 = vsel %vm991, %v6239, %v6241
  %v6574 = vsel %vm991, %v6241, %v6243
  %v6575 = vsel %vm991, %v6243, %v6245
  %v6576 = vsel %vm991, %v6245, %v6247
  %v6577 = vsel %vm991, %v6247, %v3246
  %v6578 = vsel %vm991, %v6249, %v6251
  %v6579 = vsel %vm991, %v6251, %v6253
  %v6580 = vsel %vm991, %v6253, %v6255
  %v6581 = vsel %vm991, %v6255, %v6257
  %v6582 = vsel %vm991, %v6257, %v6259
  %v6583 = vsel %vm991, %v6259, %v6261
  %v6584 = vsel %vm991, %v6261, %v6263
  %v6585 = vsel %vm991, %v6263, %v6265
  %v6586 = vsel %vm991, %v6265, %v6267
  %v6587 = vsel %vm991, %v6267, %v3246
  %v6588 = vsel %vm991, %v6269, %v6271
  %v6589 = vsel %vm991, %v6271, %v6273
  %v6590 = vsel %vm991, %v6273, %v6275
  %v6591 = vsel %vm991, %v6275, %v6277
  %v6592 = vsel %vm991, %v6277, %v6279
  %v6593 = vsel %vm991, %v6279, %v6281
  %v6594 = vsel %vm991, %v6281, %v6283
  %v6595 = vsel %vm991, %v6283, %v6285
  %v6596 = vsel %vm991, %v6285, %v6287
  %v6597 = vsel %vm991, %v6287, %v3268
  %v6598 = vsel %vm991, %v6289, %v6291
  %v6599 = vsel %vm991, %v6291, %v6293
  %v6600 = vsel %vm991, %v6293, %v6295
  %v6601 = vsel %vm991, %v6295, %v6297
  %v6602 = vsel %vm991, %v6297, %v6299
  %v6603 = vsel %vm991, %v6299, %v6301
  %v6604 = vsel %vm991, %v6301, %v6303
  %v6605 = vsel %vm991, %v6303, %v6305
  %v6606 = vsel %vm991, %v6305, %v6307
  %v6607 = vsel %vm991, %v6307, %v3268
  %v6608 = vsel %vm991, %v6309, %v6311
  %v6609 = vsel %vm991, %v6311, %v6313
  %v6610 = vsel %vm991, %v6313, %v6315
  %v6611 = vsel %vm991, %v6315, %v6317
  %v6612 = vsel %vm991, %v6317, %v6319
  %v6613 = vsel %vm991, %v6319, %v6321
  %v6614 = vsel %vm991, %v6321, %v6323
  %v6615 = vsel %vm991, %v6323, %v6325
  %v6616 = vsel %vm991, %v6325, %v6327
  %v6617 = vsel %vm991, %v6327, %v3290
  %v6618 = vsel %vm991, %v6329, %v6331
  %v6619 = vsel %vm991, %v6331, %v6333
  %v6620 = vsel %vm991, %v6333, %v6335
  %v6621 = vsel %vm991, %v6335, %v6337
  %v6622 = vsel %vm991, %v6337, %v6339
  %v6623 = vsel %vm991, %v6339, %v6341
  %v6624 = vsel %vm991, %v6341, %v6343
  %v6625 = vsel %vm991, %v6343, %v6345
  %v6626 = vsel %vm991, %v6345, %v6347
  %v6627 = vsel %vm991, %v6347, %v3290
  %v6628 = vsel %vm991, %v6349, %v6351
  %v6629 = vsel %vm991, %v6351, %v6353
  %v6630 = vsel %vm991, %v6353, %v6355
  %v6631 = vsel %vm991, %v6355, %v6357
  %v6632 = vsel %vm991, %v6357, %v6359
  %v6633 = vsel %vm991, %v6359, %v6361
  %v6634 = vsel %vm991, %v6361, %v6363
  %v6635 = vsel %vm991, %v6363, %v6365
  %v6636 = vsel %vm991, %v6365, %v6367
  %v6637 = vsel %vm991, %v6367, %v3312
  %v6638 = vsel %vm991, %v6369, %v6371
  %v6639 = vsel %vm991, %v6371, %v6373
  %v6640 = vsel %vm991, %v6373, %v6375
  %v6641 = vsel %vm991, %v6375, %v6377
  %v6642 = vsel %vm991, %v6377, %v6379
  %v6643 = vsel %vm991, %v6379, %v6381
  %v6644 = vsel %vm991, %v6381, %v6383
  %v6645 = vsel %vm991, %v6383, %v6385
  %v6646 = vsel %vm991, %v6385, %v6387
  %v6647 = vsel %vm991, %v6387, %v3312
  %v6648 = vsel %vm991, %v6389, %v6391
  %v6649 = vsel %vm991, %v6391, %v6393
  %v6650 = vsel %vm991, %v6393, %v6395
  %v6651 = vsel %vm991, %v6395, %v6397
  %v6652 = vsel %vm991, %v6397, %v6399
  %v6653 = vsel %vm991, %v6399, %v6401
  %v6654 = vsel %vm991, %v6401, %v6403
  %v6655 = vsel %vm991, %v6403, %v6405
  %v6656 = vsel %vm991, %v6405, %v6407
  %v6657 = vsel %vm991, %v6407, %v3334
  %v6658 = vsel %vm991, %v6409, %v6411
  %v6659 = vsel %vm991, %v6411, %v6413
  %v6660 = vsel %vm991, %v6413, %v6415
  %v6661 = vsel %vm991, %v6415, %v6417
  %v6662 = vsel %vm991, %v6417, %v6419
  %v6663 = vsel %vm991, %v6419, %v6421
  %v6664 = vsel %vm991, %v6421, %v6423
  %v6665 = vsel %vm991, %v6423, %v6425
  %v6666 = vsel %vm991, %v6425, %v6427
  %v6667 = vsel %vm991, %v6427, %v3334
  %v6668 = vsel %vm991, %v6429, %v6431
  %v6669 = vsel %vm991, %v6431, %v6433
  %v6670 = vsel %vm991, %v6433, %v6435
  %v6671 = vsel %vm991, %v6435, %v6437
  %v6672 = vsel %vm991, %v6437, %v6439
  %v6673 = vsel %vm991, %v6439, %v6441
  %v6674 = vsel %vm991, %v6441, %v6443
  %v6675 = vsel %vm991, %v6443, %v6445
  %v6676 = vsel %vm991, %v6445, %v6447
  %v6677 = vsel %vm991, %v6447, %v3356
  %v6678 = vsel %vm991, %v6449, %v6451
  %v6679 = vsel %vm991, %v6451, %v6453
  %v6680 = vsel %vm991, %v6453, %v6455
  %v6681 = vsel %vm991, %v6455, %v6457
  %v6682 = vsel %vm991, %v6457, %v6459
  %v6683 = vsel %vm991, %v6459, %v6461
  %v6684 = vsel %vm991, %v6461, %v6463
  %v6685 = vsel %vm991, %v6463, %v6465
  %v6686 = vsel %vm991, %v6465, %v6467
  %v6687 = vsel %vm991, %v6467, %v3356
  %v6688 = vsel %vm991, %v6469, %v6471
  %v6689 = vsel %vm991, %v6471, %v6473
  %v6690 = vsel %vm991, %v6473, %v6475
  %v6691 = vsel %vm991, %v6475, %v6477
  %v6692 = vsel %vm991, %v6477, %v6479
  %v6693 = vsel %vm991, %v6479, %v6481
  %v6694 = vsel %vm991, %v6481, %v6483
  %v6695 = vsel %vm991, %v6483, %v6485
  %v6696 = vsel %vm991, %v6485, %v6487
  %v6697 = vsel %vm991, %v6487, %v3378
  %v6698 = vsel %vm991, %v6489, %v6491
  %v6699 = vsel %vm991, %v6491, %v6493
  %v6700 = vsel %vm991, %v6493, %v6495
  %v6701 = vsel %vm991, %v6495, %v6497
  %v6702 = vsel %vm991, %v6497, %v6499
  %v6703 = vsel %vm991, %v6499, %v6501
  %v6704 = vsel %vm991, %v6501, %v6503
  %v6705 = vsel %vm991, %v6503, %v6505
  %v6706 = vsel %vm991, %v6505, %v6507
  %v6707 = vsel %vm991, %v6507, %v3378
  %v6708 = vsel %vm991, %v6509, %v6511
  %v6709 = vsel %vm991, %v6511, %v6513
  %v6710 = vsel %vm991, %v6513, %v6515
  %v6711 = vsel %vm991, %v6515, %v6517
  %v6712 = vsel %vm991, %v6517, %v6519
  %v6713 = vsel %vm991, %v6519, %v6521
  %v6714 = vsel %vm991, %v6521, %v6523
  %v6715 = vsel %vm991, %v6523, %v6525
  %v6716 = vsel %vm991, %v6525, %v6527
  %v6717 = vsel %vm991, %v6527, %v3400
  %v6718 = vsel %vm991, %v6529, %v6531
  %v6719 = vsel %vm991, %v6531, %v6533
  %v6720 = vsel %vm991, %v6533, %v6535
  %v6721 = vsel %vm991, %v6535, %v6537
  %v6722 = vsel %vm991, %v6537, %v6539
  %v6723 = vsel %vm991, %v6539, %v6541
  %v6724 = vsel %vm991, %v6541, %v6543
  %v6725 = vsel %vm991, %v6543, %v6545
  %v6726 = vsel %vm991, %v6545, %v6547
  %v6727 = vsel %vm991, %v6547, %v3400
  %v6728 = vld [vmem:[%s6] sm:$0xff]
  %v6729 = vld [vmem:[%s6 + $0x8] sm:$0xff]
  %v6730 = vld [vmem:[%s6 + $0x10] sm:$0xff]
  %v6731 = vld [vmem:[%s6 + $0x18] sm:$0xff]
  %v6732 = vld [vmem:[%s6 + $0x20] sm:$0xff]
  %v6733 = vld [vmem:[%s6 + $0x28] sm:$0xff]
  %v6734 = vld [vmem:[%s6 + $0x30] sm:$0xff]
  %v6735 = vld [vmem:[%s6 + $0x38] sm:$0xff]
  %v6736 = vld [vmem:[%s6 + $0x40] sm:$0xff]
  %v6737 = vld [vmem:[%s6 + $0x48] sm:$0xff]
  %v6738 = vld [vmem:[%s6 + $0x50] sm:$0xff]
  %v6739 = vld [vmem:[%s6 + $0x58] sm:$0xff]
  %v6740 = vld [vmem:[%s6 + $0x60] sm:$0xff]
  %v6741 = vld [vmem:[%s6 + $0x68] sm:$0xff]
  %v6742 = vld [vmem:[%s6 + $0x70] sm:$0xff]
  %v6743 = vld [vmem:[%s6 + $0x78] sm:$0xff]
  %v6744 = vld [vmem:[%s7] sm:$0xff]
  %v6745 = vld [vmem:[%s7 + $0x8] sm:$0xff]
  %v6746 = vld [vmem:[%s7 + $0x10] sm:$0xff]
  %v6747 = vld [vmem:[%s7 + $0x18] sm:$0xff]
  %6749 = vset.pattern.permute.xlu0 0
  %6750 = vperm.xlu0 %6749, %v6744
  %v6751 = vpop.permute.xlu0 %6750
  %6754 = vset.pattern.permute.xlu0 0
  %6755 = vperm.xlu0 %6754, %v6745
  %v6756 = vpop.permute.xlu0 %6755
  %6759 = vset.pattern.permute.xlu0 0
  %6760 = vperm.xlu0 %6759, %v6746
  %v6761 = vpop.permute.xlu0 %6760
  %6764 = vset.pattern.permute.xlu0 0
  %6765 = vperm.xlu0 %6764, %v6747
  %v6766 = vpop.permute.xlu0 %6765
  %6768 = vrot.lane.b32.xlu0 %v5176, 66
  %v6769 = vpop.permute.xlu0 %6768
  %6770 = vrot.lane.b32.xlu0 %v5177, 66
  %v6771 = vpop.permute.xlu0 %6770
  %6772 = vrot.lane.b32.xlu0 %v5178, 66
  %v6773 = vpop.permute.xlu0 %6772
  %6774 = vrot.lane.b32.xlu0 %v5179, 66
  %v6775 = vpop.permute.xlu0 %6774
  %6776 = vrot.lane.b32.xlu0 %v5180, 66
  %v6777 = vpop.permute.xlu0 %6776
  %6778 = vrot.lane.b32.xlu0 %v5181, 66
  %v6779 = vpop.permute.xlu0 %6778
  %6780 = vrot.lane.b32.xlu0 %v5182, 66
  %v6781 = vpop.permute.xlu0 %6780
  %6782 = vrot.lane.b32.xlu0 %v5183, 66
  %v6783 = vpop.permute.xlu0 %6782
  %6784 = vrot.lane.b32.xlu0 %v5184, 66
  %v6785 = vpop.permute.xlu0 %6784
  %6786 = vrot.lane.b32.xlu0 %v5185, 66
  %v6787 = vpop.permute.xlu0 %6786
  %6788 = vrot.lane.b32.xlu0 %v5186, 66
  %v6789 = vpop.permute.xlu0 %6788
  %6790 = vrot.lane.b32.xlu0 %v5187, 66
  %v6791 = vpop.permute.xlu0 %6790
  %6792 = vrot.lane.b32.xlu0 %v5188, 66
  %v6793 = vpop.permute.xlu0 %6792
  %6794 = vrot.lane.b32.xlu0 %v5189, 66
  %v6795 = vpop.permute.xlu0 %6794
  %6796 = vrot.lane.b32.xlu0 %v5190, 66
  %v6797 = vpop.permute.xlu0 %6796
  %6798 = vrot.lane.b32.xlu0 %v5191, 66
  %v6799 = vpop.permute.xlu0 %6798
  %6800 = vrot.lane.b32.xlu0 %v5192, 66
  %v6801 = vpop.permute.xlu0 %6800
  %6802 = vrot.lane.b32.xlu0 %v5193, 66
  %v6803 = vpop.permute.xlu0 %6802
  %6804 = vrot.lane.b32.xlu0 %v5194, 66
  %v6805 = vpop.permute.xlu0 %6804
  %6806 = vrot.lane.b32.xlu0 %v5195, 66
  %v6807 = vpop.permute.xlu0 %6806
  %6808 = vrot.lane.b32.xlu0 %v5256, 66
  %v6809 = vpop.permute.xlu0 %6808
  %6810 = vrot.lane.b32.xlu0 %v5257, 66
  %v6811 = vpop.permute.xlu0 %6810
  %6812 = vrot.lane.b32.xlu0 %v5258, 66
  %v6813 = vpop.permute.xlu0 %6812
  %6814 = vrot.lane.b32.xlu0 %v5259, 66
  %v6815 = vpop.permute.xlu0 %6814
  %6816 = vrot.lane.b32.xlu0 %v5260, 66
  %v6817 = vpop.permute.xlu0 %6816
  %6818 = vrot.lane.b32.xlu0 %v5261, 66
  %v6819 = vpop.permute.xlu0 %6818
  %6820 = vrot.lane.b32.xlu0 %v5262, 66
  %v6821 = vpop.permute.xlu0 %6820
  %6822 = vrot.lane.b32.xlu0 %v5263, 66
  %v6823 = vpop.permute.xlu0 %6822
  %6824 = vrot.lane.b32.xlu0 %v5264, 66
  %v6825 = vpop.permute.xlu0 %6824
  %6826 = vrot.lane.b32.xlu0 %v5265, 66
  %v6827 = vpop.permute.xlu0 %6826
  %6828 = vrot.lane.b32.xlu0 %v5235, 66
  %v6829 = vpop.permute.xlu0 %6828
  %6830 = vrot.lane.b32.xlu0 %v5266, 66
  %v6831 = vpop.permute.xlu0 %6830
  %6832 = vrot.lane.b32.xlu0 %v5267, 66
  %v6833 = vpop.permute.xlu0 %6832
  %6834 = vrot.lane.b32.xlu0 %v5268, 66
  %v6835 = vpop.permute.xlu0 %6834
  %6836 = vrot.lane.b32.xlu0 %v5269, 66
  %v6837 = vpop.permute.xlu0 %6836
  %6838 = vrot.lane.b32.xlu0 %v5270, 66
  %v6839 = vpop.permute.xlu0 %6838
  %6840 = vrot.lane.b32.xlu0 %v5271, 66
  %v6841 = vpop.permute.xlu0 %6840
  %6842 = vrot.lane.b32.xlu0 %v5272, 66
  %v6843 = vpop.permute.xlu0 %6842
  %6844 = vrot.lane.b32.xlu0 %v5273, 66
  %v6845 = vpop.permute.xlu0 %6844
  %6846 = vrot.lane.b32.xlu0 %v5274, 66
  %v6847 = vpop.permute.xlu0 %6846
  %6848 = vrot.lane.b32.xlu0 %v5275, 66
  %v6849 = vpop.permute.xlu0 %6848
  %6850 = vrot.lane.b32.xlu0 %v5255, 66
  %v6851 = vpop.permute.xlu0 %6850
  %6852 = vrot.lane.b32.xlu0 %v5316, 66
  %v6853 = vpop.permute.xlu0 %6852
  %6854 = vrot.lane.b32.xlu0 %v5317, 66
  %v6855 = vpop.permute.xlu0 %6854
  %6856 = vrot.lane.b32.xlu0 %v5318, 66
  %v6857 = vpop.permute.xlu0 %6856
  %6858 = vrot.lane.b32.xlu0 %v5319, 66
  %v6859 = vpop.permute.xlu0 %6858
  %6860 = vrot.lane.b32.xlu0 %v5320, 66
  %v6861 = vpop.permute.xlu0 %6860
  %6862 = vrot.lane.b32.xlu0 %v5321, 66
  %v6863 = vpop.permute.xlu0 %6862
  %6864 = vrot.lane.b32.xlu0 %v5322, 66
  %v6865 = vpop.permute.xlu0 %6864
  %6866 = vrot.lane.b32.xlu0 %v5323, 66
  %v6867 = vpop.permute.xlu0 %6866
  %6868 = vrot.lane.b32.xlu0 %v5324, 66
  %v6869 = vpop.permute.xlu0 %6868
  %6870 = vrot.lane.b32.xlu0 %v5325, 66
  %v6871 = vpop.permute.xlu0 %6870
  %6872 = vrot.lane.b32.xlu0 %v5295, 66
  %v6873 = vpop.permute.xlu0 %6872
  %6874 = vrot.lane.b32.xlu0 %v5326, 66
  %v6875 = vpop.permute.xlu0 %6874
  %6876 = vrot.lane.b32.xlu0 %v5327, 66
  %v6877 = vpop.permute.xlu0 %6876
  %6878 = vrot.lane.b32.xlu0 %v5328, 66
  %v6879 = vpop.permute.xlu0 %6878
  %6880 = vrot.lane.b32.xlu0 %v5329, 66
  %v6881 = vpop.permute.xlu0 %6880
  %6882 = vrot.lane.b32.xlu0 %v5330, 66
  %v6883 = vpop.permute.xlu0 %6882
  %6884 = vrot.lane.b32.xlu0 %v5331, 66
  %v6885 = vpop.permute.xlu0 %6884
  %6886 = vrot.lane.b32.xlu0 %v5332, 66
  %v6887 = vpop.permute.xlu0 %6886
  %6888 = vrot.lane.b32.xlu0 %v5333, 66
  %v6889 = vpop.permute.xlu0 %6888
  %6890 = vrot.lane.b32.xlu0 %v5334, 66
  %v6891 = vpop.permute.xlu0 %6890
  %6892 = vrot.lane.b32.xlu0 %v5335, 66
  %v6893 = vpop.permute.xlu0 %6892
  %6894 = vrot.lane.b32.xlu0 %v5315, 66
  %v6895 = vpop.permute.xlu0 %6894
  %6896 = vrot.lane.b32.xlu0 %v5376, 66
  %v6897 = vpop.permute.xlu0 %6896
  %6898 = vrot.lane.b32.xlu0 %v5377, 66
  %v6899 = vpop.permute.xlu0 %6898
  %6900 = vrot.lane.b32.xlu0 %v5378, 66
  %v6901 = vpop.permute.xlu0 %6900
  %6902 = vrot.lane.b32.xlu0 %v5379, 66
  %v6903 = vpop.permute.xlu0 %6902
  %6904 = vrot.lane.b32.xlu0 %v5380, 66
  %v6905 = vpop.permute.xlu0 %6904
  %6906 = vrot.lane.b32.xlu0 %v5381, 66
  %v6907 = vpop.permute.xlu0 %6906
  %6908 = vrot.lane.b32.xlu0 %v5382, 66
  %v6909 = vpop.permute.xlu0 %6908
  %6910 = vrot.lane.b32.xlu0 %v5383, 66
  %v6911 = vpop.permute.xlu0 %6910
  %6912 = vrot.lane.b32.xlu0 %v5384, 66
  %v6913 = vpop.permute.xlu0 %6912
  %6914 = vrot.lane.b32.xlu0 %v5385, 66
  %v6915 = vpop.permute.xlu0 %6914
  %6916 = vrot.lane.b32.xlu0 %v5355, 66
  %v6917 = vpop.permute.xlu0 %6916
  %6918 = vrot.lane.b32.xlu0 %v5386, 66
  %v6919 = vpop.permute.xlu0 %6918
  %6920 = vrot.lane.b32.xlu0 %v5387, 66
  %v6921 = vpop.permute.xlu0 %6920
  %6922 = vrot.lane.b32.xlu0 %v5388, 66
  %v6923 = vpop.permute.xlu0 %6922
  %6924 = vrot.lane.b32.xlu0 %v5389, 66
  %v6925 = vpop.permute.xlu0 %6924
  %6926 = vrot.lane.b32.xlu0 %v5390, 66
  %v6927 = vpop.permute.xlu0 %6926
  %6928 = vrot.lane.b32.xlu0 %v5391, 66
  %v6929 = vpop.permute.xlu0 %6928
  %6930 = vrot.lane.b32.xlu0 %v5392, 66
  %v6931 = vpop.permute.xlu0 %6930
  %6932 = vrot.lane.b32.xlu0 %v5393, 66
  %v6933 = vpop.permute.xlu0 %6932
  %6934 = vrot.lane.b32.xlu0 %v5394, 66
  %v6935 = vpop.permute.xlu0 %6934
  %6936 = vrot.lane.b32.xlu0 %v5395, 66
  %v6937 = vpop.permute.xlu0 %6936
  %6938 = vrot.lane.b32.xlu0 %v5375, 66
  %v6939 = vpop.permute.xlu0 %6938
  %6940 = vrot.lane.b32.xlu0 %v5436, 66
  %v6941 = vpop.permute.xlu0 %6940
  %6942 = vrot.lane.b32.xlu0 %v5437, 66
  %v6943 = vpop.permute.xlu0 %6942
  %6944 = vrot.lane.b32.xlu0 %v5438, 66
  %v6945 = vpop.permute.xlu0 %6944
  %6946 = vrot.lane.b32.xlu0 %v5439, 66
  %v6947 = vpop.permute.xlu0 %6946
  %6948 = vrot.lane.b32.xlu0 %v5440, 66
  %v6949 = vpop.permute.xlu0 %6948
  %6950 = vrot.lane.b32.xlu0 %v5441, 66
  %v6951 = vpop.permute.xlu0 %6950
  %6952 = vrot.lane.b32.xlu0 %v5442, 66
  %v6953 = vpop.permute.xlu0 %6952
  %6954 = vrot.lane.b32.xlu0 %v5443, 66
  %v6955 = vpop.permute.xlu0 %6954
  %6956 = vrot.lane.b32.xlu0 %v5444, 66
  %v6957 = vpop.permute.xlu0 %6956
  %6958 = vrot.lane.b32.xlu0 %v5445, 66
  %v6959 = vpop.permute.xlu0 %6958
  %6960 = vrot.lane.b32.xlu0 %v5415, 66
  %v6961 = vpop.permute.xlu0 %6960
  %6962 = vrot.lane.b32.xlu0 %v5446, 66
  %v6963 = vpop.permute.xlu0 %6962
  %6964 = vrot.lane.b32.xlu0 %v5447, 66
  %v6965 = vpop.permute.xlu0 %6964
  %6966 = vrot.lane.b32.xlu0 %v5448, 66
  %v6967 = vpop.permute.xlu0 %6966
  %6968 = vrot.lane.b32.xlu0 %v5449, 66
  %v6969 = vpop.permute.xlu0 %6968
  %6970 = vrot.lane.b32.xlu0 %v5450, 66
  %v6971 = vpop.permute.xlu0 %6970
  %6972 = vrot.lane.b32.xlu0 %v5451, 66
  %v6973 = vpop.permute.xlu0 %6972
  %6974 = vrot.lane.b32.xlu0 %v5452, 66
  %v6975 = vpop.permute.xlu0 %6974
  %6976 = vrot.lane.b32.xlu0 %v5453, 66
  %v6977 = vpop.permute.xlu0 %6976
  %6978 = vrot.lane.b32.xlu0 %v5454, 66
  %v6979 = vpop.permute.xlu0 %6978
  %6980 = vrot.lane.b32.xlu0 %v5455, 66
  %v6981 = vpop.permute.xlu0 %6980
  %6982 = vrot.lane.b32.xlu0 %v5435, 66
  %v6983 = vpop.permute.xlu0 %6982
  %6984 = vrot.lane.b32.xlu0 %v5496, 66
  %v6985 = vpop.permute.xlu0 %6984
  %6986 = vrot.lane.b32.xlu0 %v5497, 66
  %v6987 = vpop.permute.xlu0 %6986
  %6988 = vrot.lane.b32.xlu0 %v5498, 66
  %v6989 = vpop.permute.xlu0 %6988
  %6990 = vrot.lane.b32.xlu0 %v5499, 66
  %v6991 = vpop.permute.xlu0 %6990
  %6992 = vrot.lane.b32.xlu0 %v5500, 66
  %v6993 = vpop.permute.xlu0 %6992
  %6994 = vrot.lane.b32.xlu0 %v5501, 66
  %v6995 = vpop.permute.xlu0 %6994
  %6996 = vrot.lane.b32.xlu0 %v5502, 66
  %v6997 = vpop.permute.xlu0 %6996
  %6998 = vrot.lane.b32.xlu0 %v5503, 66
  %v6999 = vpop.permute.xlu0 %6998
  %7000 = vrot.lane.b32.xlu0 %v5504, 66
  %v7001 = vpop.permute.xlu0 %7000
  %7002 = vrot.lane.b32.xlu0 %v5505, 66
  %v7003 = vpop.permute.xlu0 %7002
  %7004 = vrot.lane.b32.xlu0 %v5475, 66
  %v7005 = vpop.permute.xlu0 %7004
  %7006 = vrot.lane.b32.xlu0 %v5506, 66
  %v7007 = vpop.permute.xlu0 %7006
  %7008 = vrot.lane.b32.xlu0 %v5507, 66
  %v7009 = vpop.permute.xlu0 %7008
  %7010 = vrot.lane.b32.xlu0 %v5508, 66
  %v7011 = vpop.permute.xlu0 %7010
  %7012 = vrot.lane.b32.xlu0 %v5509, 66
  %v7013 = vpop.permute.xlu0 %7012
  %7014 = vrot.lane.b32.xlu0 %v5510, 66
  %v7015 = vpop.permute.xlu0 %7014
  %7016 = vrot.lane.b32.xlu0 %v5511, 66
  %v7017 = vpop.permute.xlu0 %7016
  %7018 = vrot.lane.b32.xlu0 %v5512, 66
  %v7019 = vpop.permute.xlu0 %7018
  %7020 = vrot.lane.b32.xlu0 %v5513, 66
  %v7021 = vpop.permute.xlu0 %7020
  %7022 = vrot.lane.b32.xlu0 %v5514, 66
  %v7023 = vpop.permute.xlu0 %7022
  %7024 = vrot.lane.b32.xlu0 %v5515, 66
  %v7025 = vpop.permute.xlu0 %7024
  %7026 = vrot.lane.b32.xlu0 %v5495, 66
  %v7027 = vpop.permute.xlu0 %7026
  %7028 = vrot.lane.b32.xlu0 %v5556, 66
  %v7029 = vpop.permute.xlu0 %7028
  %7030 = vrot.lane.b32.xlu0 %v5557, 66
  %v7031 = vpop.permute.xlu0 %7030
  %7032 = vrot.lane.b32.xlu0 %v5558, 66
  %v7033 = vpop.permute.xlu0 %7032
  %7034 = vrot.lane.b32.xlu0 %v5559, 66
  %v7035 = vpop.permute.xlu0 %7034
  %7036 = vrot.lane.b32.xlu0 %v5560, 66
  %v7037 = vpop.permute.xlu0 %7036
  %7038 = vrot.lane.b32.xlu0 %v5561, 66
  %v7039 = vpop.permute.xlu0 %7038
  %7040 = vrot.lane.b32.xlu0 %v5562, 66
  %v7041 = vpop.permute.xlu0 %7040
  %7042 = vrot.lane.b32.xlu0 %v5563, 66
  %v7043 = vpop.permute.xlu0 %7042
  %7044 = vrot.lane.b32.xlu0 %v5564, 66
  %v7045 = vpop.permute.xlu0 %7044
  %7046 = vrot.lane.b32.xlu0 %v5565, 66
  %v7047 = vpop.permute.xlu0 %7046
  %7048 = vrot.lane.b32.xlu0 %v5535, 66
  %v7049 = vpop.permute.xlu0 %7048
  %7050 = vrot.lane.b32.xlu0 %v5566, 66
  %v7051 = vpop.permute.xlu0 %7050
  %7052 = vrot.lane.b32.xlu0 %v5567, 66
  %v7053 = vpop.permute.xlu0 %7052
  %7054 = vrot.lane.b32.xlu0 %v5568, 66
  %v7055 = vpop.permute.xlu0 %7054
  %7056 = vrot.lane.b32.xlu0 %v5569, 66
  %v7057 = vpop.permute.xlu0 %7056
  %7058 = vrot.lane.b32.xlu0 %v5570, 66
  %v7059 = vpop.permute.xlu0 %7058
  %7060 = vrot.lane.b32.xlu0 %v5571, 66
  %v7061 = vpop.permute.xlu0 %7060
  %7062 = vrot.lane.b32.xlu0 %v5572, 66
  %v7063 = vpop.permute.xlu0 %7062
  %7064 = vrot.lane.b32.xlu0 %v5573, 66
  %v7065 = vpop.permute.xlu0 %7064
  %7066 = vrot.lane.b32.xlu0 %v5574, 66
  %v7067 = vpop.permute.xlu0 %7066
  %7068 = vrot.lane.b32.xlu0 %v5575, 66
  %v7069 = vpop.permute.xlu0 %7068
  %7070 = vrot.lane.b32.xlu0 %v5555, 66
  %v7071 = vpop.permute.xlu0 %7070
  %7072 = vrot.lane.b32.xlu0 %v5616, 66
  %v7073 = vpop.permute.xlu0 %7072
  %7074 = vrot.lane.b32.xlu0 %v5617, 66
  %v7075 = vpop.permute.xlu0 %7074
  %7076 = vrot.lane.b32.xlu0 %v5618, 66
  %v7077 = vpop.permute.xlu0 %7076
  %7078 = vrot.lane.b32.xlu0 %v5619, 66
  %v7079 = vpop.permute.xlu0 %7078
  %7080 = vrot.lane.b32.xlu0 %v5620, 66
  %v7081 = vpop.permute.xlu0 %7080
  %7082 = vrot.lane.b32.xlu0 %v5621, 66
  %v7083 = vpop.permute.xlu0 %7082
  %7084 = vrot.lane.b32.xlu0 %v5622, 66
  %v7085 = vpop.permute.xlu0 %7084
  %7086 = vrot.lane.b32.xlu0 %v5623, 66
  %v7087 = vpop.permute.xlu0 %7086
  %7088 = vrot.lane.b32.xlu0 %v5624, 66
  %v7089 = vpop.permute.xlu0 %7088
  %7090 = vrot.lane.b32.xlu0 %v5625, 66
  %v7091 = vpop.permute.xlu0 %7090
  %7092 = vrot.lane.b32.xlu0 %v5595, 66
  %v7093 = vpop.permute.xlu0 %7092
  %7094 = vrot.lane.b32.xlu0 %v5626, 66
  %v7095 = vpop.permute.xlu0 %7094
  %7096 = vrot.lane.b32.xlu0 %v5627, 66
  %v7097 = vpop.permute.xlu0 %7096
  %7098 = vrot.lane.b32.xlu0 %v5628, 66
  %v7099 = vpop.permute.xlu0 %7098
  %7100 = vrot.lane.b32.xlu0 %v5629, 66
  %v7101 = vpop.permute.xlu0 %7100
  %7102 = vrot.lane.b32.xlu0 %v5630, 66
  %v7103 = vpop.permute.xlu0 %7102
  %7104 = vrot.lane.b32.xlu0 %v5631, 66
  %v7105 = vpop.permute.xlu0 %7104
  %7106 = vrot.lane.b32.xlu0 %v5632, 66
  %v7107 = vpop.permute.xlu0 %7106
  %7108 = vrot.lane.b32.xlu0 %v5633, 66
  %v7109 = vpop.permute.xlu0 %7108
  %7110 = vrot.lane.b32.xlu0 %v5634, 66
  %v7111 = vpop.permute.xlu0 %7110
  %7112 = vrot.lane.b32.xlu0 %v5635, 66
  %v7113 = vpop.permute.xlu0 %7112
  %7114 = vrot.lane.b32.xlu0 %v5615, 66
  %v7115 = vpop.permute.xlu0 %7114
  %7116 = vrot.lane.b32.xlu0 %v5676, 66
  %v7117 = vpop.permute.xlu0 %7116
  %7118 = vrot.lane.b32.xlu0 %v5677, 66
  %v7119 = vpop.permute.xlu0 %7118
  %7120 = vrot.lane.b32.xlu0 %v5678, 66
  %v7121 = vpop.permute.xlu0 %7120
  %7122 = vrot.lane.b32.xlu0 %v5679, 66
  %v7123 = vpop.permute.xlu0 %7122
  %7124 = vrot.lane.b32.xlu0 %v5680, 66
  %v7125 = vpop.permute.xlu0 %7124
  %7126 = vrot.lane.b32.xlu0 %v5681, 66
  %v7127 = vpop.permute.xlu0 %7126
  %7128 = vrot.lane.b32.xlu0 %v5682, 66
  %v7129 = vpop.permute.xlu0 %7128
  %7130 = vrot.lane.b32.xlu0 %v5683, 66
  %v7131 = vpop.permute.xlu0 %7130
  %7132 = vrot.lane.b32.xlu0 %v5684, 66
  %v7133 = vpop.permute.xlu0 %7132
  %7134 = vrot.lane.b32.xlu0 %v5685, 66
  %v7135 = vpop.permute.xlu0 %7134
  %7136 = vrot.lane.b32.xlu0 %v5655, 66
  %v7137 = vpop.permute.xlu0 %7136
  %7138 = vrot.lane.b32.xlu0 %v5686, 66
  %v7139 = vpop.permute.xlu0 %7138
  %7140 = vrot.lane.b32.xlu0 %v5687, 66
  %v7141 = vpop.permute.xlu0 %7140
  %7142 = vrot.lane.b32.xlu0 %v5688, 66
  %v7143 = vpop.permute.xlu0 %7142
  %7144 = vrot.lane.b32.xlu0 %v5689, 66
  %v7145 = vpop.permute.xlu0 %7144
  %7146 = vrot.lane.b32.xlu0 %v5690, 66
  %v7147 = vpop.permute.xlu0 %7146
  %7148 = vrot.lane.b32.xlu0 %v5691, 66
  %v7149 = vpop.permute.xlu0 %7148
  %7150 = vrot.lane.b32.xlu0 %v5692, 66
  %v7151 = vpop.permute.xlu0 %7150
  %7152 = vrot.lane.b32.xlu0 %v5693, 66
  %v7153 = vpop.permute.xlu0 %7152
  %7154 = vrot.lane.b32.xlu0 %v5694, 66
  %v7155 = vpop.permute.xlu0 %7154
  %7156 = vrot.lane.b32.xlu0 %v5695, 66
  %v7157 = vpop.permute.xlu0 %7156
  %7158 = vrot.lane.b32.xlu0 %v5675, 66
  %v7159 = vpop.permute.xlu0 %7158
  %7160 = vrot.lane.b32.xlu0 %v5736, 66
  %v7161 = vpop.permute.xlu0 %7160
  %7162 = vrot.lane.b32.xlu0 %v5737, 66
  %v7163 = vpop.permute.xlu0 %7162
  %7164 = vrot.lane.b32.xlu0 %v5738, 66
  %v7165 = vpop.permute.xlu0 %7164
  %7166 = vrot.lane.b32.xlu0 %v5739, 66
  %v7167 = vpop.permute.xlu0 %7166
  %7168 = vrot.lane.b32.xlu0 %v5740, 66
  %v7169 = vpop.permute.xlu0 %7168
  %7170 = vrot.lane.b32.xlu0 %v5741, 66
  %v7171 = vpop.permute.xlu0 %7170
  %7172 = vrot.lane.b32.xlu0 %v5742, 66
  %v7173 = vpop.permute.xlu0 %7172
  %7174 = vrot.lane.b32.xlu0 %v5743, 66
  %v7175 = vpop.permute.xlu0 %7174
  %7176 = vrot.lane.b32.xlu0 %v5744, 66
  %v7177 = vpop.permute.xlu0 %7176
  %7178 = vrot.lane.b32.xlu0 %v5745, 66
  %v7179 = vpop.permute.xlu0 %7178
  %7180 = vrot.lane.b32.xlu0 %v5715, 66
  %v7181 = vpop.permute.xlu0 %7180
  %7182 = vrot.lane.b32.xlu0 %v5746, 66
  %v7183 = vpop.permute.xlu0 %7182
  %7184 = vrot.lane.b32.xlu0 %v5747, 66
  %v7185 = vpop.permute.xlu0 %7184
  %7186 = vrot.lane.b32.xlu0 %v5748, 66
  %v7187 = vpop.permute.xlu0 %7186
  %7188 = vrot.lane.b32.xlu0 %v5749, 66
  %v7189 = vpop.permute.xlu0 %7188
  %7190 = vrot.lane.b32.xlu0 %v5750, 66
  %v7191 = vpop.permute.xlu0 %7190
  %7192 = vrot.lane.b32.xlu0 %v5751, 66
  %v7193 = vpop.permute.xlu0 %7192
  %7194 = vrot.lane.b32.xlu0 %v5752, 66
  %v7195 = vpop.permute.xlu0 %7194
  %7196 = vrot.lane.b32.xlu0 %v5753, 66
  %v7197 = vpop.permute.xlu0 %7196
  %7198 = vrot.lane.b32.xlu0 %v5754, 66
  %v7199 = vpop.permute.xlu0 %7198
  %7200 = vrot.lane.b32.xlu0 %v5755, 66
  %v7201 = vpop.permute.xlu0 %7200
  %7202 = vrot.lane.b32.xlu0 %v5735, 66
  %v7203 = vpop.permute.xlu0 %7202
  %7204 = vrot.lane.b32.xlu0 %v5796, 66
  %v7205 = vpop.permute.xlu0 %7204
  %7206 = vrot.lane.b32.xlu0 %v5797, 66
  %v7207 = vpop.permute.xlu0 %7206
  %7208 = vrot.lane.b32.xlu0 %v5798, 66
  %v7209 = vpop.permute.xlu0 %7208
  %7210 = vrot.lane.b32.xlu0 %v5799, 66
  %v7211 = vpop.permute.xlu0 %7210
  %7212 = vrot.lane.b32.xlu0 %v5800, 66
  %v7213 = vpop.permute.xlu0 %7212
  %7214 = vrot.lane.b32.xlu0 %v5801, 66
  %v7215 = vpop.permute.xlu0 %7214
  %7216 = vrot.lane.b32.xlu0 %v5802, 66
  %v7217 = vpop.permute.xlu0 %7216
  %7218 = vrot.lane.b32.xlu0 %v5803, 66
  %v7219 = vpop.permute.xlu0 %7218
  %7220 = vrot.lane.b32.xlu0 %v5804, 66
  %v7221 = vpop.permute.xlu0 %7220
  %7222 = vrot.lane.b32.xlu0 %v5805, 66
  %v7223 = vpop.permute.xlu0 %7222
  %7224 = vrot.lane.b32.xlu0 %v5775, 66
  %v7225 = vpop.permute.xlu0 %7224
  %7226 = vrot.lane.b32.xlu0 %v5806, 66
  %v7227 = vpop.permute.xlu0 %7226
  %7228 = vrot.lane.b32.xlu0 %v5807, 66
  %v7229 = vpop.permute.xlu0 %7228
  %7230 = vrot.lane.b32.xlu0 %v5808, 66
  %v7231 = vpop.permute.xlu0 %7230
  %7232 = vrot.lane.b32.xlu0 %v5809, 66
  %v7233 = vpop.permute.xlu0 %7232
  %7234 = vrot.lane.b32.xlu0 %v5810, 66
  %v7235 = vpop.permute.xlu0 %7234
  %7236 = vrot.lane.b32.xlu0 %v5811, 66
  %v7237 = vpop.permute.xlu0 %7236
  %7238 = vrot.lane.b32.xlu0 %v5812, 66
  %v7239 = vpop.permute.xlu0 %7238
  %7240 = vrot.lane.b32.xlu0 %v5813, 66
  %v7241 = vpop.permute.xlu0 %7240
  %7242 = vrot.lane.b32.xlu0 %v5814, 66
  %v7243 = vpop.permute.xlu0 %7242
  %7244 = vrot.lane.b32.xlu0 %v5815, 66
  %v7245 = vpop.permute.xlu0 %7244
  %7246 = vrot.lane.b32.xlu0 %v5795, 66
  %v7247 = vpop.permute.xlu0 %7246
  %7248 = vrot.lane.b32.xlu0 %v5856, 66
  %v7249 = vpop.permute.xlu0 %7248
  %7250 = vrot.lane.b32.xlu0 %v5857, 66
  %v7251 = vpop.permute.xlu0 %7250
  %7252 = vrot.lane.b32.xlu0 %v5858, 66
  %v7253 = vpop.permute.xlu0 %7252
  %7254 = vrot.lane.b32.xlu0 %v5859, 66
  %v7255 = vpop.permute.xlu0 %7254
  %7256 = vrot.lane.b32.xlu0 %v5860, 66
  %v7257 = vpop.permute.xlu0 %7256
  %7258 = vrot.lane.b32.xlu0 %v5861, 66
  %v7259 = vpop.permute.xlu0 %7258
  %7260 = vrot.lane.b32.xlu0 %v5862, 66
  %v7261 = vpop.permute.xlu0 %7260
  %7262 = vrot.lane.b32.xlu0 %v5863, 66
  %v7263 = vpop.permute.xlu0 %7262
  %7264 = vrot.lane.b32.xlu0 %v5864, 66
  %v7265 = vpop.permute.xlu0 %7264
  %7266 = vrot.lane.b32.xlu0 %v5865, 66
  %v7267 = vpop.permute.xlu0 %7266
  %7268 = vrot.lane.b32.xlu0 %v5835, 66
  %v7269 = vpop.permute.xlu0 %7268
  %7270 = vrot.lane.b32.xlu0 %v5866, 66
  %v7271 = vpop.permute.xlu0 %7270
  %7272 = vrot.lane.b32.xlu0 %v5867, 66
  %v7273 = vpop.permute.xlu0 %7272
  %7274 = vrot.lane.b32.xlu0 %v5868, 66
  %v7275 = vpop.permute.xlu0 %7274
  %7276 = vrot.lane.b32.xlu0 %v5869, 66
  %v7277 = vpop.permute.xlu0 %7276
  %7278 = vrot.lane.b32.xlu0 %v5870, 66
  %v7279 = vpop.permute.xlu0 %7278
  %7280 = vrot.lane.b32.xlu0 %v5871, 66
  %v7281 = vpop.permute.xlu0 %7280
  %7282 = vrot.lane.b32.xlu0 %v5872, 66
  %v7283 = vpop.permute.xlu0 %7282
  %7284 = vrot.lane.b32.xlu0 %v5873, 66
  %v7285 = vpop.permute.xlu0 %7284
  %7286 = vrot.lane.b32.xlu0 %v5874, 66
  %v7287 = vpop.permute.xlu0 %7286
  %7288 = vrot.lane.b32.xlu0 %v5875, 66
  %v7289 = vpop.permute.xlu0 %7288
  %7290 = vrot.lane.b32.xlu0 %v5855, 66
  %v7291 = vpop.permute.xlu0 %7290
  %7292 = vrot.lane.b32.xlu0 %v5877, 66
  %v7293 = vpop.permute.xlu0 %7292
  %7294 = vrot.lane.b32.xlu0 %v5916, 66
  %v7295 = vpop.permute.xlu0 %7294
  %7296 = vrot.lane.b32.xlu0 %v5917, 66
  %v7297 = vpop.permute.xlu0 %7296
  %7298 = vrot.lane.b32.xlu0 %v5918, 66
  %v7299 = vpop.permute.xlu0 %7298
  %7300 = vrot.lane.b32.xlu0 %v5919, 66
  %v7301 = vpop.permute.xlu0 %7300
  %7302 = vrot.lane.b32.xlu0 %v5920, 66
  %v7303 = vpop.permute.xlu0 %7302
  %7304 = vrot.lane.b32.xlu0 %v5921, 66
  %v7305 = vpop.permute.xlu0 %7304
  %7306 = vrot.lane.b32.xlu0 %v5922, 66
  %v7307 = vpop.permute.xlu0 %7306
  %7308 = vrot.lane.b32.xlu0 %v5923, 66
  %v7309 = vpop.permute.xlu0 %7308
  %7310 = vrot.lane.b32.xlu0 %v5924, 66
  %v7311 = vpop.permute.xlu0 %7310
  %7312 = vrot.lane.b32.xlu0 %v5895, 66
  %v7313 = vpop.permute.xlu0 %7312
  %7314 = vrot.lane.b32.xlu0 %v5897, 66
  %v7315 = vpop.permute.xlu0 %7314
  %7316 = vrot.lane.b32.xlu0 %v5925, 66
  %v7317 = vpop.permute.xlu0 %7316
  %7318 = vrot.lane.b32.xlu0 %v5926, 66
  %v7319 = vpop.permute.xlu0 %7318
  %7320 = vrot.lane.b32.xlu0 %v5927, 66
  %v7321 = vpop.permute.xlu0 %7320
  %7322 = vrot.lane.b32.xlu0 %v5928, 66
  %v7323 = vpop.permute.xlu0 %7322
  %7324 = vrot.lane.b32.xlu0 %v5929, 66
  %v7325 = vpop.permute.xlu0 %7324
  %7326 = vrot.lane.b32.xlu0 %v5930, 66
  %v7327 = vpop.permute.xlu0 %7326
  %7328 = vrot.lane.b32.xlu0 %v5931, 66
  %v7329 = vpop.permute.xlu0 %7328
  %7330 = vrot.lane.b32.xlu0 %v5932, 66
  %v7331 = vpop.permute.xlu0 %7330
  %7332 = vrot.lane.b32.xlu0 %v5933, 66
  %v7333 = vpop.permute.xlu0 %7332
  %7334 = vrot.lane.b32.xlu0 %v5915, 66
  %v7335 = vpop.permute.xlu0 %7334
  %7336 = vrot.lane.b32.xlu0 %v5935, 66
  %v7337 = vpop.permute.xlu0 %7336
  %7338 = vrot.lane.b32.xlu0 %v5974, 66
  %v7339 = vpop.permute.xlu0 %7338
  %7340 = vrot.lane.b32.xlu0 %v5975, 66
  %v7341 = vpop.permute.xlu0 %7340
  %7342 = vrot.lane.b32.xlu0 %v5976, 66
  %v7343 = vpop.permute.xlu0 %7342
  %7344 = vrot.lane.b32.xlu0 %v5977, 66
  %v7345 = vpop.permute.xlu0 %7344
  %7346 = vrot.lane.b32.xlu0 %v5978, 66
  %v7347 = vpop.permute.xlu0 %7346
  %7348 = vrot.lane.b32.xlu0 %v5979, 66
  %v7349 = vpop.permute.xlu0 %7348
  %7350 = vrot.lane.b32.xlu0 %v5980, 66
  %v7351 = vpop.permute.xlu0 %7350
  %7352 = vrot.lane.b32.xlu0 %v5981, 66
  %v7353 = vpop.permute.xlu0 %7352
  %7354 = vrot.lane.b32.xlu0 %v5982, 66
  %v7355 = vpop.permute.xlu0 %7354
  %7356 = vrot.lane.b32.xlu0 %v5983, 66
  %v7357 = vpop.permute.xlu0 %7356
  %7358 = vrot.lane.b32.xlu0 %v5955, 66
  %v7359 = vpop.permute.xlu0 %7358
  %7360 = vrot.lane.b32.xlu0 %v5984, 66
  %v7361 = vpop.permute.xlu0 %7360
  %7362 = vrot.lane.b32.xlu0 %v5985, 66
  %v7363 = vpop.permute.xlu0 %7362
  %7364 = vrot.lane.b32.xlu0 %v5986, 66
  %v7365 = vpop.permute.xlu0 %7364
  %7366 = vrot.lane.b32.xlu0 %v5987, 66
  %v7367 = vpop.permute.xlu0 %7366
  %7368 = vrot.lane.b32.xlu0 %v5988, 66
  %v7369 = vpop.permute.xlu0 %7368
  %7370 = vrot.lane.b32.xlu0 %v5989, 66
  %v7371 = vpop.permute.xlu0 %7370
  %7372 = vrot.lane.b32.xlu0 %v5990, 66
  %v7373 = vpop.permute.xlu0 %7372
  %7374 = vrot.lane.b32.xlu0 %v5991, 66
  %v7375 = vpop.permute.xlu0 %7374
  %7376 = vrot.lane.b32.xlu0 %v5992, 66
  %v7377 = vpop.permute.xlu0 %7376
  %7378 = vrot.lane.b32.xlu0 %v5993, 66
  %v7379 = vpop.permute.xlu0 %7378
  %7380 = vrot.lane.b32.xlu0 %v5995, 66
  %v7381 = vpop.permute.xlu0 %7380
  %7382 = vrot.lane.b32.xlu0 %v6034, 66
  %v7383 = vpop.permute.xlu0 %7382
  %7384 = vrot.lane.b32.xlu0 %v6035, 66
  %v7385 = vpop.permute.xlu0 %7384
  %7386 = vrot.lane.b32.xlu0 %v6036, 66
  %v7387 = vpop.permute.xlu0 %7386
  %7388 = vrot.lane.b32.xlu0 %v6037, 66
  %v7389 = vpop.permute.xlu0 %7388
  %7390 = vrot.lane.b32.xlu0 %v6038, 66
  %v7391 = vpop.permute.xlu0 %7390
  %7392 = vrot.lane.b32.xlu0 %v6039, 66
  %v7393 = vpop.permute.xlu0 %7392
  %7394 = vrot.lane.b32.xlu0 %v6040, 66
  %v7395 = vpop.permute.xlu0 %7394
  %7396 = vrot.lane.b32.xlu0 %v6041, 66
  %v7397 = vpop.permute.xlu0 %7396
  %7398 = vrot.lane.b32.xlu0 %v6042, 66
  %v7399 = vpop.permute.xlu0 %7398
  %7400 = vrot.lane.b32.xlu0 %v6043, 66
  %v7401 = vpop.permute.xlu0 %7400
  %7402 = vrot.lane.b32.xlu0 %v6015, 66
  %v7403 = vpop.permute.xlu0 %7402
  %7404 = vrot.lane.b32.xlu0 %v6044, 66
  %v7405 = vpop.permute.xlu0 %7404
  %7406 = vrot.lane.b32.xlu0 %v6045, 66
  %v7407 = vpop.permute.xlu0 %7406
  %7408 = vrot.lane.b32.xlu0 %v6046, 66
  %v7409 = vpop.permute.xlu0 %7408
  %7410 = vrot.lane.b32.xlu0 %v6047, 66
  %v7411 = vpop.permute.xlu0 %7410
  %7412 = vrot.lane.b32.xlu0 %v6048, 66
  %v7413 = vpop.permute.xlu0 %7412
  %7414 = vrot.lane.b32.xlu0 %v6049, 66
  %v7415 = vpop.permute.xlu0 %7414
  %7416 = vrot.lane.b32.xlu0 %v6050, 66
  %v7417 = vpop.permute.xlu0 %7416
  %7418 = vrot.lane.b32.xlu0 %v6051, 66
  %v7419 = vpop.permute.xlu0 %7418
  %7420 = vrot.lane.b32.xlu0 %v6052, 66
  %v7421 = vpop.permute.xlu0 %7420
  %7422 = vrot.lane.b32.xlu0 %v6053, 66
  %v7423 = vpop.permute.xlu0 %7422
  %7424 = vrot.lane.b32.xlu0 %v6055, 66
  %v7425 = vpop.permute.xlu0 %7424
  %7426 = vrot.lane.b32.xlu0 %v6094, 66
  %v7427 = vpop.permute.xlu0 %7426
  %7428 = vrot.lane.b32.xlu0 %v6095, 66
  %v7429 = vpop.permute.xlu0 %7428
  %7430 = vrot.lane.b32.xlu0 %v6096, 66
  %v7431 = vpop.permute.xlu0 %7430
  %7432 = vrot.lane.b32.xlu0 %v6097, 66
  %v7433 = vpop.permute.xlu0 %7432
  %7434 = vrot.lane.b32.xlu0 %v6098, 66
  %v7435 = vpop.permute.xlu0 %7434
  %7436 = vrot.lane.b32.xlu0 %v6099, 66
  %v7437 = vpop.permute.xlu0 %7436
  %7438 = vrot.lane.b32.xlu0 %v6100, 66
  %v7439 = vpop.permute.xlu0 %7438
  %7440 = vrot.lane.b32.xlu0 %v6101, 66
  %v7441 = vpop.permute.xlu0 %7440
  %7442 = vrot.lane.b32.xlu0 %v6102, 66
  %v7443 = vpop.permute.xlu0 %7442
  %7444 = vrot.lane.b32.xlu0 %v6103, 66
  %v7445 = vpop.permute.xlu0 %7444
  %7446 = vrot.lane.b32.xlu0 %v6075, 66
  %v7447 = vpop.permute.xlu0 %7446
  %7448 = vrot.lane.b32.xlu0 %v6104, 66
  %v7449 = vpop.permute.xlu0 %7448
  %7450 = vrot.lane.b32.xlu0 %v6105, 66
  %v7451 = vpop.permute.xlu0 %7450
  %7452 = vrot.lane.b32.xlu0 %v6106, 66
  %v7453 = vpop.permute.xlu0 %7452
  %7454 = vrot.lane.b32.xlu0 %v6107, 66
  %v7455 = vpop.permute.xlu0 %7454
  %7456 = vrot.lane.b32.xlu0 %v6108, 66
  %v7457 = vpop.permute.xlu0 %7456
  %7458 = vrot.lane.b32.xlu0 %v6109, 66
  %v7459 = vpop.permute.xlu0 %7458
  %7460 = vrot.lane.b32.xlu0 %v6110, 66
  %v7461 = vpop.permute.xlu0 %7460
  %7462 = vrot.lane.b32.xlu0 %v6111, 66
  %v7463 = vpop.permute.xlu0 %7462
  %7464 = vrot.lane.b32.xlu0 %v6112, 66
  %v7465 = vpop.permute.xlu0 %7464
  %7466 = vrot.lane.b32.xlu0 %v6113, 66
  %v7467 = vpop.permute.xlu0 %7466
  %7468 = vrot.lane.b32.xlu0 %v6189, 66
  %v7469 = vpop.permute.xlu0 %7468
  %7470 = vrot.lane.b32.xlu0 %v6548, 66
  %v7471 = vpop.permute.xlu0 %7470
  %7472 = vrot.lane.b32.xlu0 %v6549, 66
  %v7473 = vpop.permute.xlu0 %7472
  %7474 = vrot.lane.b32.xlu0 %v6550, 66
  %v7475 = vpop.permute.xlu0 %7474
  %7476 = vrot.lane.b32.xlu0 %v6551, 66
  %v7477 = vpop.permute.xlu0 %7476
  %7478 = vrot.lane.b32.xlu0 %v6552, 66
  %v7479 = vpop.permute.xlu0 %7478
  %7480 = vrot.lane.b32.xlu0 %v6553, 66
  %v7481 = vpop.permute.xlu0 %7480
  %7482 = vrot.lane.b32.xlu0 %v6554, 66
  %v7483 = vpop.permute.xlu0 %7482
  %7484 = vrot.lane.b32.xlu0 %v6555, 66
  %v7485 = vpop.permute.xlu0 %7484
  %7486 = vrot.lane.b32.xlu0 %v6556, 66
  %v7487 = vpop.permute.xlu0 %7486
  %7488 = vrot.lane.b32.xlu0 %v6557, 66
  %v7489 = vpop.permute.xlu0 %7488
  %7490 = vrot.lane.b32.xlu0 %v6209, 66
  %v7491 = vpop.permute.xlu0 %7490
  %7492 = vrot.lane.b32.xlu0 %v6558, 66
  %v7493 = vpop.permute.xlu0 %7492
  %7494 = vrot.lane.b32.xlu0 %v6559, 66
  %v7495 = vpop.permute.xlu0 %7494
  %7496 = vrot.lane.b32.xlu0 %v6560, 66
  %v7497 = vpop.permute.xlu0 %7496
  %7498 = vrot.lane.b32.xlu0 %v6561, 66
  %v7499 = vpop.permute.xlu0 %7498
  %7500 = vrot.lane.b32.xlu0 %v6562, 66
  %v7501 = vpop.permute.xlu0 %7500
  %7502 = vrot.lane.b32.xlu0 %v6563, 66
  %v7503 = vpop.permute.xlu0 %7502
  %7504 = vrot.lane.b32.xlu0 %v6564, 66
  %v7505 = vpop.permute.xlu0 %7504
  %7506 = vrot.lane.b32.xlu0 %v6565, 66
  %v7507 = vpop.permute.xlu0 %7506
  %7508 = vrot.lane.b32.xlu0 %v6566, 66
  %v7509 = vpop.permute.xlu0 %7508
  %7510 = vrot.lane.b32.xlu0 %v6567, 66
  %v7511 = vpop.permute.xlu0 %7510
  %7512 = vrot.lane.b32.xlu0 %v6229, 66
  %v7513 = vpop.permute.xlu0 %7512
  %7514 = vrot.lane.b32.xlu0 %v6568, 66
  %v7515 = vpop.permute.xlu0 %7514
  %7516 = vrot.lane.b32.xlu0 %v6569, 66
  %v7517 = vpop.permute.xlu0 %7516
  %7518 = vrot.lane.b32.xlu0 %v6570, 66
  %v7519 = vpop.permute.xlu0 %7518
  %7520 = vrot.lane.b32.xlu0 %v6571, 66
  %v7521 = vpop.permute.xlu0 %7520
  %7522 = vrot.lane.b32.xlu0 %v6572, 66
  %v7523 = vpop.permute.xlu0 %7522
  %7524 = vrot.lane.b32.xlu0 %v6573, 66
  %v7525 = vpop.permute.xlu0 %7524
  %7526 = vrot.lane.b32.xlu0 %v6574, 66
  %v7527 = vpop.permute.xlu0 %7526
  %7528 = vrot.lane.b32.xlu0 %v6575, 66
  %v7529 = vpop.permute.xlu0 %7528
  %7530 = vrot.lane.b32.xlu0 %v6576, 66
  %v7531 = vpop.permute.xlu0 %7530
  %7532 = vrot.lane.b32.xlu0 %v6577, 66
  %v7533 = vpop.permute.xlu0 %7532
  %7534 = vrot.lane.b32.xlu0 %v6249, 66
  %v7535 = vpop.permute.xlu0 %7534
  %7536 = vrot.lane.b32.xlu0 %v6578, 66
  %v7537 = vpop.permute.xlu0 %7536
  %7538 = vrot.lane.b32.xlu0 %v6579, 66
  %v7539 = vpop.permute.xlu0 %7538
  %7540 = vrot.lane.b32.xlu0 %v6580, 66
  %v7541 = vpop.permute.xlu0 %7540
  %7542 = vrot.lane.b32.xlu0 %v6581, 66
  %v7543 = vpop.permute.xlu0 %7542
  %7544 = vrot.lane.b32.xlu0 %v6582, 66
  %v7545 = vpop.permute.xlu0 %7544
  %7546 = vrot.lane.b32.xlu0 %v6583, 66
  %v7547 = vpop.permute.xlu0 %7546
  %7548 = vrot.lane.b32.xlu0 %v6584, 66
  %v7549 = vpop.permute.xlu0 %7548
  %7550 = vrot.lane.b32.xlu0 %v6585, 66
  %v7551 = vpop.permute.xlu0 %7550
  %7552 = vrot.lane.b32.xlu0 %v6586, 66
  %v7553 = vpop.permute.xlu0 %7552
  %7554 = vrot.lane.b32.xlu0 %v6587, 66
  %v7555 = vpop.permute.xlu0 %7554
  %7556 = vrot.lane.b32.xlu0 %v6269, 66
  %v7557 = vpop.permute.xlu0 %7556
  %7558 = vrot.lane.b32.xlu0 %v6588, 66
  %v7559 = vpop.permute.xlu0 %7558
  %7560 = vrot.lane.b32.xlu0 %v6589, 66
  %v7561 = vpop.permute.xlu0 %7560
  %7562 = vrot.lane.b32.xlu0 %v6590, 66
  %v7563 = vpop.permute.xlu0 %7562
  %7564 = vrot.lane.b32.xlu0 %v6591, 66
  %v7565 = vpop.permute.xlu0 %7564
  %7566 = vrot.lane.b32.xlu0 %v6592, 66
  %v7567 = vpop.permute.xlu0 %7566
  %7568 = vrot.lane.b32.xlu0 %v6593, 66
  %v7569 = vpop.permute.xlu0 %7568
  %7570 = vrot.lane.b32.xlu0 %v6594, 66
  %v7571 = vpop.permute.xlu0 %7570
  %7572 = vrot.lane.b32.xlu0 %v6595, 66
  %v7573 = vpop.permute.xlu0 %7572
  %7574 = vrot.lane.b32.xlu0 %v6596, 66
  %v7575 = vpop.permute.xlu0 %7574
  %7576 = vrot.lane.b32.xlu0 %v6597, 66
  %v7577 = vpop.permute.xlu0 %7576
  %7578 = vrot.lane.b32.xlu0 %v6289, 66
  %v7579 = vpop.permute.xlu0 %7578
  %7580 = vrot.lane.b32.xlu0 %v6598, 66
  %v7581 = vpop.permute.xlu0 %7580
  %7582 = vrot.lane.b32.xlu0 %v6599, 66
  %v7583 = vpop.permute.xlu0 %7582
  %7584 = vrot.lane.b32.xlu0 %v6600, 66
  %v7585 = vpop.permute.xlu0 %7584
  %7586 = vrot.lane.b32.xlu0 %v6601, 66
  %v7587 = vpop.permute.xlu0 %7586
  %7588 = vrot.lane.b32.xlu0 %v6602, 66
  %v7589 = vpop.permute.xlu0 %7588
  %7590 = vrot.lane.b32.xlu0 %v6603, 66
  %v7591 = vpop.permute.xlu0 %7590
  %7592 = vrot.lane.b32.xlu0 %v6604, 66
  %v7593 = vpop.permute.xlu0 %7592
  %7594 = vrot.lane.b32.xlu0 %v6605, 66
  %v7595 = vpop.permute.xlu0 %7594
  %7596 = vrot.lane.b32.xlu0 %v6606, 66
  %v7597 = vpop.permute.xlu0 %7596
  %7598 = vrot.lane.b32.xlu0 %v6607, 66
  %v7599 = vpop.permute.xlu0 %7598
  %7600 = vrot.lane.b32.xlu0 %v6309, 66
  %v7601 = vpop.permute.xlu0 %7600
  %7602 = vrot.lane.b32.xlu0 %v6608, 66
  %v7603 = vpop.permute.xlu0 %7602
  %7604 = vrot.lane.b32.xlu0 %v6609, 66
  %v7605 = vpop.permute.xlu0 %7604
  %7606 = vrot.lane.b32.xlu0 %v6610, 66
  %v7607 = vpop.permute.xlu0 %7606
  %7608 = vrot.lane.b32.xlu0 %v6611, 66
  %v7609 = vpop.permute.xlu0 %7608
  %7610 = vrot.lane.b32.xlu0 %v6612, 66
  %v7611 = vpop.permute.xlu0 %7610
  %7612 = vrot.lane.b32.xlu0 %v6613, 66
  %v7613 = vpop.permute.xlu0 %7612
  %7614 = vrot.lane.b32.xlu0 %v6614, 66
  %v7615 = vpop.permute.xlu0 %7614
  %7616 = vrot.lane.b32.xlu0 %v6615, 66
  %v7617 = vpop.permute.xlu0 %7616
  %7618 = vrot.lane.b32.xlu0 %v6616, 66
  %v7619 = vpop.permute.xlu0 %7618
  %7620 = vrot.lane.b32.xlu0 %v6617, 66
  %v7621 = vpop.permute.xlu0 %7620
  %7622 = vrot.lane.b32.xlu0 %v6329, 66
  %v7623 = vpop.permute.xlu0 %7622
  %7624 = vrot.lane.b32.xlu0 %v6618, 66
  %v7625 = vpop.permute.xlu0 %7624
  %7626 = vrot.lane.b32.xlu0 %v6619, 66
  %v7627 = vpop.permute.xlu0 %7626
  %7628 = vrot.lane.b32.xlu0 %v6620, 66
  %v7629 = vpop.permute.xlu0 %7628
  %7630 = vrot.lane.b32.xlu0 %v6621, 66
  %v7631 = vpop.permute.xlu0 %7630
  %7632 = vrot.lane.b32.xlu0 %v6622, 66
  %v7633 = vpop.permute.xlu0 %7632
  %7634 = vrot.lane.b32.xlu0 %v6623, 66
  %v7635 = vpop.permute.xlu0 %7634
  %7636 = vrot.lane.b32.xlu0 %v6624, 66
  %v7637 = vpop.permute.xlu0 %7636
  %7638 = vrot.lane.b32.xlu0 %v6625, 66
  %v7639 = vpop.permute.xlu0 %7638
  %7640 = vrot.lane.b32.xlu0 %v6626, 66
  %v7641 = vpop.permute.xlu0 %7640
  %7642 = vrot.lane.b32.xlu0 %v6627, 66
  %v7643 = vpop.permute.xlu0 %7642
  %7644 = vrot.lane.b32.xlu0 %v6349, 66
  %v7645 = vpop.permute.xlu0 %7644
  %7646 = vrot.lane.b32.xlu0 %v6628, 66
  %v7647 = vpop.permute.xlu0 %7646
  %7648 = vrot.lane.b32.xlu0 %v6629, 66
  %v7649 = vpop.permute.xlu0 %7648
  %7650 = vrot.lane.b32.xlu0 %v6630, 66
  %v7651 = vpop.permute.xlu0 %7650
  %7652 = vrot.lane.b32.xlu0 %v6631, 66
  %v7653 = vpop.permute.xlu0 %7652
  %7654 = vrot.lane.b32.xlu0 %v6632, 66
  %v7655 = vpop.permute.xlu0 %7654
  %7656 = vrot.lane.b32.xlu0 %v6633, 66
  %v7657 = vpop.permute.xlu0 %7656
  %7658 = vrot.lane.b32.xlu0 %v6634, 66
  %v7659 = vpop.permute.xlu0 %7658
  %7660 = vrot.lane.b32.xlu0 %v6635, 66
  %v7661 = vpop.permute.xlu0 %7660
  %7662 = vrot.lane.b32.xlu0 %v6636, 66
  %v7663 = vpop.permute.xlu0 %7662
  %7664 = vrot.lane.b32.xlu0 %v6637, 66
  %v7665 = vpop.permute.xlu0 %7664
  %7666 = vrot.lane.b32.xlu0 %v6369, 66
  %v7667 = vpop.permute.xlu0 %7666
  %7668 = vrot.lane.b32.xlu0 %v6638, 66
  %v7669 = vpop.permute.xlu0 %7668
  %7670 = vrot.lane.b32.xlu0 %v6639, 66
  %v7671 = vpop.permute.xlu0 %7670
  %7672 = vrot.lane.b32.xlu0 %v6640, 66
  %v7673 = vpop.permute.xlu0 %7672
  %7674 = vrot.lane.b32.xlu0 %v6641, 66
  %v7675 = vpop.permute.xlu0 %7674
  %7676 = vrot.lane.b32.xlu0 %v6642, 66
  %v7677 = vpop.permute.xlu0 %7676
  %7678 = vrot.lane.b32.xlu0 %v6643, 66
  %v7679 = vpop.permute.xlu0 %7678
  %7680 = vrot.lane.b32.xlu0 %v6644, 66
  %v7681 = vpop.permute.xlu0 %7680
  %7682 = vrot.lane.b32.xlu0 %v6645, 66
  %v7683 = vpop.permute.xlu0 %7682
  %7684 = vrot.lane.b32.xlu0 %v6646, 66
  %v7685 = vpop.permute.xlu0 %7684
  %7686 = vrot.lane.b32.xlu0 %v6647, 66
  %v7687 = vpop.permute.xlu0 %7686
  %7688 = vrot.lane.b32.xlu0 %v6389, 66
  %v7689 = vpop.permute.xlu0 %7688
  %7690 = vrot.lane.b32.xlu0 %v6648, 66
  %v7691 = vpop.permute.xlu0 %7690
  %7692 = vrot.lane.b32.xlu0 %v6649, 66
  %v7693 = vpop.permute.xlu0 %7692
  %7694 = vrot.lane.b32.xlu0 %v6650, 66
  %v7695 = vpop.permute.xlu0 %7694
  %7696 = vrot.lane.b32.xlu0 %v6651, 66
  %v7697 = vpop.permute.xlu0 %7696
  %7698 = vrot.lane.b32.xlu0 %v6652, 66
  %v7699 = vpop.permute.xlu0 %7698
  %7700 = vrot.lane.b32.xlu0 %v6653, 66
  %v7701 = vpop.permute.xlu0 %7700
  %7702 = vrot.lane.b32.xlu0 %v6654, 66
  %v7703 = vpop.permute.xlu0 %7702
  %7704 = vrot.lane.b32.xlu0 %v6655, 66
  %v7705 = vpop.permute.xlu0 %7704
  %7706 = vrot.lane.b32.xlu0 %v6656, 66
  %v7707 = vpop.permute.xlu0 %7706
  %7708 = vrot.lane.b32.xlu0 %v6657, 66
  %v7709 = vpop.permute.xlu0 %7708
  %7710 = vrot.lane.b32.xlu0 %v6409, 66
  %v7711 = vpop.permute.xlu0 %7710
  %7712 = vrot.lane.b32.xlu0 %v6658, 66
  %v7713 = vpop.permute.xlu0 %7712
  %7714 = vrot.lane.b32.xlu0 %v6659, 66
  %v7715 = vpop.permute.xlu0 %7714
  %7716 = vrot.lane.b32.xlu0 %v6660, 66
  %v7717 = vpop.permute.xlu0 %7716
  %7718 = vrot.lane.b32.xlu0 %v6661, 66
  %v7719 = vpop.permute.xlu0 %7718
  %7720 = vrot.lane.b32.xlu0 %v6662, 66
  %v7721 = vpop.permute.xlu0 %7720
  %7722 = vrot.lane.b32.xlu0 %v6663, 66
  %v7723 = vpop.permute.xlu0 %7722
  %7724 = vrot.lane.b32.xlu0 %v6664, 66
  %v7725 = vpop.permute.xlu0 %7724
  %7726 = vrot.lane.b32.xlu0 %v6665, 66
  %v7727 = vpop.permute.xlu0 %7726
  %7728 = vrot.lane.b32.xlu0 %v6666, 66
  %v7729 = vpop.permute.xlu0 %7728
  %7730 = vrot.lane.b32.xlu0 %v6667, 66
  %v7731 = vpop.permute.xlu0 %7730
  %7732 = vrot.lane.b32.xlu0 %v6429, 66
  %v7733 = vpop.permute.xlu0 %7732
  %7734 = vrot.lane.b32.xlu0 %v6668, 66
  %v7735 = vpop.permute.xlu0 %7734
  %7736 = vrot.lane.b32.xlu0 %v6669, 66
  %v7737 = vpop.permute.xlu0 %7736
  %7738 = vrot.lane.b32.xlu0 %v6670, 66
  %v7739 = vpop.permute.xlu0 %7738
  %7740 = vrot.lane.b32.xlu0 %v6671, 66
  %v7741 = vpop.permute.xlu0 %7740
  %7742 = vrot.lane.b32.xlu0 %v6672, 66
  %v7743 = vpop.permute.xlu0 %7742
  %7744 = vrot.lane.b32.xlu0 %v6673, 66
  %v7745 = vpop.permute.xlu0 %7744
  %7746 = vrot.lane.b32.xlu0 %v6674, 66
  %v7747 = vpop.permute.xlu0 %7746
  %7748 = vrot.lane.b32.xlu0 %v6675, 66
  %v7749 = vpop.permute.xlu0 %7748
  %7750 = vrot.lane.b32.xlu0 %v6676, 66
  %v7751 = vpop.permute.xlu0 %7750
  %7752 = vrot.lane.b32.xlu0 %v6677, 66
  %v7753 = vpop.permute.xlu0 %7752
  %7754 = vrot.lane.b32.xlu0 %v6449, 66
  %v7755 = vpop.permute.xlu0 %7754
  %7756 = vrot.lane.b32.xlu0 %v6678, 66
  %v7757 = vpop.permute.xlu0 %7756
  %7758 = vrot.lane.b32.xlu0 %v6679, 66
  %v7759 = vpop.permute.xlu0 %7758
  %7760 = vrot.lane.b32.xlu0 %v6680, 66
  %v7761 = vpop.permute.xlu0 %7760
  %7762 = vrot.lane.b32.xlu0 %v6681, 66
  %v7763 = vpop.permute.xlu0 %7762
  %7764 = vrot.lane.b32.xlu0 %v6682, 66
  %v7765 = vpop.permute.xlu0 %7764
  %7766 = vrot.lane.b32.xlu0 %v6683, 66
  %v7767 = vpop.permute.xlu0 %7766
  %7768 = vrot.lane.b32.xlu0 %v6684, 66
  %v7769 = vpop.permute.xlu0 %7768
  %7770 = vrot.lane.b32.xlu0 %v6685, 66
  %v7771 = vpop.permute.xlu0 %7770
  %7772 = vrot.lane.b32.xlu0 %v6686, 66
  %v7773 = vpop.permute.xlu0 %7772
  %7774 = vrot.lane.b32.xlu0 %v6687, 66
  %v7775 = vpop.permute.xlu0 %7774
  %7776 = vrot.lane.b32.xlu0 %v6469, 66
  %v7777 = vpop.permute.xlu0 %7776
  %7778 = vrot.lane.b32.xlu0 %v6688, 66
  %v7779 = vpop.permute.xlu0 %7778
  %7780 = vrot.lane.b32.xlu0 %v6689, 66
  %v7781 = vpop.permute.xlu0 %7780
  %7782 = vrot.lane.b32.xlu0 %v6690, 66
  %v7783 = vpop.permute.xlu0 %7782
  %7784 = vrot.lane.b32.xlu0 %v6691, 66
  %v7785 = vpop.permute.xlu0 %7784
  %7786 = vrot.lane.b32.xlu0 %v6692, 66
  %v7787 = vpop.permute.xlu0 %7786
  %7788 = vrot.lane.b32.xlu0 %v6693, 66
  %v7789 = vpop.permute.xlu0 %7788
  %7790 = vrot.lane.b32.xlu0 %v6694, 66
  %v7791 = vpop.permute.xlu0 %7790
  %7792 = vrot.lane.b32.xlu0 %v6695, 66
  %v7793 = vpop.permute.xlu0 %7792
  %7794 = vrot.lane.b32.xlu0 %v6696, 66
  %v7795 = vpop.permute.xlu0 %7794
  %7796 = vrot.lane.b32.xlu0 %v6697, 66
  %v7797 = vpop.permute.xlu0 %7796
  %7798 = vrot.lane.b32.xlu0 %v6489, 66
  %v7799 = vpop.permute.xlu0 %7798
  %7800 = vrot.lane.b32.xlu0 %v6698, 66
  %v7801 = vpop.permute.xlu0 %7800
  %7802 = vrot.lane.b32.xlu0 %v6699, 66
  %v7803 = vpop.permute.xlu0 %7802
  %7804 = vrot.lane.b32.xlu0 %v6700, 66
  %v7805 = vpop.permute.xlu0 %7804
  %7806 = vrot.lane.b32.xlu0 %v6701, 66
  %v7807 = vpop.permute.xlu0 %7806
  %7808 = vrot.lane.b32.xlu0 %v6702, 66
  %v7809 = vpop.permute.xlu0 %7808
  %7810 = vrot.lane.b32.xlu0 %v6703, 66
  %v7811 = vpop.permute.xlu0 %7810
  %7812 = vrot.lane.b32.xlu0 %v6704, 66
  %v7813 = vpop.permute.xlu0 %7812
  %7814 = vrot.lane.b32.xlu0 %v6705, 66
  %v7815 = vpop.permute.xlu0 %7814
  %7816 = vrot.lane.b32.xlu0 %v6706, 66
  %v7817 = vpop.permute.xlu0 %7816
  %7818 = vrot.lane.b32.xlu0 %v6707, 66
  %v7819 = vpop.permute.xlu0 %7818
  %7820 = vrot.lane.b32.xlu0 %v6509, 66
  %v7821 = vpop.permute.xlu0 %7820
  %7822 = vrot.lane.b32.xlu0 %v6708, 66
  %v7823 = vpop.permute.xlu0 %7822
  %7824 = vrot.lane.b32.xlu0 %v6709, 66
  %v7825 = vpop.permute.xlu0 %7824
  %7826 = vrot.lane.b32.xlu0 %v6710, 66
  %v7827 = vpop.permute.xlu0 %7826
  %7828 = vrot.lane.b32.xlu0 %v6711, 66
  %v7829 = vpop.permute.xlu0 %7828
  %7830 = vrot.lane.b32.xlu0 %v6712, 66
  %v7831 = vpop.permute.xlu0 %7830
  %7832 = vrot.lane.b32.xlu0 %v6713, 66
  %v7833 = vpop.permute.xlu0 %7832
  %7834 = vrot.lane.b32.xlu0 %v6714, 66
  %v7835 = vpop.permute.xlu0 %7834
  %7836 = vrot.lane.b32.xlu0 %v6715, 66
  %v7837 = vpop.permute.xlu0 %7836
  %7838 = vrot.lane.b32.xlu0 %v6716, 66
  %v7839 = vpop.permute.xlu0 %7838
  %7840 = vrot.lane.b32.xlu0 %v6717, 66
  %v7841 = vpop.permute.xlu0 %7840
  %7842 = vrot.lane.b32.xlu0 %v6529, 66
  %v7843 = vpop.permute.xlu0 %7842
  %7844 = vrot.lane.b32.xlu0 %v6718, 66
  %v7845 = vpop.permute.xlu0 %7844
  %7846 = vrot.lane.b32.xlu0 %v6719, 66
  %v7847 = vpop.permute.xlu0 %7846
  %7848 = vrot.lane.b32.xlu0 %v6720, 66
  %v7849 = vpop.permute.xlu0 %7848
  %7850 = vrot.lane.b32.xlu0 %v6721, 66
  %v7851 = vpop.permute.xlu0 %7850
  %7852 = vrot.lane.b32.xlu0 %v6722, 66
  %v7853 = vpop.permute.xlu0 %7852
  %7854 = vrot.lane.b32.xlu0 %v6723, 66
  %v7855 = vpop.permute.xlu0 %7854
  %7856 = vrot.lane.b32.xlu0 %v6724, 66
  %v7857 = vpop.permute.xlu0 %7856
  %7858 = vrot.lane.b32.xlu0 %v6725, 66
  %v7859 = vpop.permute.xlu0 %7858
  %7860 = vrot.lane.b32.xlu0 %v6726, 66
  %v7861 = vpop.permute.xlu0 %7860
  %7862 = vrot.lane.b32.xlu0 %v6727, 66
  %v7863 = vpop.permute.xlu0 %7862
  %v7864 = vsel %vm1640, %v3508, %v6769
  %v7865 = vsel %vm1640, %v6769, %v6771
  %v7866 = vsel %vm1640, %v6771, %v6773
  %v7867 = vsel %vm1640, %v6773, %v6775
  %v7868 = vsel %vm1640, %v6775, %v6777
  %v7869 = vsel %vm1640, %v6777, %v6779
  %v7870 = vsel %vm1640, %v6779, %v6781
  %v7871 = vsel %vm1640, %v6781, %v6783
  %v7872 = vsel %vm1640, %v6783, %v6785
  %v7873 = vsel %vm1640, %v6785, %v6787
  %v7874 = vsel %vm1640, %v3508, %v6789
  %v7875 = vsel %vm1640, %v6789, %v6791
  %v7876 = vsel %vm1640, %v6791, %v6793
  %v7877 = vsel %vm1640, %v6793, %v6795
  %v7878 = vsel %vm1640, %v6795, %v6797
  %v7879 = vsel %vm1640, %v6797, %v6799
  %v7880 = vsel %vm1640, %v6799, %v6801
  %v7881 = vsel %vm1640, %v6801, %v6803
  %v7882 = vsel %vm1640, %v6803, %v6805
  %v7883 = vsel %vm1640, %v6805, %v6807
  %v7884 = vsel %vm1640, %v6809, %v6811
  %v7885 = vsel %vm1640, %v6811, %v6813
  %v7886 = vsel %vm1640, %v6813, %v6815
  %v7887 = vsel %vm1640, %v6815, %v6817
  %v7888 = vsel %vm1640, %v6817, %v6819
  %v7889 = vsel %vm1640, %v6819, %v6821
  %v7890 = vsel %vm1640, %v6821, %v6823
  %v7891 = vsel %vm1640, %v6823, %v6825
  %v7892 = vsel %vm1640, %v6825, %v6827
  %v7893 = vsel %vm1640, %v6827, %v6829
  %v7894 = vsel %vm1640, %v6831, %v6833
  %v7895 = vsel %vm1640, %v6833, %v6835
  %v7896 = vsel %vm1640, %v6835, %v6837
  %v7897 = vsel %vm1640, %v6837, %v6839
  %v7898 = vsel %vm1640, %v6839, %v6841
  %v7899 = vsel %vm1640, %v6841, %v6843
  %v7900 = vsel %vm1640, %v6843, %v6845
  %v7901 = vsel %vm1640, %v6845, %v6847
  %v7902 = vsel %vm1640, %v6847, %v6849
  %v7903 = vsel %vm1640, %v6849, %v6851
  %v7904 = vsel %vm1640, %v6853, %v6855
  %v7905 = vsel %vm1640, %v6855, %v6857
  %v7906 = vsel %vm1640, %v6857, %v6859
  %v7907 = vsel %vm1640, %v6859, %v6861
  %v7908 = vsel %vm1640, %v6861, %v6863
  %v7909 = vsel %vm1640, %v6863, %v6865
  %v7910 = vsel %vm1640, %v6865, %v6867
  %v7911 = vsel %vm1640, %v6867, %v6869
  %v7912 = vsel %vm1640, %v6869, %v6871
  %v7913 = vsel %vm1640, %v6871, %v6873
  %v7914 = vsel %vm1640, %v6875, %v6877
  %v7915 = vsel %vm1640, %v6877, %v6879
  %v7916 = vsel %vm1640, %v6879, %v6881
  %v7917 = vsel %vm1640, %v6881, %v6883
  %v7918 = vsel %vm1640, %v6883, %v6885
  %v7919 = vsel %vm1640, %v6885, %v6887
  %v7920 = vsel %vm1640, %v6887, %v6889
  %v7921 = vsel %vm1640, %v6889, %v6891
  %v7922 = vsel %vm1640, %v6891, %v6893
  %v7923 = vsel %vm1640, %v6893, %v6895
  %v7924 = vsel %vm1640, %v6897, %v6899
  %v7925 = vsel %vm1640, %v6899, %v6901
  %v7926 = vsel %vm1640, %v6901, %v6903
  %v7927 = vsel %vm1640, %v6903, %v6905
  %v7928 = vsel %vm1640, %v6905, %v6907
  %v7929 = vsel %vm1640, %v6907, %v6909
  %v7930 = vsel %vm1640, %v6909, %v6911
  %v7931 = vsel %vm1640, %v6911, %v6913
  %v7932 = vsel %vm1640, %v6913, %v6915
  %v7933 = vsel %vm1640, %v6915, %v6917
  %v7934 = vsel %vm1640, %v6919, %v6921
  %v7935 = vsel %vm1640, %v6921, %v6923
  %v7936 = vsel %vm1640, %v6923, %v6925
  %v7937 = vsel %vm1640, %v6925, %v6927
  %v7938 = vsel %vm1640, %v6927, %v6929
  %v7939 = vsel %vm1640, %v6929, %v6931
  %v7940 = vsel %vm1640, %v6931, %v6933
  %v7941 = vsel %vm1640, %v6933, %v6935
  %v7942 = vsel %vm1640, %v6935, %v6937
  %v7943 = vsel %vm1640, %v6937, %v6939
  %v7944 = vsel %vm1640, %v6941, %v6943
  %v7945 = vsel %vm1640, %v6943, %v6945
  %v7946 = vsel %vm1640, %v6945, %v6947
  %v7947 = vsel %vm1640, %v6947, %v6949
  %v7948 = vsel %vm1640, %v6949, %v6951
  %v7949 = vsel %vm1640, %v6951, %v6953
  %v7950 = vsel %vm1640, %v6953, %v6955
  %v7951 = vsel %vm1640, %v6955, %v6957
  %v7952 = vsel %vm1640, %v6957, %v6959
  %v7953 = vsel %vm1640, %v6959, %v6961
  %v7954 = vsel %vm1640, %v6963, %v6965
  %v7955 = vsel %vm1640, %v6965, %v6967
  %v7956 = vsel %vm1640, %v6967, %v6969
  %v7957 = vsel %vm1640, %v6969, %v6971
  %v7958 = vsel %vm1640, %v6971, %v6973
  %v7959 = vsel %vm1640, %v6973, %v6975
  %v7960 = vsel %vm1640, %v6975, %v6977
  %v7961 = vsel %vm1640, %v6977, %v6979
  %v7962 = vsel %vm1640, %v6979, %v6981
  %v7963 = vsel %vm1640, %v6981, %v6983
  %v7964 = vsel %vm1640, %v6985, %v6987
  %v7965 = vsel %vm1640, %v6987, %v6989
  %v7966 = vsel %vm1640, %v6989, %v6991
  %v7967 = vsel %vm1640, %v6991, %v6993
  %v7968 = vsel %vm1640, %v6993, %v6995
  %v7969 = vsel %vm1640, %v6995, %v6997
  %v7970 = vsel %vm1640, %v6997, %v6999
  %v7971 = vsel %vm1640, %v6999, %v7001
  %v7972 = vsel %vm1640, %v7001, %v7003
  %v7973 = vsel %vm1640, %v7003, %v7005
  %v7974 = vsel %vm1640, %v7007, %v7009
  %v7975 = vsel %vm1640, %v7009, %v7011
  %v7976 = vsel %vm1640, %v7011, %v7013
  %v7977 = vsel %vm1640, %v7013, %v7015
  %v7978 = vsel %vm1640, %v7015, %v7017
  %v7979 = vsel %vm1640, %v7017, %v7019
  %v7980 = vsel %vm1640, %v7019, %v7021
  %v7981 = vsel %vm1640, %v7021, %v7023
  %v7982 = vsel %vm1640, %v7023, %v7025
  %v7983 = vsel %vm1640, %v7025, %v7027
  %v7984 = vsel %vm1640, %v7029, %v7031
  %v7985 = vsel %vm1640, %v7031, %v7033
  %v7986 = vsel %vm1640, %v7033, %v7035
  %v7987 = vsel %vm1640, %v7035, %v7037
  %v7988 = vsel %vm1640, %v7037, %v7039
  %v7989 = vsel %vm1640, %v7039, %v7041
  %v7990 = vsel %vm1640, %v7041, %v7043
  %v7991 = vsel %vm1640, %v7043, %v7045
  %v7992 = vsel %vm1640, %v7045, %v7047
  %v7993 = vsel %vm1640, %v7047, %v7049
  %v7994 = vsel %vm1640, %v7051, %v7053
  %v7995 = vsel %vm1640, %v7053, %v7055
  %v7996 = vsel %vm1640, %v7055, %v7057
  %v7997 = vsel %vm1640, %v7057, %v7059
  %v7998 = vsel %vm1640, %v7059, %v7061
  %v7999 = vsel %vm1640, %v7061, %v7063
  %v8000 = vsel %vm1640, %v7063, %v7065
  %v8001 = vsel %vm1640, %v7065, %v7067
  %v8002 = vsel %vm1640, %v7067, %v7069
  %v8003 = vsel %vm1640, %v7069, %v7071
  %v8004 = vsel %vm1640, %v7073, %v7075
  %v8005 = vsel %vm1640, %v7075, %v7077
  %v8006 = vsel %vm1640, %v7077, %v7079
  %v8007 = vsel %vm1640, %v7079, %v7081
  %v8008 = vsel %vm1640, %v7081, %v7083
  %v8009 = vsel %vm1640, %v7083, %v7085
  %v8010 = vsel %vm1640, %v7085, %v7087
  %v8011 = vsel %vm1640, %v7087, %v7089
  %v8012 = vsel %vm1640, %v7089, %v7091
  %v8013 = vsel %vm1640, %v7091, %v7093
  %v8014 = vsel %vm1640, %v7095, %v7097
  %v8015 = vsel %vm1640, %v7097, %v7099
  %v8016 = vsel %vm1640, %v7099, %v7101
  %v8017 = vsel %vm1640, %v7101, %v7103
  %v8018 = vsel %vm1640, %v7103, %v7105
  %v8019 = vsel %vm1640, %v7105, %v7107
  %v8020 = vsel %vm1640, %v7107, %v7109
  %v8021 = vsel %vm1640, %v7109, %v7111
  %v8022 = vsel %vm1640, %v7111, %v7113
  %v8023 = vsel %vm1640, %v7113, %v7115
  %v8024 = vsel %vm1640, %v7117, %v7119
  %v8025 = vsel %vm1640, %v7119, %v7121
  %v8026 = vsel %vm1640, %v7121, %v7123
  %v8027 = vsel %vm1640, %v7123, %v7125
  %v8028 = vsel %vm1640, %v7125, %v7127
  %v8029 = vsel %vm1640, %v7127, %v7129
  %v8030 = vsel %vm1640, %v7129, %v7131
  %v8031 = vsel %vm1640, %v7131, %v7133
  %v8032 = vsel %vm1640, %v7133, %v7135
  %v8033 = vsel %vm1640, %v7135, %v7137
  %v8034 = vsel %vm1640, %v7139, %v7141
  %v8035 = vsel %vm1640, %v7141, %v7143
  %v8036 = vsel %vm1640, %v7143, %v7145
  %v8037 = vsel %vm1640, %v7145, %v7147
  %v8038 = vsel %vm1640, %v7147, %v7149
  %v8039 = vsel %vm1640, %v7149, %v7151
  %v8040 = vsel %vm1640, %v7151, %v7153
  %v8041 = vsel %vm1640, %v7153, %v7155
  %v8042 = vsel %vm1640, %v7155, %v7157
  %v8043 = vsel %vm1640, %v7157, %v7159
  %v8044 = vsel %vm1640, %v7161, %v7163
  %v8045 = vsel %vm1640, %v7163, %v7165
  %v8046 = vsel %vm1640, %v7165, %v7167
  %v8047 = vsel %vm1640, %v7167, %v7169
  %v8048 = vsel %vm1640, %v7169, %v7171
  %v8049 = vsel %vm1640, %v7171, %v7173
  %v8050 = vsel %vm1640, %v7173, %v7175
  %v8051 = vsel %vm1640, %v7175, %v7177
  %v8052 = vsel %vm1640, %v7177, %v7179
  %v8053 = vsel %vm1640, %v7179, %v7181
  %v8054 = vsel %vm1640, %v7183, %v7185
  %v8055 = vsel %vm1640, %v7185, %v7187
  %v8056 = vsel %vm1640, %v7187, %v7189
  %v8057 = vsel %vm1640, %v7189, %v7191
  %v8058 = vsel %vm1640, %v7191, %v7193
  %v8059 = vsel %vm1640, %v7193, %v7195
  %v8060 = vsel %vm1640, %v7195, %v7197
  %v8061 = vsel %vm1640, %v7197, %v7199
  %v8062 = vsel %vm1640, %v7199, %v7201
  %v8063 = vsel %vm1640, %v7201, %v7203
  %v8064 = vsel %vm1640, %v7205, %v7207
  %v8065 = vsel %vm1640, %v7207, %v7209
  %v8066 = vsel %vm1640, %v7209, %v7211
  %v8067 = vsel %vm1640, %v7211, %v7213
  %v8068 = vsel %vm1640, %v7213, %v7215
  %v8069 = vsel %vm1640, %v7215, %v7217
  %v8070 = vsel %vm1640, %v7217, %v7219
  %v8071 = vsel %vm1640, %v7219, %v7221
  %v8072 = vsel %vm1640, %v7221, %v7223
  %v8073 = vsel %vm1640, %v7223, %v7225
  %v8074 = vsel %vm1640, %v7227, %v7229
  %v8075 = vsel %vm1640, %v7229, %v7231
  %v8076 = vsel %vm1640, %v7231, %v7233
  %v8077 = vsel %vm1640, %v7233, %v7235
  %v8078 = vsel %vm1640, %v7235, %v7237
  %v8079 = vsel %vm1640, %v7237, %v7239
  %v8080 = vsel %vm1640, %v7239, %v7241
  %v8081 = vsel %vm1640, %v7241, %v7243
  %v8082 = vsel %vm1640, %v7243, %v7245
  %v8083 = vsel %vm1640, %v7245, %v7247
  %v8084 = vsel %vm1640, %v7249, %v7251
  %v8085 = vsel %vm1640, %v7251, %v7253
  %v8086 = vsel %vm1640, %v7253, %v7255
  %v8087 = vsel %vm1640, %v7255, %v7257
  %v8088 = vsel %vm1640, %v7257, %v7259
  %v8089 = vsel %vm1640, %v7259, %v7261
  %v8090 = vsel %vm1640, %v7261, %v7263
  %v8091 = vsel %vm1640, %v7263, %v7265
  %v8092 = vsel %vm1640, %v7265, %v7267
  %v8093 = vsel %vm1640, %v7267, %v7269
  %v8094 = vsel %vm1640, %v7271, %v7273
  %v8095 = vsel %vm1640, %v7273, %v7275
  %v8096 = vsel %vm1640, %v7275, %v7277
  %v8097 = vsel %vm1640, %v7277, %v7279
  %v8098 = vsel %vm1640, %v7279, %v7281
  %v8099 = vsel %vm1640, %v7281, %v7283
  %v8100 = vsel %vm1640, %v7283, %v7285
  %v8101 = vsel %vm1640, %v7285, %v7287
  %v8102 = vsel %vm1640, %v7287, %v7289
  %v8103 = vsel %vm1640, %v7289, %v7291
  %v8104 = vsel %vm1640, %v7293, %v7295
  %v8105 = vsel %vm1640, %v7295, %v7297
  %v8106 = vsel %vm1640, %v7297, %v7299
  %v8107 = vsel %vm1640, %v7299, %v7301
  %v8108 = vsel %vm1640, %v7301, %v7303
  %v8109 = vsel %vm1640, %v7303, %v7305
  %v8110 = vsel %vm1640, %v7305, %v7307
  %v8111 = vsel %vm1640, %v7307, %v7309
  %v8112 = vsel %vm1640, %v7309, %v7311
  %v8113 = vsel %vm1640, %v7311, %v7313
  %v8114 = vsel %vm1640, %v7315, %v7317
  %v8115 = vsel %vm1640, %v7317, %v7319
  %v8116 = vsel %vm1640, %v7319, %v7321
  %v8117 = vsel %vm1640, %v7321, %v7323
  %v8118 = vsel %vm1640, %v7323, %v7325
  %v8119 = vsel %vm1640, %v7325, %v7327
  %v8120 = vsel %vm1640, %v7327, %v7329
  %v8121 = vsel %vm1640, %v7329, %v7331
  %v8122 = vsel %vm1640, %v7331, %v7333
  %v8123 = vsel %vm1640, %v7333, %v7335
  %v8124 = vsel %vm1640, %v7337, %v7339
  %v8125 = vsel %vm1640, %v7339, %v7341
  %v8126 = vsel %vm1640, %v7341, %v7343
  %v8127 = vsel %vm1640, %v7343, %v7345
  %v8128 = vsel %vm1640, %v7345, %v7347
  %v8129 = vsel %vm1640, %v7347, %v7349
  %v8130 = vsel %vm1640, %v7349, %v7351
  %v8131 = vsel %vm1640, %v7351, %v7353
  %v8132 = vsel %vm1640, %v7353, %v7355
  %v8133 = vsel %vm1640, %v7355, %v7357
  %v8134 = vsel %vm1640, %v7359, %v7361
  %v8135 = vsel %vm1640, %v7361, %v7363
  %v8136 = vsel %vm1640, %v7363, %v7365
  %v8137 = vsel %vm1640, %v7365, %v7367
  %v8138 = vsel %vm1640, %v7367, %v7369
  %v8139 = vsel %vm1640, %v7369, %v7371
  %v8140 = vsel %vm1640, %v7371, %v7373
  %v8141 = vsel %vm1640, %v7373, %v7375
  %v8142 = vsel %vm1640, %v7375, %v7377
  %v8143 = vsel %vm1640, %v7377, %v7379
  %v8144 = vsel %vm1640, %v7381, %v7383
  %v8145 = vsel %vm1640, %v7383, %v7385
  %v8146 = vsel %vm1640, %v7385, %v7387
  %v8147 = vsel %vm1640, %v7387, %v7389
  %v8148 = vsel %vm1640, %v7389, %v7391
  %v8149 = vsel %vm1640, %v7391, %v7393
  %v8150 = vsel %vm1640, %v7393, %v7395
  %v8151 = vsel %vm1640, %v7395, %v7397
  %v8152 = vsel %vm1640, %v7397, %v7399
  %v8153 = vsel %vm1640, %v7399, %v7401
  %v8154 = vsel %vm1640, %v7403, %v7405
  %v8155 = vsel %vm1640, %v7405, %v7407
  %v8156 = vsel %vm1640, %v7407, %v7409
  %v8157 = vsel %vm1640, %v7409, %v7411
  %v8158 = vsel %vm1640, %v7411, %v7413
  %v8159 = vsel %vm1640, %v7413, %v7415
  %v8160 = vsel %vm1640, %v7415, %v7417
  %v8161 = vsel %vm1640, %v7417, %v7419
  %v8162 = vsel %vm1640, %v7419, %v7421
  %v8163 = vsel %vm1640, %v7421, %v7423
  %v8164 = vsel %vm1640, %v7425, %v7427
  %v8165 = vsel %vm1640, %v7427, %v7429
  %v8166 = vsel %vm1640, %v7429, %v7431
  %v8167 = vsel %vm1640, %v7431, %v7433
  %v8168 = vsel %vm1640, %v7433, %v7435
  %v8169 = vsel %vm1640, %v7435, %v7437
  %v8170 = vsel %vm1640, %v7437, %v7439
  %v8171 = vsel %vm1640, %v7439, %v7441
  %v8172 = vsel %vm1640, %v7441, %v7443
  %v8173 = vsel %vm1640, %v7443, %v7445
  %v8174 = vsel %vm1640, %v7447, %v7449
  %v8175 = vsel %vm1640, %v7449, %v7451
  %v8176 = vsel %vm1640, %v7451, %v7453
  %v8177 = vsel %vm1640, %v7453, %v7455
  %v8178 = vsel %vm1640, %v7455, %v7457
  %v8179 = vsel %vm1640, %v7457, %v7459
  %v8180 = vsel %vm1640, %v7459, %v7461
  %v8181 = vsel %vm1640, %v7461, %v7463
  %v8182 = vsel %vm1640, %v7463, %v7465
  %v8183 = vsel %vm1640, %v7465, %v7467
  %v8184 = vsel %vm1640, %v7469, %v7471
  %v8185 = vsel %vm1640, %v7471, %v7473
  %v8186 = vsel %vm1640, %v7473, %v7475
  %v8187 = vsel %vm1640, %v7475, %v7477
  %v8188 = vsel %vm1640, %v7477, %v7479
  %v8189 = vsel %vm1640, %v7479, %v7481
  %v8190 = vsel %vm1640, %v7481, %v7483
  %v8191 = vsel %vm1640, %v7483, %v7485
  %v8192 = vsel %vm1640, %v7485, %v7487
  %v8193 = vsel %vm1640, %v7487, %v7489
  %v8194 = vsel %vm1640, %v7491, %v7493
  %v8195 = vsel %vm1640, %v7493, %v7495
  %v8196 = vsel %vm1640, %v7495, %v7497
  %v8197 = vsel %vm1640, %v7497, %v7499
  %v8198 = vsel %vm1640, %v7499, %v7501
  %v8199 = vsel %vm1640, %v7501, %v7503
  %v8200 = vsel %vm1640, %v7503, %v7505
  %v8201 = vsel %vm1640, %v7505, %v7507
  %v8202 = vsel %vm1640, %v7507, %v7509
  %v8203 = vsel %vm1640, %v7509, %v7511
  %v8204 = vsel %vm1640, %v7513, %v7515
  %v8205 = vsel %vm1640, %v7515, %v7517
  %v8206 = vsel %vm1640, %v7517, %v7519
  %v8207 = vsel %vm1640, %v7519, %v7521
  %v8208 = vsel %vm1640, %v7521, %v7523
  %v8209 = vsel %vm1640, %v7523, %v7525
  %v8210 = vsel %vm1640, %v7525, %v7527
  %v8211 = vsel %vm1640, %v7527, %v7529
  %v8212 = vsel %vm1640, %v7529, %v7531
  %v8213 = vsel %vm1640, %v7531, %v7533
  %v8214 = vsel %vm1640, %v7535, %v7537
  %v8215 = vsel %vm1640, %v7537, %v7539
  %v8216 = vsel %vm1640, %v7539, %v7541
  %v8217 = vsel %vm1640, %v7541, %v7543
  %v8218 = vsel %vm1640, %v7543, %v7545
  %v8219 = vsel %vm1640, %v7545, %v7547
  %v8220 = vsel %vm1640, %v7547, %v7549
  %v8221 = vsel %vm1640, %v7549, %v7551
  %v8222 = vsel %vm1640, %v7551, %v7553
  %v8223 = vsel %vm1640, %v7553, %v7555
  %v8224 = vsel %vm1640, %v7557, %v7559
  %v8225 = vsel %vm1640, %v7559, %v7561
  %v8226 = vsel %vm1640, %v7561, %v7563
  %v8227 = vsel %vm1640, %v7563, %v7565
  %v8228 = vsel %vm1640, %v7565, %v7567
  %v8229 = vsel %vm1640, %v7567, %v7569
  %v8230 = vsel %vm1640, %v7569, %v7571
  %v8231 = vsel %vm1640, %v7571, %v7573
  %v8232 = vsel %vm1640, %v7573, %v7575
  %v8233 = vsel %vm1640, %v7575, %v7577
  %v8234 = vsel %vm1640, %v7579, %v7581
  %v8235 = vsel %vm1640, %v7581, %v7583
  %v8236 = vsel %vm1640, %v7583, %v7585
  %v8237 = vsel %vm1640, %v7585, %v7587
  %v8238 = vsel %vm1640, %v7587, %v7589
  %v8239 = vsel %vm1640, %v7589, %v7591
  %v8240 = vsel %vm1640, %v7591, %v7593
  %v8241 = vsel %vm1640, %v7593, %v7595
  %v8242 = vsel %vm1640, %v7595, %v7597
  %v8243 = vsel %vm1640, %v7597, %v7599
  %v8244 = vsel %vm1640, %v7601, %v7603
  %v8245 = vsel %vm1640, %v7603, %v7605
  %v8246 = vsel %vm1640, %v7605, %v7607
  %v8247 = vsel %vm1640, %v7607, %v7609
  %v8248 = vsel %vm1640, %v7609, %v7611
  %v8249 = vsel %vm1640, %v7611, %v7613
  %v8250 = vsel %vm1640, %v7613, %v7615
  %v8251 = vsel %vm1640, %v7615, %v7617
  %v8252 = vsel %vm1640, %v7617, %v7619
  %v8253 = vsel %vm1640, %v7619, %v7621
  %v8254 = vsel %vm1640, %v7623, %v7625
  %v8255 = vsel %vm1640, %v7625, %v7627
  %v8256 = vsel %vm1640, %v7627, %v7629
  %v8257 = vsel %vm1640, %v7629, %v7631
  %v8258 = vsel %vm1640, %v7631, %v7633
  %v8259 = vsel %vm1640, %v7633, %v7635
  %v8260 = vsel %vm1640, %v7635, %v7637
  %v8261 = vsel %vm1640, %v7637, %v7639
  %v8262 = vsel %vm1640, %v7639, %v7641
  %v8263 = vsel %vm1640, %v7641, %v7643
  %v8264 = vsel %vm1640, %v7645, %v7647
  %v8265 = vsel %vm1640, %v7647, %v7649
  %v8266 = vsel %vm1640, %v7649, %v7651
  %v8267 = vsel %vm1640, %v7651, %v7653
  %v8268 = vsel %vm1640, %v7653, %v7655
  %v8269 = vsel %vm1640, %v7655, %v7657
  %v8270 = vsel %vm1640, %v7657, %v7659
  %v8271 = vsel %vm1640, %v7659, %v7661
  %v8272 = vsel %vm1640, %v7661, %v7663
  %v8273 = vsel %vm1640, %v7663, %v7665
  %v8274 = vsel %vm1640, %v7667, %v7669
  %v8275 = vsel %vm1640, %v7669, %v7671
  %v8276 = vsel %vm1640, %v7671, %v7673
  %v8277 = vsel %vm1640, %v7673, %v7675
  %v8278 = vsel %vm1640, %v7675, %v7677
  %v8279 = vsel %vm1640, %v7677, %v7679
  %v8280 = vsel %vm1640, %v7679, %v7681
  %v8281 = vsel %vm1640, %v7681, %v7683
  %v8282 = vsel %vm1640, %v7683, %v7685
  %v8283 = vsel %vm1640, %v7685, %v7687
  %v8284 = vsel %vm1640, %v7689, %v7691
  %v8285 = vsel %vm1640, %v7691, %v7693
  %v8286 = vsel %vm1640, %v7693, %v7695
  %v8287 = vsel %vm1640, %v7695, %v7697
  %v8288 = vsel %vm1640, %v7697, %v7699
  %v8289 = vsel %vm1640, %v7699, %v7701
  %v8290 = vsel %vm1640, %v7701, %v7703
  %v8291 = vsel %vm1640, %v7703, %v7705
  %v8292 = vsel %vm1640, %v7705, %v7707
  %v8293 = vsel %vm1640, %v7707, %v7709
  %v8294 = vsel %vm1640, %v7711, %v7713
  %v8295 = vsel %vm1640, %v7713, %v7715
  %v8296 = vsel %vm1640, %v7715, %v7717
  %v8297 = vsel %vm1640, %v7717, %v7719
  %v8298 = vsel %vm1640, %v7719, %v7721
  %v8299 = vsel %vm1640, %v7721, %v7723
  %v8300 = vsel %vm1640, %v7723, %v7725
  %v8301 = vsel %vm1640, %v7725, %v7727
  %v8302 = vsel %vm1640, %v7727, %v7729
  %v8303 = vsel %vm1640, %v7729, %v7731
  %v8304 = vsel %vm1640, %v7733, %v7735
  %v8305 = vsel %vm1640, %v7735, %v7737
  %v8306 = vsel %vm1640, %v7737, %v7739
  %v8307 = vsel %vm1640, %v7739, %v7741
  %v8308 = vsel %vm1640, %v7741, %v7743
  %v8309 = vsel %vm1640, %v7743, %v7745
  %v8310 = vsel %vm1640, %v7745, %v7747
  %v8311 = vsel %vm1640, %v7747, %v7749
  %v8312 = vsel %vm1640, %v7749, %v7751
  %v8313 = vsel %vm1640, %v7751, %v7753
  %v8314 = vsel %vm1640, %v7755, %v7757
  %v8315 = vsel %vm1640, %v7757, %v7759
  %v8316 = vsel %vm1640, %v7759, %v7761
  %v8317 = vsel %vm1640, %v7761, %v7763
  %v8318 = vsel %vm1640, %v7763, %v7765
  %v8319 = vsel %vm1640, %v7765, %v7767
  %v8320 = vsel %vm1640, %v7767, %v7769
  %v8321 = vsel %vm1640, %v7769, %v7771
  %v8322 = vsel %vm1640, %v7771, %v7773
  %v8323 = vsel %vm1640, %v7773, %v7775
  %v8324 = vsel %vm1640, %v7777, %v7779
  %v8325 = vsel %vm1640, %v7779, %v7781
  %v8326 = vsel %vm1640, %v7781, %v7783
  %v8327 = vsel %vm1640, %v7783, %v7785
  %v8328 = vsel %vm1640, %v7785, %v7787
  %v8329 = vsel %vm1640, %v7787, %v7789
  %v8330 = vsel %vm1640, %v7789, %v7791
  %v8331 = vsel %vm1640, %v7791, %v7793
  %v8332 = vsel %vm1640, %v7793, %v7795
  %v8333 = vsel %vm1640, %v7795, %v7797
  %v8334 = vsel %vm1640, %v7799, %v7801
  %v8335 = vsel %vm1640, %v7801, %v7803
  %v8336 = vsel %vm1640, %v7803, %v7805
  %v8337 = vsel %vm1640, %v7805, %v7807
  %v8338 = vsel %vm1640, %v7807, %v7809
  %v8339 = vsel %vm1640, %v7809, %v7811
  %v8340 = vsel %vm1640, %v7811, %v7813
  %v8341 = vsel %vm1640, %v7813, %v7815
  %v8342 = vsel %vm1640, %v7815, %v7817
  %v8343 = vsel %vm1640, %v7817, %v7819
  %v8344 = vsel %vm1640, %v7821, %v7823
  %v8345 = vsel %vm1640, %v7823, %v7825
  %v8346 = vsel %vm1640, %v7825, %v7827
  %v8347 = vsel %vm1640, %v7827, %v7829
  %v8348 = vsel %vm1640, %v7829, %v7831
  %v8349 = vsel %vm1640, %v7831, %v7833
  %v8350 = vsel %vm1640, %v7833, %v7835
  %v8351 = vsel %vm1640, %v7835, %v7837
  %v8352 = vsel %vm1640, %v7837, %v7839
  %v8353 = vsel %vm1640, %v7839, %v7841
  %v8354 = vsel %vm1640, %v7843, %v7845
  %v8355 = vsel %vm1640, %v7845, %v7847
  %v8356 = vsel %vm1640, %v7847, %v7849
  %v8357 = vsel %vm1640, %v7849, %v7851
  %v8358 = vsel %vm1640, %v7851, %v7853
  %v8359 = vsel %vm1640, %v7853, %v7855
  %v8360 = vsel %vm1640, %v7855, %v7857
  %v8361 = vsel %vm1640, %v7857, %v7859
  %v8362 = vsel %vm1640, %v7859, %v7861
  %v8363 = vsel %vm1640, %v7861, %v7863
  %vm8864 = vcmask 130048
  %v8866 = vsel %vm8864, %v6731, 0
  %v8869 = vsel %vm8864, %v6735, 0
  %v8872 = vsel %vm8864, %v6739, 0
  %v8875 = vsel %vm8864, %v6743, 0
  %8877 = vmatprep.subr.mxu0 %v7865
  %8878 = vmatpush1.msra.mxu0 %v7864
  %8879 = vmatprep.subr.mxu0 %v7875
  %8880 = vmatpush1.msra.mxu0 %v7874
  %8881 = vmatprep.subr.mxu0 %v7885
  %8882 = vmatpush1.msra.mxu0 %v7884
  %8883 = vmatprep.subr.mxu0 %v7895
  %8884 = vmatpush1.msra.mxu0 %v7894
  %8885 = vmatprep.subr.mxu0 %v7905
  %8886 = vmatpush1.msra.mxu0 %v7904
  %8887 = vmatprep.subr.mxu0 %v7915
  %8888 = vmatpush1.msra.mxu0 %v7914
  %8889 = vmatprep.subr.mxu0 %v7925
  %8890 = vmatpush1.msra.mxu0 %v7924
  %8891 = vmatprep.subr.mxu0 %v7935
  %8892 = vmatpush1.msra.mxu0 %v7934
  %8893 = vmatprep.subr.mxu0 %v7945
  %8894 = vmatpush1.msra.mxu0 %v7944
  %8895 = vmatprep.subr.mxu0 %v7955
  %8896 = vmatpush1.msra.mxu0 %v7954
  %8897 = vmatprep.subr.mxu0 %v7965
  %8898 = vmatpush1.msra.mxu0 %v7964
  %8899 = vmatprep.subr.mxu0 %v7975
  %8900 = vmatpush1.msra.mxu0 %v7974
  %8901 = vmatprep.subr.mxu0 %v7985
  %8902 = vmatpush1.msra.mxu0 %v7984
  %8903 = vmatprep.subr.mxu0 %v7995
  %8904 = vmatpush1.msra.mxu0 %v7994
  %8905 = vmatprep.subr.mxu0 %v8005
  %8906 = vmatpush1.msra.mxu0 %v8004
  %8907 = vmatprep.subr.mxu0 %v8015
  %8908 = vmatpush1.msra.mxu0 %v8014
  %8909 = vmatprep.subr.mxu0 %v8025
  %8910 = vmatpush1.msra.mxu0 %v8024
  %8911 = vmatprep.subr.mxu0 %v8035
  %8912 = vmatpush1.msra.mxu0 %v8034
  %8913 = vmatprep.subr.mxu0 %v8045
  %8914 = vmatpush1.msra.mxu0 %v8044
  %8915 = vmatprep.subr.mxu0 %v8055
  %8916 = vmatpush1.msra.mxu0 %v8054
  %8917 = vmatprep.subr.mxu0 %v8065
  %8918 = vmatpush1.msra.mxu0 %v8064
  %8919 = vmatprep.subr.mxu0 %v8075
  %8920 = vmatpush1.msra.mxu0 %v8074
  %8921 = vmatprep.subr.mxu0 %v8085
  %8922 = vmatpush1.msra.mxu0 %v8084
  %8923 = vmatprep.subr.mxu0 %v8095
  %8924 = vmatpush1.msra.mxu0 %v8094
  %8925 = vmatprep.subr.mxu0 %v8105
  %8926 = vmatpush1.msra.mxu0 %v8104
  %8927 = vmatprep.subr.mxu0 %v8115
  %8928 = vmatpush1.msra.mxu0 %v8114
  %8929 = vmatprep.subr.mxu0 %v8125
  %8930 = vmatpush1.msra.mxu0 %v8124
  %8931 = vmatprep.subr.mxu0 %v8135
  %8932 = vmatpush1.msra.mxu0 %v8134
  %8933 = vmatprep.subr.mxu0 %v8145
  %8934 = vmatpush1.msra.mxu0 %v8144
  %8935 = vmatprep.subr.mxu0 %v8155
  %8936 = vmatpush1.msra.mxu0 %v8154
  %8937 = vmatprep.subr.mxu0 %v8165
  %8938 = vmatpush1.msra.mxu0 %v8164
  %8939 = vmatprep.subr.mxu0 %v8175
  %8940 = vmatpush1.msra.mxu0 %v8174
  %8941 = vmatprep.mubr.f32.mxu0 %v6729
  %8942 = vmatmul.mubr.f32.gmra.mrb[0].mxu0 %v6728
  %v8943 = vpop.f32.mrb[0].mxu0
  %v8944 = vadd.f32 %v6751, %v8943
  %v8945 = vpop.f32.mrb[0].mxu0
  %v8946 = vadd.f32 %v6751, %v8945
  %8947 = vmatprep.mubr.f32.mxu0 %v6733
  %8948 = vmatmul.mubr.f32.gmra.mrb[0].mxu0 %v6732
  %v8949 = vpop.f32.mrb[0].mxu0
  %v8950 = vadd.f32 %v6756, %v8949
  %v8951 = vpop.f32.mrb[0].mxu0
  %v8952 = vadd.f32 %v6756, %v8951
  %8953 = vmatprep.mubr.f32.mxu0 %v6737
  %8954 = vmatmul.mubr.f32.gmra.mrb[0].mxu0 %v6736
  %v8955 = vpop.f32.mrb[0].mxu0
  %v8956 = vadd.f32 %v6761, %v8955
  %v8957 = vpop.f32.mrb[0].mxu0
  %v8958 = vadd.f32 %v6761, %v8957
  %8959 = vmatprep.mubr.f32.mxu0 %v6741
  %8960 = vmatmul.mubr.f32.gmra.mrb[0].mxu0 %v6740
  %v8961 = vpop.f32.mrb[0].mxu0
  %v8962 = vadd.f32 %v6766, %v8961
  %v8963 = vpop.f32.mrb[0].mxu0
  %v8964 = vadd.f32 %v6766, %v8963
  %8965 = vdwg.mxu0
  %8966 = vmatprep.subr.mxu0 %v8185
  %8967 = vmatpush1.msra.mxu0 %v8184
  %8968 = vmatprep.subr.mxu0 %v8195
  %8969 = vmatpush1.msra.mxu0 %v8194
  %8970 = vmatprep.subr.mxu0 %v8205
  %8971 = vmatpush1.msra.mxu0 %v8204
  %8972 = vmatprep.subr.mxu0 %v8215
  %8973 = vmatpush1.msra.mxu0 %v8214
  %8974 = vmatprep.subr.mxu0 %v8225
  %8975 = vmatpush1.msra.mxu0 %v8224
  %8976 = vmatprep.subr.mxu0 %v8235
  %8977 = vmatpush1.msra.mxu0 %v8234
  %8978 = vmatprep.subr.mxu0 %v8245
  %8979 = vmatpush1.msra.mxu0 %v8244
  %8980 = vmatprep.subr.mxu0 %v8255
  %8981 = vmatpush1.msra.mxu0 %v8254
  %8982 = vmatprep.subr.mxu0 %v8265
  %8983 = vmatpush1.msra.mxu0 %v8264
  %8984 = vmatprep.subr.mxu0 %v8275
  %8985 = vmatpush1.msra.mxu0 %v8274
  %8986 = vmatprep.subr.mxu0 %v8285
  %8987 = vmatpush1.msra.mxu0 %v8284
  %8988 = vmatprep.subr.mxu0 %v8295
  %8989 = vmatpush1.msra.mxu0 %v8294
  %8990 = vmatprep.subr.mxu0 %v8305
  %8991 = vmatpush1.msra.mxu0 %v8304
  %8992 = vmatprep.subr.mxu0 %v8315
  %8993 = vmatpush1.msra.mxu0 %v8314
  %8994 = vmatprep.subr.mxu0 %v8325
  %8995 = vmatpush1.msra.mxu0 %v8324
  %8996 = vmatprep.subr.mxu0 %v8335
  %8997 = vmatpush1.msra.mxu0 %v8334
  %8998 = vmatprep.subr.mxu0 %v8345
  %8999 = vmatpush1.msra.mxu0 %v8344
  %9000 = vmatprep.subr.mxu0 %v8355
  %9001 = vmatpush1.msra.mxu0 %v8354
  %9002 = vmatprep.subr.mxu0 0.0
  %9003 = vmatpush1.msra.mxu0 0.0
  %9004 = vmatprep.subr.mxu0 0.0
  %9005 = vmatpush1.msra.mxu0 0.0
  %9006 = vmatprep.subr.mxu0 0.0
  %9007 = vmatpush1.msra.mxu0 0.0
  %9008 = vmatprep.subr.mxu0 0.0
  %9009 = vmatpush1.msra.mxu0 0.0
  %9010 = vmatprep.subr.mxu0 0.0
  %9011 = vmatpush1.msra.mxu0 0.0
  %9012 = vmatprep.subr.mxu0 0.0
  %9013 = vmatpush1.msra.mxu0 0.0
  %9014 = vmatprep.subr.mxu0 0.0
  %9015 = vmatpush1.msra.mxu0 0.0
  %9016 = vmatprep.subr.mxu0 0.0
  %9017 = vmatpush1.msra.mxu0 0.0
  %9018 = vmatprep.subr.mxu0 0.0
  %9019 = vmatpush1.msra.mxu0 0.0
  %9020 = vmatprep.subr.mxu0 0.0
  %9021 = vmatpush1.msra.mxu0 0.0
  %9022 = vmatprep.subr.mxu0 0.0
  %9023 = vmatpush1.msra.mxu0 0.0
  %9024 = vmatprep.subr.mxu0 0.0
  %9025 = vmatpush1.msra.mxu0 0.0
  %9026 = vmatprep.subr.mxu0 0.0
  %9027 = vmatpush1.msra.mxu0 0.0
  %9028 = vmatprep.subr.mxu0 0.0
  %9029 = vmatpush1.msra.mxu0 0.0
  %9030 = vmatprep.mubr.f32.mxu0 %v8866
  %9031 = vmatmul.mubr.f32.gmra.mrb[0].mxu0 %v6730
  %v9032 = vpop.f32.mrb[0].mxu0
  %v9033 = vadd.f32 %v8944, %v9032
  %v9034 = vpop.f32.mrb[0].mxu0
  %v9035 = vadd.f32 %v8946, %v9034
  %9036 = vmatprep.mubr.f32.mxu0 %v8869
  %9037 = vmatmul.mubr.f32.gmra.mrb[0].mxu0 %v6734
  %v9038 = vpop.f32.mrb[0].mxu0
  %v9039 = vadd.f32 %v8950, %v9038
  %v9040 = vpop.f32.mrb[0].mxu0
  %v9041 = vadd.f32 %v8952, %v9040
  %9042 = vmatprep.mubr.f32.mxu0 %v8872
  %9043 = vmatmul.mubr.f32.gmra.mrb[0].mxu0 %v6738
  %v9044 = vpop.f32.mrb[0].mxu0
  %v9045 = vadd.f32 %v8956, %v9044
  %v9046 = vpop.f32.mrb[0].mxu0
  %v9047 = vadd.f32 %v8958, %v9046
  %9048 = vmatprep.mubr.f32.mxu0 %v8875
  %9049 = vmatmul.mubr.f32.gmra.mrb[0].mxu0 %v6742
  %v9050 = vpop.f32.mrb[0].mxu0
  %v9051 = vadd.f32 %v8962, %v9050
  %v9052 = vpop.f32.mrb[0].mxu0
  %v9053 = vadd.f32 %v8964, %v9052
  %9054 = vdwg.mxu0
  %9055 = vmatprep.subr.mxu0 %v7867
  %9056 = vmatpush1.msra.mxu0 %v7866
  %9057 = vmatprep.subr.mxu0 %v7877
  %9058 = vmatpush1.msra.mxu0 %v7876
  %9059 = vmatprep.subr.mxu0 %v7887
  %9060 = vmatpush1.msra.mxu0 %v7886
  %9061 = vmatprep.subr.mxu0 %v7897
  %9062 = vmatpush1.msra.mxu0 %v7896
  %9063 = vmatprep.subr.mxu0 %v7907
  %9064 = vmatpush1.msra.mxu0 %v7906
  %9065 = vmatprep.subr.mxu0 %v7917
  %9066 = vmatpush1.msra.mxu0 %v7916
  %9067 = vmatprep.subr.mxu0 %v7927
  %9068 = vmatpush1.msra.mxu0 %v7926
  %9069 = vmatprep.subr.mxu0 %v7937
  %9070 = vmatpush1.msra.mxu0 %v7936
  %9071 = vmatprep.subr.mxu0 %v7947
  %9072 = vmatpush1.msra.mxu0 %v7946
  %9073 = vmatprep.subr.mxu0 %v7957
  %9074 = vmatpush1.msra.mxu0 %v7956
  %9075 = vmatprep.subr.mxu0 %v7967
  %9076 = vmatpush1.msra.mxu0 %v7966
  %9077 = vmatprep.subr.mxu0 %v7977
  %9078 = vmatpush1.msra.mxu0 %v7976
  %9079 = vmatprep.subr.mxu0 %v7987
  %9080 = vmatpush1.msra.mxu0 %v7986
  %9081 = vmatprep.subr.mxu0 %v7997
  %9082 = vmatpush1.msra.mxu0 %v7996
  %9083 = vmatprep.subr.mxu0 %v8007
  %9084 = vmatpush1.msra.mxu0 %v8006
  %9085 = vmatprep.subr.mxu0 %v8017
  %9086 = vmatpush1.msra.mxu0 %v8016
  %9087 = vmatprep.subr.mxu0 %v8027
  %9088 = vmatpush1.msra.mxu0 %v8026
  %9089 = vmatprep.subr.mxu0 %v8037
  %9090 = vmatpush1.msra.mxu0 %v8036
  %9091 = vmatprep.subr.mxu0 %v8047
  %9092 = vmatpush1.msra.mxu0 %v8046
  %9093 = vmatprep.subr.mxu0 %v8057
  %9094 = vmatpush1.msra.mxu0 %v8056
  %9095 = vmatprep.subr.mxu0 %v8067
  %9096 = vmatpush1.msra.mxu0 %v8066
  %9097 = vmatprep.subr.mxu0 %v8077
  %9098 = vmatpush1.msra.mxu0 %v8076
  %9099 = vmatprep.subr.mxu0 %v8087
  %9100 = vmatpush1.msra.mxu0 %v8086
  %9101 = vmatprep.subr.mxu0 %v8097
  %9102 = vmatpush1.msra.mxu0 %v8096
  %9103 = vmatprep.subr.mxu0 %v8107
  %9104 = vmatpush1.msra.mxu0 %v8106
  %9105 = vmatprep.subr.mxu0 %v8117
  %9106 = vmatpush1.msra.mxu0 %v8116
  %9107 = vmatprep.subr.mxu0 %v8127
  %9108 = vmatpush1.msra.mxu0 %v8126
  %9109 = vmatprep.subr.mxu0 %v8137
  %9110 = vmatpush1.msra.mxu0 %v8136
  %9111 = vmatprep.subr.mxu0 %v8147
  %9112 = vmatpush1.msra.mxu0 %v8146
  %9113 = vmatprep.subr.mxu0 %v8157
  %9114 = vmatpush1.msra.mxu0 %v8156
  %9115 = vmatprep.subr.mxu0 %v8167
  %9116 = vmatpush1.msra.mxu0 %v8166
  %9117 = vmatprep.subr.mxu0 %v8177
  %9118 = vmatpush1.msra.mxu0 %v8176
  %9119 = vmatprep.mubr.f32.mxu0 %v6729
  %9120 = vmatmul.mubr.f32.gmra.mrb[0].mxu0 %v6728
  %v9121 = vpop.f32.mrb[0].mxu0
  %v9122 = vadd.f32 %v6751, %v9121
  %v9123 = vpop.f32.mrb[0].mxu0
  %v9124 = vadd.f32 %v6751, %v9123
  %9125 = vmatprep.mubr.f32.mxu0 %v6733
  %9126 = vmatmul.mubr.f32.gmra.mrb[0].mxu0 %v6732
  %v9127 = vpop.f32.mrb[0].mxu0
  %v9128 = vadd.f32 %v6756, %v9127
  %v9129 = vpop.f32.mrb[0].mxu0
  %v9130 = vadd.f32 %v6756, %v9129
  %9131 = vmatprep.mubr.f32.mxu0 %v6737
  %9132 = vmatmul.mubr.f32.gmra.mrb[0].mxu0 %v6736
  %v9133 = vpop.f32.mrb[0].mxu0
  %v9134 = vadd.f32 %v6761, %v9133
  %v9135 = vpop.f32.mrb[0].mxu0
  %v9136 = vadd.f32 %v6761, %v9135
  %9137 = vmatprep.mubr.f32.mxu0 %v6741
  %9138 = vmatmul.mubr.f32.gmra.mrb[0].mxu0 %v6740
  %v9139 = vpop.f32.mrb[0].mxu0
  %v9140 = vadd.f32 %v6766, %v9139
  %v9141 = vpop.f32.mrb[0].mxu0
  %v9142 = vadd.f32 %v6766, %v9141
  %9143 = vdwg.mxu0
  %9144 = vmatprep.subr.mxu0 %v8187
  %9145 = vmatpush1.msra.mxu0 %v8186
  %9146 = vmatprep.subr.mxu0 %v8197
  %9147 = vmatpush1.msra.mxu0 %v8196
  %9148 = vmatprep.subr.mxu0 %v8207
  %9149 = vmatpush1.msra.mxu0 %v8206
  %9150 = vmatprep.subr.mxu0 %v8217
  %9151 = vmatpush1.msra.mxu0 %v8216
  %9152 = vmatprep.subr.mxu0 %v8227
  %9153 = vmatpush1.msra.mxu0 %v8226
  %9154 = vmatprep.subr.mxu0 %v8237
  %9155 = vmatpush1.msra.mxu0 %v8236
  %9156 = vmatprep.subr.mxu0 %v8247
  %9157 = vmatpush1.msra.mxu0 %v8246
  %9158 = vmatprep.subr.mxu0 %v8257
  %9159 = vmatpush1.msra.mxu0 %v8256
  %9160 = vmatprep.subr.mxu0 %v8267
  %9161 = vmatpush1.msra.mxu0 %v8266
  %9162 = vmatprep.subr.mxu0 %v8277
  %9163 = vmatpush1.msra.mxu0 %v8276
  %9164 = vmatprep.subr.mxu0 %v8287
  %9165 = vmatpush1.msra.mxu0 %v8286
  %9166 = vmatprep.subr.mxu0 %v8297
  %9167 = vmatpush1.msra.mxu0 %v8296
  %9168 = vmatprep.subr.mxu0 %v8307
  %9169 = vmatpush1.msra.mxu0 %v8306
  %9170 = vmatprep.subr.mxu0 %v8317
  %9171 = vmatpush1.msra.mxu0 %v8316
  %9172 = vmatprep.subr.mxu0 %v8327
  %9173 = vmatpush1.msra.mxu0 %v8326
  %9174 = vmatprep.subr.mxu0 %v8337
  %9175 = vmatpush1.msra.mxu0 %v8336
  %9176 = vmatprep.subr.mxu0 %v8347
  %9177 = vmatpush1.msra.mxu0 %v8346
  %9178 = vmatprep.subr.mxu0 %v8357
  %9179 = vmatpush1.msra.mxu0 %v8356
  %9180 = vmatprep.subr.mxu0 0.0
  %9181 = vmatpush1.msra.mxu0 0.0
  %9182 = vmatprep.subr.mxu0 0.0
  %9183 = vmatpush1.msra.mxu0 0.0
  %9184 = vmatprep.subr.mxu0 0.0
  %9185 = vmatpush1.msra.mxu0 0.0
  %9186 = vmatprep.subr.mxu0 0.0
  %9187 = vmatpush1.msra.mxu0 0.0
  %9188 = vmatprep.subr.mxu0 0.0
  %9189 = vmatpush1.msra.mxu0 0.0
  %9190 = vmatprep.subr.mxu0 0.0
  %9191 = vmatpush1.msra.mxu0 0.0
  %9192 = vmatprep.subr.mxu0 0.0
  %9193 = vmatpush1.msra.mxu0 0.0
  %9194 = vmatprep.subr.mxu0 0.0
  %9195 = vmatpush1.msra.mxu0 0.0
  %9196 = vmatprep.subr.mxu0 0.0
  %9197 = vmatpush1.msra.mxu0 0.0
  %9198 = vmatprep.subr.mxu0 0.0
  %9199 = vmatpush1.msra.mxu0 0.0
  %9200 = vmatprep.subr.mxu0 0.0
  %9201 = vmatpush1.msra.mxu0 0.0
  %9202 = vmatprep.subr.mxu0 0.0
  %9203 = vmatpush1.msra.mxu0 0.0
  %9204 = vmatprep.subr.mxu0 0.0
  %9205 = vmatpush1.msra.mxu0 0.0
  %9206 = vmatprep.subr.mxu0 0.0
  %9207 = vmatpush1.msra.mxu0 0.0
  %9208 = vmatprep.mubr.f32.mxu0 %v8866
  %9209 = vmatmul.mubr.f32.gmra.mrb[0].mxu0 %v6730
  %v9210 = vpop.f32.mrb[0].mxu0
  %v9211 = vadd.f32 %v9122, %v9210
  %v9212 = vpop.f32.mrb[0].mxu0
  %v9213 = vadd.f32 %v9124, %v9212
  %9214 = vmatprep.mubr.f32.mxu0 %v8869
  %9215 = vmatmul.mubr.f32.gmra.mrb[0].mxu0 %v6734
  %v9216 = vpop.f32.mrb[0].mxu0
  %v9217 = vadd.f32 %v9128, %v9216
  %v9218 = vpop.f32.mrb[0].mxu0
  %v9219 = vadd.f32 %v9130, %v9218
  %9220 = vmatprep.mubr.f32.mxu0 %v8872
  %9221 = vmatmul.mubr.f32.gmra.mrb[0].mxu0 %v6738
  %v9222 = vpop.f32.mrb[0].mxu0
  %v9223 = vadd.f32 %v9134, %v9222
  %v9224 = vpop.f32.mrb[0].mxu0
  %v9225 = vadd.f32 %v9136, %v9224
  %9226 = vmatprep.mubr.f32.mxu0 %v8875
  %9227 = vmatmul.mubr.f32.gmra.mrb[0].mxu0 %v6742
  %v9228 = vpop.f32.mrb[0].mxu0
  %v9229 = vadd.f32 %v9140, %v9228
  %v9230 = vpop.f32.mrb[0].mxu0
  %v9231 = vadd.f32 %v9142, %v9230
  %9232 = vdwg.mxu0
  %9233 = vmatprep.subr.mxu0 %v7869
  %9234 = vmatpush1.msra.mxu0 %v7868
  %9235 = vmatprep.subr.mxu0 %v7879
  %9236 = vmatpush1.msra.mxu0 %v7878
  %9237 = vmatprep.subr.mxu0 %v7889
  %9238 = vmatpush1.msra.mxu0 %v7888
  %9239 = vmatprep.subr.mxu0 %v7899
  %9240 = vmatpush1.msra.mxu0 %v7898
  %9241 = vmatprep.subr.mxu0 %v7909
  %9242 = vmatpush1.msra.mxu0 %v7908
  %9243 = vmatprep.subr.mxu0 %v7919
  %9244 = vmatpush1.msra.mxu0 %v7918
  %9245 = vmatprep.subr.mxu0 %v7929
  %9246 = vmatpush1.msra.mxu0 %v7928
  %9247 = vmatprep.subr.mxu0 %v7939
  %9248 = vmatpush1.msra.mxu0 %v7938
  %9249 = vmatprep.subr.mxu0 %v7949
  %9250 = vmatpush1.msra.mxu0 %v7948
  %9251 = vmatprep.subr.mxu0 %v7959
  %9252 = vmatpush1.msra.mxu0 %v7958
  %9253 = vmatprep.subr.mxu0 %v7969
  %9254 = vmatpush1.msra.mxu0 %v7968
  %9255 = vmatprep.subr.mxu0 %v7979
  %9256 = vmatpush1.msra.mxu0 %v7978
  %9257 = vmatprep.subr.mxu0 %v7989
  %9258 = vmatpush1.msra.mxu0 %v7988
  %9259 = vmatprep.subr.mxu0 %v7999
  %9260 = vmatpush1.msra.mxu0 %v7998
  %9261 = vmatprep.subr.mxu0 %v8009
  %9262 = vmatpush1.msra.mxu0 %v8008
  %9263 = vmatprep.subr.mxu0 %v8019
  %9264 = vmatpush1.msra.mxu0 %v8018
  %9265 = vmatprep.subr.mxu0 %v8029
  %9266 = vmatpush1.msra.mxu0 %v8028
  %9267 = vmatprep.subr.mxu0 %v8039
  %9268 = vmatpush1.msra.mxu0 %v8038
  %9269 = vmatprep.subr.mxu0 %v8049
  %9270 = vmatpush1.msra.mxu0 %v8048
  %9271 = vmatprep.subr.mxu0 %v8059
  %9272 = vmatpush1.msra.mxu0 %v8058
  %9273 = vmatprep.subr.mxu0 %v8069
  %9274 = vmatpush1.msra.mxu0 %v8068
  %9275 = vmatprep.subr.mxu0 %v8079
  %9276 = vmatpush1.msra.mxu0 %v8078
  %9277 = vmatprep.subr.mxu0 %v8089
  %9278 = vmatpush1.msra.mxu0 %v8088
  %9279 = vmatprep.subr.mxu0 %v8099
  %9280 = vmatpush1.msra.mxu0 %v8098
  %9281 = vmatprep.subr.mxu0 %v8109
  %9282 = vmatpush1.msra.mxu0 %v8108
  %9283 = vmatprep.subr.mxu0 %v8119
  %9284 = vmatpush1.msra.mxu0 %v8118
  %9285 = vmatprep.subr.mxu0 %v8129
  %9286 = vmatpush1.msra.mxu0 %v8128
  %9287 = vmatprep.subr.mxu0 %v8139
  %9288 = vmatpush1.msra.mxu0 %v8138
  %9289 = vmatprep.subr.mxu0 %v8149
  %9290 = vmatpush1.msra.mxu0 %v8148
  %9291 = vmatprep.subr.mxu0 %v8159
  %9292 = vmatpush1.msra.mxu0 %v8158
  %9293 = vmatprep.subr.mxu0 %v8169
  %9294 = vmatpush1.msra.mxu0 %v8168
  %9295 = vmatprep.subr.mxu0 %v8179
  %9296 = vmatpush1.msra.mxu0 %v8178
  %9297 = vmatprep.mubr.f32.mxu0 %v6729
  %9298 = vmatmul.mubr.f32.gmra.mrb[0].mxu0 %v6728
  %v9299 = vpop.f32.mrb[0].mxu0
  %v9300 = vadd.f32 %v6751, %v9299
  %v9301 = vpop.f32.mrb[0].mxu0
  %v9302 = vadd.f32 %v6751, %v9301
  %9303 = vmatprep.mubr.f32.mxu0 %v6733
  %9304 = vmatmul.mubr.f32.gmra.mrb[0].mxu0 %v6732
  %v9305 = vpop.f32.mrb[0].mxu0
  %v9306 = vadd.f32 %v6756, %v9305
  %v9307 = vpop.f32.mrb[0].mxu0
  %v9308 = vadd.f32 %v6756, %v9307
  %9309 = vmatprep.mubr.f32.mxu0 %v6737
  %9310 = vmatmul.mubr.f32.gmra.mrb[0].mxu0 %v6736
  %v9311 = vpop.f32.mrb[0].mxu0
  %v9312 = vadd.f32 %v6761, %v9311
  %v9313 = vpop.f32.mrb[0].mxu0
  %v9314 = vadd.f32 %v6761, %v9313
  %9315 = vmatprep.mubr.f32.mxu0 %v6741
  %9316 = vmatmul.mubr.f32.gmra.mrb[0].mxu0 %v6740
  %v9317 = vpop.f32.mrb[0].mxu0
  %v9318 = vadd.f32 %v6766, %v9317
  %v9319 = vpop.f32.mrb[0].mxu0
  %v9320 = vadd.f32 %v6766, %v9319
  %9321 = vdwg.mxu0
  %9322 = vmatprep.subr.mxu0 %v8189
  %9323 = vmatpush1.msra.mxu0 %v8188
  %9324 = vmatprep.subr.mxu0 %v8199
  %9325 = vmatpush1.msra.mxu0 %v8198
  %9326 = vmatprep.subr.mxu0 %v8209
  %9327 = vmatpush1.msra.mxu0 %v8208
  %9328 = vmatprep.subr.mxu0 %v8219
  %9329 = vmatpush1.msra.mxu0 %v8218
  %9330 = vmatprep.subr.mxu0 %v8229
  %9331 = vmatpush1.msra.mxu0 %v8228
  %9332 = vmatprep.subr.mxu0 %v8239
  %9333 = vmatpush1.msra.mxu0 %v8238
  %9334 = vmatprep.subr.mxu0 %v8249
  %9335 = vmatpush1.msra.mxu0 %v8248
  %9336 = vmatprep.subr.mxu0 %v8259
  %9337 = vmatpush1.msra.mxu0 %v8258
  %9338 = vmatprep.subr.mxu0 %v8269
  %9339 = vmatpush1.msra.mxu0 %v8268
  %9340 = vmatprep.subr.mxu0 %v8279
  %9341 = vmatpush1.msra.mxu0 %v8278
  %9342 = vmatprep.subr.mxu0 %v8289
  %9343 = vmatpush1.msra.mxu0 %v8288
  %9344 = vmatprep.subr.mxu0 %v8299
  %9345 = vmatpush1.msra.mxu0 %v8298
  %9346 = vmatprep.subr.mxu0 %v8309
  %9347 = vmatpush1.msra.mxu0 %v8308
  %9348 = vmatprep.subr.mxu0 %v8319
  %9349 = vmatpush1.msra.mxu0 %v8318
  %9350 = vmatprep.subr.mxu0 %v8329
  %9351 = vmatpush1.msra.mxu0 %v8328
  %9352 = vmatprep.subr.mxu0 %v8339
  %9353 = vmatpush1.msra.mxu0 %v8338
  %9354 = vmatprep.subr.mxu0 %v8349
  %9355 = vmatpush1.msra.mxu0 %v8348
  %9356 = vmatprep.subr.mxu0 %v8359
  %9357 = vmatpush1.msra.mxu0 %v8358
  %9358 = vmatprep.subr.mxu0 0.0
  %9359 = vmatpush1.msra.mxu0 0.0
  %9360 = vmatprep.subr.mxu0 0.0
  %9361 = vmatpush1.msra.mxu0 0.0
  %9362 = vmatprep.subr.mxu0 0.0
  %9363 = vmatpush1.msra.mxu0 0.0
  %9364 = vmatprep.subr.mxu0 0.0
  %9365 = vmatpush1.msra.mxu0 0.0
  %9366 = vmatprep.subr.mxu0 0.0
  %9367 = vmatpush1.msra.mxu0 0.0
  %9368 = vmatprep.subr.mxu0 0.0
  %9369 = vmatpush1.msra.mxu0 0.0
  %9370 = vmatprep.subr.mxu0 0.0
  %9371 = vmatpush1.msra.mxu0 0.0
  %9372 = vmatprep.subr.mxu0 0.0
  %9373 = vmatpush1.msra.mxu0 0.0
  %9374 = vmatprep.subr.mxu0 0.0
  %9375 = vmatpush1.msra.mxu0 0.0
  %9376 = vmatprep.subr.mxu0 0.0
  %9377 = vmatpush1.msra.mxu0 0.0
  %9378 = vmatprep.subr.mxu0 0.0
  %9379 = vmatpush1.msra.mxu0 0.0
  %9380 = vmatprep.subr.mxu0 0.0
  %9381 = vmatpush1.msra.mxu0 0.0
  %9382 = vmatprep.subr.mxu0 0.0
  %9383 = vmatpush1.msra.mxu0 0.0
  %9384 = vmatprep.subr.mxu0 0.0
  %9385 = vmatpush1.msra.mxu0 0.0
  %9386 = vmatprep.mubr.f32.mxu0 %v8866
  %9387 = vmatmul.mubr.f32.gmra.mrb[0].mxu0 %v6730
  %v9388 = vpop.f32.mrb[0].mxu0
  %v9389 = vadd.f32 %v9300, %v9388
  %v9390 = vpop.f32.mrb[0].mxu0
  %v9391 = vadd.f32 %v9302, %v9390
  %9392 = vmatprep.mubr.f32.mxu0 %v8869
  %9393 = vmatmul.mubr.f32.gmra.mrb[0].mxu0 %v6734
  %v9394 = vpop.f32.mrb[0].mxu0
  %v9395 = vadd.f32 %v9306, %v9394
  %v9396 = vpop.f32.mrb[0].mxu0
  %v9397 = vadd.f32 %v9308, %v9396
  %9398 = vmatprep.mubr.f32.mxu0 %v8872
  %9399 = vmatmul.mubr.f32.gmra.mrb[0].mxu0 %v6738
  %v9400 = vpop.f32.mrb[0].mxu0
  %v9401 = vadd.f32 %v9312, %v9400
  %v9402 = vpop.f32.mrb[0].mxu0
  %v9403 = vadd.f32 %v9314, %v9402
  %9404 = vmatprep.mubr.f32.mxu0 %v8875
  %9405 = vmatmul.mubr.f32.gmra.mrb[0].mxu0 %v6742
  %v9406 = vpop.f32.mrb[0].mxu0
  %v9407 = vadd.f32 %v9318, %v9406
  %v9408 = vpop.f32.mrb[0].mxu0
  %v9409 = vadd.f32 %v9320, %v9408
  %9410 = vdwg.mxu0
  %9411 = vmatprep.subr.mxu0 %v7871
  %9412 = vmatpush1.msra.mxu0 %v7870
  %9413 = vmatprep.subr.mxu0 %v7881
  %9414 = vmatpush1.msra.mxu0 %v7880
  %9415 = vmatprep.subr.mxu0 %v7891
  %9416 = vmatpush1.msra.mxu0 %v7890
  %9417 = vmatprep.subr.mxu0 %v7901
  %9418 = vmatpush1.msra.mxu0 %v7900
  %9419 = vmatprep.subr.mxu0 %v7911
  %9420 = vmatpush1.msra.mxu0 %v7910
  %9421 = vmatprep.subr.mxu0 %v7921
  %9422 = vmatpush1.msra.mxu0 %v7920
  %9423 = vmatprep.subr.mxu0 %v7931
  %9424 = vmatpush1.msra.mxu0 %v7930
  %9425 = vmatprep.subr.mxu0 %v7941
  %9426 = vmatpush1.msra.mxu0 %v7940
  %9427 = vmatprep.subr.mxu0 %v7951
  %9428 = vmatpush1.msra.mxu0 %v7950
  %9429 = vmatprep.subr.mxu0 %v7961
  %9430 = vmatpush1.msra.mxu0 %v7960
  %9431 = vmatprep.subr.mxu0 %v7971
  %9432 = vmatpush1.msra.mxu0 %v7970
  %9433 = vmatprep.subr.mxu0 %v7981
  %9434 = vmatpush1.msra.mxu0 %v7980
  %9435 = vmatprep.subr.mxu0 %v7991
  %9436 = vmatpush1.msra.mxu0 %v7990
  %9437 = vmatprep.subr.mxu0 %v8001
  %9438 = vmatpush1.msra.mxu0 %v8000
  %9439 = vmatprep.subr.mxu0 %v8011
  %9440 = vmatpush1.msra.mxu0 %v8010
  %9441 = vmatprep.subr.mxu0 %v8021
  %9442 = vmatpush1.msra.mxu0 %v8020
  %9443 = vmatprep.subr.mxu0 %v8031
  %9444 = vmatpush1.msra.mxu0 %v8030
  %9445 = vmatprep.subr.mxu0 %v8041
  %9446 = vmatpush1.msra.mxu0 %v8040
  %9447 = vmatprep.subr.mxu0 %v8051
  %9448 = vmatpush1.msra.mxu0 %v8050
  %9449 = vmatprep.subr.mxu0 %v8061
  %9450 = vmatpush1.msra.mxu0 %v8060
  %9451 = vmatprep.subr.mxu0 %v8071
  %9452 = vmatpush1.msra.mxu0 %v8070
  %9453 = vmatprep.subr.mxu0 %v8081
  %9454 = vmatpush1.msra.mxu0 %v8080
  %9455 = vmatprep.subr.mxu0 %v8091
  %9456 = vmatpush1.msra.mxu0 %v8090
  %9457 = vmatprep.subr.mxu0 %v8101
  %9458 = vmatpush1.msra.mxu0 %v8100
  %9459 = vmatprep.subr.mxu0 %v8111
  %9460 = vmatpush1.msra.mxu0 %v8110
  %9461 = vmatprep.subr.mxu0 %v8121
  %9462 = vmatpush1.msra.mxu0 %v8120
  %9463 = vmatprep.subr.mxu0 %v8131
  %9464 = vmatpush1.msra.mxu0 %v8130
  %9465 = vmatprep.subr.mxu0 %v8141
  %9466 = vmatpush1.msra.mxu0 %v8140
  %9467 = vmatprep.subr.mxu0 %v8151
  %9468 = vmatpush1.msra.mxu0 %v8150
  %9469 = vmatprep.subr.mxu0 %v8161
  %9470 = vmatpush1.msra.mxu0 %v8160
  %9471 = vmatprep.subr.mxu0 %v8171
  %9472 = vmatpush1.msra.mxu0 %v8170
  %9473 = vmatprep.subr.mxu0 %v8181
  %9474 = vmatpush1.msra.mxu0 %v8180
  %9475 = vmatprep.mubr.f32.mxu0 %v6729
  %9476 = vmatmul.mubr.f32.gmra.mrb[0].mxu0 %v6728
  %v9477 = vpop.f32.mrb[0].mxu0
  %v9478 = vadd.f32 %v6751, %v9477
  %v9479 = vpop.f32.mrb[0].mxu0
  %v9480 = vadd.f32 %v6751, %v9479
  %9481 = vmatprep.mubr.f32.mxu0 %v6733
  %9482 = vmatmul.mubr.f32.gmra.mrb[0].mxu0 %v6732
  %v9483 = vpop.f32.mrb[0].mxu0
  %v9484 = vadd.f32 %v6756, %v9483
  %v9485 = vpop.f32.mrb[0].mxu0
  %v9486 = vadd.f32 %v6756, %v9485
  %9487 = vmatprep.mubr.f32.mxu0 %v6737
  %9488 = vmatmul.mubr.f32.gmra.mrb[0].mxu0 %v6736
  %v9489 = vpop.f32.mrb[0].mxu0
  %v9490 = vadd.f32 %v6761, %v9489
  %v9491 = vpop.f32.mrb[0].mxu0
  %v9492 = vadd.f32 %v6761, %v9491
  %9493 = vmatprep.mubr.f32.mxu0 %v6741
  %9494 = vmatmul.mubr.f32.gmra.mrb[0].mxu0 %v6740
  %v9495 = vpop.f32.mrb[0].mxu0
  %v9496 = vadd.f32 %v6766, %v9495
  %v9497 = vpop.f32.mrb[0].mxu0
  %v9498 = vadd.f32 %v6766, %v9497
  %9499 = vdwg.mxu0
  %9500 = vmatprep.subr.mxu0 %v8191
  %9501 = vmatpush1.msra.mxu0 %v8190
  %9502 = vmatprep.subr.mxu0 %v8201
  %9503 = vmatpush1.msra.mxu0 %v8200
  %9504 = vmatprep.subr.mxu0 %v8211
  %9505 = vmatpush1.msra.mxu0 %v8210
  %9506 = vmatprep.subr.mxu0 %v8221
  %9507 = vmatpush1.msra.mxu0 %v8220
  %9508 = vmatprep.subr.mxu0 %v8231
  %9509 = vmatpush1.msra.mxu0 %v8230
  %9510 = vmatprep.subr.mxu0 %v8241
  %9511 = vmatpush1.msra.mxu0 %v8240
  %9512 = vmatprep.subr.mxu0 %v8251
  %9513 = vmatpush1.msra.mxu0 %v8250
  %9514 = vmatprep.subr.mxu0 %v8261
  %9515 = vmatpush1.msra.mxu0 %v8260
  %9516 = vmatprep.subr.mxu0 %v8271
  %9517 = vmatpush1.msra.mxu0 %v8270
  %9518 = vmatprep.subr.mxu0 %v8281
  %9519 = vmatpush1.msra.mxu0 %v8280
  %9520 = vmatprep.subr.mxu0 %v8291
  %9521 = vmatpush1.msra.mxu0 %v8290
  %9522 = vmatprep.subr.mxu0 %v8301
  %9523 = vmatpush1.msra.mxu0 %v8300
  %9524 = vmatprep.subr.mxu0 %v8311
  %9525 = vmatpush1.msra.mxu0 %v8310
  %9526 = vmatprep.subr.mxu0 %v8321
  %9527 = vmatpush1.msra.mxu0 %v8320
  %9528 = vmatprep.subr.mxu0 %v8331
  %9529 = vmatpush1.msra.mxu0 %v8330
  %9530 = vmatprep.subr.mxu0 %v8341
  %9531 = vmatpush1.msra.mxu0 %v8340
  %9532 = vmatprep.subr.mxu0 %v8351
  %9533 = vmatpush1.msra.mxu0 %v8350
  %9534 = vmatprep.subr.mxu0 %v8361
  %9535 = vmatpush1.msra.mxu0 %v8360
  %9536 = vmatprep.subr.mxu0 0.0
  %9537 = vmatpush1.msra.mxu0 0.0
  %9538 = vmatprep.subr.mxu0 0.0
  %9539 = vmatpush1.msra.mxu0 0.0
  %9540 = vmatprep.subr.mxu0 0.0
  %9541 = vmatpush1.msra.mxu0 0.0
  %9542 = vmatprep.subr.mxu0 0.0
  %9543 = vmatpush1.msra.mxu0 0.0
  %9544 = vmatprep.subr.mxu0 0.0
  %9545 = vmatpush1.msra.mxu0 0.0
  %9546 = vmatprep.subr.mxu0 0.0
  %9547 = vmatpush1.msra.mxu0 0.0
  %9548 = vmatprep.subr.mxu0 0.0
  %9549 = vmatpush1.msra.mxu0 0.0
  %9550 = vmatprep.subr.mxu0 0.0
  %9551 = vmatpush1.msra.mxu0 0.0
  %9552 = vmatprep.subr.mxu0 0.0
  %9553 = vmatpush1.msra.mxu0 0.0
  %9554 = vmatprep.subr.mxu0 0.0
  %9555 = vmatpush1.msra.mxu0 0.0
  %9556 = vmatprep.subr.mxu0 0.0
  %9557 = vmatpush1.msra.mxu0 0.0
  %9558 = vmatprep.subr.mxu0 0.0
  %9559 = vmatpush1.msra.mxu0 0.0
  %9560 = vmatprep.subr.mxu0 0.0
  %9561 = vmatpush1.msra.mxu0 0.0
  %9562 = vmatprep.subr.mxu0 0.0
  %9563 = vmatpush1.msra.mxu0 0.0
  %9564 = vmatprep.mubr.f32.mxu0 %v8866
  %9565 = vmatmul.mubr.f32.gmra.mrb[0].mxu0 %v6730
  %v9566 = vpop.f32.mrb[0].mxu0
  %v9567 = vadd.f32 %v9478, %v9566
  %v9568 = vpop.f32.mrb[0].mxu0
  %v9569 = vadd.f32 %v9480, %v9568
  %9570 = vmatprep.mubr.f32.mxu0 %v8869
  %9571 = vmatmul.mubr.f32.gmra.mrb[0].mxu0 %v6734
  %v9572 = vpop.f32.mrb[0].mxu0
  %v9573 = vadd.f32 %v9484, %v9572
  %v9574 = vpop.f32.mrb[0].mxu0
  %v9575 = vadd.f32 %v9486, %v9574
  %9576 = vmatprep.mubr.f32.mxu0 %v8872
  %9577 = vmatmul.mubr.f32.gmra.mrb[0].mxu0 %v6738
  %v9578 = vpop.f32.mrb[0].mxu0
  %v9579 = vadd.f32 %v9490, %v9578
  %v9580 = vpop.f32.mrb[0].mxu0
  %v9581 = vadd.f32 %v9492, %v9580
  %9582 = vmatprep.mubr.f32.mxu0 %v8875
  %9583 = vmatmul.mubr.f32.gmra.mrb[0].mxu0 %v6742
  %v9584 = vpop.f32.mrb[0].mxu0
  %v9585 = vadd.f32 %v9496, %v9584
  %v9586 = vpop.f32.mrb[0].mxu0
  %v9587 = vadd.f32 %v9498, %v9586
  %9588 = vdwg.mxu0
  %9589 = vmatprep.subr.mxu0 %v7873
  %9590 = vmatpush1.msra.mxu0 %v7872
  %9591 = vmatprep.subr.mxu0 %v7883
  %9592 = vmatpush1.msra.mxu0 %v7882
  %9593 = vmatprep.subr.mxu0 %v7893
  %9594 = vmatpush1.msra.mxu0 %v7892
  %9595 = vmatprep.subr.mxu0 %v7903
  %9596 = vmatpush1.msra.mxu0 %v7902
  %9597 = vmatprep.subr.mxu0 %v7913
  %9598 = vmatpush1.msra.mxu0 %v7912
  %9599 = vmatprep.subr.mxu0 %v7923
  %9600 = vmatpush1.msra.mxu0 %v7922
  %9601 = vmatprep.subr.mxu0 %v7933
  %9602 = vmatpush1.msra.mxu0 %v7932
  %9603 = vmatprep.subr.mxu0 %v7943
  %9604 = vmatpush1.msra.mxu0 %v7942
  %9605 = vmatprep.subr.mxu0 %v7953
  %9606 = vmatpush1.msra.mxu0 %v7952
  %9607 = vmatprep.subr.mxu0 %v7963
  %9608 = vmatpush1.msra.mxu0 %v7962
  %9609 = vmatprep.subr.mxu0 %v7973
  %9610 = vmatpush1.msra.mxu0 %v7972
  %9611 = vmatprep.subr.mxu0 %v7983
  %9612 = vmatpush1.msra.mxu0 %v7982
  %9613 = vmatprep.subr.mxu0 %v7993
  %9614 = vmatpush1.msra.mxu0 %v7992
  %9615 = vmatprep.subr.mxu0 %v8003
  %9616 = vmatpush1.msra.mxu0 %v8002
  %9617 = vmatprep.subr.mxu0 %v8013
  %9618 = vmatpush1.msra.mxu0 %v8012
  %9619 = vmatprep.subr.mxu0 %v8023
  %9620 = vmatpush1.msra.mxu0 %v8022
  %9621 = vmatprep.subr.mxu0 %v8033
  %9622 = vmatpush1.msra.mxu0 %v8032
  %9623 = vmatprep.subr.mxu0 %v8043
  %9624 = vmatpush1.msra.mxu0 %v8042
  %9625 = vmatprep.subr.mxu0 %v8053
  %9626 = vmatpush1.msra.mxu0 %v8052
  %9627 = vmatprep.subr.mxu0 %v8063
  %9628 = vmatpush1.msra.mxu0 %v8062
  %9629 = vmatprep.subr.mxu0 %v8073
  %9630 = vmatpush1.msra.mxu0 %v8072
  %9631 = vmatprep.subr.mxu0 %v8083
  %9632 = vmatpush1.msra.mxu0 %v8082
  %9633 = vmatprep.subr.mxu0 %v8093
  %9634 = vmatpush1.msra.mxu0 %v8092
  %9635 = vmatprep.subr.mxu0 %v8103
  %9636 = vmatpush1.msra.mxu0 %v8102
  %9637 = vmatprep.subr.mxu0 %v8113
  %9638 = vmatpush1.msra.mxu0 %v8112
  %9639 = vmatprep.subr.mxu0 %v8123
  %9640 = vmatpush1.msra.mxu0 %v8122
  %9641 = vmatprep.subr.mxu0 %v8133
  %9642 = vmatpush1.msra.mxu0 %v8132
  %9643 = vmatprep.subr.mxu0 %v8143
  %9644 = vmatpush1.msra.mxu0 %v8142
  %9645 = vmatprep.subr.mxu0 %v8153
  %9646 = vmatpush1.msra.mxu0 %v8152
  %9647 = vmatprep.subr.mxu0 %v8163
  %9648 = vmatpush1.msra.mxu0 %v8162
  %9649 = vmatprep.subr.mxu0 %v8173
  %9650 = vmatpush1.msra.mxu0 %v8172
  %9651 = vmatprep.subr.mxu0 %v8183
  %9652 = vmatpush1.msra.mxu0 %v8182
  %9653 = vmatprep.mubr.f32.mxu0 %v6729
  %9654 = vmatmul.mubr.f32.gmra.mrb[0].mxu0 %v6728
  %v9655 = vpop.f32.mrb[0].mxu0
  %v9656 = vadd.f32 %v6751, %v9655
  %v9657 = vpop.f32.mrb[0].mxu0
  %v9658 = vadd.f32 %v6751, %v9657
  %9659 = vmatprep.mubr.f32.mxu0 %v6733
  %9660 = vmatmul.mubr.f32.gmra.mrb[0].mxu0 %v6732
  %v9661 = vpop.f32.mrb[0].mxu0
  %v9662 = vadd.f32 %v6756, %v9661
  %v9663 = vpop.f32.mrb[0].mxu0
  %v9664 = vadd.f32 %v6756, %v9663
  %9665 = vmatprep.mubr.f32.mxu0 %v6737
  %9666 = vmatmul.mubr.f32.gmra.mrb[0].mxu0 %v6736
  %v9667 = vpop.f32.mrb[0].mxu0
  %v9668 = vadd.f32 %v6761, %v9667
  %v9669 = vpop.f32.mrb[0].mxu0
  %v9670 = vadd.f32 %v6761, %v9669
  %9671 = vmatprep.mubr.f32.mxu0 %v6741
  %9672 = vmatmul.mubr.f32.gmra.mrb[0].mxu0 %v6740
  %v9673 = vpop.f32.mrb[0].mxu0
  %v9674 = vadd.f32 %v6766, %v9673
  %v9675 = vpop.f32.mrb[0].mxu0
  %v9676 = vadd.f32 %v6766, %v9675
  %9677 = vdwg.mxu0
  %9678 = vmatprep.subr.mxu0 %v8193
  %9679 = vmatpush1.msra.mxu0 %v8192
  %9680 = vmatprep.subr.mxu0 %v8203
  %9681 = vmatpush1.msra.mxu0 %v8202
  %9682 = vmatprep.subr.mxu0 %v8213
  %9683 = vmatpush1.msra.mxu0 %v8212
  %9684 = vmatprep.subr.mxu0 %v8223
  %9685 = vmatpush1.msra.mxu0 %v8222
  %9686 = vmatprep.subr.mxu0 %v8233
  %9687 = vmatpush1.msra.mxu0 %v8232
  %9688 = vmatprep.subr.mxu0 %v8243
  %9689 = vmatpush1.msra.mxu0 %v8242
  %9690 = vmatprep.subr.mxu0 %v8253
  %9691 = vmatpush1.msra.mxu0 %v8252
  %9692 = vmatprep.subr.mxu0 %v8263
  %9693 = vmatpush1.msra.mxu0 %v8262
  %9694 = vmatprep.subr.mxu0 %v8273
  %9695 = vmatpush1.msra.mxu0 %v8272
  %9696 = vmatprep.subr.mxu0 %v8283
  %9697 = vmatpush1.msra.mxu0 %v8282
  %9698 = vmatprep.subr.mxu0 %v8293
  %9699 = vmatpush1.msra.mxu0 %v8292
  %9700 = vmatprep.subr.mxu0 %v8303
  %9701 = vmatpush1.msra.mxu0 %v8302
  %9702 = vmatprep.subr.mxu0 %v8313
  %9703 = vmatpush1.msra.mxu0 %v8312
  %9704 = vmatprep.subr.mxu0 %v8323
  %9705 = vmatpush1.msra.mxu0 %v8322
  %9706 = vmatprep.subr.mxu0 %v8333
  %9707 = vmatpush1.msra.mxu0 %v8332
  %9708 = vmatprep.subr.mxu0 %v8343
  %9709 = vmatpush1.msra.mxu0 %v8342
  %9710 = vmatprep.subr.mxu0 %v8353
  %9711 = vmatpush1.msra.mxu0 %v8352
  %9712 = vmatprep.subr.mxu0 %v8363
  %9713 = vmatpush1.msra.mxu0 %v8362
  %9714 = vmatprep.subr.mxu0 0.0
  %9715 = vmatpush1.msra.mxu0 0.0
  %9716 = vmatprep.subr.mxu0 0.0
  %9717 = vmatpush1.msra.mxu0 0.0
  %9718 = vmatprep.subr.mxu0 0.0
  %9719 = vmatpush1.msra.mxu0 0.0
  %9720 = vmatprep.subr.mxu0 0.0
  %9721 = vmatpush1.msra.mxu0 0.0
  %9722 = vmatprep.subr.mxu0 0.0
  %9723 = vmatpush1.msra.mxu0 0.0
  %9724 = vmatprep.subr.mxu0 0.0
  %9725 = vmatpush1.msra.mxu0 0.0
  %9726 = vmatprep.subr.mxu0 0.0
  %9727 = vmatpush1.msra.mxu0 0.0
  %9728 = vmatprep.subr.mxu0 0.0
  %9729 = vmatpush1.msra.mxu0 0.0
  %9730 = vmatprep.subr.mxu0 0.0
  %9731 = vmatpush1.msra.mxu0 0.0
  %9732 = vmatprep.subr.mxu0 0.0
  %9733 = vmatpush1.msra.mxu0 0.0
  %9734 = vmatprep.subr.mxu0 0.0
  %9735 = vmatpush1.msra.mxu0 0.0
  %9736 = vmatprep.subr.mxu0 0.0
  %9737 = vmatpush1.msra.mxu0 0.0
  %9738 = vmatprep.subr.mxu0 0.0
  %9739 = vmatpush1.msra.mxu0 0.0
  %9740 = vmatprep.subr.mxu0 0.0
  %9741 = vmatpush1.msra.mxu0 0.0
  %9742 = vmatprep.mubr.f32.mxu0 %v8866
  %9743 = vmatmul.mubr.f32.gmra.mrb[0].mxu0 %v6730
  %v9744 = vpop.f32.mrb[0].mxu0
  %v9745 = vadd.f32 %v9656, %v9744
  %v9746 = vpop.f32.mrb[0].mxu0
  %v9747 = vadd.f32 %v9658, %v9746
  %9748 = vmatprep.mubr.f32.mxu0 %v8869
  %9749 = vmatmul.mubr.f32.gmra.mrb[0].mxu0 %v6734
  %v9750 = vpop.f32.mrb[0].mxu0
  %v9751 = vadd.f32 %v9662, %v9750
  %v9752 = vpop.f32.mrb[0].mxu0
  %v9753 = vadd.f32 %v9664, %v9752
  %9754 = vmatprep.mubr.f32.mxu0 %v8872
  %9755 = vmatmul.mubr.f32.gmra.mrb[0].mxu0 %v6738
  %v9756 = vpop.f32.mrb[0].mxu0
  %v9757 = vadd.f32 %v9668, %v9756
  %v9758 = vpop.f32.mrb[0].mxu0
  %v9759 = vadd.f32 %v9670, %v9758
  %9760 = vmatprep.mubr.f32.mxu0 %v8875
  %9761 = vmatmul.mubr.f32.gmra.mrb[0].mxu0 %v6742
  %v9762 = vpop.f32.mrb[0].mxu0
  %v9763 = vadd.f32 %v9674, %v9762
  %v9764 = vpop.f32.mrb[0].mxu0
  %v9765 = vadd.f32 %v9676, %v9764
  %9766 = vdwg.mxu0
  %v9767 = vmul.f32 %v9033, %v2505
  %v9768 = vmul.f32 %v9035, %v2509
  %v9769 = vmul.f32 %v9211, %v2513
  %v9770 = vmul.f32 %v9213, %v2517
  %v9771 = vmul.f32 %v9389, %v2521
  %v9772 = vmul.f32 %v9391, %v2525
  %v9773 = vmul.f32 %v9567, %v2529
  %v9774 = vmul.f32 %v9569, %v2533
  %v9775 = vmul.f32 %v9745, %v2537
  %v9776 = vmul.f32 %v9747, %v2541
  %v9777 = vmul.f32 %v9039, %v2505
  %v9778 = vmul.f32 %v9041, %v2509
  %v9779 = vmul.f32 %v9217, %v2513
  %v9780 = vmul.f32 %v9219, %v2517
  %v9781 = vmul.f32 %v9395, %v2521
  %v9782 = vmul.f32 %v9397, %v2525
  %v9783 = vmul.f32 %v9573, %v2529
  %v9784 = vmul.f32 %v9575, %v2533
  %v9785 = vmul.f32 %v9751, %v2537
  %v9786 = vmul.f32 %v9753, %v2541
  %v9787 = vmul.f32 %v9045, %v2505
  %v9788 = vmul.f32 %v9047, %v2509
  %v9789 = vmul.f32 %v9223, %v2513
  %v9790 = vmul.f32 %v9225, %v2517
  %v9791 = vmul.f32 %v9401, %v2521
  %v9792 = vmul.f32 %v9403, %v2525
  %v9793 = vmul.f32 %v9579, %v2529
  %v9794 = vmul.f32 %v9581, %v2533
  %v9795 = vmul.f32 %v9757, %v2537
  %v9796 = vmul.f32 %v9759, %v2541
  %v9797 = vmul.f32 %v9051, %v2505
  %v9798 = vmul.f32 %v9053, %v2509
  %v9799 = vmul.f32 %v9229, %v2513
  %v9800 = vmul.f32 %v9231, %v2517
  %v9801 = vmul.f32 %v9407, %v2521
  %v9802 = vmul.f32 %v9409, %v2525
  %v9803 = vmul.f32 %v9585, %v2529
  %v9804 = vmul.f32 %v9587, %v2533
  %v9805 = vmul.f32 %v9763, %v2537
  %v9806 = vmul.f32 %v9765, %v2541
  %v9807 = vadd.f32 %v9767, %v9768
  %v9808 = vadd.f32 %v9807, %v9769
  %v9809 = vadd.f32 %v9808, %v9770
  %v9810 = vadd.f32 %v9809, %v9771
  %v9811 = vadd.f32 %v9810, %v9772
  %v9812 = vadd.f32 %v9811, %v9773
  %v9813 = vadd.f32 %v9812, %v9774
  %v9814 = vadd.f32 %v9813, %v9775
  %v9815 = vadd.f32 %v9814, %v9776
  %9816 = vadd.xlane.f32.xlu0 %v9815
  %v9817 = vpop.xlane.xlu0 %9816
  %v9818 = vadd.f32 %v9777, %v9778
  %v9819 = vadd.f32 %v9818, %v9779
  %v9820 = vadd.f32 %v9819, %v9780
  %v9821 = vadd.f32 %v9820, %v9781
  %v9822 = vadd.f32 %v9821, %v9782
  %v9823 = vadd.f32 %v9822, %v9783
  %v9824 = vadd.f32 %v9823, %v9784
  %v9825 = vadd.f32 %v9824, %v9785
  %v9826 = vadd.f32 %v9825, %v9786
  %9827 = vadd.xlane.f32.xlu0 %v9826
  %v9828 = vpop.xlane.xlu0 %9827
  %v9829 = vadd.f32 %v9787, %v9788
  %v9830 = vadd.f32 %v9829, %v9789
  %v9831 = vadd.f32 %v9830, %v9790
  %v9832 = vadd.f32 %v9831, %v9791
  %v9833 = vadd.f32 %v9832, %v9792
  %v9834 = vadd.f32 %v9833, %v9793
  %v9835 = vadd.f32 %v9834, %v9794
  %v9836 = vadd.f32 %v9835, %v9795
  %v9837 = vadd.f32 %v9836, %v9796
  %9838 = vadd.xlane.f32.xlu0 %v9837
  %v9839 = vpop.xlane.xlu0 %9838
  %v9840 = vadd.f32 %v9797, %v9798
  %v9841 = vadd.f32 %v9840, %v9799
  %v9842 = vadd.f32 %v9841, %v9800
  %v9843 = vadd.f32 %v9842, %v9801
  %v9844 = vadd.f32 %v9843, %v9802
  %v9845 = vadd.f32 %v9844, %v9803
  %v9846 = vadd.f32 %v9845, %v9804
  %v9847 = vadd.f32 %v9846, %v9805
  %v9848 = vadd.f32 %v9847, %v9806
  %9849 = vadd.xlane.f32.xlu0 %v9848
  %v9850 = vpop.xlane.xlu0 %9849
  %v9851 = vmul.f32 %v9817, 0.001953125
  %v9852 = vmul.f32 %v9828, 0.001953125
  %v9853 = vmul.f32 %v9839, 0.001953125
  %v9854 = vmul.f32 %v9850, 0.001953125
  %v9855 = vsub.f32 %v9033, %v9851
  %v9856 = vsub.f32 %v9035, %v9851
  %v9857 = vsub.f32 %v9211, %v9851
  %v9858 = vsub.f32 %v9213, %v9851
  %v9859 = vsub.f32 %v9389, %v9851
  %v9860 = vsub.f32 %v9391, %v9851
  %v9861 = vsub.f32 %v9567, %v9851
  %v9862 = vsub.f32 %v9569, %v9851
  %v9863 = vsub.f32 %v9745, %v9851
  %v9864 = vsub.f32 %v9747, %v9851
  %v9865 = vsub.f32 %v9039, %v9852
  %v9866 = vsub.f32 %v9041, %v9852
  %v9867 = vsub.f32 %v9217, %v9852
  %v9868 = vsub.f32 %v9219, %v9852
  %v9869 = vsub.f32 %v9395, %v9852
  %v9870 = vsub.f32 %v9397, %v9852
  %v9871 = vsub.f32 %v9573, %v9852
  %v9872 = vsub.f32 %v9575, %v9852
  %v9873 = vsub.f32 %v9751, %v9852
  %v9874 = vsub.f32 %v9753, %v9852
  %v9875 = vsub.f32 %v9045, %v9853
  %v9876 = vsub.f32 %v9047, %v9853
  %v9877 = vsub.f32 %v9223, %v9853
  %v9878 = vsub.f32 %v9225, %v9853
  %v9879 = vsub.f32 %v9401, %v9853
  %v9880 = vsub.f32 %v9403, %v9853
  %v9881 = vsub.f32 %v9579, %v9853
  %v9882 = vsub.f32 %v9581, %v9853
  %v9883 = vsub.f32 %v9757, %v9853
  %v9884 = vsub.f32 %v9759, %v9853
  %v9885 = vsub.f32 %v9051, %v9854
  %v9886 = vsub.f32 %v9053, %v9854
  %v9887 = vsub.f32 %v9229, %v9854
  %v9888 = vsub.f32 %v9231, %v9854
  %v9889 = vsub.f32 %v9407, %v9854
  %v9890 = vsub.f32 %v9409, %v9854
  %v9891 = vsub.f32 %v9585, %v9854
  %v9892 = vsub.f32 %v9587, %v9854
  %v9893 = vsub.f32 %v9763, %v9854
  %v9894 = vsub.f32 %v9765, %v9854
  %v9895 = vmul.f32 %v9855, %v2505
  %v9896 = vmul.f32 %v9856, %v2509
  %v9897 = vmul.f32 %v9857, %v2513
  %v9898 = vmul.f32 %v9858, %v2517
  %v9899 = vmul.f32 %v9859, %v2521
  %v9900 = vmul.f32 %v9860, %v2525
  %v9901 = vmul.f32 %v9861, %v2529
  %v9902 = vmul.f32 %v9862, %v2533
  %v9903 = vmul.f32 %v9863, %v2537
  %v9904 = vmul.f32 %v9864, %v2541
  %v9905 = vmul.f32 %v9865, %v2505
  %v9906 = vmul.f32 %v9866, %v2509
  %v9907 = vmul.f32 %v9867, %v2513
  %v9908 = vmul.f32 %v9868, %v2517
  %v9909 = vmul.f32 %v9869, %v2521
  %v9910 = vmul.f32 %v9870, %v2525
  %v9911 = vmul.f32 %v9871, %v2529
  %v9912 = vmul.f32 %v9872, %v2533
  %v9913 = vmul.f32 %v9873, %v2537
  %v9914 = vmul.f32 %v9874, %v2541
  %v9915 = vmul.f32 %v9875, %v2505
  %v9916 = vmul.f32 %v9876, %v2509
  %v9917 = vmul.f32 %v9877, %v2513
  %v9918 = vmul.f32 %v9878, %v2517
  %v9919 = vmul.f32 %v9879, %v2521
  %v9920 = vmul.f32 %v9880, %v2525
  %v9921 = vmul.f32 %v9881, %v2529
  %v9922 = vmul.f32 %v9882, %v2533
  %v9923 = vmul.f32 %v9883, %v2537
  %v9924 = vmul.f32 %v9884, %v2541
  %v9925 = vmul.f32 %v9885, %v2505
  %v9926 = vmul.f32 %v9886, %v2509
  %v9927 = vmul.f32 %v9887, %v2513
  %v9928 = vmul.f32 %v9888, %v2517
  %v9929 = vmul.f32 %v9889, %v2521
  %v9930 = vmul.f32 %v9890, %v2525
  %v9931 = vmul.f32 %v9891, %v2529
  %v9932 = vmul.f32 %v9892, %v2533
  %v9933 = vmul.f32 %v9893, %v2537
  %v9934 = vmul.f32 %v9894, %v2541
  %v9935 = vmul.f32 %v9895, %v9895
  %v9936 = vmul.f32 %v9896, %v9896
  %v9937 = vmul.f32 %v9897, %v9897
  %v9938 = vmul.f32 %v9898, %v9898
  %v9939 = vmul.f32 %v9899, %v9899
  %v9940 = vmul.f32 %v9900, %v9900
  %v9941 = vmul.f32 %v9901, %v9901
  %v9942 = vmul.f32 %v9902, %v9902
  %v9943 = vmul.f32 %v9903, %v9903
  %v9944 = vmul.f32 %v9904, %v9904
  %v9945 = vmul.f32 %v9905, %v9905
  %v9946 = vmul.f32 %v9906, %v9906
  %v9947 = vmul.f32 %v9907, %v9907
  %v9948 = vmul.f32 %v9908, %v9908
  %v9949 = vmul.f32 %v9909, %v9909
  %v9950 = vmul.f32 %v9910, %v9910
  %v9951 = vmul.f32 %v9911, %v9911
  %v9952 = vmul.f32 %v9912, %v9912
  %v9953 = vmul.f32 %v9913, %v9913
  %v9954 = vmul.f32 %v9914, %v9914
  %v9955 = vmul.f32 %v9915, %v9915
  %v9956 = vmul.f32 %v9916, %v9916
  %v9957 = vmul.f32 %v9917, %v9917
  %v9958 = vmul.f32 %v9918, %v9918
  %v9959 = vmul.f32 %v9919, %v9919
  %v9960 = vmul.f32 %v9920, %v9920
  %v9961 = vmul.f32 %v9921, %v9921
  %v9962 = vmul.f32 %v9922, %v9922
  %v9963 = vmul.f32 %v9923, %v9923
  %v9964 = vmul.f32 %v9924, %v9924
  %v9965 = vmul.f32 %v9925, %v9925
  %v9966 = vmul.f32 %v9926, %v9926
  %v9967 = vmul.f32 %v9927, %v9927
  %v9968 = vmul.f32 %v9928, %v9928
  %v9969 = vmul.f32 %v9929, %v9929
  %v9970 = vmul.f32 %v9930, %v9930
  %v9971 = vmul.f32 %v9931, %v9931
  %v9972 = vmul.f32 %v9932, %v9932
  %v9973 = vmul.f32 %v9933, %v9933
  %v9974 = vmul.f32 %v9934, %v9934
  %v9975 = vadd.f32 %v9935, %v9936
  %v9976 = vadd.f32 %v9975, %v9937
  %v9977 = vadd.f32 %v9976, %v9938
  %v9978 = vadd.f32 %v9977, %v9939
  %v9979 = vadd.f32 %v9978, %v9940
  %v9980 = vadd.f32 %v9979, %v9941
  %v9981 = vadd.f32 %v9980, %v9942
  %v9982 = vadd.f32 %v9981, %v9943
  %v9983 = vadd.f32 %v9982, %v9944
  %9984 = vadd.xlane.f32.xlu0 %v9983
  %v9985 = vpop.xlane.xlu0 %9984
  %v9986 = vadd.f32 %v9945, %v9946
  %v9987 = vadd.f32 %v9986, %v9947
  %v9988 = vadd.f32 %v9987, %v9948
  %v9989 = vadd.f32 %v9988, %v9949
  %v9990 = vadd.f32 %v9989, %v9950
  %v9991 = vadd.f32 %v9990, %v9951
  %v9992 = vadd.f32 %v9991, %v9952
  %v9993 = vadd.f32 %v9992, %v9953
  %v9994 = vadd.f32 %v9993, %v9954
  %9995 = vadd.xlane.f32.xlu0 %v9994
  %v9996 = vpop.xlane.xlu0 %9995
  %v9997 = vadd.f32 %v9955, %v9956
  %v9998 = vadd.f32 %v9997, %v9957
  %v9999 = vadd.f32 %v9998, %v9958
  %v10000 = vadd.f32 %v9999, %v9959
  %v10001 = vadd.f32 %v10000, %v9960
  %v10002 = vadd.f32 %v10001, %v9961
  %v10003 = vadd.f32 %v10002, %v9962
  %v10004 = vadd.f32 %v10003, %v9963
  %v10005 = vadd.f32 %v10004, %v9964
  %10006 = vadd.xlane.f32.xlu0 %v10005
  %v10007 = vpop.xlane.xlu0 %10006
  %v10008 = vadd.f32 %v9965, %v9966
  %v10009 = vadd.f32 %v10008, %v9967
  %v10010 = vadd.f32 %v10009, %v9968
  %v10011 = vadd.f32 %v10010, %v9969
  %v10012 = vadd.f32 %v10011, %v9970
  %v10013 = vadd.f32 %v10012, %v9971
  %v10014 = vadd.f32 %v10013, %v9972
  %v10015 = vadd.f32 %v10014, %v9973
  %v10016 = vadd.f32 %v10015, %v9974
  %10017 = vadd.xlane.f32.xlu0 %v10016
  %v10018 = vpop.xlane.xlu0 %10017
  %v10019 = vmul.f32 %v9985, 0.001953125
  %v10020 = vmul.f32 %v9996, 0.001953125
  %v10021 = vmul.f32 %v10007, 0.001953125
  %v10022 = vmul.f32 %v10018, 0.001953125
  %v10023 = vadd.f32 %v10019, 1e-05
  %v10024 = vadd.f32 %v10020, 1e-05
  %v10025 = vadd.f32 %v10021, 1e-05
  %v10026 = vadd.f32 %v10022, 1e-05
  %v10027 = vrsqrt.pop %v10023
  %v10028 = vrsqrt.pop %v10024
  %v10029 = vrsqrt.pop %v10025
  %v10030 = vrsqrt.pop %v10026
  %v10031 = vmul.f32 %v9895, %v10027
  %v10032 = vmul.f32 %v9896, %v10027
  %v10033 = vmul.f32 %v9897, %v10027
  %v10034 = vmul.f32 %v9898, %v10027
  %v10035 = vmul.f32 %v9899, %v10027
  %v10036 = vmul.f32 %v9900, %v10027
  %v10037 = vmul.f32 %v9901, %v10027
  %v10038 = vmul.f32 %v9902, %v10027
  %v10039 = vmul.f32 %v9903, %v10027
  %v10040 = vmul.f32 %v9904, %v10027
  %v10041 = vmul.f32 %v9905, %v10028
  %v10042 = vmul.f32 %v9906, %v10028
  %v10043 = vmul.f32 %v9907, %v10028
  %v10044 = vmul.f32 %v9908, %v10028
  %v10045 = vmul.f32 %v9909, %v10028
  %v10046 = vmul.f32 %v9910, %v10028
  %v10047 = vmul.f32 %v9911, %v10028
  %v10048 = vmul.f32 %v9912, %v10028
  %v10049 = vmul.f32 %v9913, %v10028
  %v10050 = vmul.f32 %v9914, %v10028
  %v10051 = vmul.f32 %v9915, %v10029
  %v10052 = vmul.f32 %v9916, %v10029
  %v10053 = vmul.f32 %v9917, %v10029
  %v10054 = vmul.f32 %v9918, %v10029
  %v10055 = vmul.f32 %v9919, %v10029
  %v10056 = vmul.f32 %v9920, %v10029
  %v10057 = vmul.f32 %v9921, %v10029
  %v10058 = vmul.f32 %v9922, %v10029
  %v10059 = vmul.f32 %v9923, %v10029
  %v10060 = vmul.f32 %v9924, %v10029
  %v10061 = vmul.f32 %v9925, %v10030
  %v10062 = vmul.f32 %v9926, %v10030
  %v10063 = vmul.f32 %v9927, %v10030
  %v10064 = vmul.f32 %v9928, %v10030
  %v10065 = vmul.f32 %v9929, %v10030
  %v10066 = vmul.f32 %v9930, %v10030
  %v10067 = vmul.f32 %v9931, %v10030
  %v10068 = vmul.f32 %v9932, %v10030
  %v10069 = vmul.f32 %v9933, %v10030
  %v10070 = vmul.f32 %v9934, %v10030
  %10071 = vset.pattern.permute.xlu0 1
  %10072 = vperm.xlu0 %10071, %v6744
  %v10073 = vpop.permute.xlu0 %10072
  %10075 = vset.pattern.permute.xlu0 1
  %10076 = vperm.xlu0 %10075, %v6745
  %v10077 = vpop.permute.xlu0 %10076
  %10079 = vset.pattern.permute.xlu0 1
  %10080 = vperm.xlu0 %10079, %v6746
  %v10081 = vpop.permute.xlu0 %10080
  %10083 = vset.pattern.permute.xlu0 1
  %10084 = vperm.xlu0 %10083, %v6747
  %v10085 = vpop.permute.xlu0 %10084
  %v10087 = vmul.f32 %v10031, %v10073
  %v10088 = vmul.f32 %v10032, %v10073
  %v10089 = vmul.f32 %v10033, %v10073
  %v10090 = vmul.f32 %v10034, %v10073
  %v10091 = vmul.f32 %v10035, %v10073
  %v10092 = vmul.f32 %v10036, %v10073
  %v10093 = vmul.f32 %v10037, %v10073
  %v10094 = vmul.f32 %v10038, %v10073
  %v10095 = vmul.f32 %v10039, %v10073
  %v10096 = vmul.f32 %v10040, %v10073
  %v10097 = vmul.f32 %v10041, %v10077
  %v10098 = vmul.f32 %v10042, %v10077
  %v10099 = vmul.f32 %v10043, %v10077
  %v10100 = vmul.f32 %v10044, %v10077
  %v10101 = vmul.f32 %v10045, %v10077
  %v10102 = vmul.f32 %v10046, %v10077
  %v10103 = vmul.f32 %v10047, %v10077
  %v10104 = vmul.f32 %v10048, %v10077
  %v10105 = vmul.f32 %v10049, %v10077
  %v10106 = vmul.f32 %v10050, %v10077
  %v10107 = vmul.f32 %v10051, %v10081
  %v10108 = vmul.f32 %v10052, %v10081
  %v10109 = vmul.f32 %v10053, %v10081
  %v10110 = vmul.f32 %v10054, %v10081
  %v10111 = vmul.f32 %v10055, %v10081
  %v10112 = vmul.f32 %v10056, %v10081
  %v10113 = vmul.f32 %v10057, %v10081
  %v10114 = vmul.f32 %v10058, %v10081
  %v10115 = vmul.f32 %v10059, %v10081
  %v10116 = vmul.f32 %v10060, %v10081
  %v10117 = vmul.f32 %v10061, %v10085
  %v10118 = vmul.f32 %v10062, %v10085
  %v10119 = vmul.f32 %v10063, %v10085
  %v10120 = vmul.f32 %v10064, %v10085
  %v10121 = vmul.f32 %v10065, %v10085
  %v10122 = vmul.f32 %v10066, %v10085
  %v10123 = vmul.f32 %v10067, %v10085
  %v10124 = vmul.f32 %v10068, %v10085
  %v10125 = vmul.f32 %v10069, %v10085
  %v10126 = vmul.f32 %v10070, %v10085
  %10127 = vset.pattern.permute.xlu0 2
  %10128 = vperm.xlu0 %10127, %v6744
  %v10129 = vpop.permute.xlu0 %10128
  %10131 = vset.pattern.permute.xlu0 2
  %10132 = vperm.xlu0 %10131, %v6745
  %v10133 = vpop.permute.xlu0 %10132
  %10135 = vset.pattern.permute.xlu0 2
  %10136 = vperm.xlu0 %10135, %v6746
  %v10137 = vpop.permute.xlu0 %10136
  %10139 = vset.pattern.permute.xlu0 2
  %10140 = vperm.xlu0 %10139, %v6747
  %v10141 = vpop.permute.xlu0 %10140
  %v10143 = vadd.f32 %v10087, %v10129
  %v10144 = vadd.f32 %v10088, %v10129
  %v10145 = vadd.f32 %v10089, %v10129
  %v10146 = vadd.f32 %v10090, %v10129
  %v10147 = vadd.f32 %v10091, %v10129
  %v10148 = vadd.f32 %v10092, %v10129
  %v10149 = vadd.f32 %v10093, %v10129
  %v10150 = vadd.f32 %v10094, %v10129
  %v10151 = vadd.f32 %v10095, %v10129
  %v10152 = vadd.f32 %v10096, %v10129
  %v10153 = vadd.f32 %v10097, %v10133
  %v10154 = vadd.f32 %v10098, %v10133
  %v10155 = vadd.f32 %v10099, %v10133
  %v10156 = vadd.f32 %v10100, %v10133
  %v10157 = vadd.f32 %v10101, %v10133
  %v10158 = vadd.f32 %v10102, %v10133
  %v10159 = vadd.f32 %v10103, %v10133
  %v10160 = vadd.f32 %v10104, %v10133
  %v10161 = vadd.f32 %v10105, %v10133
  %v10162 = vadd.f32 %v10106, %v10133
  %v10163 = vadd.f32 %v10107, %v10137
  %v10164 = vadd.f32 %v10108, %v10137
  %v10165 = vadd.f32 %v10109, %v10137
  %v10166 = vadd.f32 %v10110, %v10137
  %v10167 = vadd.f32 %v10111, %v10137
  %v10168 = vadd.f32 %v10112, %v10137
  %v10169 = vadd.f32 %v10113, %v10137
  %v10170 = vadd.f32 %v10114, %v10137
  %v10171 = vadd.f32 %v10115, %v10137
  %v10172 = vadd.f32 %v10116, %v10137
  %v10173 = vadd.f32 %v10117, %v10141
  %v10174 = vadd.f32 %v10118, %v10141
  %v10175 = vadd.f32 %v10119, %v10141
  %v10176 = vadd.f32 %v10120, %v10141
  %v10177 = vadd.f32 %v10121, %v10141
  %v10178 = vadd.f32 %v10122, %v10141
  %v10179 = vadd.f32 %v10123, %v10141
  %v10180 = vadd.f32 %v10124, %v10141
  %v10181 = vadd.f32 %v10125, %v10141
  %v10182 = vadd.f32 %v10126, %v10141
  %v10183 = vmax.f32 %v10143, 0.0
  %v10184 = vmax.f32 %v10144, 0.0
  %v10185 = vmax.f32 %v10145, 0.0
  %v10186 = vmax.f32 %v10146, 0.0
  %v10187 = vmax.f32 %v10147, 0.0
  %v10188 = vmax.f32 %v10148, 0.0
  %v10189 = vmax.f32 %v10149, 0.0
  %v10190 = vmax.f32 %v10150, 0.0
  %v10191 = vmax.f32 %v10151, 0.0
  %v10192 = vmax.f32 %v10152, 0.0
  %v10193 = vmax.f32 %v10153, 0.0
  %v10194 = vmax.f32 %v10154, 0.0
  %v10195 = vmax.f32 %v10155, 0.0
  %v10196 = vmax.f32 %v10156, 0.0
  %v10197 = vmax.f32 %v10157, 0.0
  %v10198 = vmax.f32 %v10158, 0.0
  %v10199 = vmax.f32 %v10159, 0.0
  %v10200 = vmax.f32 %v10160, 0.0
  %v10201 = vmax.f32 %v10161, 0.0
  %v10202 = vmax.f32 %v10162, 0.0
  %v10203 = vmax.f32 %v10163, 0.0
  %v10204 = vmax.f32 %v10164, 0.0
  %v10205 = vmax.f32 %v10165, 0.0
  %v10206 = vmax.f32 %v10166, 0.0
  %v10207 = vmax.f32 %v10167, 0.0
  %v10208 = vmax.f32 %v10168, 0.0
  %v10209 = vmax.f32 %v10169, 0.0
  %v10210 = vmax.f32 %v10170, 0.0
  %v10211 = vmax.f32 %v10171, 0.0
  %v10212 = vmax.f32 %v10172, 0.0
  %v10213 = vmax.f32 %v10173, 0.0
  %v10214 = vmax.f32 %v10174, 0.0
  %v10215 = vmax.f32 %v10175, 0.0
  %v10216 = vmax.f32 %v10176, 0.0
  %v10217 = vmax.f32 %v10177, 0.0
  %v10218 = vmax.f32 %v10178, 0.0
  %v10219 = vmax.f32 %v10179, 0.0
  %v10220 = vmax.f32 %v10180, 0.0
  %v10221 = vmax.f32 %v10181, 0.0
  %v10222 = vmax.f32 %v10182, 0.0
  %v10223 = vmul.f32 %v10183, %v2505
  %v10224 = vmul.f32 %v10184, %v2509
  %v10225 = vmul.f32 %v10185, %v2513
  %v10226 = vmul.f32 %v10186, %v2517
  %v10227 = vmul.f32 %v10187, %v2521
  %v10228 = vmul.f32 %v10188, %v2525
  %v10229 = vmul.f32 %v10189, %v2529
  %v10230 = vmul.f32 %v10190, %v2533
  %v10231 = vmul.f32 %v10191, %v2537
  %v10232 = vmul.f32 %v10192, %v2541
  %v10233 = vmul.f32 %v10193, %v2505
  %v10234 = vmul.f32 %v10194, %v2509
  %v10235 = vmul.f32 %v10195, %v2513
  %v10236 = vmul.f32 %v10196, %v2517
  %v10237 = vmul.f32 %v10197, %v2521
  %v10238 = vmul.f32 %v10198, %v2525
  %v10239 = vmul.f32 %v10199, %v2529
  %v10240 = vmul.f32 %v10200, %v2533
  %v10241 = vmul.f32 %v10201, %v2537
  %v10242 = vmul.f32 %v10202, %v2541
  %v10243 = vmul.f32 %v10203, %v2505
  %v10244 = vmul.f32 %v10204, %v2509
  %v10245 = vmul.f32 %v10205, %v2513
  %v10246 = vmul.f32 %v10206, %v2517
  %v10247 = vmul.f32 %v10207, %v2521
  %v10248 = vmul.f32 %v10208, %v2525
  %v10249 = vmul.f32 %v10209, %v2529
  %v10250 = vmul.f32 %v10210, %v2533
  %v10251 = vmul.f32 %v10211, %v2537
  %v10252 = vmul.f32 %v10212, %v2541
  %v10253 = vmul.f32 %v10213, %v2505
  %v10254 = vmul.f32 %v10214, %v2509
  %v10255 = vmul.f32 %v10215, %v2513
  %v10256 = vmul.f32 %v10216, %v2517
  %v10257 = vmul.f32 %v10217, %v2521
  %v10258 = vmul.f32 %v10218, %v2525
  %v10259 = vmul.f32 %v10219, %v2529
  %v10260 = vmul.f32 %v10220, %v2533
  %v10261 = vmul.f32 %v10221, %v2537
  %v10262 = vmul.f32 %v10222, %v2541
  %10267 = vrot.lane.b32.xlu0 %v10223, 62
  %v10268 = vpop.permute.xlu0 %10267
  %10269 = vrot.lane.b32.xlu0 %v10233, 62
  %v10270 = vpop.permute.xlu0 %10269
  %10271 = vrot.lane.b32.xlu0 %v10243, 62
  %v10272 = vpop.permute.xlu0 %10271
  %10273 = vrot.lane.b32.xlu0 %v10253, 62
  %v10274 = vpop.permute.xlu0 %10273
  %10279 = vst.msk [vmem:[%s8] sm:$0xff] %vm8864, %v10268
  %10280 = vst.msk [vmem:[%s8 + $0x10] sm:$0xff] %vm8864, %v10270
  %10281 = vst.msk [vmem:[%s8 + $0x20] sm:$0xff] %vm8864, %v10272
  %10282 = vst.msk [vmem:[%s8 + $0x30] sm:$0xff] %vm8864, %v10274
  %10283 = vrot.lane.b32.xlu0 %v10223, 46
  %v10284 = vpop.permute.xlu0 %10283
  %10285 = vrot.lane.b32.xlu0 %v10233, 46
  %v10286 = vpop.permute.xlu0 %10285
  %10287 = vrot.lane.b32.xlu0 %v10243, 46
  %v10288 = vpop.permute.xlu0 %10287
  %10289 = vrot.lane.b32.xlu0 %v10253, 46
  %v10290 = vpop.permute.xlu0 %10289
  %vm10295 = vcmask 261248
  %10296 = vst.msk [vmem:[%s8] sm:$0xff] %vm10295, %v10284
  %10297 = vst.msk [vmem:[%s8 + $0x10] sm:$0xff] %vm10295, %v10286
  %10298 = vst.msk [vmem:[%s8 + $0x20] sm:$0xff] %vm10295, %v10288
  %10299 = vst.msk [vmem:[%s8 + $0x30] sm:$0xff] %vm10295, %v10290
  %10304 = vrot.lane.b32.xlu0 %v10224, 30
  %v10305 = vpop.permute.xlu0 %10304
  %10306 = vrot.lane.b32.xlu0 %v10234, 30
  %v10307 = vpop.permute.xlu0 %10306
  %10308 = vrot.lane.b32.xlu0 %v10244, 30
  %v10309 = vpop.permute.xlu0 %10308
  %10310 = vrot.lane.b32.xlu0 %v10254, 30
  %v10311 = vpop.permute.xlu0 %10310
  %vm10316 = vcmask 392448
  %10317 = vst.msk [vmem:[%s8] sm:$0xff] %vm10316, %v10305
  %10318 = vst.msk [vmem:[%s8 + $0x10] sm:$0xff] %vm10316, %v10307
  %10319 = vst.msk [vmem:[%s8 + $0x20] sm:$0xff] %vm10316, %v10309
  %10320 = vst.msk [vmem:[%s8 + $0x30] sm:$0xff] %vm10316, %v10311
  %10321 = vrot.lane.b32.xlu0 %v10224, 14
  %v10322 = vpop.permute.xlu0 %10321
  %10323 = vrot.lane.b32.xlu0 %v10234, 14
  %v10324 = vpop.permute.xlu0 %10323
  %10325 = vrot.lane.b32.xlu0 %v10244, 14
  %v10326 = vpop.permute.xlu0 %10325
  %10327 = vrot.lane.b32.xlu0 %v10254, 14
  %v10328 = vpop.permute.xlu0 %10327
  %vm10333 = vcmask 523648
  %10334 = vst.msk [vmem:[%s8] sm:$0xff] %vm10333, %v10322
  %10335 = vst.msk [vmem:[%s8 + $0x10] sm:$0xff] %vm10333, %v10324
  %10336 = vst.msk [vmem:[%s8 + $0x20] sm:$0xff] %vm10333, %v10326
  %10337 = vst.msk [vmem:[%s8 + $0x30] sm:$0xff] %vm10333, %v10328
  %10338 = vrot.lane.b32.xlu0 %v10224, 126
  %v10339 = vpop.permute.xlu0 %10338
  %10340 = vrot.lane.b32.xlu0 %v10234, 126
  %v10341 = vpop.permute.xlu0 %10340
  %10342 = vrot.lane.b32.xlu0 %v10244, 126
  %v10343 = vpop.permute.xlu0 %10342
  %10344 = vrot.lane.b32.xlu0 %v10254, 126
  %v10345 = vpop.permute.xlu0 %10344
  %vm10350 = vcmask 654848
  %10351 = vst.msk [vmem:[%s8] sm:$0xff] %vm10350, %v10339
  %10352 = vst.msk [vmem:[%s8 + $0x10] sm:$0xff] %vm10350, %v10341
  %10353 = vst.msk [vmem:[%s8 + $0x20] sm:$0xff] %vm10350, %v10343
  %10354 = vst.msk [vmem:[%s8 + $0x30] sm:$0xff] %vm10350, %v10345
  %10355 = vrot.lane.b32.xlu0 %v10224, 110
  %v10356 = vpop.permute.xlu0 %10355
  %10357 = vrot.lane.b32.xlu0 %v10234, 110
  %v10358 = vpop.permute.xlu0 %10357
  %10359 = vrot.lane.b32.xlu0 %v10244, 110
  %v10360 = vpop.permute.xlu0 %10359
  %10361 = vrot.lane.b32.xlu0 %v10254, 110
  %v10362 = vpop.permute.xlu0 %10361
  %vm10367 = vcmask 786048
  %10368 = vst.msk [vmem:[%s8] sm:$0xff] %vm10367, %v10356
  %10369 = vst.msk [vmem:[%s8 + $0x10] sm:$0xff] %vm10367, %v10358
  %10370 = vst.msk [vmem:[%s8 + $0x20] sm:$0xff] %vm10367, %v10360
  %10371 = vst.msk [vmem:[%s8 + $0x30] sm:$0xff] %vm10367, %v10362
  %10376 = vrot.lane.b32.xlu0 %v10225, 94
  %v10377 = vpop.permute.xlu0 %10376
  %10378 = vrot.lane.b32.xlu0 %v10235, 94
  %v10379 = vpop.permute.xlu0 %10378
  %10380 = vrot.lane.b32.xlu0 %v10245, 94
  %v10381 = vpop.permute.xlu0 %10380
  %10382 = vrot.lane.b32.xlu0 %v10255, 94
  %v10383 = vpop.permute.xlu0 %10382
  %vm10388 = vcmask 917248
  %10389 = vst.msk [vmem:[%s8] sm:$0xff] %vm10388, %v10377
  %10390 = vst.msk [vmem:[%s8 + $0x10] sm:$0xff] %vm10388, %v10379
  %10391 = vst.msk [vmem:[%s8 + $0x20] sm:$0xff] %vm10388, %v10381
  %10392 = vst.msk [vmem:[%s8 + $0x30] sm:$0xff] %vm10388, %v10383
  %10393 = vrot.lane.b32.xlu0 %v10225, 78
  %v10394 = vpop.permute.xlu0 %10393
  %10395 = vrot.lane.b32.xlu0 %v10235, 78
  %v10396 = vpop.permute.xlu0 %10395
  %10397 = vrot.lane.b32.xlu0 %v10245, 78
  %v10398 = vpop.permute.xlu0 %10397
  %10399 = vrot.lane.b32.xlu0 %v10255, 78
  %v10400 = vpop.permute.xlu0 %10399
  %vm10405 = vcmask 1048448
  %10406 = vst.msk [vmem:[%s8] sm:$0xff] %vm10405, %v10394
  %10407 = vst.msk [vmem:[%s8 + $0x10] sm:$0xff] %vm10405, %v10396
  %10408 = vst.msk [vmem:[%s8 + $0x20] sm:$0xff] %vm10405, %v10398
  %10409 = vst.msk [vmem:[%s8 + $0x30] sm:$0xff] %vm10405, %v10400
  %10410 = vrot.lane.b32.xlu0 %v10225, 62
  %v10411 = vpop.permute.xlu0 %10410
  %10412 = vrot.lane.b32.xlu0 %v10235, 62
  %v10413 = vpop.permute.xlu0 %10412
  %10414 = vrot.lane.b32.xlu0 %v10245, 62
  %v10415 = vpop.permute.xlu0 %10414
  %10416 = vrot.lane.b32.xlu0 %v10255, 62
  %v10417 = vpop.permute.xlu0 %10416
  %10422 = vst.msk [vmem:[%s8 + $0x8] sm:$0xff] %vm8864, %v10411
  %10423 = vst.msk [vmem:[%s8 + $0x18] sm:$0xff] %vm8864, %v10413
  %10424 = vst.msk [vmem:[%s8 + $0x28] sm:$0xff] %vm8864, %v10415
  %10425 = vst.msk [vmem:[%s8 + $0x38] sm:$0xff] %vm8864, %v10417
  %10426 = vrot.lane.b32.xlu0 %v10225, 46
  %v10427 = vpop.permute.xlu0 %10426
  %10428 = vrot.lane.b32.xlu0 %v10235, 46
  %v10429 = vpop.permute.xlu0 %10428
  %10430 = vrot.lane.b32.xlu0 %v10245, 46
  %v10431 = vpop.permute.xlu0 %10430
  %10432 = vrot.lane.b32.xlu0 %v10255, 46
  %v10433 = vpop.permute.xlu0 %10432
  %10438 = vst.msk [vmem:[%s8 + $0x8] sm:$0xff] %vm10295, %v10427
  %10439 = vst.msk [vmem:[%s8 + $0x18] sm:$0xff] %vm10295, %v10429
  %10440 = vst.msk [vmem:[%s8 + $0x28] sm:$0xff] %vm10295, %v10431
  %10441 = vst.msk [vmem:[%s8 + $0x38] sm:$0xff] %vm10295, %v10433
  %10446 = vrot.lane.b32.xlu0 %v10226, 30
  %v10447 = vpop.permute.xlu0 %10446
  %10448 = vrot.lane.b32.xlu0 %v10236, 30
  %v10449 = vpop.permute.xlu0 %10448
  %10450 = vrot.lane.b32.xlu0 %v10246, 30
  %v10451 = vpop.permute.xlu0 %10450
  %10452 = vrot.lane.b32.xlu0 %v10256, 30
  %v10453 = vpop.permute.xlu0 %10452
  %10458 = vst.msk [vmem:[%s8 + $0x8] sm:$0xff] %vm10316, %v10447
  %10459 = vst.msk [vmem:[%s8 + $0x18] sm:$0xff] %vm10316, %v10449
  %10460 = vst.msk [vmem:[%s8 + $0x28] sm:$0xff] %vm10316, %v10451
  %10461 = vst.msk [vmem:[%s8 + $0x38] sm:$0xff] %vm10316, %v10453
  %10462 = vrot.lane.b32.xlu0 %v10226, 14
  %v10463 = vpop.permute.xlu0 %10462
  %10464 = vrot.lane.b32.xlu0 %v10236, 14
  %v10465 = vpop.permute.xlu0 %10464
  %10466 = vrot.lane.b32.xlu0 %v10246, 14
  %v10467 = vpop.permute.xlu0 %10466
  %10468 = vrot.lane.b32.xlu0 %v10256, 14
  %v10469 = vpop.permute.xlu0 %10468
  %10474 = vst.msk [vmem:[%s8 + $0x8] sm:$0xff] %vm10333, %v10463
  %10475 = vst.msk [vmem:[%s8 + $0x18] sm:$0xff] %vm10333, %v10465
  %10476 = vst.msk [vmem:[%s8 + $0x28] sm:$0xff] %vm10333, %v10467
  %10477 = vst.msk [vmem:[%s8 + $0x38] sm:$0xff] %vm10333, %v10469
  %10478 = vrot.lane.b32.xlu0 %v10226, 126
  %v10479 = vpop.permute.xlu0 %10478
  %10480 = vrot.lane.b32.xlu0 %v10236, 126
  %v10481 = vpop.permute.xlu0 %10480
  %10482 = vrot.lane.b32.xlu0 %v10246, 126
  %v10483 = vpop.permute.xlu0 %10482
  %10484 = vrot.lane.b32.xlu0 %v10256, 126
  %v10485 = vpop.permute.xlu0 %10484
  %10490 = vst.msk [vmem:[%s8 + $0x8] sm:$0xff] %vm10350, %v10479
  %10491 = vst.msk [vmem:[%s8 + $0x18] sm:$0xff] %vm10350, %v10481
  %10492 = vst.msk [vmem:[%s8 + $0x28] sm:$0xff] %vm10350, %v10483
  %10493 = vst.msk [vmem:[%s8 + $0x38] sm:$0xff] %vm10350, %v10485
  %10494 = vrot.lane.b32.xlu0 %v10226, 110
  %v10495 = vpop.permute.xlu0 %10494
  %10496 = vrot.lane.b32.xlu0 %v10236, 110
  %v10497 = vpop.permute.xlu0 %10496
  %10498 = vrot.lane.b32.xlu0 %v10246, 110
  %v10499 = vpop.permute.xlu0 %10498
  %10500 = vrot.lane.b32.xlu0 %v10256, 110
  %v10501 = vpop.permute.xlu0 %10500
  %10506 = vst.msk [vmem:[%s8 + $0x8] sm:$0xff] %vm10367, %v10495
  %10507 = vst.msk [vmem:[%s8 + $0x18] sm:$0xff] %vm10367, %v10497
  %10508 = vst.msk [vmem:[%s8 + $0x28] sm:$0xff] %vm10367, %v10499
  %10509 = vst.msk [vmem:[%s8 + $0x38] sm:$0xff] %vm10367, %v10501
  %10514 = vrot.lane.b32.xlu0 %v10227, 94
  %v10515 = vpop.permute.xlu0 %10514
  %10516 = vrot.lane.b32.xlu0 %v10237, 94
  %v10517 = vpop.permute.xlu0 %10516
  %10518 = vrot.lane.b32.xlu0 %v10247, 94
  %v10519 = vpop.permute.xlu0 %10518
  %10520 = vrot.lane.b32.xlu0 %v10257, 94
  %v10521 = vpop.permute.xlu0 %10520
  %10526 = vst.msk [vmem:[%s8 + $0x8] sm:$0xff] %vm10388, %v10515
  %10527 = vst.msk [vmem:[%s8 + $0x18] sm:$0xff] %vm10388, %v10517
  %10528 = vst.msk [vmem:[%s8 + $0x28] sm:$0xff] %vm10388, %v10519
  %10529 = vst.msk [vmem:[%s8 + $0x38] sm:$0xff] %vm10388, %v10521
  %10530 = vrot.lane.b32.xlu0 %v10227, 78
  %v10531 = vpop.permute.xlu0 %10530
  %10532 = vrot.lane.b32.xlu0 %v10237, 78
  %v10533 = vpop.permute.xlu0 %10532
  %10534 = vrot.lane.b32.xlu0 %v10247, 78
  %v10535 = vpop.permute.xlu0 %10534
  %10536 = vrot.lane.b32.xlu0 %v10257, 78
  %v10537 = vpop.permute.xlu0 %10536
  %10542 = vst.msk [vmem:[%s8 + $0x8] sm:$0xff] %vm10405, %v10531
  %10543 = vst.msk [vmem:[%s8 + $0x18] sm:$0xff] %vm10405, %v10533
  %10544 = vst.msk [vmem:[%s8 + $0x28] sm:$0xff] %vm10405, %v10535
  %10545 = vst.msk [vmem:[%s8 + $0x38] sm:$0xff] %vm10405, %v10537
  %10550 = vrot.lane.b32.xlu0 %v10228, 62
  %v10551 = vpop.permute.xlu0 %10550
  %10552 = vrot.lane.b32.xlu0 %v10238, 62
  %v10553 = vpop.permute.xlu0 %10552
  %10554 = vrot.lane.b32.xlu0 %v10248, 62
  %v10555 = vpop.permute.xlu0 %10554
  %10556 = vrot.lane.b32.xlu0 %v10258, 62
  %v10557 = vpop.permute.xlu0 %10556
  %s10562 = scalar_lea.vmem %s8, 64
  %10563 = vst.msk [vmem:[%s10562] sm:$0xff] %vm8864, %v10551
  %10564 = vst.msk [vmem:[%s10562 + $0x10] sm:$0xff] %vm8864, %v10553
  %10565 = vst.msk [vmem:[%s10562 + $0x20] sm:$0xff] %vm8864, %v10555
  %10566 = vst.msk [vmem:[%s10562 + $0x30] sm:$0xff] %vm8864, %v10557
  %10567 = vrot.lane.b32.xlu0 %v10228, 46
  %v10568 = vpop.permute.xlu0 %10567
  %10569 = vrot.lane.b32.xlu0 %v10238, 46
  %v10570 = vpop.permute.xlu0 %10569
  %10571 = vrot.lane.b32.xlu0 %v10248, 46
  %v10572 = vpop.permute.xlu0 %10571
  %10573 = vrot.lane.b32.xlu0 %v10258, 46
  %v10574 = vpop.permute.xlu0 %10573
  %10579 = vst.msk [vmem:[%s10562] sm:$0xff] %vm10295, %v10568
  %10580 = vst.msk [vmem:[%s10562 + $0x10] sm:$0xff] %vm10295, %v10570
  %10581 = vst.msk [vmem:[%s10562 + $0x20] sm:$0xff] %vm10295, %v10572
  %10582 = vst.msk [vmem:[%s10562 + $0x30] sm:$0xff] %vm10295, %v10574
  %10587 = vrot.lane.b32.xlu0 %v10229, 30
  %v10588 = vpop.permute.xlu0 %10587
  %10589 = vrot.lane.b32.xlu0 %v10239, 30
  %v10590 = vpop.permute.xlu0 %10589
  %10591 = vrot.lane.b32.xlu0 %v10249, 30
  %v10592 = vpop.permute.xlu0 %10591
  %10593 = vrot.lane.b32.xlu0 %v10259, 30
  %v10594 = vpop.permute.xlu0 %10593
  %10599 = vst.msk [vmem:[%s10562] sm:$0xff] %vm10316, %v10588
  %10600 = vst.msk [vmem:[%s10562 + $0x10] sm:$0xff] %vm10316, %v10590
  %10601 = vst.msk [vmem:[%s10562 + $0x20] sm:$0xff] %vm10316, %v10592
  %10602 = vst.msk [vmem:[%s10562 + $0x30] sm:$0xff] %vm10316, %v10594
  %10603 = vrot.lane.b32.xlu0 %v10229, 14
  %v10604 = vpop.permute.xlu0 %10603
  %10605 = vrot.lane.b32.xlu0 %v10239, 14
  %v10606 = vpop.permute.xlu0 %10605
  %10607 = vrot.lane.b32.xlu0 %v10249, 14
  %v10608 = vpop.permute.xlu0 %10607
  %10609 = vrot.lane.b32.xlu0 %v10259, 14
  %v10610 = vpop.permute.xlu0 %10609
  %10615 = vst.msk [vmem:[%s10562] sm:$0xff] %vm10333, %v10604
  %10616 = vst.msk [vmem:[%s10562 + $0x10] sm:$0xff] %vm10333, %v10606
  %10617 = vst.msk [vmem:[%s10562 + $0x20] sm:$0xff] %vm10333, %v10608
  %10618 = vst.msk [vmem:[%s10562 + $0x30] sm:$0xff] %vm10333, %v10610
  %10619 = vrot.lane.b32.xlu0 %v10229, 126
  %v10620 = vpop.permute.xlu0 %10619
  %10621 = vrot.lane.b32.xlu0 %v10239, 126
  %v10622 = vpop.permute.xlu0 %10621
  %10623 = vrot.lane.b32.xlu0 %v10249, 126
  %v10624 = vpop.permute.xlu0 %10623
  %10625 = vrot.lane.b32.xlu0 %v10259, 126
  %v10626 = vpop.permute.xlu0 %10625
  %10631 = vst.msk [vmem:[%s10562] sm:$0xff] %vm10350, %v10620
  %10632 = vst.msk [vmem:[%s10562 + $0x10] sm:$0xff] %vm10350, %v10622
  %10633 = vst.msk [vmem:[%s10562 + $0x20] sm:$0xff] %vm10350, %v10624
  %10634 = vst.msk [vmem:[%s10562 + $0x30] sm:$0xff] %vm10350, %v10626
  %10635 = vrot.lane.b32.xlu0 %v10229, 110
  %v10636 = vpop.permute.xlu0 %10635
  %10637 = vrot.lane.b32.xlu0 %v10239, 110
  %v10638 = vpop.permute.xlu0 %10637
  %10639 = vrot.lane.b32.xlu0 %v10249, 110
  %v10640 = vpop.permute.xlu0 %10639
  %10641 = vrot.lane.b32.xlu0 %v10259, 110
  %v10642 = vpop.permute.xlu0 %10641
  %10647 = vst.msk [vmem:[%s10562] sm:$0xff] %vm10367, %v10636
  %10648 = vst.msk [vmem:[%s10562 + $0x10] sm:$0xff] %vm10367, %v10638
  %10649 = vst.msk [vmem:[%s10562 + $0x20] sm:$0xff] %vm10367, %v10640
  %10650 = vst.msk [vmem:[%s10562 + $0x30] sm:$0xff] %vm10367, %v10642
  %10655 = vrot.lane.b32.xlu0 %v10230, 94
  %v10656 = vpop.permute.xlu0 %10655
  %10657 = vrot.lane.b32.xlu0 %v10240, 94
  %v10658 = vpop.permute.xlu0 %10657
  %10659 = vrot.lane.b32.xlu0 %v10250, 94
  %v10660 = vpop.permute.xlu0 %10659
  %10661 = vrot.lane.b32.xlu0 %v10260, 94
  %v10662 = vpop.permute.xlu0 %10661
  %10667 = vst.msk [vmem:[%s10562] sm:$0xff] %vm10388, %v10656
  %10668 = vst.msk [vmem:[%s10562 + $0x10] sm:$0xff] %vm10388, %v10658
  %10669 = vst.msk [vmem:[%s10562 + $0x20] sm:$0xff] %vm10388, %v10660
  %10670 = vst.msk [vmem:[%s10562 + $0x30] sm:$0xff] %vm10388, %v10662
  %10671 = vrot.lane.b32.xlu0 %v10230, 78
  %v10672 = vpop.permute.xlu0 %10671
  %10673 = vrot.lane.b32.xlu0 %v10240, 78
  %v10674 = vpop.permute.xlu0 %10673
  %10675 = vrot.lane.b32.xlu0 %v10250, 78
  %v10676 = vpop.permute.xlu0 %10675
  %10677 = vrot.lane.b32.xlu0 %v10260, 78
  %v10678 = vpop.permute.xlu0 %10677
  %10683 = vst.msk [vmem:[%s10562] sm:$0xff] %vm10405, %v10672
  %10684 = vst.msk [vmem:[%s10562 + $0x10] sm:$0xff] %vm10405, %v10674
  %10685 = vst.msk [vmem:[%s10562 + $0x20] sm:$0xff] %vm10405, %v10676
  %10686 = vst.msk [vmem:[%s10562 + $0x30] sm:$0xff] %vm10405, %v10678
  %10687 = vrot.lane.b32.xlu0 %v10230, 62
  %v10688 = vpop.permute.xlu0 %10687
  %10689 = vrot.lane.b32.xlu0 %v10240, 62
  %v10690 = vpop.permute.xlu0 %10689
  %10691 = vrot.lane.b32.xlu0 %v10250, 62
  %v10692 = vpop.permute.xlu0 %10691
  %10693 = vrot.lane.b32.xlu0 %v10260, 62
  %v10694 = vpop.permute.xlu0 %10693
  %10699 = vst.msk [vmem:[%s10562 + $0x8] sm:$0xff] %vm8864, %v10688
  %10700 = vst.msk [vmem:[%s10562 + $0x18] sm:$0xff] %vm8864, %v10690
  %10701 = vst.msk [vmem:[%s10562 + $0x28] sm:$0xff] %vm8864, %v10692
  %10702 = vst.msk [vmem:[%s10562 + $0x38] sm:$0xff] %vm8864, %v10694
  %10703 = vrot.lane.b32.xlu0 %v10230, 46
  %v10704 = vpop.permute.xlu0 %10703
  %10705 = vrot.lane.b32.xlu0 %v10240, 46
  %v10706 = vpop.permute.xlu0 %10705
  %10707 = vrot.lane.b32.xlu0 %v10250, 46
  %v10708 = vpop.permute.xlu0 %10707
  %10709 = vrot.lane.b32.xlu0 %v10260, 46
  %v10710 = vpop.permute.xlu0 %10709
  %10715 = vst.msk [vmem:[%s10562 + $0x8] sm:$0xff] %vm10295, %v10704
  %10716 = vst.msk [vmem:[%s10562 + $0x18] sm:$0xff] %vm10295, %v10706
  %10717 = vst.msk [vmem:[%s10562 + $0x28] sm:$0xff] %vm10295, %v10708
  %10718 = vst.msk [vmem:[%s10562 + $0x38] sm:$0xff] %vm10295, %v10710
  %10723 = vrot.lane.b32.xlu0 %v10231, 30
  %v10724 = vpop.permute.xlu0 %10723
  %10725 = vrot.lane.b32.xlu0 %v10241, 30
  %v10726 = vpop.permute.xlu0 %10725
  %10727 = vrot.lane.b32.xlu0 %v10251, 30
  %v10728 = vpop.permute.xlu0 %10727
  %10729 = vrot.lane.b32.xlu0 %v10261, 30
  %v10730 = vpop.permute.xlu0 %10729
  %10735 = vst.msk [vmem:[%s10562 + $0x8] sm:$0xff] %vm10316, %v10724
  %10736 = vst.msk [vmem:[%s10562 + $0x18] sm:$0xff] %vm10316, %v10726
  %10737 = vst.msk [vmem:[%s10562 + $0x28] sm:$0xff] %vm10316, %v10728
  %10738 = vst.msk [vmem:[%s10562 + $0x38] sm:$0xff] %vm10316, %v10730
  %10739 = vrot.lane.b32.xlu0 %v10231, 14
  %v10740 = vpop.permute.xlu0 %10739
  %10741 = vrot.lane.b32.xlu0 %v10241, 14
  %v10742 = vpop.permute.xlu0 %10741
  %10743 = vrot.lane.b32.xlu0 %v10251, 14
  %v10744 = vpop.permute.xlu0 %10743
  %10745 = vrot.lane.b32.xlu0 %v10261, 14
  %v10746 = vpop.permute.xlu0 %10745
  %10751 = vst.msk [vmem:[%s10562 + $0x8] sm:$0xff] %vm10333, %v10740
  %10752 = vst.msk [vmem:[%s10562 + $0x18] sm:$0xff] %vm10333, %v10742
  %10753 = vst.msk [vmem:[%s10562 + $0x28] sm:$0xff] %vm10333, %v10744
  %10754 = vst.msk [vmem:[%s10562 + $0x38] sm:$0xff] %vm10333, %v10746
  %10755 = vrot.lane.b32.xlu0 %v10231, 126
  %v10756 = vpop.permute.xlu0 %10755
  %10757 = vrot.lane.b32.xlu0 %v10241, 126
  %v10758 = vpop.permute.xlu0 %10757
  %10759 = vrot.lane.b32.xlu0 %v10251, 126
  %v10760 = vpop.permute.xlu0 %10759
  %10761 = vrot.lane.b32.xlu0 %v10261, 126
  %v10762 = vpop.permute.xlu0 %10761
  %10767 = vst.msk [vmem:[%s10562 + $0x8] sm:$0xff] %vm10350, %v10756
  %10768 = vst.msk [vmem:[%s10562 + $0x18] sm:$0xff] %vm10350, %v10758
  %10769 = vst.msk [vmem:[%s10562 + $0x28] sm:$0xff] %vm10350, %v10760
  %10770 = vst.msk [vmem:[%s10562 + $0x38] sm:$0xff] %vm10350, %v10762
  %10771 = vrot.lane.b32.xlu0 %v10231, 110
  %v10772 = vpop.permute.xlu0 %10771
  %10773 = vrot.lane.b32.xlu0 %v10241, 110
  %v10774 = vpop.permute.xlu0 %10773
  %10775 = vrot.lane.b32.xlu0 %v10251, 110
  %v10776 = vpop.permute.xlu0 %10775
  %10777 = vrot.lane.b32.xlu0 %v10261, 110
  %v10778 = vpop.permute.xlu0 %10777
  %10783 = vst.msk [vmem:[%s10562 + $0x8] sm:$0xff] %vm10367, %v10772
  %10784 = vst.msk [vmem:[%s10562 + $0x18] sm:$0xff] %vm10367, %v10774
  %10785 = vst.msk [vmem:[%s10562 + $0x28] sm:$0xff] %vm10367, %v10776
  %10786 = vst.msk [vmem:[%s10562 + $0x38] sm:$0xff] %vm10367, %v10778
  %10791 = vrot.lane.b32.xlu0 %v10232, 94
  %v10792 = vpop.permute.xlu0 %10791
  %10793 = vrot.lane.b32.xlu0 %v10242, 94
  %v10794 = vpop.permute.xlu0 %10793
  %10795 = vrot.lane.b32.xlu0 %v10252, 94
  %v10796 = vpop.permute.xlu0 %10795
  %10797 = vrot.lane.b32.xlu0 %v10262, 94
  %v10798 = vpop.permute.xlu0 %10797
  %10803 = vst.msk [vmem:[%s10562 + $0x8] sm:$0xff] %vm10388, %v10792
  %10804 = vst.msk [vmem:[%s10562 + $0x18] sm:$0xff] %vm10388, %v10794
  %10805 = vst.msk [vmem:[%s10562 + $0x28] sm:$0xff] %vm10388, %v10796
  %10806 = vst.msk [vmem:[%s10562 + $0x38] sm:$0xff] %vm10388, %v10798
  %10807 = vrot.lane.b32.xlu0 %v10232, 78
  %v10808 = vpop.permute.xlu0 %10807
  %10809 = vrot.lane.b32.xlu0 %v10242, 78
  %v10810 = vpop.permute.xlu0 %10809
  %10811 = vrot.lane.b32.xlu0 %v10252, 78
  %v10812 = vpop.permute.xlu0 %10811
  %10813 = vrot.lane.b32.xlu0 %v10262, 78
  %v10814 = vpop.permute.xlu0 %10813
  %10819 = vst.msk [vmem:[%s10562 + $0x8] sm:$0xff] %vm10405, %v10808
  %10820 = vst.msk [vmem:[%s10562 + $0x18] sm:$0xff] %vm10405, %v10810
  %10821 = vst.msk [vmem:[%s10562 + $0x28] sm:$0xff] %vm10405, %v10812
  %10822 = vst.msk [vmem:[%s10562 + $0x38] sm:$0xff] %vm10405, %v10814
  // Predicated region
  $region34: #{b_decoder_conv_forward.1} parent=0 // pred_check
    _
  $region35: #{b_decoder_conv_forward.1} parent=0 // pred_check_branch
    %10824 = sbr.rel (0) target = $region37
  $region36: #{b_decoder_conv_forward.1} parent=0 // pred_region
    _
  $region37: #{b_decoder_conv_forward.1} parent=0 // pred_fallthru
    _
  // Predicated region
  $region38: #{b_decoder_conv_forward.1} parent=0 // pred_check
    _
  $region39: #{b_decoder_conv_forward.1} parent=0 // pred_check_branch
    %10826 = sbr.rel (0) target = $region41
  $region40: #{b_decoder_conv_forward.1} parent=0 // pred_region
    _
  $region41: #{b_decoder_conv_forward.1} parent=0 // pred_fallthru
    _

</llo_original>
